<compile_context>
chip_gen: v6e
topology: v6e:2x2x1
jax: 0.10.0
libtpu: 0.0.40
codegen_flags: <defaults>
</compile_context>

<pallas_src>
import math
from functools import partial

import jax
import jax.numpy as jnp
from jax import lax
from jax.experimental import pallas as pl
from jax.experimental.pallas import tpu as pltpu


def _layernorm(x, g, b, eps=1e-5):
    mu = jnp.mean(x, axis=-1, keepdims=True)
    xc = x - mu
    var = jnp.mean(xc * xc, axis=-1, keepdims=True)
    inv = lax.rsqrt(var + eps)
    return xc * inv * g + b


def _gelu_exact(x):
    # PyTorch nn.GELU() default = exact erf formulation
    return 0.5 * x * (1.0 + lax.erf(x * (1.0 / math.sqrt(2.0))))


# row indices of the packed (1, E) parameters inside `pvec`
_BQ, _BK, _BV, _BO, _B2, _LN1G, _LN1B, _LN2G, _LN2B = range(9)
_PVEC_ROWS = 16            # padded to a clean (8k, 128) tile


def encoder_stack_kernel(x_ref, bias_ref,
                         wq_ref, wk_ref, wv_ref, wo_ref, w1_ref, w2_ref,
                         pvec_ref, b1_ref,
                         o_ref, act_ref, ctx_ref,
                         *, n_heads, approx_softmax):
    """Grid = (batch tile b, layer l).

    x_ref / o_ref : (Bt*S, E)  activation block (constant across the layer axis)
    bias_ref      : (Bt, 1, S) additive key-mask bias (0 = valid, -1e9 = pad)
    w*_ref        : per-layer bf16 matmul weights (pipelined across the layer axis)
    pvec_ref      : (16, E) f32 packed [bq bk bv bo b2 ln1g ln1b ln2g ln2b, pad...]
    b1_ref        : (1, hid) f32
    act_ref       : (Bt*S, E) f32 activation carry (resident across layers)
    ctx_ref       : (Bt*S, E) bf16 per-head context staging buffer
    """
    l = pl.program_id(1)
    bt, _, S = bias_ref.shape
    M, E = act_ref.shape
    Dh = E // n_heads
    scale = 1.0 / math.sqrt(Dh)
    bf16, f32 = jnp.bfloat16, jnp.float32

    # Layer 0 of each batch tile: load the input activation into the VMEM carry.
    @pl.when(l == 0)
    def _():
        act_ref[...] = x_ref[...].astype(f32)

    x = act_ref[...]                               # (M, E) f32
    pvec = pvec_ref[...]                           # (16, E) f32

    def recip(v):
        if approx_softmax:
            return pl.reciprocal(v, approx=True)   # EUP slot, ~free
        return 1.0 / v

    # --- QKV projections: (Bt*S, E) x (E, E) bf16 matmuls, f32 accumulation ---
    x_b = x.astype(bf16)
    q = jnp.dot(x_b, wq_ref[...], preferred_element_type=f32) + pvec[_BQ:_BQ + 1]
    k = jnp.dot(x_b, wk_ref[...], preferred_element_type=f32) + pvec[_BK:_BK + 1]
    v = jnp.dot(x_b, wv_ref[...], preferred_element_type=f32) + pvec[_BV:_BV + 1]
    q = q * scale                                  # fold 1/sqrt(Dh) once into q

    q_b = q.astype(bf16)
    k_b = k.astype(bf16)
    v_b = v.astype(bf16)

    # --- attention: per-row (never mixes batch rows), per-head score/PV on the MXU.
    # Each head's context is staged at its lane offset; a single full-depth output
    # projection follows the loops.
    for r in range(bt):
        r0 = r * S
        bias_row = bias_ref[r]                     # (1, S) additive bias (sublane bcast)
        qr = q_b[r0:r0 + S, :]
        kr = k_b[r0:r0 + S, :]
        vr = v_b[r0:r0 + S, :]
        for h in range(n_heads):
            lo = h * Dh
            qh = qr[:, lo:lo + Dh]                 # (S, Dh)
            kh = kr[:, lo:lo + Dh]
            vh = vr[:, lo:lo + Dh]
            # contract over Dh directly -> no explicit kh.T
            # TODO(synk): check MLIR for a per-head vxpose; if present, pre-transpose
            #             k once per layer instead.
            s = lax.dot_general(qh, kh, (((1,), (1,)), ((), ())),
                                preferred_element_type=f32)          # (S, S)
            s = s + bias_row
            s = s - jnp.max(s, axis=-1, keepdims=True)
            p = jnp.exp(s)
            inv = recip(jnp.sum(p, axis=-1, keepdims=True))
            ctx = jnp.dot(p.astype(bf16), vh, preferred_element_type=f32) * inv
            ctx_ref[r0:r0 + S, lo:lo + Dh] = ctx.astype(bf16)

    # one full-depth (M, E) x (E, E) output projection
    atn = jnp.dot(ctx_ref[...], wo_ref[...], preferred_element_type=f32) + pvec[_BO:_BO + 1]

    # residual + LayerNorm 1 (dropout1 = identity at inference)
    h1 = _layernorm(atn + x, pvec[_LN1G:_LN1G + 1], pvec[_LN1B:_LN1B + 1])

    # feed-forward: Linear -> GELU(exact erf) -> Linear
    ff = jnp.dot(h1.astype(bf16), w1_ref[...], preferred_element_type=f32) + b1_ref[...]
    ff = _gelu_exact(ff)
    ff = jnp.dot(ff.astype(bf16), w2_ref[...], preferred_element_type=f32) + pvec[_B2:_B2 + 1]

    # residual + LayerNorm 2 (dropout2 = identity at inference)
    out = _layernorm(ff + h1, pvec[_LN2G:_LN2G + 1], pvec[_LN2B:_LN2B + 1])
    act_ref[...] = out                             # carry to the next layer

    # last layer: emit this batch tile's output
    @pl.when(l == pl.num_programs(1) - 1)
    def _():
        o_ref[...] = out.astype(o_ref.dtype)


def transformer_encoder(x, mask, blocks, n_heads, *,
                        block_batch=None, approx_softmax=True):
    """x: (B, S, E) f32, mask: (B, S, 1) (1 = valid, 0 = pad) or None -> (B, S, E)."""
    B, S, E = x.shape
    L = len(blocks)
    hid = blocks[0]["w1"].shape[1]
    assert E % n_heads == 0
    assert S % 8 == 0, "seq_len must be a multiple of 8 (sublane tiling)"
    bf16, f32 = jnp.bfloat16, jnp.float32

    # batch tile: aim for bt*S rows >= 128 per MXU pass (~256 target)
    if block_batch is None:
        block_batch = max(1, min(B, pl.cdiv(256, S)))
    bt = block_batch
    Bp = pl.cdiv(B, bt) * bt

    # additive key-mask bias, hoisted out of the per-layer loop
    if mask is None:
        bias = jnp.zeros((B, 1, S), f32)
    else:
        key_mask = jnp.transpose(mask, (0, 2, 1)).astype(f32)        # (B, 1, S)
        bias = jnp.where(key_mask > 0, 0.0, -1e9).astype(f32)
    if Bp != B:
        pad = Bp - B
        x = jnp.pad(x, ((0, pad), (0, 0), (0, 0)))
        bias = jnp.pad(bias, ((0, pad), (0, 0), (0, 0)))             # pad rows = all valid

    x2 = x.reshape(Bp * S, E)

    def stack(nm, dtype):
        return jnp.stack([blk[nm] for blk in blocks]).astype(dtype)

    # big matmul weights in bf16 (halves weight DMA / residency); small params packed f32
    wq = stack("wq", bf16); wk = stack("wk", bf16)
    wv = stack("wv", bf16); wo = stack("wo", bf16)
    w1 = stack("w1", bf16); w2 = stack("w2", bf16)
    pvec = jnp.concatenate(
        [stack("bq", f32), stack("bk", f32), stack("bv", f32), stack("bo", f32),
         stack("b2", f32),
         stack("ln1_g", f32), stack("ln1_b", f32),
         stack("ln2_g", f32), stack("ln2_b", f32)], axis=1)          # (L, 9, E)
    pvec = jnp.pad(pvec, ((0, 0), (0, _PVEC_ROWS - pvec.shape[1]), (0, 0)))  # (L, 16, E)
    b1 = stack("b1", f32)                                            # (L, 1, hid)

    def layer(*shape):   # per-layer operand, pipelined across the layer grid axis
        nd = len(shape)
        return pl.BlockSpec((None,) + shape, lambda b, l, nd=nd: (l,) + (0,) * nd)

    in_specs = [
        pl.BlockSpec((bt * S, E), lambda b, l: (b, 0)),       # activations
        pl.BlockSpec((bt, 1, S), lambda b, l: (b, 0, 0)),     # key-mask bias
        layer(E, E), layer(E, E), layer(E, E), layer(E, E),   # wq wk wv wo
        layer(E, hid), layer(hid, E),                         # w1 w2
        layer(_PVEC_ROWS, E),                                 # packed biases / LN params
        layer(1, hid),                                        # b1
    ]

    # explicit VMEM budget: double-buffered per-layer weights + activation blocks +
    # scratch, with ~4x headroom, clamped well under every generation's physical VMEM.
    wbytes = (4 * E * E + 2 * E * hid) * 2                    # bf16 per-layer weights
    pbytes = (_PVEC_ROWS * E + hid) * 4
    abytes = bt * S * E * 4
    footprint = 2 * (wbytes + pbytes) + 4 * abytes + abytes + bt * S * E * 2
    vmem_limit = int(min(100 * 2**20, max(32 * 2**20, 4 * footprint)))

    out = pl.pallas_call(
        partial(encoder_stack_kernel, n_heads=n_heads, approx_softmax=approx_softmax),
        out_shape=jax.ShapeDtypeStruct((Bp * S, E), x.dtype),
        grid=(Bp // bt, L),
        in_specs=in_specs,
        out_specs=pl.BlockSpec((bt * S, E), lambda b, l: (b, 0)),
        scratch_shapes=[pltpu.VMEM((bt * S, E), jnp.float32),   # activation carry
                        pltpu.VMEM((bt * S, E), jnp.bfloat16)], # per-head ctx staging
        compiler_params=pltpu.CompilerParams(
            # TODO(synk): CORE_PARALLEL on the batch axis for v7x (2 TCs/chip).
            dimension_semantics=("parallel", "arbitrary"),
            vmem_limit_bytes=vmem_limit),
    )(x2, bias, wq, wk, wv, wo, w1, w2, pvec, b1)

    return out.reshape(Bp, S, E)[:B]


def init_block_params(key, emb_dim, hid_dim):
    ks = jax.random.split(key, 12)
    s_e = 1.0 / math.sqrt(emb_dim)
    s_h = 1.0 / math.sqrt(hid_dim)
    f32 = jnp.float32
    return {
        "wq": jax.random.normal(ks[0], (emb_dim, emb_dim), f32) * s_e,
        "bq": jax.random.normal(ks[1], (1, emb_dim), f32) * 0.01,
        "wk": jax.random.normal(ks[2], (emb_dim, emb_dim), f32) * s_e,
        "bk": jax.random.normal(ks[3], (1, emb_dim), f32) * 0.01,
        "wv": jax.random.normal(ks[4], (emb_dim, emb_dim), f32) * s_e,
        "bv": jax.random.normal(ks[5], (1, emb_dim), f32) * 0.01,
        "wo": jax.random.normal(ks[6], (emb_dim, emb_dim), f32) * s_e,
        "bo": jax.random.normal(ks[7], (1, emb_dim), f32) * 0.01,
        "ln1_g": jnp.ones((1, emb_dim), f32),
        "ln1_b": jnp.zeros((1, emb_dim), f32),
        "w1": jax.random.normal(ks[8], (emb_dim, hid_dim), f32) * s_e,
        "b1": jax.random.normal(ks[9], (1, hid_dim), f32) * 0.01,
        "w2": jax.random.normal(ks[10], (hid_dim, emb_dim), f32) * s_h,
        "b2": jax.random.normal(ks[11], (1, emb_dim), f32) * 0.01,
        "ln2_g": jnp.ones((1, emb_dim), f32),
        "ln2_b": jnp.zeros((1, emb_dim), f32),
    }


# ----------------- pure-JAX reference (mirrors bf16 matmul operands) -----------------
def _ref_block(x, mask, p, n_heads):
    B, S, E = x.shape
    Dh = E // n_heads
    bf16, f32 = jnp.bfloat16, jnp.float32

    def mm(a, w):
        return jnp.dot(a.astype(bf16), w.astype(bf16), preferred_element_type=f32)

    q = mm(x, p["wq"]) + p["bq"]
    k = mm(x, p["wk"]) + p["bk"]
    v = mm(x, p["wv"]) + p["bv"]
    q = q * (1.0 / math.sqrt(Dh))
    qh = q.reshape(B, S, n_heads, Dh).transpose(0, 2, 1, 3).astype(bf16)
    kh = k.reshape(B, S, n_heads, Dh).transpose(0, 2, 1, 3).astype(bf16)
    vh = v.reshape(B, S, n_heads, Dh).transpose(0, 2, 1, 3).astype(bf16)
    s = jnp.einsum("bhqd,bhkd->bhqk", qh, kh, preferred_element_type=f32)
    s = s + jnp.where(mask[:, :, 0][:, None, None, :] > 0, 0.0, -1e9)
    s = s - jnp.max(s, axis=-1, keepdims=True)
    pm = jnp.exp(s)
    ctx = jnp.einsum("bhqk,bhkd->bhqd", pm.astype(bf16), vh,
                     preferred_element_type=f32)
    ctx = ctx / jnp.sum(pm, axis=-1, keepdims=True)
    ctx = ctx.transpose(0, 2, 1, 3).reshape(B, S, E)
    atn = mm(ctx, p["wo"]) + p["bo"]
    h1 = _layernorm(atn + x, p["ln1_g"], p["ln1_b"])
    ff = mm(h1, p["w1"]) + p["b1"]
    ff = _gelu_exact(ff)
    ff = mm(ff, p["w2"]) + p["b2"]
    return _layernorm(ff + h1, p["ln2_g"], p["ln2_b"])


if __name__ == "__main__":
    # small but lane-dense shapes: E = 128 (full lane width), S multiple of 8.
    # B = 10 with block_batch = 8 exercises batch-tiling AND the batch-padding path.
    B, S, E, H, HID, N_BLOCKS = 10, 16, 128, 4, 256, 2

    key = jax.random.PRNGKey(0)
    kx, kp = jax.random.split(key, 2)
    x = jax.random.normal(kx, (B, S, E), jnp.float32)

    # padding mask (B, S, 1): 1 = valid token, 0 = padding
    lens = jnp.maximum(S - (jnp.arange(B) % 6), 1)
    mask = (jnp.arange(S)[None, :] < lens[:, None]).astype(jnp.float32)[..., None]

    pkeys = jax.random.split(kp, N_BLOCKS)
    blocks = [init_block_params(pkeys[i], E, HID) for i in range(N_BLOCKS)]

    y = transformer_encoder(x, mask, blocks, H, block_batch=8)
    y = jax.block_until_ready(y)

    # sanity check vs plain-JAX reference with matching bf16 matmul casts.
    # Tolerance loosened slightly for the EUP approximate softmax reciprocal.
    yr = x
    for p in blocks:
        yr = _ref_block(yr, mask, p, H)
    assert y.shape == (B, S, E)
    max_err = jnp.max(jnp.abs(y - yr))
    assert jnp.allclose(y, yr, atol=2e-2, rtol=2e-2), f"kernel mismatch: {max_err}"

    print("KERNEL_OK")
</pallas_src>

<mosaic_0001>
module attributes {stable_mosaic.version = 11 : i64} {
  func.func @encoder_stack_kernel(%arg0: i32, %arg1: i32, %arg2: memref<128x128xf32, #tpu.memory_space<vmem>>, %arg3: memref<8x1x16xf32, #tpu.memory_space<vmem>>, %arg4: memref<1x128x128xbf16, #tpu.memory_space<vmem>>, %arg5: memref<1x128x128xbf16, #tpu.memory_space<vmem>>, %arg6: memref<1x128x128xbf16, #tpu.memory_space<vmem>>, %arg7: memref<1x128x128xbf16, #tpu.memory_space<vmem>>, %arg8: memref<1x128x256xbf16, #tpu.memory_space<vmem>>, %arg9: memref<1x256x128xbf16, #tpu.memory_space<vmem>>, %arg10: memref<1x16x128xf32, #tpu.memory_space<vmem>>, %arg11: memref<1x1x256xf32, #tpu.memory_space<vmem>>, %arg12: memref<128x128xf32, #tpu.memory_space<vmem>>, %arg13: memref<128x128xf32, #tpu.memory_space<vmem>>, %arg14: memref<128x128xbf16, #tpu.memory_space<vmem>>) attributes {dimension_semantics = [#tpu.dimension_semantics<parallel>, #tpu.dimension_semantics<arbitrary>], iteration_bounds = array<i64: 2, 2>, scalar_prefetch = 0 : i64, scratch_operands = 2 : i64, tpu.core_type = #tpu.core_type<tc>, window_params = [{transform_indices = @transform_0, window_bounds = array<i64: 128, 128>}, {transform_indices = @transform_1, window_bounds = array<i64: 8, 1, 16>}, {transform_indices = @transform_2, window_bounds = array<i64: 1, 128, 128>}, {transform_indices = @transform_3, window_bounds = array<i64: 1, 128, 128>}, {transform_indices = @transform_4, window_bounds = array<i64: 1, 128, 128>}, {transform_indices = @transform_5, window_bounds = array<i64: 1, 128, 128>}, {transform_indices = @transform_6, window_bounds = array<i64: 1, 128, 256>}, {transform_indices = @transform_7, window_bounds = array<i64: 1, 256, 128>}, {transform_indices = @transform_8, window_bounds = array<i64: 1, 16, 128>}, {transform_indices = @transform_9, window_bounds = array<i64: 1, 1, 256>}, {transform_indices = @transform_10, window_bounds = array<i64: 128, 128>}]} {
    %c0_i32 = arith.constant 0 : i32
    %0 = arith.cmpi eq, %arg1, %c0_i32 : i32
    %1 = arith.extui %0 : i1 to i32
    %c0_i32_0 = arith.constant 0 : i32
    %2 = arith.cmpi ne, %1, %c0_i32_0 : i32
    scf.if %2 {
      %c0_252 = arith.constant 0 : index
      %c0_253 = arith.constant 0 : index
      %790 = vector.load %arg2[%c0_252, %c0_253] : memref<128x128xf32, #tpu.memory_space<vmem>>, vector<128x128xf32>
      %c0_254 = arith.constant 0 : index
      %c0_255 = arith.constant 0 : index
      %791 = vector.load %arg13[%c0_254, %c0_255] : memref<128x128xf32, #tpu.memory_space<vmem>>, vector<128x128xf32>
      tpu.vector_store %arg13[%c0_254, %c0_255], %790 {strides = array<i32>} : memref<128x128xf32, #tpu.memory_space<vmem>>, vector<128x128xf32>,
    } else {
    }
    %c0 = arith.constant 0 : index
    %c0_1 = arith.constant 0 : index
    %3 = vector.load %arg13[%c0, %c0_1] : memref<128x128xf32, #tpu.memory_space<vmem>>, vector<128x128xf32>
    %c0_2 = arith.constant 0 : index
    %c0_3 = arith.constant 0 : index
    %c0_4 = arith.constant 0 : index
    %4 = vector.load %arg10[%c0_2, %c0_3, %c0_4] : memref<1x16x128xf32, #tpu.memory_space<vmem>>, vector<1x16x128xf32>
    %5 = vector.shape_cast %4 : vector<1x16x128xf32> to vector<16x128xf32>
    %6 = arith.truncf %3 : vector<128x128xf32> to vector<128x128xbf16>
    %c0_5 = arith.constant 0 : index
    %c0_6 = arith.constant 0 : index
    %c0_7 = arith.constant 0 : index
    %7 = vector.load %arg4[%c0_5, %c0_6, %c0_7] : memref<1x128x128xbf16, #tpu.memory_space<vmem>>, vector<1x128x128xbf16>
    %8 = vector.shape_cast %7 : vector<1x128x128xbf16> to vector<128x128xbf16>
    %cst = arith.constant dense<0.000000e+00> : vector<128x128xf32>
    %9 = tpu.matmul %6, %8, %cst {dimension_numbers = #tpu.dot_dimension_numbers<[1], [0], [0], [1], [0, 0, 1, 1], [], []>} : vector<128x128xbf16>, vector<128x128xbf16>, vector<128x128xf32> -> vector<128x128xf32>
    %10 = vector.extract_strided_slice %5 {offsets = [0, 0], sizes = [1, 128], strides = [1, 1]} : vector<16x128xf32> to vector<1x128xf32>
    %11 = vector.broadcast %10 : vector<1x128xf32> to vector<128x128xf32>
    %12 = arith.addf %9, %11 : vector<128x128xf32>
    %c0_8 = arith.constant 0 : index
    %c0_9 = arith.constant 0 : index
    %c0_10 = arith.constant 0 : index
    %13 = vector.load %arg5[%c0_8, %c0_9, %c0_10] : memref<1x128x128xbf16, #tpu.memory_space<vmem>>, vector<1x128x128xbf16>
    %14 = vector.shape_cast %13 : vector<1x128x128xbf16> to vector<128x128xbf16>
    %cst_11 = arith.constant dense<0.000000e+00> : vector<128x128xf32>
    %15 = tpu.matmul %6, %14, %cst_11 {dimension_numbers = #tpu.dot_dimension_numbers<[1], [0], [0], [1], [0, 0, 1, 1], [], []>} : vector<128x128xbf16>, vector<128x128xbf16>, vector<128x128xf32> -> vector<128x128xf32>
    %16 = vector.extract_strided_slice %5 {offsets = [1, 0], sizes = [1, 128], strides = [1, 1]} : vector<16x128xf32> to vector<1x128xf32>
    %17 = vector.broadcast %16 : vector<1x128xf32> to vector<128x128xf32>
    %18 = arith.addf %15, %17 : vector<128x128xf32>
    %c0_12 = arith.constant 0 : index
    %c0_13 = arith.constant 0 : index
    %c0_14 = arith.constant 0 : index
    %19 = vector.load %arg6[%c0_12, %c0_13, %c0_14] : memref<1x128x128xbf16, #tpu.memory_space<vmem>>, vector<1x128x128xbf16>
    %20 = vector.shape_cast %19 : vector<1x128x128xbf16> to vector<128x128xbf16>
    %cst_15 = arith.constant dense<0.000000e+00> : vector<128x128xf32>
    %21 = tpu.matmul %6, %20, %cst_15 {dimension_numbers = #tpu.dot_dimension_numbers<[1], [0], [0], [1], [0, 0, 1, 1], [], []>} : vector<128x128xbf16>, vector<128x128xbf16>, vector<128x128xf32> -> vector<128x128xf32>
    %22 = vector.extract_strided_slice %5 {offsets = [2, 0], sizes = [1, 128], strides = [1, 1]} : vector<16x128xf32> to vector<1x128xf32>
    %23 = vector.broadcast %22 : vector<1x128xf32> to vector<128x128xf32>
    %24 = arith.addf %21, %23 : vector<128x128xf32>
    %cst_16 = arith.constant 0.176776692 : f32
    %25 = vector.broadcast %cst_16 : f32 to vector<128x128xf32>
    %26 = arith.mulf %12, %25 : vector<128x128xf32>
    %27 = arith.truncf %26 : vector<128x128xf32> to vector<128x128xbf16>
    %28 = arith.truncf %18 : vector<128x128xf32> to vector<128x128xbf16>
    %29 = arith.truncf %24 : vector<128x128xf32> to vector<128x128xbf16>
    %c0_17 = arith.constant 0 : index
    %c0_18 = arith.constant 0 : index
    %c0_19 = arith.constant 0 : index
    %30 = vector.load %arg3[%c0_17, %c0_18, %c0_19] : memref<8x1x16xf32, #tpu.memory_space<vmem>>, vector<1x1x16xf32>
    %31 = vector.shape_cast %30 : vector<1x1x16xf32> to vector<1x16xf32>
    %32 = vector.extract_strided_slice %27 {offsets = [0, 0], sizes = [16, 128], strides = [1, 1]} : vector<128x128xbf16> to vector<16x128xbf16>
    %33 = vector.extract_strided_slice %28 {offsets = [0, 0], sizes = [16, 128], strides = [1, 1]} : vector<128x128xbf16> to vector<16x128xbf16>
    %34 = vector.extract_strided_slice %29 {offsets = [0, 0], sizes = [16, 128], strides = [1, 1]} : vector<128x128xbf16> to vector<16x128xbf16>
    %35 = vector.extract_strided_slice %32 {offsets = [0, 0], sizes = [16, 32], strides = [1, 1]} : vector<16x128xbf16> to vector<16x32xbf16>
    %36 = vector.extract_strided_slice %33 {offsets = [0, 0], sizes = [16, 32], strides = [1, 1]} : vector<16x128xbf16> to vector<16x32xbf16>
    %37 = vector.extract_strided_slice %34 {offsets = [0, 0], sizes = [16, 32], strides = [1, 1]} : vector<16x128xbf16> to vector<16x32xbf16>
    %cst_20 = arith.constant dense<0.000000e+00> : vector<16x16xf32>
    %38 = tpu.matmul %35, %36, %cst_20 {dimension_numbers = #tpu.dot_dimension_numbers<[1], [1], [0], [0], [0, 0, 1, 0], [], []>} : vector<16x32xbf16>, vector<16x32xbf16>, vector<16x16xf32> -> vector<16x16xf32>
    %39 = vector.broadcast %31 : vector<1x16xf32> to vector<16x16xf32>
    %40 = arith.addf %38, %39 : vector<16x16xf32>
    %cst_21 = arith.constant dense<0xFF800000> : vector<16xf32>
    %41 = vector.multi_reduction <maximumf>, %40, %cst_21 [1] : vector<16x16xf32> to vector<16xf32>
    %42 = vector.shape_cast %41 : vector<16xf32> to vector<16x1xf32>
    %43 = vector.broadcast %42 : vector<16x1xf32> to vector<16x16xf32>
    %44 = arith.subf %40, %43 : vector<16x16xf32>
    %45 = math.exp %44 : vector<16x16xf32>
    %cst_22 = arith.constant dense<0.000000e+00> : vector<16xf32>
    %46 = vector.multi_reduction <add>, %45, %cst_22 [1] : vector<16x16xf32> to vector<16xf32>
    %47 = vector.shape_cast %46 : vector<16xf32> to vector<16x1xf32>
    %48 = tpu.reciprocal %47 {approx = true} : vector<16x1xf32> -> vector<16x1xf32>
    %49 = arith.truncf %45 : vector<16x16xf32> to vector<16x16xbf16>
    %cst_23 = arith.constant dense<0.000000e+00> : vector<16x32xf32>
    %50 = tpu.matmul %49, %37, %cst_23 {dimension_numbers = #tpu.dot_dimension_numbers<[1], [0], [0], [1], [0, 0, 1, 1], [], []>} : vector<16x16xbf16>, vector<16x32xbf16>, vector<16x32xf32> -> vector<16x32xf32>
    %51 = vector.broadcast %48 : vector<16x1xf32> to vector<16x32xf32>
    %52 = arith.mulf %50, %51 : vector<16x32xf32>
    %53 = arith.truncf %52 : vector<16x32xf32> to vector<16x32xbf16>
    %c0_24 = arith.constant 0 : index
    %c0_25 = arith.constant 0 : index
    %54 = vector.load %arg14[%c0_24, %c0_25] : memref<128x128xbf16, #tpu.memory_space<vmem>>, vector<16x32xbf16>
    tpu.vector_store %arg14[%c0_24, %c0_25], %53 {strides = array<i32>} : memref<128x128xbf16, #tpu.memory_space<vmem>>, vector<16x32xbf16>,
    %55 = vector.extract_strided_slice %32 {offsets = [0, 32], sizes = [16, 32], strides = [1, 1]} : vector<16x128xbf16> to vector<16x32xbf16>
    %56 = vector.extract_strided_slice %33 {offsets = [0, 32], sizes = [16, 32], strides = [1, 1]} : vector<16x128xbf16> to vector<16x32xbf16>
    %57 = vector.extract_strided_slice %34 {offsets = [0, 32], sizes = [16, 32], strides = [1, 1]} : vector<16x128xbf16> to vector<16x32xbf16>
    %cst_26 = arith.constant dense<0.000000e+00> : vector<16x16xf32>
    %58 = tpu.matmul %55, %56, %cst_26 {dimension_numbers = #tpu.dot_dimension_numbers<[1], [1], [0], [0], [0, 0, 1, 0], [], []>} : vector<16x32xbf16>, vector<16x32xbf16>, vector<16x16xf32> -> vector<16x16xf32>
    %59 = vector.broadcast %31 : vector<1x16xf32> to vector<16x16xf32>
    %60 = arith.addf %58, %59 : vector<16x16xf32>
    %cst_27 = arith.constant dense<0xFF800000> : vector<16xf32>
    %61 = vector.multi_reduction <maximumf>, %60, %cst_27 [1] : vector<16x16xf32> to vector<16xf32>
    %62 = vector.shape_cast %61 : vector<16xf32> to vector<16x1xf32>
    %63 = vector.broadcast %62 : vector<16x1xf32> to vector<16x16xf32>
    %64 = arith.subf %60, %63 : vector<16x16xf32>
    %65 = math.exp %64 : vector<16x16xf32>
    %cst_28 = arith.constant dense<0.000000e+00> : vector<16xf32>
    %66 = vector.multi_reduction <add>, %65, %cst_28 [1] : vector<16x16xf32> to vector<16xf32>
    %67 = vector.shape_cast %66 : vector<16xf32> to vector<16x1xf32>
    %68 = tpu.reciprocal %67 {approx = true} : vector<16x1xf32> -> vector<16x1xf32>
    %69 = arith.truncf %65 : vector<16x16xf32> to vector<16x16xbf16>
    %cst_29 = arith.constant dense<0.000000e+00> : vector<16x32xf32>
    %70 = tpu.matmul %69, %57, %cst_29 {dimension_numbers = #tpu.dot_dimension_numbers<[1], [0], [0], [1], [0, 0, 1, 1], [], []>} : vector<16x16xbf16>, vector<16x32xbf16>, vector<16x32xf32> -> vector<16x32xf32>
    %71 = vector.broadcast %68 : vector<16x1xf32> to vector<16x32xf32>
    %72 = arith.mulf %70, %71 : vector<16x32xf32>
    %73 = arith.truncf %72 : vector<16x32xf32> to vector<16x32xbf16>
    %c0_30 = arith.constant 0 : index
    %c32 = arith.constant 32 : index
    %74 = vector.load %arg14[%c0_30, %c32] : memref<128x128xbf16, #tpu.memory_space<vmem>>, vector<16x32xbf16>
    tpu.vector_store %arg14[%c0_30, %c32], %73 {strides = array<i32>} : memref<128x128xbf16, #tpu.memory_space<vmem>>, vector<16x32xbf16>,
    %75 = vector.extract_strided_slice %32 {offsets = [0, 64], sizes = [16, 32], strides = [1, 1]} : vector<16x128xbf16> to vector<16x32xbf16>
    %76 = vector.extract_strided_slice %33 {offsets = [0, 64], sizes = [16, 32], strides = [1, 1]} : vector<16x128xbf16> to vector<16x32xbf16>
    %77 = vector.extract_strided_slice %34 {offsets = [0, 64], sizes = [16, 32], strides = [1, 1]} : vector<16x128xbf16> to vector<16x32xbf16>
    %cst_31 = arith.constant dense<0.000000e+00> : vector<16x16xf32>
    %78 = tpu.matmul %75, %76, %cst_31 {dimension_numbers = #tpu.dot_dimension_numbers<[1], [1], [0], [0], [0, 0, 1, 0], [], []>} : vector<16x32xbf16>, vector<16x32xbf16>, vector<16x16xf32> -> vector<16x16xf32>
    %79 = vector.broadcast %31 : vector<1x16xf32> to vector<16x16xf32>
    %80 = arith.addf %78, %79 : vector<16x16xf32>
    %cst_32 = arith.constant dense<0xFF800000> : vector<16xf32>
    %81 = vector.multi_reduction <maximumf>, %80, %cst_32 [1] : vector<16x16xf32> to vector<16xf32>
    %82 = vector.shape_cast %81 : vector<16xf32> to vector<16x1xf32>
    %83 = vector.broadcast %82 : vector<16x1xf32> to vector<16x16xf32>
    %84 = arith.subf %80, %83 : vector<16x16xf32>
    %85 = math.exp %84 : vector<16x16xf32>
    %cst_33 = arith.constant dense<0.000000e+00> : vector<16xf32>
    %86 = vector.multi_reduction <add>, %85, %cst_33 [1] : vector<16x16xf32> to vector<16xf32>
    %87 = vector.shape_cast %86 : vector<16xf32> to vector<16x1xf32>
    %88 = tpu.reciprocal %87 {approx = true} : vector<16x1xf32> -> vector<16x1xf32>
    %89 = arith.truncf %85 : vector<16x16xf32> to vector<16x16xbf16>
    %cst_34 = arith.constant dense<0.000000e+00> : vector<16x32xf32>
    %90 = tpu.matmul %89, %77, %cst_34 {dimension_numbers = #tpu.dot_dimension_numbers<[1], [0], [0], [1], [0, 0, 1, 1], [], []>} : vector<16x16xbf16>, vector<16x32xbf16>, vector<16x32xf32> -> vector<16x32xf32>
    %91 = vector.broadcast %88 : vector<16x1xf32> to vector<16x32xf32>
    %92 = arith.mulf %90, %91 : vector<16x32xf32>
    %93 = arith.truncf %92 : vector<16x32xf32> to vector<16x32xbf16>
    %c0_35 = arith.constant 0 : index
    %c64 = arith.constant 64 : index
    %94 = vector.load %arg14[%c0_35, %c64] : memref<128x128xbf16, #tpu.memory_space<vmem>>, vector<16x32xbf16>
    tpu.vector_store %arg14[%c0_35, %c64], %93 {strides = array<i32>} : memref<128x128xbf16, #tpu.memory_space<vmem>>, vector<16x32xbf16>,
    %95 = vector.extract_strided_slice %32 {offsets = [0, 96], sizes = [16, 32], strides = [1, 1]} : vector<16x128xbf16> to vector<16x32xbf16>
    %96 = vector.extract_strided_slice %33 {offsets = [0, 96], sizes = [16, 32], strides = [1, 1]} : vector<16x128xbf16> to vector<16x32xbf16>
    %97 = vector.extract_strided_slice %34 {offsets = [0, 96], sizes = [16, 32], strides = [1, 1]} : vector<16x128xbf16> to vector<16x32xbf16>
    %cst_36 = arith.constant dense<0.000000e+00> : vector<16x16xf32>
    %98 = tpu.matmul %95, %96, %cst_36 {dimension_numbers = #tpu.dot_dimension_numbers<[1], [1], [0], [0], [0, 0, 1, 0], [], []>} : vector<16x32xbf16>, vector<16x32xbf16>, vector<16x16xf32> -> vector<16x16xf32>
    %99 = vector.broadcast %31 : vector<1x16xf32> to vector<16x16xf32>
    %100 = arith.addf %98, %99 : vector<16x16xf32>
    %cst_37 = arith.constant dense<0xFF800000> : vector<16xf32>
    %101 = vector.multi_reduction <maximumf>, %100, %cst_37 [1] : vector<16x16xf32> to vector<16xf32>
    %102 = vector.shape_cast %101 : vector<16xf32> to vector<16x1xf32>
    %103 = vector.broadcast %102 : vector<16x1xf32> to vector<16x16xf32>
    %104 = arith.subf %100, %103 : vector<16x16xf32>
    %105 = math.exp %104 : vector<16x16xf32>
    %cst_38 = arith.constant dense<0.000000e+00> : vector<16xf32>
    %106 = vector.multi_reduction <add>, %105, %cst_38 [1] : vector<16x16xf32> to vector<16xf32>
    %107 = vector.shape_cast %106 : vector<16xf32> to vector<16x1xf32>
    %108 = tpu.reciprocal %107 {approx = true} : vector<16x1xf32> -> vector<16x1xf32>
    %109 = arith.truncf %105 : vector<16x16xf32> to vector<16x16xbf16>
    %cst_39 = arith.constant dense<0.000000e+00> : vector<16x32xf32>
    %110 = tpu.matmul %109, %97, %cst_39 {dimension_numbers = #tpu.dot_dimension_numbers<[1], [0], [0], [1], [0, 0, 1, 1], [], []>} : vector<16x16xbf16>, vector<16x32xbf16>, vector<16x32xf32> -> vector<16x32xf32>
    %111 = vector.broadcast %108 : vector<16x1xf32> to vector<16x32xf32>
    %112 = arith.mulf %110, %111 : vector<16x32xf32>
    %113 = arith.truncf %112 : vector<16x32xf32> to vector<16x32xbf16>
    %c0_40 = arith.constant 0 : index
    %c96 = arith.constant 96 : index
    %114 = vector.load %arg14[%c0_40, %c96] : memref<128x128xbf16, #tpu.memory_space<vmem>>, vector<16x32xbf16>
    tpu.vector_store %arg14[%c0_40, %c96], %113 {strides = array<i32>} : memref<128x128xbf16, #tpu.memory_space<vmem>>, vector<16x32xbf16>,
    %c1 = arith.constant 1 : index
    %c0_41 = arith.constant 0 : index
    %c0_42 = arith.constant 0 : index
    %115 = vector.load %arg3[%c1, %c0_41, %c0_42] : memref<8x1x16xf32, #tpu.memory_space<vmem>>, vector<1x1x16xf32>
    %116 = vector.shape_cast %115 : vector<1x1x16xf32> to vector<1x16xf32>
    %117 = vector.extract_strided_slice %27 {offsets = [16, 0], sizes = [16, 128], strides = [1, 1]} : vector<128x128xbf16> to vector<16x128xbf16>
    %118 = vector.extract_strided_slice %28 {offsets = [16, 0], sizes = [16, 128], strides = [1, 1]} : vector<128x128xbf16> to vector<16x128xbf16>
    %119 = vector.extract_strided_slice %29 {offsets = [16, 0], sizes = [16, 128], strides = [1, 1]} : vector<128x128xbf16> to vector<16x128xbf16>
    %120 = vector.extract_strided_slice %117 {offsets = [0, 0], sizes = [16, 32], strides = [1, 1]} : vector<16x128xbf16> to vector<16x32xbf16>
    %121 = vector.extract_strided_slice %118 {offsets = [0, 0], sizes = [16, 32], strides = [1, 1]} : vector<16x128xbf16> to vector<16x32xbf16>
    %122 = vector.extract_strided_slice %119 {offsets = [0, 0], sizes = [16, 32], strides = [1, 1]} : vector<16x128xbf16> to vector<16x32xbf16>
    %cst_43 = arith.constant dense<0.000000e+00> : vector<16x16xf32>
    %123 = tpu.matmul %120, %121, %cst_43 {dimension_numbers = #tpu.dot_dimension_numbers<[1], [1], [0], [0], [0, 0, 1, 0], [], []>} : vector<16x32xbf16>, vector<16x32xbf16>, vector<16x16xf32> -> vector<16x16xf32>
    %124 = vector.broadcast %116 : vector<1x16xf32> to vector<16x16xf32>
    %125 = arith.addf %123, %124 : vector<16x16xf32>
    %cst_44 = arith.constant dense<0xFF800000> : vector<16xf32>
    %126 = vector.multi_reduction <maximumf>, %125, %cst_44 [1] : vector<16x16xf32> to vector<16xf32>
    %127 = vector.shape_cast %126 : vector<16xf32> to vector<16x1xf32>
    %128 = vector.broadcast %127 : vector<16x1xf32> to vector<16x16xf32>
    %129 = arith.subf %125, %128 : vector<16x16xf32>
    %130 = math.exp %129 : vector<16x16xf32>
    %cst_45 = arith.constant dense<0.000000e+00> : vector<16xf32>
    %131 = vector.multi_reduction <add>, %130, %cst_45 [1] : vector<16x16xf32> to vector<16xf32>
    %132 = vector.shape_cast %131 : vector<16xf32> to vector<16x1xf32>
    %133 = tpu.reciprocal %132 {approx = true} : vector<16x1xf32> -> vector<16x1xf32>
    %134 = arith.truncf %130 : vector<16x16xf32> to vector<16x16xbf16>
    %cst_46 = arith.constant dense<0.000000e+00> : vector<16x32xf32>
    %135 = tpu.matmul %134, %122, %cst_46 {dimension_numbers = #tpu.dot_dimension_numbers<[1], [0], [0], [1], [0, 0, 1, 1], [], []>} : vector<16x16xbf16>, vector<16x32xbf16>, vector<16x32xf32> -> vector<16x32xf32>
    %136 = vector.broadcast %133 : vector<16x1xf32> to vector<16x32xf32>
    %137 = arith.mulf %135, %136 : vector<16x32xf32>
    %138 = arith.truncf %137 : vector<16x32xf32> to vector<16x32xbf16>
    %c16 = arith.constant 16 : index
    %c0_47 = arith.constant 0 : index
    %139 = vector.load %arg14[%c16, %c0_47] : memref<128x128xbf16, #tpu.memory_space<vmem>>, vector<16x32xbf16>
    tpu.vector_store %arg14[%c16, %c0_47], %138 {strides = array<i32>} : memref<128x128xbf16, #tpu.memory_space<vmem>>, vector<16x32xbf16>,
    %140 = vector.extract_strided_slice %117 {offsets = [0, 32], sizes = [16, 32], strides = [1, 1]} : vector<16x128xbf16> to vector<16x32xbf16>
    %141 = vector.extract_strided_slice %118 {offsets = [0, 32], sizes = [16, 32], strides = [1, 1]} : vector<16x128xbf16> to vector<16x32xbf16>
    %142 = vector.extract_strided_slice %119 {offsets = [0, 32], sizes = [16, 32], strides = [1, 1]} : vector<16x128xbf16> to vector<16x32xbf16>
    %cst_48 = arith.constant dense<0.000000e+00> : vector<16x16xf32>
    %143 = tpu.matmul %140, %141, %cst_48 {dimension_numbers = #tpu.dot_dimension_numbers<[1], [1], [0], [0], [0, 0, 1, 0], [], []>} : vector<16x32xbf16>, vector<16x32xbf16>, vector<16x16xf32> -> vector<16x16xf32>
    %144 = vector.broadcast %116 : vector<1x16xf32> to vector<16x16xf32>
    %145 = arith.addf %143, %144 : vector<16x16xf32>
    %cst_49 = arith.constant dense<0xFF800000> : vector<16xf32>
    %146 = vector.multi_reduction <maximumf>, %145, %cst_49 [1] : vector<16x16xf32> to vector<16xf32>
    %147 = vector.shape_cast %146 : vector<16xf32> to vector<16x1xf32>
    %148 = vector.broadcast %147 : vector<16x1xf32> to vector<16x16xf32>
    %149 = arith.subf %145, %148 : vector<16x16xf32>
    %150 = math.exp %149 : vector<16x16xf32>
    %cst_50 = arith.constant dense<0.000000e+00> : vector<16xf32>
    %151 = vector.multi_reduction <add>, %150, %cst_50 [1] : vector<16x16xf32> to vector<16xf32>
    %152 = vector.shape_cast %151 : vector<16xf32> to vector<16x1xf32>
    %153 = tpu.reciprocal %152 {approx = true} : vector<16x1xf32> -> vector<16x1xf32>
    %154 = arith.truncf %150 : vector<16x16xf32> to vector<16x16xbf16>
    %cst_51 = arith.constant dense<0.000000e+00> : vector<16x32xf32>
    %155 = tpu.matmul %154, %142, %cst_51 {dimension_numbers = #tpu.dot_dimension_numbers<[1], [0], [0], [1], [0, 0, 1, 1], [], []>} : vector<16x16xbf16>, vector<16x32xbf16>, vector<16x32xf32> -> vector<16x32xf32>
    %156 = vector.broadcast %153 : vector<16x1xf32> to vector<16x32xf32>
    %157 = arith.mulf %155, %156 : vector<16x32xf32>
    %158 = arith.truncf %157 : vector<16x32xf32> to vector<16x32xbf16>
    %c16_52 = arith.constant 16 : index
    %c32_53 = arith.constant 32 : index
    %159 = vector.load %arg14[%c16_52, %c32_53] : memref<128x128xbf16, #tpu.memory_space<vmem>>, vector<16x32xbf16>
    tpu.vector_store %arg14[%c16_52, %c32_53], %158 {strides = array<i32>} : memref<128x128xbf16, #tpu.memory_space<vmem>>, vector<16x32xbf16>,
    %160 = vector.extract_strided_slice %117 {offsets = [0, 64], sizes = [16, 32], strides = [1, 1]} : vector<16x128xbf16> to vector<16x32xbf16>
    %161 = vector.extract_strided_slice %118 {offsets = [0, 64], sizes = [16, 32], strides = [1, 1]} : vector<16x128xbf16> to vector<16x32xbf16>
    %162 = vector.extract_strided_slice %119 {offsets = [0, 64], sizes = [16, 32], strides = [1, 1]} : vector<16x128xbf16> to vector<16x32xbf16>
    %cst_54 = arith.constant dense<0.000000e+00> : vector<16x16xf32>
    %163 = tpu.matmul %160, %161, %cst_54 {dimension_numbers = #tpu.dot_dimension_numbers<[1], [1], [0], [0], [0, 0, 1, 0], [], []>} : vector<16x32xbf16>, vector<16x32xbf16>, vector<16x16xf32> -> vector<16x16xf32>
    %164 = vector.broadcast %116 : vector<1x16xf32> to vector<16x16xf32>
    %165 = arith.addf %163, %164 : vector<16x16xf32>
    %cst_55 = arith.constant dense<0xFF800000> : vector<16xf32>
    %166 = vector.multi_reduction <maximumf>, %165, %cst_55 [1] : vector<16x16xf32> to vector<16xf32>
    %167 = vector.shape_cast %166 : vector<16xf32> to vector<16x1xf32>
    %168 = vector.broadcast %167 : vector<16x1xf32> to vector<16x16xf32>
    %169 = arith.subf %165, %168 : vector<16x16xf32>
    %170 = math.exp %169 : vector<16x16xf32>
    %cst_56 = arith.constant dense<0.000000e+00> : vector<16xf32>
    %171 = vector.multi_reduction <add>, %170, %cst_56 [1] : vector<16x16xf32> to vector<16xf32>
    %172 = vector.shape_cast %171 : vector<16xf32> to vector<16x1xf32>
    %173 = tpu.reciprocal %172 {approx = true} : vector<16x1xf32> -> vector<16x1xf32>
    %174 = arith.truncf %170 : vector<16x16xf32> to vector<16x16xbf16>
    %cst_57 = arith.constant dense<0.000000e+00> : vector<16x32xf32>
    %175 = tpu.matmul %174, %162, %cst_57 {dimension_numbers = #tpu.dot_dimension_numbers<[1], [0], [0], [1], [0, 0, 1, 1], [], []>} : vector<16x16xbf16>, vector<16x32xbf16>, vector<16x32xf32> -> vector<16x32xf32>
    %176 = vector.broadcast %173 : vector<16x1xf32> to vector<16x32xf32>
    %177 = arith.mulf %175, %176 : vector<16x32xf32>
    %178 = arith.truncf %177 : vector<16x32xf32> to vector<16x32xbf16>
    %c16_58 = arith.constant 16 : index
    %c64_59 = arith.constant 64 : index
    %179 = vector.load %arg14[%c16_58, %c64_59] : memref<128x128xbf16, #tpu.memory_space<vmem>>, vector<16x32xbf16>
    tpu.vector_store %arg14[%c16_58, %c64_59], %178 {strides = array<i32>} : memref<128x128xbf16, #tpu.memory_space<vmem>>, vector<16x32xbf16>,
    %180 = vector.extract_strided_slice %117 {offsets = [0, 96], sizes = [16, 32], strides = [1, 1]} : vector<16x128xbf16> to vector<16x32xbf16>
    %181 = vector.extract_strided_slice %118 {offsets = [0, 96], sizes = [16, 32], strides = [1, 1]} : vector<16x128xbf16> to vector<16x32xbf16>
    %182 = vector.extract_strided_slice %119 {offsets = [0, 96], sizes = [16, 32], strides = [1, 1]} : vector<16x128xbf16> to vector<16x32xbf16>
    %cst_60 = arith.constant dense<0.000000e+00> : vector<16x16xf32>
    %183 = tpu.matmul %180, %181, %cst_60 {dimension_numbers = #tpu.dot_dimension_numbers<[1], [1], [0], [0], [0, 0, 1, 0], [], []>} : vector<16x32xbf16>, vector<16x32xbf16>, vector<16x16xf32> -> vector<16x16xf32>
    %184 = vector.broadcast %116 : vector<1x16xf32> to vector<16x16xf32>
    %185 = arith.addf %183, %184 : vector<16x16xf32>
    %cst_61 = arith.constant dense<0xFF800000> : vector<16xf32>
    %186 = vector.multi_reduction <maximumf>, %185, %cst_61 [1] : vector<16x16xf32> to vector<16xf32>
    %187 = vector.shape_cast %186 : vector<16xf32> to vector<16x1xf32>
    %188 = vector.broadcast %187 : vector<16x1xf32> to vector<16x16xf32>
    %189 = arith.subf %185, %188 : vector<16x16xf32>
    %190 = math.exp %189 : vector<16x16xf32>
    %cst_62 = arith.constant dense<0.000000e+00> : vector<16xf32>
    %191 = vector.multi_reduction <add>, %190, %cst_62 [1] : vector<16x16xf32> to vector<16xf32>
    %192 = vector.shape_cast %191 : vector<16xf32> to vector<16x1xf32>
    %193 = tpu.reciprocal %192 {approx = true} : vector<16x1xf32> -> vector<16x1xf32>
    %194 = arith.truncf %190 : vector<16x16xf32> to vector<16x16xbf16>
    %cst_63 = arith.constant dense<0.000000e+00> : vector<16x32xf32>
    %195 = tpu.matmul %194, %182, %cst_63 {dimension_numbers = #tpu.dot_dimension_numbers<[1], [0], [0], [1], [0, 0, 1, 1], [], []>} : vector<16x16xbf16>, vector<16x32xbf16>, vector<16x32xf32> -> vector<16x32xf32>
    %196 = vector.broadcast %193 : vector<16x1xf32> to vector<16x32xf32>
    %197 = arith.mulf %195, %196 : vector<16x32xf32>
    %198 = arith.truncf %197 : vector<16x32xf32> to vector<16x32xbf16>
    %c16_64 = arith.constant 16 : index
    %c96_65 = arith.constant 96 : index
    %199 = vector.load %arg14[%c16_64, %c96_65] : memref<128x128xbf16, #tpu.memory_space<vmem>>, vector<16x32xbf16>
    tpu.vector_store %arg14[%c16_64, %c96_65], %198 {strides = array<i32>} : memref<128x128xbf16, #tpu.memory_space<vmem>>, vector<16x32xbf16>,
    %c2 = arith.constant 2 : index
    %c0_66 = arith.constant 0 : index
    %c0_67 = arith.constant 0 : index
    %200 = vector.load %arg3[%c2, %c0_66, %c0_67] : memref<8x1x16xf32, #tpu.memory_space<vmem>>, vector<1x1x16xf32>
    %201 = vector.shape_cast %200 : vector<1x1x16xf32> to vector<1x16xf32>
    %202 = vector.extract_strided_slice %27 {offsets = [32, 0], sizes = [16, 128], strides = [1, 1]} : vector<128x128xbf16> to vector<16x128xbf16>
    %203 = vector.extract_strided_slice %28 {offsets = [32, 0], sizes = [16, 128], strides = [1, 1]} : vector<128x128xbf16> to vector<16x128xbf16>
    %204 = vector.extract_strided_slice %29 {offsets = [32, 0], sizes = [16, 128], strides = [1, 1]} : vector<128x128xbf16> to vector<16x128xbf16>
    %205 = vector.extract_strided_slice %202 {offsets = [0, 0], sizes = [16, 32], strides = [1, 1]} : vector<16x128xbf16> to vector<16x32xbf16>
    %206 = vector.extract_strided_slice %203 {offsets = [0, 0], sizes = [16, 32], strides = [1, 1]} : vector<16x128xbf16> to vector<16x32xbf16>
    %207 = vector.extract_strided_slice %204 {offsets = [0, 0], sizes = [16, 32], strides = [1, 1]} : vector<16x128xbf16> to vector<16x32xbf16>
    %cst_68 = arith.constant dense<0.000000e+00> : vector<16x16xf32>
    %208 = tpu.matmul %205, %206, %cst_68 {dimension_numbers = #tpu.dot_dimension_numbers<[1], [1], [0], [0], [0, 0, 1, 0], [], []>} : vector<16x32xbf16>, vector<16x32xbf16>, vector<16x16xf32> -> vector<16x16xf32>
    %209 = vector.broadcast %201 : vector<1x16xf32> to vector<16x16xf32>
    %210 = arith.addf %208, %209 : vector<16x16xf32>
    %cst_69 = arith.constant dense<0xFF800000> : vector<16xf32>
    %211 = vector.multi_reduction <maximumf>, %210, %cst_69 [1] : vector<16x16xf32> to vector<16xf32>
    %212 = vector.shape_cast %211 : vector<16xf32> to vector<16x1xf32>
    %213 = vector.broadcast %212 : vector<16x1xf32> to vector<16x16xf32>
    %214 = arith.subf %210, %213 : vector<16x16xf32>
    %215 = math.exp %214 : vector<16x16xf32>
    %cst_70 = arith.constant dense<0.000000e+00> : vector<16xf32>
    %216 = vector.multi_reduction <add>, %215, %cst_70 [1] : vector<16x16xf32> to vector<16xf32>
    %217 = vector.shape_cast %216 : vector<16xf32> to vector<16x1xf32>
    %218 = tpu.reciprocal %217 {approx = true} : vector<16x1xf32> -> vector<16x1xf32>
    %219 = arith.truncf %215 : vector<16x16xf32> to vector<16x16xbf16>
    %cst_71 = arith.constant dense<0.000000e+00> : vector<16x32xf32>
    %220 = tpu.matmul %219, %207, %cst_71 {dimension_numbers = #tpu.dot_dimension_numbers<[1], [0], [0], [1], [0, 0, 1, 1], [], []>} : vector<16x16xbf16>, vector<16x32xbf16>, vector<16x32xf32> -> vector<16x32xf32>
    %221 = vector.broadcast %218 : vector<16x1xf32> to vector<16x32xf32>
    %222 = arith.mulf %220, %221 : vector<16x32xf32>
    %223 = arith.truncf %222 : vector<16x32xf32> to vector<16x32xbf16>
    %c32_72 = arith.constant 32 : index
    %c0_73 = arith.constant 0 : index
    %224 = vector.load %arg14[%c32_72, %c0_73] : memref<128x128xbf16, #tpu.memory_space<vmem>>, vector<16x32xbf16>
    tpu.vector_store %arg14[%c32_72, %c0_73], %223 {strides = array<i32>} : memref<128x128xbf16, #tpu.memory_space<vmem>>, vector<16x32xbf16>,
    %225 = vector.extract_strided_slice %202 {offsets = [0, 32], sizes = [16, 32], strides = [1, 1]} : vector<16x128xbf16> to vector<16x32xbf16>
    %226 = vector.extract_strided_slice %203 {offsets = [0, 32], sizes = [16, 32], strides = [1, 1]} : vector<16x128xbf16> to vector<16x32xbf16>
    %227 = vector.extract_strided_slice %204 {offsets = [0, 32], sizes = [16, 32], strides = [1, 1]} : vector<16x128xbf16> to vector<16x32xbf16>
    %cst_74 = arith.constant dense<0.000000e+00> : vector<16x16xf32>
    %228 = tpu.matmul %225, %226, %cst_74 {dimension_numbers = #tpu.dot_dimension_numbers<[1], [1], [0], [0], [0, 0, 1, 0], [], []>} : vector<16x32xbf16>, vector<16x32xbf16>, vector<16x16xf32> -> vector<16x16xf32>
    %229 = vector.broadcast %201 : vector<1x16xf32> to vector<16x16xf32>
    %230 = arith.addf %228, %229 : vector<16x16xf32>
    %cst_75 = arith.constant dense<0xFF800000> : vector<16xf32>
    %231 = vector.multi_reduction <maximumf>, %230, %cst_75 [1] : vector<16x16xf32> to vector<16xf32>
    %232 = vector.shape_cast %231 : vector<16xf32> to vector<16x1xf32>
    %233 = vector.broadcast %232 : vector<16x1xf32> to vector<16x16xf32>
    %234 = arith.subf %230, %233 : vector<16x16xf32>
    %235 = math.exp %234 : vector<16x16xf32>
    %cst_76 = arith.constant dense<0.000000e+00> : vector<16xf32>
    %236 = vector.multi_reduction <add>, %235, %cst_76 [1] : vector<16x16xf32> to vector<16xf32>
    %237 = vector.shape_cast %236 : vector<16xf32> to vector<16x1xf32>
    %238 = tpu.reciprocal %237 {approx = true} : vector<16x1xf32> -> vector<16x1xf32>
    %239 = arith.truncf %235 : vector<16x16xf32> to vector<16x16xbf16>
    %cst_77 = arith.constant dense<0.000000e+00> : vector<16x32xf32>
    %240 = tpu.matmul %239, %227, %cst_77 {dimension_numbers = #tpu.dot_dimension_numbers<[1], [0], [0], [1], [0, 0, 1, 1], [], []>} : vector<16x16xbf16>, vector<16x32xbf16>, vector<16x32xf32> -> vector<16x32xf32>
    %241 = vector.broadcast %238 : vector<16x1xf32> to vector<16x32xf32>
    %242 = arith.mulf %240, %241 : vector<16x32xf32>
    %243 = arith.truncf %242 : vector<16x32xf32> to vector<16x32xbf16>
    %c32_78 = arith.constant 32 : index
    %c32_79 = arith.constant 32 : index
    %244 = vector.load %arg14[%c32_78, %c32_79] : memref<128x128xbf16, #tpu.memory_space<vmem>>, vector<16x32xbf16>
    tpu.vector_store %arg14[%c32_78, %c32_79], %243 {strides = array<i32>} : memref<128x128xbf16, #tpu.memory_space<vmem>>, vector<16x32xbf16>,
    %245 = vector.extract_strided_slice %202 {offsets = [0, 64], sizes = [16, 32], strides = [1, 1]} : vector<16x128xbf16> to vector<16x32xbf16>
    %246 = vector.extract_strided_slice %203 {offsets = [0, 64], sizes = [16, 32], strides = [1, 1]} : vector<16x128xbf16> to vector<16x32xbf16>
    %247 = vector.extract_strided_slice %204 {offsets = [0, 64], sizes = [16, 32], strides = [1, 1]} : vector<16x128xbf16> to vector<16x32xbf16>
    %cst_80 = arith.constant dense<0.000000e+00> : vector<16x16xf32>
    %248 = tpu.matmul %245, %246, %cst_80 {dimension_numbers = #tpu.dot_dimension_numbers<[1], [1], [0], [0], [0, 0, 1, 0], [], []>} : vector<16x32xbf16>, vector<16x32xbf16>, vector<16x16xf32> -> vector<16x16xf32>
    %249 = vector.broadcast %201 : vector<1x16xf32> to vector<16x16xf32>
    %250 = arith.addf %248, %249 : vector<16x16xf32>
    %cst_81 = arith.constant dense<0xFF800000> : vector<16xf32>
    %251 = vector.multi_reduction <maximumf>, %250, %cst_81 [1] : vector<16x16xf32> to vector<16xf32>
    %252 = vector.shape_cast %251 : vector<16xf32> to vector<16x1xf32>
    %253 = vector.broadcast %252 : vector<16x1xf32> to vector<16x16xf32>
    %254 = arith.subf %250, %253 : vector<16x16xf32>
    %255 = math.exp %254 : vector<16x16xf32>
    %cst_82 = arith.constant dense<0.000000e+00> : vector<16xf32>
    %256 = vector.multi_reduction <add>, %255, %cst_82 [1] : vector<16x16xf32> to vector<16xf32>
    %257 = vector.shape_cast %256 : vector<16xf32> to vector<16x1xf32>
    %258 = tpu.reciprocal %257 {approx = true} : vector<16x1xf32> -> vector<16x1xf32>
    %259 = arith.truncf %255 : vector<16x16xf32> to vector<16x16xbf16>
    %cst_83 = arith.constant dense<0.000000e+00> : vector<16x32xf32>
    %260 = tpu.matmul %259, %247, %cst_83 {dimension_numbers = #tpu.dot_dimension_numbers<[1], [0], [0], [1], [0, 0, 1, 1], [], []>} : vector<16x16xbf16>, vector<16x32xbf16>, vector<16x32xf32> -> vector<16x32xf32>
    %261 = vector.broadcast %258 : vector<16x1xf32> to vector<16x32xf32>
    %262 = arith.mulf %260, %261 : vector<16x32xf32>
    %263 = arith.truncf %262 : vector<16x32xf32> to vector<16x32xbf16>
    %c32_84 = arith.constant 32 : index
    %c64_85 = arith.constant 64 : index
    %264 = vector.load %arg14[%c32_84, %c64_85] : memref<128x128xbf16, #tpu.memory_space<vmem>>, vector<16x32xbf16>
    tpu.vector_store %arg14[%c32_84, %c64_85], %263 {strides = array<i32>} : memref<128x128xbf16, #tpu.memory_space<vmem>>, vector<16x32xbf16>,
    %265 = vector.extract_strided_slice %202 {offsets = [0, 96], sizes = [16, 32], strides = [1, 1]} : vector<16x128xbf16> to vector<16x32xbf16>
    %266 = vector.extract_strided_slice %203 {offsets = [0, 96], sizes = [16, 32], strides = [1, 1]} : vector<16x128xbf16> to vector<16x32xbf16>
    %267 = vector.extract_strided_slice %204 {offsets = [0, 96], sizes = [16, 32], strides = [1, 1]} : vector<16x128xbf16> to vector<16x32xbf16>
    %cst_86 = arith.constant dense<0.000000e+00> : vector<16x16xf32>
    %268 = tpu.matmul %265, %266, %cst_86 {dimension_numbers = #tpu.dot_dimension_numbers<[1], [1], [0], [0], [0, 0, 1, 0], [], []>} : vector<16x32xbf16>, vector<16x32xbf16>, vector<16x16xf32> -> vector<16x16xf32>
    %269 = vector.broadcast %201 : vector<1x16xf32> to vector<16x16xf32>
    %270 = arith.addf %268, %269 : vector<16x16xf32>
    %cst_87 = arith.constant dense<0xFF800000> : vector<16xf32>
    %271 = vector.multi_reduction <maximumf>, %270, %cst_87 [1] : vector<16x16xf32> to vector<16xf32>
    %272 = vector.shape_cast %271 : vector<16xf32> to vector<16x1xf32>
    %273 = vector.broadcast %272 : vector<16x1xf32> to vector<16x16xf32>
    %274 = arith.subf %270, %273 : vector<16x16xf32>
    %275 = math.exp %274 : vector<16x16xf32>
    %cst_88 = arith.constant dense<0.000000e+00> : vector<16xf32>
    %276 = vector.multi_reduction <add>, %275, %cst_88 [1] : vector<16x16xf32> to vector<16xf32>
    %277 = vector.shape_cast %276 : vector<16xf32> to vector<16x1xf32>
    %278 = tpu.reciprocal %277 {approx = true} : vector<16x1xf32> -> vector<16x1xf32>
    %279 = arith.truncf %275 : vector<16x16xf32> to vector<16x16xbf16>
    %cst_89 = arith.constant dense<0.000000e+00> : vector<16x32xf32>
    %280 = tpu.matmul %279, %267, %cst_89 {dimension_numbers = #tpu.dot_dimension_numbers<[1], [0], [0], [1], [0, 0, 1, 1], [], []>} : vector<16x16xbf16>, vector<16x32xbf16>, vector<16x32xf32> -> vector<16x32xf32>
    %281 = vector.broadcast %278 : vector<16x1xf32> to vector<16x32xf32>
    %282 = arith.mulf %280, %281 : vector<16x32xf32>
    %283 = arith.truncf %282 : vector<16x32xf32> to vector<16x32xbf16>
    %c32_90 = arith.constant 32 : index
    %c96_91 = arith.constant 96 : index
    %284 = vector.load %arg14[%c32_90, %c96_91] : memref<128x128xbf16, #tpu.memory_space<vmem>>, vector<16x32xbf16>
    tpu.vector_store %arg14[%c32_90, %c96_91], %283 {strides = array<i32>} : memref<128x128xbf16, #tpu.memory_space<vmem>>, vector<16x32xbf16>,
    %c3 = arith.constant 3 : index
    %c0_92 = arith.constant 0 : index
    %c0_93 = arith.constant 0 : index
    %285 = vector.load %arg3[%c3, %c0_92, %c0_93] : memref<8x1x16xf32, #tpu.memory_space<vmem>>, vector<1x1x16xf32>
    %286 = vector.shape_cast %285 : vector<1x1x16xf32> to vector<1x16xf32>
    %287 = vector.extract_strided_slice %27 {offsets = [48, 0], sizes = [16, 128], strides = [1, 1]} : vector<128x128xbf16> to vector<16x128xbf16>
    %288 = vector.extract_strided_slice %28 {offsets = [48, 0], sizes = [16, 128], strides = [1, 1]} : vector<128x128xbf16> to vector<16x128xbf16>
    %289 = vector.extract_strided_slice %29 {offsets = [48, 0], sizes = [16, 128], strides = [1, 1]} : vector<128x128xbf16> to vector<16x128xbf16>
    %290 = vector.extract_strided_slice %287 {offsets = [0, 0], sizes = [16, 32], strides = [1, 1]} : vector<16x128xbf16> to vector<16x32xbf16>
    %291 = vector.extract_strided_slice %288 {offsets = [0, 0], sizes = [16, 32], strides = [1, 1]} : vector<16x128xbf16> to vector<16x32xbf16>
    %292 = vector.extract_strided_slice %289 {offsets = [0, 0], sizes = [16, 32], strides = [1, 1]} : vector<16x128xbf16> to vector<16x32xbf16>
    %cst_94 = arith.constant dense<0.000000e+00> : vector<16x16xf32>
    %293 = tpu.matmul %290, %291, %cst_94 {dimension_numbers = #tpu.dot_dimension_numbers<[1], [1], [0], [0], [0, 0, 1, 0], [], []>} : vector<16x32xbf16>, vector<16x32xbf16>, vector<16x16xf32> -> vector<16x16xf32>
    %294 = vector.broadcast %286 : vector<1x16xf32> to vector<16x16xf32>
    %295 = arith.addf %293, %294 : vector<16x16xf32>
    %cst_95 = arith.constant dense<0xFF800000> : vector<16xf32>
    %296 = vector.multi_reduction <maximumf>, %295, %cst_95 [1] : vector<16x16xf32> to vector<16xf32>
    %297 = vector.shape_cast %296 : vector<16xf32> to vector<16x1xf32>
    %298 = vector.broadcast %297 : vector<16x1xf32> to vector<16x16xf32>
    %299 = arith.subf %295, %298 : vector<16x16xf32>
    %300 = math.exp %299 : vector<16x16xf32>
    %cst_96 = arith.constant dense<0.000000e+00> : vector<16xf32>
    %301 = vector.multi_reduction <add>, %300, %cst_96 [1] : vector<16x16xf32> to vector<16xf32>
    %302 = vector.shape_cast %301 : vector<16xf32> to vector<16x1xf32>
    %303 = tpu.reciprocal %302 {approx = true} : vector<16x1xf32> -> vector<16x1xf32>
    %304 = arith.truncf %300 : vector<16x16xf32> to vector<16x16xbf16>
    %cst_97 = arith.constant dense<0.000000e+00> : vector<16x32xf32>
    %305 = tpu.matmul %304, %292, %cst_97 {dimension_numbers = #tpu.dot_dimension_numbers<[1], [0], [0], [1], [0, 0, 1, 1], [], []>} : vector<16x16xbf16>, vector<16x32xbf16>, vector<16x32xf32> -> vector<16x32xf32>
    %306 = vector.broadcast %303 : vector<16x1xf32> to vector<16x32xf32>
    %307 = arith.mulf %305, %306 : vector<16x32xf32>
    %308 = arith.truncf %307 : vector<16x32xf32> to vector<16x32xbf16>
    %c48 = arith.constant 48 : index
    %c0_98 = arith.constant 0 : index
    %309 = vector.load %arg14[%c48, %c0_98] : memref<128x128xbf16, #tpu.memory_space<vmem>>, vector<16x32xbf16>
    tpu.vector_store %arg14[%c48, %c0_98], %308 {strides = array<i32>} : memref<128x128xbf16, #tpu.memory_space<vmem>>, vector<16x32xbf16>,
    %310 = vector.extract_strided_slice %287 {offsets = [0, 32], sizes = [16, 32], strides = [1, 1]} : vector<16x128xbf16> to vector<16x32xbf16>
    %311 = vector.extract_strided_slice %288 {offsets = [0, 32], sizes = [16, 32], strides = [1, 1]} : vector<16x128xbf16> to vector<16x32xbf16>
    %312 = vector.extract_strided_slice %289 {offsets = [0, 32], sizes = [16, 32], strides = [1, 1]} : vector<16x128xbf16> to vector<16x32xbf16>
    %cst_99 = arith.constant dense<0.000000e+00> : vector<16x16xf32>
    %313 = tpu.matmul %310, %311, %cst_99 {dimension_numbers = #tpu.dot_dimension_numbers<[1], [1], [0], [0], [0, 0, 1, 0], [], []>} : vector<16x32xbf16>, vector<16x32xbf16>, vector<16x16xf32> -> vector<16x16xf32>
    %314 = vector.broadcast %286 : vector<1x16xf32> to vector<16x16xf32>
    %315 = arith.addf %313, %314 : vector<16x16xf32>
    %cst_100 = arith.constant dense<0xFF800000> : vector<16xf32>
    %316 = vector.multi_reduction <maximumf>, %315, %cst_100 [1] : vector<16x16xf32> to vector<16xf32>
    %317 = vector.shape_cast %316 : vector<16xf32> to vector<16x1xf32>
    %318 = vector.broadcast %317 : vector<16x1xf32> to vector<16x16xf32>
    %319 = arith.subf %315, %318 : vector<16x16xf32>
    %320 = math.exp %319 : vector<16x16xf32>
    %cst_101 = arith.constant dense<0.000000e+00> : vector<16xf32>
    %321 = vector.multi_reduction <add>, %320, %cst_101 [1] : vector<16x16xf32> to vector<16xf32>
    %322 = vector.shape_cast %321 : vector<16xf32> to vector<16x1xf32>
    %323 = tpu.reciprocal %322 {approx = true} : vector<16x1xf32> -> vector<16x1xf32>
    %324 = arith.truncf %320 : vector<16x16xf32> to vector<16x16xbf16>
    %cst_102 = arith.constant dense<0.000000e+00> : vector<16x32xf32>
    %325 = tpu.matmul %324, %312, %cst_102 {dimension_numbers = #tpu.dot_dimension_numbers<[1], [0], [0], [1], [0, 0, 1, 1], [], []>} : vector<16x16xbf16>, vector<16x32xbf16>, vector<16x32xf32> -> vector<16x32xf32>
    %326 = vector.broadcast %323 : vector<16x1xf32> to vector<16x32xf32>
    %327 = arith.mulf %325, %326 : vector<16x32xf32>
    %328 = arith.truncf %327 : vector<16x32xf32> to vector<16x32xbf16>
    %c48_103 = arith.constant 48 : index
    %c32_104 = arith.constant 32 : index
    %329 = vector.load %arg14[%c48_103, %c32_104] : memref<128x128xbf16, #tpu.memory_space<vmem>>, vector<16x32xbf16>
    tpu.vector_store %arg14[%c48_103, %c32_104], %328 {strides = array<i32>} : memref<128x128xbf16, #tpu.memory_space<vmem>>, vector<16x32xbf16>,
    %330 = vector.extract_strided_slice %287 {offsets = [0, 64], sizes = [16, 32], strides = [1, 1]} : vector<16x128xbf16> to vector<16x32xbf16>
    %331 = vector.extract_strided_slice %288 {offsets = [0, 64], sizes = [16, 32], strides = [1, 1]} : vector<16x128xbf16> to vector<16x32xbf16>
    %332 = vector.extract_strided_slice %289 {offsets = [0, 64], sizes = [16, 32], strides = [1, 1]} : vector<16x128xbf16> to vector<16x32xbf16>
    %cst_105 = arith.constant dense<0.000000e+00> : vector<16x16xf32>
    %333 = tpu.matmul %330, %331, %cst_105 {dimension_numbers = #tpu.dot_dimension_numbers<[1], [1], [0], [0], [0, 0, 1, 0], [], []>} : vector<16x32xbf16>, vector<16x32xbf16>, vector<16x16xf32> -> vector<16x16xf32>
    %334 = vector.broadcast %286 : vector<1x16xf32> to vector<16x16xf32>
    %335 = arith.addf %333, %334 : vector<16x16xf32>
    %cst_106 = arith.constant dense<0xFF800000> : vector<16xf32>
    %336 = vector.multi_reduction <maximumf>, %335, %cst_106 [1] : vector<16x16xf32> to vector<16xf32>
    %337 = vector.shape_cast %336 : vector<16xf32> to vector<16x1xf32>
    %338 = vector.broadcast %337 : vector<16x1xf32> to vector<16x16xf32>
    %339 = arith.subf %335, %338 : vector<16x16xf32>
    %340 = math.exp %339 : vector<16x16xf32>
    %cst_107 = arith.constant dense<0.000000e+00> : vector<16xf32>
    %341 = vector.multi_reduction <add>, %340, %cst_107 [1] : vector<16x16xf32> to vector<16xf32>
    %342 = vector.shape_cast %341 : vector<16xf32> to vector<16x1xf32>
    %343 = tpu.reciprocal %342 {approx = true} : vector<16x1xf32> -> vector<16x1xf32>
    %344 = arith.truncf %340 : vector<16x16xf32> to vector<16x16xbf16>
    %cst_108 = arith.constant dense<0.000000e+00> : vector<16x32xf32>
    %345 = tpu.matmul %344, %332, %cst_108 {dimension_numbers = #tpu.dot_dimension_numbers<[1], [0], [0], [1], [0, 0, 1, 1], [], []>} : vector<16x16xbf16>, vector<16x32xbf16>, vector<16x32xf32> -> vector<16x32xf32>
    %346 = vector.broadcast %343 : vector<16x1xf32> to vector<16x32xf32>
    %347 = arith.mulf %345, %346 : vector<16x32xf32>
    %348 = arith.truncf %347 : vector<16x32xf32> to vector<16x32xbf16>
    %c48_109 = arith.constant 48 : index
    %c64_110 = arith.constant 64 : index
    %349 = vector.load %arg14[%c48_109, %c64_110] : memref<128x128xbf16, #tpu.memory_space<vmem>>, vector<16x32xbf16>
    tpu.vector_store %arg14[%c48_109, %c64_110], %348 {strides = array<i32>} : memref<128x128xbf16, #tpu.memory_space<vmem>>, vector<16x32xbf16>,
    %350 = vector.extract_strided_slice %287 {offsets = [0, 96], sizes = [16, 32], strides = [1, 1]} : vector<16x128xbf16> to vector<16x32xbf16>
    %351 = vector.extract_strided_slice %288 {offsets = [0, 96], sizes = [16, 32], strides = [1, 1]} : vector<16x128xbf16> to vector<16x32xbf16>
    %352 = vector.extract_strided_slice %289 {offsets = [0, 96], sizes = [16, 32], strides = [1, 1]} : vector<16x128xbf16> to vector<16x32xbf16>
    %cst_111 = arith.constant dense<0.000000e+00> : vector<16x16xf32>
    %353 = tpu.matmul %350, %351, %cst_111 {dimension_numbers = #tpu.dot_dimension_numbers<[1], [1], [0], [0], [0, 0, 1, 0], [], []>} : vector<16x32xbf16>, vector<16x32xbf16>, vector<16x16xf32> -> vector<16x16xf32>
    %354 = vector.broadcast %286 : vector<1x16xf32> to vector<16x16xf32>
    %355 = arith.addf %353, %354 : vector<16x16xf32>
    %cst_112 = arith.constant dense<0xFF800000> : vector<16xf32>
    %356 = vector.multi_reduction <maximumf>, %355, %cst_112 [1] : vector<16x16xf32> to vector<16xf32>
    %357 = vector.shape_cast %356 : vector<16xf32> to vector<16x1xf32>
    %358 = vector.broadcast %357 : vector<16x1xf32> to vector<16x16xf32>
    %359 = arith.subf %355, %358 : vector<16x16xf32>
    %360 = math.exp %359 : vector<16x16xf32>
    %cst_113 = arith.constant dense<0.000000e+00> : vector<16xf32>
    %361 = vector.multi_reduction <add>, %360, %cst_113 [1] : vector<16x16xf32> to vector<16xf32>
    %362 = vector.shape_cast %361 : vector<16xf32> to vector<16x1xf32>
    %363 = tpu.reciprocal %362 {approx = true} : vector<16x1xf32> -> vector<16x1xf32>
    %364 = arith.truncf %360 : vector<16x16xf32> to vector<16x16xbf16>
    %cst_114 = arith.constant dense<0.000000e+00> : vector<16x32xf32>
    %365 = tpu.matmul %364, %352, %cst_114 {dimension_numbers = #tpu.dot_dimension_numbers<[1], [0], [0], [1], [0, 0, 1, 1], [], []>} : vector<16x16xbf16>, vector<16x32xbf16>, vector<16x32xf32> -> vector<16x32xf32>
    %366 = vector.broadcast %363 : vector<16x1xf32> to vector<16x32xf32>
    %367 = arith.mulf %365, %366 : vector<16x32xf32>
    %368 = arith.truncf %367 : vector<16x32xf32> to vector<16x32xbf16>
    %c48_115 = arith.constant 48 : index
    %c96_116 = arith.constant 96 : index
    %369 = vector.load %arg14[%c48_115, %c96_116] : memref<128x128xbf16, #tpu.memory_space<vmem>>, vector<16x32xbf16>
    tpu.vector_store %arg14[%c48_115, %c96_116], %368 {strides = array<i32>} : memref<128x128xbf16, #tpu.memory_space<vmem>>, vector<16x32xbf16>,
    %c4 = arith.constant 4 : index
    %c0_117 = arith.constant 0 : index
    %c0_118 = arith.constant 0 : index
    %370 = vector.load %arg3[%c4, %c0_117, %c0_118] : memref<8x1x16xf32, #tpu.memory_space<vmem>>, vector<1x1x16xf32>
    %371 = vector.shape_cast %370 : vector<1x1x16xf32> to vector<1x16xf32>
    %372 = vector.extract_strided_slice %27 {offsets = [64, 0], sizes = [16, 128], strides = [1, 1]} : vector<128x128xbf16> to vector<16x128xbf16>
    %373 = vector.extract_strided_slice %28 {offsets = [64, 0], sizes = [16, 128], strides = [1, 1]} : vector<128x128xbf16> to vector<16x128xbf16>
    %374 = vector.extract_strided_slice %29 {offsets = [64, 0], sizes = [16, 128], strides = [1, 1]} : vector<128x128xbf16> to vector<16x128xbf16>
    %375 = vector.extract_strided_slice %372 {offsets = [0, 0], sizes = [16, 32], strides = [1, 1]} : vector<16x128xbf16> to vector<16x32xbf16>
    %376 = vector.extract_strided_slice %373 {offsets = [0, 0], sizes = [16, 32], strides = [1, 1]} : vector<16x128xbf16> to vector<16x32xbf16>
    %377 = vector.extract_strided_slice %374 {offsets = [0, 0], sizes = [16, 32], strides = [1, 1]} : vector<16x128xbf16> to vector<16x32xbf16>
    %cst_119 = arith.constant dense<0.000000e+00> : vector<16x16xf32>
    %378 = tpu.matmul %375, %376, %cst_119 {dimension_numbers = #tpu.dot_dimension_numbers<[1], [1], [0], [0], [0, 0, 1, 0], [], []>} : vector<16x32xbf16>, vector<16x32xbf16>, vector<16x16xf32> -> vector<16x16xf32>
    %379 = vector.broadcast %371 : vector<1x16xf32> to vector<16x16xf32>
    %380 = arith.addf %378, %379 : vector<16x16xf32>
    %cst_120 = arith.constant dense<0xFF800000> : vector<16xf32>
    %381 = vector.multi_reduction <maximumf>, %380, %cst_120 [1] : vector<16x16xf32> to vector<16xf32>
    %382 = vector.shape_cast %381 : vector<16xf32> to vector<16x1xf32>
    %383 = vector.broadcast %382 : vector<16x1xf32> to vector<16x16xf32>
    %384 = arith.subf %380, %383 : vector<16x16xf32>
    %385 = math.exp %384 : vector<16x16xf32>
    %cst_121 = arith.constant dense<0.000000e+00> : vector<16xf32>
    %386 = vector.multi_reduction <add>, %385, %cst_121 [1] : vector<16x16xf32> to vector<16xf32>
    %387 = vector.shape_cast %386 : vector<16xf32> to vector<16x1xf32>
    %388 = tpu.reciprocal %387 {approx = true} : vector<16x1xf32> -> vector<16x1xf32>
    %389 = arith.truncf %385 : vector<16x16xf32> to vector<16x16xbf16>
    %cst_122 = arith.constant dense<0.000000e+00> : vector<16x32xf32>
    %390 = tpu.matmul %389, %377, %cst_122 {dimension_numbers = #tpu.dot_dimension_numbers<[1], [0], [0], [1], [0, 0, 1, 1], [], []>} : vector<16x16xbf16>, vector<16x32xbf16>, vector<16x32xf32> -> vector<16x32xf32>
    %391 = vector.broadcast %388 : vector<16x1xf32> to vector<16x32xf32>
    %392 = arith.mulf %390, %391 : vector<16x32xf32>
    %393 = arith.truncf %392 : vector<16x32xf32> to vector<16x32xbf16>
    %c64_123 = arith.constant 64 : index
    %c0_124 = arith.constant 0 : index
    %394 = vector.load %arg14[%c64_123, %c0_124] : memref<128x128xbf16, #tpu.memory_space<vmem>>, vector<16x32xbf16>
    tpu.vector_store %arg14[%c64_123, %c0_124], %393 {strides = array<i32>} : memref<128x128xbf16, #tpu.memory_space<vmem>>, vector<16x32xbf16>,
    %395 = vector.extract_strided_slice %372 {offsets = [0, 32], sizes = [16, 32], strides = [1, 1]} : vector<16x128xbf16> to vector<16x32xbf16>
    %396 = vector.extract_strided_slice %373 {offsets = [0, 32], sizes = [16, 32], strides = [1, 1]} : vector<16x128xbf16> to vector<16x32xbf16>
    %397 = vector.extract_strided_slice %374 {offsets = [0, 32], sizes = [16, 32], strides = [1, 1]} : vector<16x128xbf16> to vector<16x32xbf16>
    %cst_125 = arith.constant dense<0.000000e+00> : vector<16x16xf32>
    %398 = tpu.matmul %395, %396, %cst_125 {dimension_numbers = #tpu.dot_dimension_numbers<[1], [1], [0], [0], [0, 0, 1, 0], [], []>} : vector<16x32xbf16>, vector<16x32xbf16>, vector<16x16xf32> -> vector<16x16xf32>
    %399 = vector.broadcast %371 : vector<1x16xf32> to vector<16x16xf32>
    %400 = arith.addf %398, %399 : vector<16x16xf32>
    %cst_126 = arith.constant dense<0xFF800000> : vector<16xf32>
    %401 = vector.multi_reduction <maximumf>, %400, %cst_126 [1] : vector<16x16xf32> to vector<16xf32>
    %402 = vector.shape_cast %401 : vector<16xf32> to vector<16x1xf32>
    %403 = vector.broadcast %402 : vector<16x1xf32> to vector<16x16xf32>
    %404 = arith.subf %400, %403 : vector<16x16xf32>
    %405 = math.exp %404 : vector<16x16xf32>
    %cst_127 = arith.constant dense<0.000000e+00> : vector<16xf32>
    %406 = vector.multi_reduction <add>, %405, %cst_127 [1] : vector<16x16xf32> to vector<16xf32>
    %407 = vector.shape_cast %406 : vector<16xf32> to vector<16x1xf32>
    %408 = tpu.reciprocal %407 {approx = true} : vector<16x1xf32> -> vector<16x1xf32>
    %409 = arith.truncf %405 : vector<16x16xf32> to vector<16x16xbf16>
    %cst_128 = arith.constant dense<0.000000e+00> : vector<16x32xf32>
    %410 = tpu.matmul %409, %397, %cst_128 {dimension_numbers = #tpu.dot_dimension_numbers<[1], [0], [0], [1], [0, 0, 1, 1], [], []>} : vector<16x16xbf16>, vector<16x32xbf16>, vector<16x32xf32> -> vector<16x32xf32>
    %411 = vector.broadcast %408 : vector<16x1xf32> to vector<16x32xf32>
    %412 = arith.mulf %410, %411 : vector<16x32xf32>
    %413 = arith.truncf %412 : vector<16x32xf32> to vector<16x32xbf16>
    %c64_129 = arith.constant 64 : index
    %c32_130 = arith.constant 32 : index
    %414 = vector.load %arg14[%c64_129, %c32_130] : memref<128x128xbf16, #tpu.memory_space<vmem>>, vector<16x32xbf16>
    tpu.vector_store %arg14[%c64_129, %c32_130], %413 {strides = array<i32>} : memref<128x128xbf16, #tpu.memory_space<vmem>>, vector<16x32xbf16>,
    %415 = vector.extract_strided_slice %372 {offsets = [0, 64], sizes = [16, 32], strides = [1, 1]} : vector<16x128xbf16> to vector<16x32xbf16>
    %416 = vector.extract_strided_slice %373 {offsets = [0, 64], sizes = [16, 32], strides = [1, 1]} : vector<16x128xbf16> to vector<16x32xbf16>
    %417 = vector.extract_strided_slice %374 {offsets = [0, 64], sizes = [16, 32], strides = [1, 1]} : vector<16x128xbf16> to vector<16x32xbf16>
    %cst_131 = arith.constant dense<0.000000e+00> : vector<16x16xf32>
    %418 = tpu.matmul %415, %416, %cst_131 {dimension_numbers = #tpu.dot_dimension_numbers<[1], [1], [0], [0], [0, 0, 1, 0], [], []>} : vector<16x32xbf16>, vector<16x32xbf16>, vector<16x16xf32> -> vector<16x16xf32>
    %419 = vector.broadcast %371 : vector<1x16xf32> to vector<16x16xf32>
    %420 = arith.addf %418, %419 : vector<16x16xf32>
    %cst_132 = arith.constant dense<0xFF800000> : vector<16xf32>
    %421 = vector.multi_reduction <maximumf>, %420, %cst_132 [1] : vector<16x16xf32> to vector<16xf32>
    %422 = vector.shape_cast %421 : vector<16xf32> to vector<16x1xf32>
    %423 = vector.broadcast %422 : vector<16x1xf32> to vector<16x16xf32>
    %424 = arith.subf %420, %423 : vector<16x16xf32>
    %425 = math.exp %424 : vector<16x16xf32>
    %cst_133 = arith.constant dense<0.000000e+00> : vector<16xf32>
    %426 = vector.multi_reduction <add>, %425, %cst_133 [1] : vector<16x16xf32> to vector<16xf32>
    %427 = vector.shape_cast %426 : vector<16xf32> to vector<16x1xf32>
    %428 = tpu.reciprocal %427 {approx = true} : vector<16x1xf32> -> vector<16x1xf32>
    %429 = arith.truncf %425 : vector<16x16xf32> to vector<16x16xbf16>
    %cst_134 = arith.constant dense<0.000000e+00> : vector<16x32xf32>
    %430 = tpu.matmul %429, %417, %cst_134 {dimension_numbers = #tpu.dot_dimension_numbers<[1], [0], [0], [1], [0, 0, 1, 1], [], []>} : vector<16x16xbf16>, vector<16x32xbf16>, vector<16x32xf32> -> vector<16x32xf32>
    %431 = vector.broadcast %428 : vector<16x1xf32> to vector<16x32xf32>
    %432 = arith.mulf %430, %431 : vector<16x32xf32>
    %433 = arith.truncf %432 : vector<16x32xf32> to vector<16x32xbf16>
    %c64_135 = arith.constant 64 : index
    %c64_136 = arith.constant 64 : index
    %434 = vector.load %arg14[%c64_135, %c64_136] : memref<128x128xbf16, #tpu.memory_space<vmem>>, vector<16x32xbf16>
    tpu.vector_store %arg14[%c64_135, %c64_136], %433 {strides = array<i32>} : memref<128x128xbf16, #tpu.memory_space<vmem>>, vector<16x32xbf16>,
    %435 = vector.extract_strided_slice %372 {offsets = [0, 96], sizes = [16, 32], strides = [1, 1]} : vector<16x128xbf16> to vector<16x32xbf16>
    %436 = vector.extract_strided_slice %373 {offsets = [0, 96], sizes = [16, 32], strides = [1, 1]} : vector<16x128xbf16> to vector<16x32xbf16>
    %437 = vector.extract_strided_slice %374 {offsets = [0, 96], sizes = [16, 32], strides = [1, 1]} : vector<16x128xbf16> to vector<16x32xbf16>
    %cst_137 = arith.constant dense<0.000000e+00> : vector<16x16xf32>
    %438 = tpu.matmul %435, %436, %cst_137 {dimension_numbers = #tpu.dot_dimension_numbers<[1], [1], [0], [0], [0, 0, 1, 0], [], []>} : vector<16x32xbf16>, vector<16x32xbf16>, vector<16x16xf32> -> vector<16x16xf32>
    %439 = vector.broadcast %371 : vector<1x16xf32> to vector<16x16xf32>
    %440 = arith.addf %438, %439 : vector<16x16xf32>
    %cst_138 = arith.constant dense<0xFF800000> : vector<16xf32>
    %441 = vector.multi_reduction <maximumf>, %440, %cst_138 [1] : vector<16x16xf32> to vector<16xf32>
    %442 = vector.shape_cast %441 : vector<16xf32> to vector<16x1xf32>
    %443 = vector.broadcast %442 : vector<16x1xf32> to vector<16x16xf32>
    %444 = arith.subf %440, %443 : vector<16x16xf32>
    %445 = math.exp %444 : vector<16x16xf32>
    %cst_139 = arith.constant dense<0.000000e+00> : vector<16xf32>
    %446 = vector.multi_reduction <add>, %445, %cst_139 [1] : vector<16x16xf32> to vector<16xf32>
    %447 = vector.shape_cast %446 : vector<16xf32> to vector<16x1xf32>
    %448 = tpu.reciprocal %447 {approx = true} : vector<16x1xf32> -> vector<16x1xf32>
    %449 = arith.truncf %445 : vector<16x16xf32> to vector<16x16xbf16>
    %cst_140 = arith.constant dense<0.000000e+00> : vector<16x32xf32>
    %450 = tpu.matmul %449, %437, %cst_140 {dimension_numbers = #tpu.dot_dimension_numbers<[1], [0], [0], [1], [0, 0, 1, 1], [], []>} : vector<16x16xbf16>, vector<16x32xbf16>, vector<16x32xf32> -> vector<16x32xf32>
    %451 = vector.broadcast %448 : vector<16x1xf32> to vector<16x32xf32>
    %452 = arith.mulf %450, %451 : vector<16x32xf32>
    %453 = arith.truncf %452 : vector<16x32xf32> to vector<16x32xbf16>
    %c64_141 = arith.constant 64 : index
    %c96_142 = arith.constant 96 : index
    %454 = vector.load %arg14[%c64_141, %c96_142] : memref<128x128xbf16, #tpu.memory_space<vmem>>, vector<16x32xbf16>
    tpu.vector_store %arg14[%c64_141, %c96_142], %453 {strides = array<i32>} : memref<128x128xbf16, #tpu.memory_space<vmem>>, vector<16x32xbf16>,
    %c5 = arith.constant 5 : index
    %c0_143 = arith.constant 0 : index
    %c0_144 = arith.constant 0 : index
    %455 = vector.load %arg3[%c5, %c0_143, %c0_144] : memref<8x1x16xf32, #tpu.memory_space<vmem>>, vector<1x1x16xf32>
    %456 = vector.shape_cast %455 : vector<1x1x16xf32> to vector<1x16xf32>
    %457 = vector.extract_strided_slice %27 {offsets = [80, 0], sizes = [16, 128], strides = [1, 1]} : vector<128x128xbf16> to vector<16x128xbf16>
    %458 = vector.extract_strided_slice %28 {offsets = [80, 0], sizes = [16, 128], strides = [1, 1]} : vector<128x128xbf16> to vector<16x128xbf16>
    %459 = vector.extract_strided_slice %29 {offsets = [80, 0], sizes = [16, 128], strides = [1, 1]} : vector<128x128xbf16> to vector<16x128xbf16>
    %460 = vector.extract_strided_slice %457 {offsets = [0, 0], sizes = [16, 32], strides = [1, 1]} : vector<16x128xbf16> to vector<16x32xbf16>
    %461 = vector.extract_strided_slice %458 {offsets = [0, 0], sizes = [16, 32], strides = [1, 1]} : vector<16x128xbf16> to vector<16x32xbf16>
    %462 = vector.extract_strided_slice %459 {offsets = [0, 0], sizes = [16, 32], strides = [1, 1]} : vector<16x128xbf16> to vector<16x32xbf16>
    %cst_145 = arith.constant dense<0.000000e+00> : vector<16x16xf32>
    %463 = tpu.matmul %460, %461, %cst_145 {dimension_numbers = #tpu.dot_dimension_numbers<[1], [1], [0], [0], [0, 0, 1, 0], [], []>} : vector<16x32xbf16>, vector<16x32xbf16>, vector<16x16xf32> -> vector<16x16xf32>
    %464 = vector.broadcast %456 : vector<1x16xf32> to vector<16x16xf32>
    %465 = arith.addf %463, %464 : vector<16x16xf32>
    %cst_146 = arith.constant dense<0xFF800000> : vector<16xf32>
    %466 = vector.multi_reduction <maximumf>, %465, %cst_146 [1] : vector<16x16xf32> to vector<16xf32>
    %467 = vector.shape_cast %466 : vector<16xf32> to vector<16x1xf32>
    %468 = vector.broadcast %467 : vector<16x1xf32> to vector<16x16xf32>
    %469 = arith.subf %465, %468 : vector<16x16xf32>
    %470 = math.exp %469 : vector<16x16xf32>
    %cst_147 = arith.constant dense<0.000000e+00> : vector<16xf32>
    %471 = vector.multi_reduction <add>, %470, %cst_147 [1] : vector<16x16xf32> to vector<16xf32>
    %472 = vector.shape_cast %471 : vector<16xf32> to vector<16x1xf32>
    %473 = tpu.reciprocal %472 {approx = true} : vector<16x1xf32> -> vector<16x1xf32>
    %474 = arith.truncf %470 : vector<16x16xf32> to vector<16x16xbf16>
    %cst_148 = arith.constant dense<0.000000e+00> : vector<16x32xf32>
    %475 = tpu.matmul %474, %462, %cst_148 {dimension_numbers = #tpu.dot_dimension_numbers<[1], [0], [0], [1], [0, 0, 1, 1], [], []>} : vector<16x16xbf16>, vector<16x32xbf16>, vector<16x32xf32> -> vector<16x32xf32>
    %476 = vector.broadcast %473 : vector<16x1xf32> to vector<16x32xf32>
    %477 = arith.mulf %475, %476 : vector<16x32xf32>
    %478 = arith.truncf %477 : vector<16x32xf32> to vector<16x32xbf16>
    %c80 = arith.constant 80 : index
    %c0_149 = arith.constant 0 : index
    %479 = vector.load %arg14[%c80, %c0_149] : memref<128x128xbf16, #tpu.memory_space<vmem>>, vector<16x32xbf16>
    tpu.vector_store %arg14[%c80, %c0_149], %478 {strides = array<i32>} : memref<128x128xbf16, #tpu.memory_space<vmem>>, vector<16x32xbf16>,
    %480 = vector.extract_strided_slice %457 {offsets = [0, 32], sizes = [16, 32], strides = [1, 1]} : vector<16x128xbf16> to vector<16x32xbf16>
    %481 = vector.extract_strided_slice %458 {offsets = [0, 32], sizes = [16, 32], strides = [1, 1]} : vector<16x128xbf16> to vector<16x32xbf16>
    %482 = vector.extract_strided_slice %459 {offsets = [0, 32], sizes = [16, 32], strides = [1, 1]} : vector<16x128xbf16> to vector<16x32xbf16>
    %cst_150 = arith.constant dense<0.000000e+00> : vector<16x16xf32>
    %483 = tpu.matmul %480, %481, %cst_150 {dimension_numbers = #tpu.dot_dimension_numbers<[1], [1], [0], [0], [0, 0, 1, 0], [], []>} : vector<16x32xbf16>, vector<16x32xbf16>, vector<16x16xf32> -> vector<16x16xf32>
    %484 = vector.broadcast %456 : vector<1x16xf32> to vector<16x16xf32>
    %485 = arith.addf %483, %484 : vector<16x16xf32>
    %cst_151 = arith.constant dense<0xFF800000> : vector<16xf32>
    %486 = vector.multi_reduction <maximumf>, %485, %cst_151 [1] : vector<16x16xf32> to vector<16xf32>
    %487 = vector.shape_cast %486 : vector<16xf32> to vector<16x1xf32>
    %488 = vector.broadcast %487 : vector<16x1xf32> to vector<16x16xf32>
    %489 = arith.subf %485, %488 : vector<16x16xf32>
    %490 = math.exp %489 : vector<16x16xf32>
    %cst_152 = arith.constant dense<0.000000e+00> : vector<16xf32>
    %491 = vector.multi_reduction <add>, %490, %cst_152 [1] : vector<16x16xf32> to vector<16xf32>
    %492 = vector.shape_cast %491 : vector<16xf32> to vector<16x1xf32>
    %493 = tpu.reciprocal %492 {approx = true} : vector<16x1xf32> -> vector<16x1xf32>
    %494 = arith.truncf %490 : vector<16x16xf32> to vector<16x16xbf16>
    %cst_153 = arith.constant dense<0.000000e+00> : vector<16x32xf32>
    %495 = tpu.matmul %494, %482, %cst_153 {dimension_numbers = #tpu.dot_dimension_numbers<[1], [0], [0], [1], [0, 0, 1, 1], [], []>} : vector<16x16xbf16>, vector<16x32xbf16>, vector<16x32xf32> -> vector<16x32xf32>
    %496 = vector.broadcast %493 : vector<16x1xf32> to vector<16x32xf32>
    %497 = arith.mulf %495, %496 : vector<16x32xf32>
    %498 = arith.truncf %497 : vector<16x32xf32> to vector<16x32xbf16>
    %c80_154 = arith.constant 80 : index
    %c32_155 = arith.constant 32 : index
    %499 = vector.load %arg14[%c80_154, %c32_155] : memref<128x128xbf16, #tpu.memory_space<vmem>>, vector<16x32xbf16>
    tpu.vector_store %arg14[%c80_154, %c32_155], %498 {strides = array<i32>} : memref<128x128xbf16, #tpu.memory_space<vmem>>, vector<16x32xbf16>,
    %500 = vector.extract_strided_slice %457 {offsets = [0, 64], sizes = [16, 32], strides = [1, 1]} : vector<16x128xbf16> to vector<16x32xbf16>
    %501 = vector.extract_strided_slice %458 {offsets = [0, 64], sizes = [16, 32], strides = [1, 1]} : vector<16x128xbf16> to vector<16x32xbf16>
    %502 = vector.extract_strided_slice %459 {offsets = [0, 64], sizes = [16, 32], strides = [1, 1]} : vector<16x128xbf16> to vector<16x32xbf16>
    %cst_156 = arith.constant dense<0.000000e+00> : vector<16x16xf32>
    %503 = tpu.matmul %500, %501, %cst_156 {dimension_numbers = #tpu.dot_dimension_numbers<[1], [1], [0], [0], [0, 0, 1, 0], [], []>} : vector<16x32xbf16>, vector<16x32xbf16>, vector<16x16xf32> -> vector<16x16xf32>
    %504 = vector.broadcast %456 : vector<1x16xf32> to vector<16x16xf32>
    %505 = arith.addf %503, %504 : vector<16x16xf32>
    %cst_157 = arith.constant dense<0xFF800000> : vector<16xf32>
    %506 = vector.multi_reduction <maximumf>, %505, %cst_157 [1] : vector<16x16xf32> to vector<16xf32>
    %507 = vector.shape_cast %506 : vector<16xf32> to vector<16x1xf32>
    %508 = vector.broadcast %507 : vector<16x1xf32> to vector<16x16xf32>
    %509 = arith.subf %505, %508 : vector<16x16xf32>
    %510 = math.exp %509 : vector<16x16xf32>
    %cst_158 = arith.constant dense<0.000000e+00> : vector<16xf32>
    %511 = vector.multi_reduction <add>, %510, %cst_158 [1] : vector<16x16xf32> to vector<16xf32>
    %512 = vector.shape_cast %511 : vector<16xf32> to vector<16x1xf32>
    %513 = tpu.reciprocal %512 {approx = true} : vector<16x1xf32> -> vector<16x1xf32>
    %514 = arith.truncf %510 : vector<16x16xf32> to vector<16x16xbf16>
    %cst_159 = arith.constant dense<0.000000e+00> : vector<16x32xf32>
    %515 = tpu.matmul %514, %502, %cst_159 {dimension_numbers = #tpu.dot_dimension_numbers<[1], [0], [0], [1], [0, 0, 1, 1], [], []>} : vector<16x16xbf16>, vector<16x32xbf16>, vector<16x32xf32> -> vector<16x32xf32>
    %516 = vector.broadcast %513 : vector<16x1xf32> to vector<16x32xf32>
    %517 = arith.mulf %515, %516 : vector<16x32xf32>
    %518 = arith.truncf %517 : vector<16x32xf32> to vector<16x32xbf16>
    %c80_160 = arith.constant 80 : index
    %c64_161 = arith.constant 64 : index
    %519 = vector.load %arg14[%c80_160, %c64_161] : memref<128x128xbf16, #tpu.memory_space<vmem>>, vector<16x32xbf16>
    tpu.vector_store %arg14[%c80_160, %c64_161], %518 {strides = array<i32>} : memref<128x128xbf16, #tpu.memory_space<vmem>>, vector<16x32xbf16>,
    %520 = vector.extract_strided_slice %457 {offsets = [0, 96], sizes = [16, 32], strides = [1, 1]} : vector<16x128xbf16> to vector<16x32xbf16>
    %521 = vector.extract_strided_slice %458 {offsets = [0, 96], sizes = [16, 32], strides = [1, 1]} : vector<16x128xbf16> to vector<16x32xbf16>
    %522 = vector.extract_strided_slice %459 {offsets = [0, 96], sizes = [16, 32], strides = [1, 1]} : vector<16x128xbf16> to vector<16x32xbf16>
    %cst_162 = arith.constant dense<0.000000e+00> : vector<16x16xf32>
    %523 = tpu.matmul %520, %521, %cst_162 {dimension_numbers = #tpu.dot_dimension_numbers<[1], [1], [0], [0], [0, 0, 1, 0], [], []>} : vector<16x32xbf16>, vector<16x32xbf16>, vector<16x16xf32> -> vector<16x16xf32>
    %524 = vector.broadcast %456 : vector<1x16xf32> to vector<16x16xf32>
    %525 = arith.addf %523, %524 : vector<16x16xf32>
    %cst_163 = arith.constant dense<0xFF800000> : vector<16xf32>
    %526 = vector.multi_reduction <maximumf>, %525, %cst_163 [1] : vector<16x16xf32> to vector<16xf32>
    %527 = vector.shape_cast %526 : vector<16xf32> to vector<16x1xf32>
    %528 = vector.broadcast %527 : vector<16x1xf32> to vector<16x16xf32>
    %529 = arith.subf %525, %528 : vector<16x16xf32>
    %530 = math.exp %529 : vector<16x16xf32>
    %cst_164 = arith.constant dense<0.000000e+00> : vector<16xf32>
    %531 = vector.multi_reduction <add>, %530, %cst_164 [1] : vector<16x16xf32> to vector<16xf32>
    %532 = vector.shape_cast %531 : vector<16xf32> to vector<16x1xf32>
    %533 = tpu.reciprocal %532 {approx = true} : vector<16x1xf32> -> vector<16x1xf32>
    %534 = arith.truncf %530 : vector<16x16xf32> to vector<16x16xbf16>
    %cst_165 = arith.constant dense<0.000000e+00> : vector<16x32xf32>
    %535 = tpu.matmul %534, %522, %cst_165 {dimension_numbers = #tpu.dot_dimension_numbers<[1], [0], [0], [1], [0, 0, 1, 1], [], []>} : vector<16x16xbf16>, vector<16x32xbf16>, vector<16x32xf32> -> vector<16x32xf32>
    %536 = vector.broadcast %533 : vector<16x1xf32> to vector<16x32xf32>
    %537 = arith.mulf %535, %536 : vector<16x32xf32>
    %538 = arith.truncf %537 : vector<16x32xf32> to vector<16x32xbf16>
    %c80_166 = arith.constant 80 : index
    %c96_167 = arith.constant 96 : index
    %539 = vector.load %arg14[%c80_166, %c96_167] : memref<128x128xbf16, #tpu.memory_space<vmem>>, vector<16x32xbf16>
    tpu.vector_store %arg14[%c80_166, %c96_167], %538 {strides = array<i32>} : memref<128x128xbf16, #tpu.memory_space<vmem>>, vector<16x32xbf16>,
    %c6 = arith.constant 6 : index
    %c0_168 = arith.constant 0 : index
    %c0_169 = arith.constant 0 : index
    %540 = vector.load %arg3[%c6, %c0_168, %c0_169] : memref<8x1x16xf32, #tpu.memory_space<vmem>>, vector<1x1x16xf32>
    %541 = vector.shape_cast %540 : vector<1x1x16xf32> to vector<1x16xf32>
    %542 = vector.extract_strided_slice %27 {offsets = [96, 0], sizes = [16, 128], strides = [1, 1]} : vector<128x128xbf16> to vector<16x128xbf16>
    %543 = vector.extract_strided_slice %28 {offsets = [96, 0], sizes = [16, 128], strides = [1, 1]} : vector<128x128xbf16> to vector<16x128xbf16>
    %544 = vector.extract_strided_slice %29 {offsets = [96, 0], sizes = [16, 128], strides = [1, 1]} : vector<128x128xbf16> to vector<16x128xbf16>
    %545 = vector.extract_strided_slice %542 {offsets = [0, 0], sizes = [16, 32], strides = [1, 1]} : vector<16x128xbf16> to vector<16x32xbf16>
    %546 = vector.extract_strided_slice %543 {offsets = [0, 0], sizes = [16, 32], strides = [1, 1]} : vector<16x128xbf16> to vector<16x32xbf16>
    %547 = vector.extract_strided_slice %544 {offsets = [0, 0], sizes = [16, 32], strides = [1, 1]} : vector<16x128xbf16> to vector<16x32xbf16>
    %cst_170 = arith.constant dense<0.000000e+00> : vector<16x16xf32>
    %548 = tpu.matmul %545, %546, %cst_170 {dimension_numbers = #tpu.dot_dimension_numbers<[1], [1], [0], [0], [0, 0, 1, 0], [], []>} : vector<16x32xbf16>, vector<16x32xbf16>, vector<16x16xf32> -> vector<16x16xf32>
    %549 = vector.broadcast %541 : vector<1x16xf32> to vector<16x16xf32>
    %550 = arith.addf %548, %549 : vector<16x16xf32>
    %cst_171 = arith.constant dense<0xFF800000> : vector<16xf32>
    %551 = vector.multi_reduction <maximumf>, %550, %cst_171 [1] : vector<16x16xf32> to vector<16xf32>
    %552 = vector.shape_cast %551 : vector<16xf32> to vector<16x1xf32>
    %553 = vector.broadcast %552 : vector<16x1xf32> to vector<16x16xf32>
    %554 = arith.subf %550, %553 : vector<16x16xf32>
    %555 = math.exp %554 : vector<16x16xf32>
    %cst_172 = arith.constant dense<0.000000e+00> : vector<16xf32>
    %556 = vector.multi_reduction <add>, %555, %cst_172 [1] : vector<16x16xf32> to vector<16xf32>
    %557 = vector.shape_cast %556 : vector<16xf32> to vector<16x1xf32>
    %558 = tpu.reciprocal %557 {approx = true} : vector<16x1xf32> -> vector<16x1xf32>
    %559 = arith.truncf %555 : vector<16x16xf32> to vector<16x16xbf16>
    %cst_173 = arith.constant dense<0.000000e+00> : vector<16x32xf32>
    %560 = tpu.matmul %559, %547, %cst_173 {dimension_numbers = #tpu.dot_dimension_numbers<[1], [0], [0], [1], [0, 0, 1, 1], [], []>} : vector<16x16xbf16>, vector<16x32xbf16>, vector<16x32xf32> -> vector<16x32xf32>
    %561 = vector.broadcast %558 : vector<16x1xf32> to vector<16x32xf32>
    %562 = arith.mulf %560, %561 : vector<16x32xf32>
    %563 = arith.truncf %562 : vector<16x32xf32> to vector<16x32xbf16>
    %c96_174 = arith.constant 96 : index
    %c0_175 = arith.constant 0 : index
    %564 = vector.load %arg14[%c96_174, %c0_175] : memref<128x128xbf16, #tpu.memory_space<vmem>>, vector<16x32xbf16>
    tpu.vector_store %arg14[%c96_174, %c0_175], %563 {strides = array<i32>} : memref<128x128xbf16, #tpu.memory_space<vmem>>, vector<16x32xbf16>,
    %565 = vector.extract_strided_slice %542 {offsets = [0, 32], sizes = [16, 32], strides = [1, 1]} : vector<16x128xbf16> to vector<16x32xbf16>
    %566 = vector.extract_strided_slice %543 {offsets = [0, 32], sizes = [16, 32], strides = [1, 1]} : vector<16x128xbf16> to vector<16x32xbf16>
    %567 = vector.extract_strided_slice %544 {offsets = [0, 32], sizes = [16, 32], strides = [1, 1]} : vector<16x128xbf16> to vector<16x32xbf16>
    %cst_176 = arith.constant dense<0.000000e+00> : vector<16x16xf32>
    %568 = tpu.matmul %565, %566, %cst_176 {dimension_numbers = #tpu.dot_dimension_numbers<[1], [1], [0], [0], [0, 0, 1, 0], [], []>} : vector<16x32xbf16>, vector<16x32xbf16>, vector<16x16xf32> -> vector<16x16xf32>
    %569 = vector.broadcast %541 : vector<1x16xf32> to vector<16x16xf32>
    %570 = arith.addf %568, %569 : vector<16x16xf32>
    %cst_177 = arith.constant dense<0xFF800000> : vector<16xf32>
    %571 = vector.multi_reduction <maximumf>, %570, %cst_177 [1] : vector<16x16xf32> to vector<16xf32>
    %572 = vector.shape_cast %571 : vector<16xf32> to vector<16x1xf32>
    %573 = vector.broadcast %572 : vector<16x1xf32> to vector<16x16xf32>
    %574 = arith.subf %570, %573 : vector<16x16xf32>
    %575 = math.exp %574 : vector<16x16xf32>
    %cst_178 = arith.constant dense<0.000000e+00> : vector<16xf32>
    %576 = vector.multi_reduction <add>, %575, %cst_178 [1] : vector<16x16xf32> to vector<16xf32>
    %577 = vector.shape_cast %576 : vector<16xf32> to vector<16x1xf32>
    %578 = tpu.reciprocal %577 {approx = true} : vector<16x1xf32> -> vector<16x1xf32>
    %579 = arith.truncf %575 : vector<16x16xf32> to vector<16x16xbf16>
    %cst_179 = arith.constant dense<0.000000e+00> : vector<16x32xf32>
    %580 = tpu.matmul %579, %567, %cst_179 {dimension_numbers = #tpu.dot_dimension_numbers<[1], [0], [0], [1], [0, 0, 1, 1], [], []>} : vector<16x16xbf16>, vector<16x32xbf16>, vector<16x32xf32> -> vector<16x32xf32>
    %581 = vector.broadcast %578 : vector<16x1xf32> to vector<16x32xf32>
    %582 = arith.mulf %580, %581 : vector<16x32xf32>
    %583 = arith.truncf %582 : vector<16x32xf32> to vector<16x32xbf16>
    %c96_180 = arith.constant 96 : index
    %c32_181 = arith.constant 32 : index
    %584 = vector.load %arg14[%c96_180, %c32_181] : memref<128x128xbf16, #tpu.memory_space<vmem>>, vector<16x32xbf16>
    tpu.vector_store %arg14[%c96_180, %c32_181], %583 {strides = array<i32>} : memref<128x128xbf16, #tpu.memory_space<vmem>>, vector<16x32xbf16>,
    %585 = vector.extract_strided_slice %542 {offsets = [0, 64], sizes = [16, 32], strides = [1, 1]} : vector<16x128xbf16> to vector<16x32xbf16>
    %586 = vector.extract_strided_slice %543 {offsets = [0, 64], sizes = [16, 32], strides = [1, 1]} : vector<16x128xbf16> to vector<16x32xbf16>
    %587 = vector.extract_strided_slice %544 {offsets = [0, 64], sizes = [16, 32], strides = [1, 1]} : vector<16x128xbf16> to vector<16x32xbf16>
    %cst_182 = arith.constant dense<0.000000e+00> : vector<16x16xf32>
    %588 = tpu.matmul %585, %586, %cst_182 {dimension_numbers = #tpu.dot_dimension_numbers<[1], [1], [0], [0], [0, 0, 1, 0], [], []>} : vector<16x32xbf16>, vector<16x32xbf16>, vector<16x16xf32> -> vector<16x16xf32>
    %589 = vector.broadcast %541 : vector<1x16xf32> to vector<16x16xf32>
    %590 = arith.addf %588, %589 : vector<16x16xf32>
    %cst_183 = arith.constant dense<0xFF800000> : vector<16xf32>
    %591 = vector.multi_reduction <maximumf>, %590, %cst_183 [1] : vector<16x16xf32> to vector<16xf32>
    %592 = vector.shape_cast %591 : vector<16xf32> to vector<16x1xf32>
    %593 = vector.broadcast %592 : vector<16x1xf32> to vector<16x16xf32>
    %594 = arith.subf %590, %593 : vector<16x16xf32>
    %595 = math.exp %594 : vector<16x16xf32>
    %cst_184 = arith.constant dense<0.000000e+00> : vector<16xf32>
    %596 = vector.multi_reduction <add>, %595, %cst_184 [1] : vector<16x16xf32> to vector<16xf32>
    %597 = vector.shape_cast %596 : vector<16xf32> to vector<16x1xf32>
    %598 = tpu.reciprocal %597 {approx = true} : vector<16x1xf32> -> vector<16x1xf32>
    %599 = arith.truncf %595 : vector<16x16xf32> to vector<16x16xbf16>
    %cst_185 = arith.constant dense<0.000000e+00> : vector<16x32xf32>
    %600 = tpu.matmul %599, %587, %cst_185 {dimension_numbers = #tpu.dot_dimension_numbers<[1], [0], [0], [1], [0, 0, 1, 1], [], []>} : vector<16x16xbf16>, vector<16x32xbf16>, vector<16x32xf32> -> vector<16x32xf32>
    %601 = vector.broadcast %598 : vector<16x1xf32> to vector<16x32xf32>
    %602 = arith.mulf %600, %601 : vector<16x32xf32>
    %603 = arith.truncf %602 : vector<16x32xf32> to vector<16x32xbf16>
    %c96_186 = arith.constant 96 : index
    %c64_187 = arith.constant 64 : index
    %604 = vector.load %arg14[%c96_186, %c64_187] : memref<128x128xbf16, #tpu.memory_space<vmem>>, vector<16x32xbf16>
    tpu.vector_store %arg14[%c96_186, %c64_187], %603 {strides = array<i32>} : memref<128x128xbf16, #tpu.memory_space<vmem>>, vector<16x32xbf16>,
    %605 = vector.extract_strided_slice %542 {offsets = [0, 96], sizes = [16, 32], strides = [1, 1]} : vector<16x128xbf16> to vector<16x32xbf16>
    %606 = vector.extract_strided_slice %543 {offsets = [0, 96], sizes = [16, 32], strides = [1, 1]} : vector<16x128xbf16> to vector<16x32xbf16>
    %607 = vector.extract_strided_slice %544 {offsets = [0, 96], sizes = [16, 32], strides = [1, 1]} : vector<16x128xbf16> to vector<16x32xbf16>
    %cst_188 = arith.constant dense<0.000000e+00> : vector<16x16xf32>
    %608 = tpu.matmul %605, %606, %cst_188 {dimension_numbers = #tpu.dot_dimension_numbers<[1], [1], [0], [0], [0, 0, 1, 0], [], []>} : vector<16x32xbf16>, vector<16x32xbf16>, vector<16x16xf32> -> vector<16x16xf32>
    %609 = vector.broadcast %541 : vector<1x16xf32> to vector<16x16xf32>
    %610 = arith.addf %608, %609 : vector<16x16xf32>
    %cst_189 = arith.constant dense<0xFF800000> : vector<16xf32>
    %611 = vector.multi_reduction <maximumf>, %610, %cst_189 [1] : vector<16x16xf32> to vector<16xf32>
    %612 = vector.shape_cast %611 : vector<16xf32> to vector<16x1xf32>
    %613 = vector.broadcast %612 : vector<16x1xf32> to vector<16x16xf32>
    %614 = arith.subf %610, %613 : vector<16x16xf32>
    %615 = math.exp %614 : vector<16x16xf32>
    %cst_190 = arith.constant dense<0.000000e+00> : vector<16xf32>
    %616 = vector.multi_reduction <add>, %615, %cst_190 [1] : vector<16x16xf32> to vector<16xf32>
    %617 = vector.shape_cast %616 : vector<16xf32> to vector<16x1xf32>
    %618 = tpu.reciprocal %617 {approx = true} : vector<16x1xf32> -> vector<16x1xf32>
    %619 = arith.truncf %615 : vector<16x16xf32> to vector<16x16xbf16>
    %cst_191 = arith.constant dense<0.000000e+00> : vector<16x32xf32>
    %620 = tpu.matmul %619, %607, %cst_191 {dimension_numbers = #tpu.dot_dimension_numbers<[1], [0], [0], [1], [0, 0, 1, 1], [], []>} : vector<16x16xbf16>, vector<16x32xbf16>, vector<16x32xf32> -> vector<16x32xf32>
    %621 = vector.broadcast %618 : vector<16x1xf32> to vector<16x32xf32>
    %622 = arith.mulf %620, %621 : vector<16x32xf32>
    %623 = arith.truncf %622 : vector<16x32xf32> to vector<16x32xbf16>
    %c96_192 = arith.constant 96 : index
    %c96_193 = arith.constant 96 : index
    %624 = vector.load %arg14[%c96_192, %c96_193] : memref<128x128xbf16, #tpu.memory_space<vmem>>, vector<16x32xbf16>
    tpu.vector_store %arg14[%c96_192, %c96_193], %623 {strides = array<i32>} : memref<128x128xbf16, #tpu.memory_space<vmem>>, vector<16x32xbf16>,
    %c7 = arith.constant 7 : index
    %c0_194 = arith.constant 0 : index
    %c0_195 = arith.constant 0 : index
    %625 = vector.load %arg3[%c7, %c0_194, %c0_195] : memref<8x1x16xf32, #tpu.memory_space<vmem>>, vector<1x1x16xf32>
    %626 = vector.shape_cast %625 : vector<1x1x16xf32> to vector<1x16xf32>
    %627 = vector.extract_strided_slice %27 {offsets = [112, 0], sizes = [16, 128], strides = [1, 1]} : vector<128x128xbf16> to vector<16x128xbf16>
    %628 = vector.extract_strided_slice %28 {offsets = [112, 0], sizes = [16, 128], strides = [1, 1]} : vector<128x128xbf16> to vector<16x128xbf16>
    %629 = vector.extract_strided_slice %29 {offsets = [112, 0], sizes = [16, 128], strides = [1, 1]} : vector<128x128xbf16> to vector<16x128xbf16>
    %630 = vector.extract_strided_slice %627 {offsets = [0, 0], sizes = [16, 32], strides = [1, 1]} : vector<16x128xbf16> to vector<16x32xbf16>
    %631 = vector.extract_strided_slice %628 {offsets = [0, 0], sizes = [16, 32], strides = [1, 1]} : vector<16x128xbf16> to vector<16x32xbf16>
    %632 = vector.extract_strided_slice %629 {offsets = [0, 0], sizes = [16, 32], strides = [1, 1]} : vector<16x128xbf16> to vector<16x32xbf16>
    %cst_196 = arith.constant dense<0.000000e+00> : vector<16x16xf32>
    %633 = tpu.matmul %630, %631, %cst_196 {dimension_numbers = #tpu.dot_dimension_numbers<[1], [1], [0], [0], [0, 0, 1, 0], [], []>} : vector<16x32xbf16>, vector<16x32xbf16>, vector<16x16xf32> -> vector<16x16xf32>
    %634 = vector.broadcast %626 : vector<1x16xf32> to vector<16x16xf32>
    %635 = arith.addf %633, %634 : vector<16x16xf32>
    %cst_197 = arith.constant dense<0xFF800000> : vector<16xf32>
    %636 = vector.multi_reduction <maximumf>, %635, %cst_197 [1] : vector<16x16xf32> to vector<16xf32>
    %637 = vector.shape_cast %636 : vector<16xf32> to vector<16x1xf32>
    %638 = vector.broadcast %637 : vector<16x1xf32> to vector<16x16xf32>
    %639 = arith.subf %635, %638 : vector<16x16xf32>
    %640 = math.exp %639 : vector<16x16xf32>
    %cst_198 = arith.constant dense<0.000000e+00> : vector<16xf32>
    %641 = vector.multi_reduction <add>, %640, %cst_198 [1] : vector<16x16xf32> to vector<16xf32>
    %642 = vector.shape_cast %641 : vector<16xf32> to vector<16x1xf32>
    %643 = tpu.reciprocal %642 {approx = true} : vector<16x1xf32> -> vector<16x1xf32>
    %644 = arith.truncf %640 : vector<16x16xf32> to vector<16x16xbf16>
    %cst_199 = arith.constant dense<0.000000e+00> : vector<16x32xf32>
    %645 = tpu.matmul %644, %632, %cst_199 {dimension_numbers = #tpu.dot_dimension_numbers<[1], [0], [0], [1], [0, 0, 1, 1], [], []>} : vector<16x16xbf16>, vector<16x32xbf16>, vector<16x32xf32> -> vector<16x32xf32>
    %646 = vector.broadcast %643 : vector<16x1xf32> to vector<16x32xf32>
    %647 = arith.mulf %645, %646 : vector<16x32xf32>
    %648 = arith.truncf %647 : vector<16x32xf32> to vector<16x32xbf16>
    %c112 = arith.constant 112 : index
    %c0_200 = arith.constant 0 : index
    %649 = vector.load %arg14[%c112, %c0_200] : memref<128x128xbf16, #tpu.memory_space<vmem>>, vector<16x32xbf16>
    tpu.vector_store %arg14[%c112, %c0_200], %648 {strides = array<i32>} : memref<128x128xbf16, #tpu.memory_space<vmem>>, vector<16x32xbf16>,
    %650 = vector.extract_strided_slice %627 {offsets = [0, 32], sizes = [16, 32], strides = [1, 1]} : vector<16x128xbf16> to vector<16x32xbf16>
    %651 = vector.extract_strided_slice %628 {offsets = [0, 32], sizes = [16, 32], strides = [1, 1]} : vector<16x128xbf16> to vector<16x32xbf16>
    %652 = vector.extract_strided_slice %629 {offsets = [0, 32], sizes = [16, 32], strides = [1, 1]} : vector<16x128xbf16> to vector<16x32xbf16>
    %cst_201 = arith.constant dense<0.000000e+00> : vector<16x16xf32>
    %653 = tpu.matmul %650, %651, %cst_201 {dimension_numbers = #tpu.dot_dimension_numbers<[1], [1], [0], [0], [0, 0, 1, 0], [], []>} : vector<16x32xbf16>, vector<16x32xbf16>, vector<16x16xf32> -> vector<16x16xf32>
    %654 = vector.broadcast %626 : vector<1x16xf32> to vector<16x16xf32>
    %655 = arith.addf %653, %654 : vector<16x16xf32>
    %cst_202 = arith.constant dense<0xFF800000> : vector<16xf32>
    %656 = vector.multi_reduction <maximumf>, %655, %cst_202 [1] : vector<16x16xf32> to vector<16xf32>
    %657 = vector.shape_cast %656 : vector<16xf32> to vector<16x1xf32>
    %658 = vector.broadcast %657 : vector<16x1xf32> to vector<16x16xf32>
    %659 = arith.subf %655, %658 : vector<16x16xf32>
    %660 = math.exp %659 : vector<16x16xf32>
    %cst_203 = arith.constant dense<0.000000e+00> : vector<16xf32>
    %661 = vector.multi_reduction <add>, %660, %cst_203 [1] : vector<16x16xf32> to vector<16xf32>
    %662 = vector.shape_cast %661 : vector<16xf32> to vector<16x1xf32>
    %663 = tpu.reciprocal %662 {approx = true} : vector<16x1xf32> -> vector<16x1xf32>
    %664 = arith.truncf %660 : vector<16x16xf32> to vector<16x16xbf16>
    %cst_204 = arith.constant dense<0.000000e+00> : vector<16x32xf32>
    %665 = tpu.matmul %664, %652, %cst_204 {dimension_numbers = #tpu.dot_dimension_numbers<[1], [0], [0], [1], [0, 0, 1, 1], [], []>} : vector<16x16xbf16>, vector<16x32xbf16>, vector<16x32xf32> -> vector<16x32xf32>
    %666 = vector.broadcast %663 : vector<16x1xf32> to vector<16x32xf32>
    %667 = arith.mulf %665, %666 : vector<16x32xf32>
    %668 = arith.truncf %667 : vector<16x32xf32> to vector<16x32xbf16>
    %c112_205 = arith.constant 112 : index
    %c32_206 = arith.constant 32 : index
    %669 = vector.load %arg14[%c112_205, %c32_206] : memref<128x128xbf16, #tpu.memory_space<vmem>>, vector<16x32xbf16>
    tpu.vector_store %arg14[%c112_205, %c32_206], %668 {strides = array<i32>} : memref<128x128xbf16, #tpu.memory_space<vmem>>, vector<16x32xbf16>,
    %670 = vector.extract_strided_slice %627 {offsets = [0, 64], sizes = [16, 32], strides = [1, 1]} : vector<16x128xbf16> to vector<16x32xbf16>
    %671 = vector.extract_strided_slice %628 {offsets = [0, 64], sizes = [16, 32], strides = [1, 1]} : vector<16x128xbf16> to vector<16x32xbf16>
    %672 = vector.extract_strided_slice %629 {offsets = [0, 64], sizes = [16, 32], strides = [1, 1]} : vector<16x128xbf16> to vector<16x32xbf16>
    %cst_207 = arith.constant dense<0.000000e+00> : vector<16x16xf32>
    %673 = tpu.matmul %670, %671, %cst_207 {dimension_numbers = #tpu.dot_dimension_numbers<[1], [1], [0], [0], [0, 0, 1, 0], [], []>} : vector<16x32xbf16>, vector<16x32xbf16>, vector<16x16xf32> -> vector<16x16xf32>
    %674 = vector.broadcast %626 : vector<1x16xf32> to vector<16x16xf32>
    %675 = arith.addf %673, %674 : vector<16x16xf32>
    %cst_208 = arith.constant dense<0xFF800000> : vector<16xf32>
    %676 = vector.multi_reduction <maximumf>, %675, %cst_208 [1] : vector<16x16xf32> to vector<16xf32>
    %677 = vector.shape_cast %676 : vector<16xf32> to vector<16x1xf32>
    %678 = vector.broadcast %677 : vector<16x1xf32> to vector<16x16xf32>
    %679 = arith.subf %675, %678 : vector<16x16xf32>
    %680 = math.exp %679 : vector<16x16xf32>
    %cst_209 = arith.constant dense<0.000000e+00> : vector<16xf32>
    %681 = vector.multi_reduction <add>, %680, %cst_209 [1] : vector<16x16xf32> to vector<16xf32>
    %682 = vector.shape_cast %681 : vector<16xf32> to vector<16x1xf32>
    %683 = tpu.reciprocal %682 {approx = true} : vector<16x1xf32> -> vector<16x1xf32>
    %684 = arith.truncf %680 : vector<16x16xf32> to vector<16x16xbf16>
    %cst_210 = arith.constant dense<0.000000e+00> : vector<16x32xf32>
    %685 = tpu.matmul %684, %672, %cst_210 {dimension_numbers = #tpu.dot_dimension_numbers<[1], [0], [0], [1], [0, 0, 1, 1], [], []>} : vector<16x16xbf16>, vector<16x32xbf16>, vector<16x32xf32> -> vector<16x32xf32>
    %686 = vector.broadcast %683 : vector<16x1xf32> to vector<16x32xf32>
    %687 = arith.mulf %685, %686 : vector<16x32xf32>
    %688 = arith.truncf %687 : vector<16x32xf32> to vector<16x32xbf16>
    %c112_211 = arith.constant 112 : index
    %c64_212 = arith.constant 64 : index
    %689 = vector.load %arg14[%c112_211, %c64_212] : memref<128x128xbf16, #tpu.memory_space<vmem>>, vector<16x32xbf16>
    tpu.vector_store %arg14[%c112_211, %c64_212], %688 {strides = array<i32>} : memref<128x128xbf16, #tpu.memory_space<vmem>>, vector<16x32xbf16>,
    %690 = vector.extract_strided_slice %627 {offsets = [0, 96], sizes = [16, 32], strides = [1, 1]} : vector<16x128xbf16> to vector<16x32xbf16>
    %691 = vector.extract_strided_slice %628 {offsets = [0, 96], sizes = [16, 32], strides = [1, 1]} : vector<16x128xbf16> to vector<16x32xbf16>
    %692 = vector.extract_strided_slice %629 {offsets = [0, 96], sizes = [16, 32], strides = [1, 1]} : vector<16x128xbf16> to vector<16x32xbf16>
    %cst_213 = arith.constant dense<0.000000e+00> : vector<16x16xf32>
    %693 = tpu.matmul %690, %691, %cst_213 {dimension_numbers = #tpu.dot_dimension_numbers<[1], [1], [0], [0], [0, 0, 1, 0], [], []>} : vector<16x32xbf16>, vector<16x32xbf16>, vector<16x16xf32> -> vector<16x16xf32>
    %694 = vector.broadcast %626 : vector<1x16xf32> to vector<16x16xf32>
    %695 = arith.addf %693, %694 : vector<16x16xf32>
    %cst_214 = arith.constant dense<0xFF800000> : vector<16xf32>
    %696 = vector.multi_reduction <maximumf>, %695, %cst_214 [1] : vector<16x16xf32> to vector<16xf32>
    %697 = vector.shape_cast %696 : vector<16xf32> to vector<16x1xf32>
    %698 = vector.broadcast %697 : vector<16x1xf32> to vector<16x16xf32>
    %699 = arith.subf %695, %698 : vector<16x16xf32>
    %700 = math.exp %699 : vector<16x16xf32>
    %cst_215 = arith.constant dense<0.000000e+00> : vector<16xf32>
    %701 = vector.multi_reduction <add>, %700, %cst_215 [1] : vector<16x16xf32> to vector<16xf32>
    %702 = vector.shape_cast %701 : vector<16xf32> to vector<16x1xf32>
    %703 = tpu.reciprocal %702 {approx = true} : vector<16x1xf32> -> vector<16x1xf32>
    %704 = arith.truncf %700 : vector<16x16xf32> to vector<16x16xbf16>
    %cst_216 = arith.constant dense<0.000000e+00> : vector<16x32xf32>
    %705 = tpu.matmul %704, %692, %cst_216 {dimension_numbers = #tpu.dot_dimension_numbers<[1], [0], [0], [1], [0, 0, 1, 1], [], []>} : vector<16x16xbf16>, vector<16x32xbf16>, vector<16x32xf32> -> vector<16x32xf32>
    %706 = vector.broadcast %703 : vector<16x1xf32> to vector<16x32xf32>
    %707 = arith.mulf %705, %706 : vector<16x32xf32>
    %708 = arith.truncf %707 : vector<16x32xf32> to vector<16x32xbf16>
    %c112_217 = arith.constant 112 : index
    %c96_218 = arith.constant 96 : index
    %709 = vector.load %arg14[%c112_217, %c96_218] : memref<128x128xbf16, #tpu.memory_space<vmem>>, vector<16x32xbf16>
    tpu.vector_store %arg14[%c112_217, %c96_218], %708 {strides = array<i32>} : memref<128x128xbf16, #tpu.memory_space<vmem>>, vector<16x32xbf16>,
    %c0_219 = arith.constant 0 : index
    %c0_220 = arith.constant 0 : index
    %710 = vector.load %arg14[%c0_219, %c0_220] : memref<128x128xbf16, #tpu.memory_space<vmem>>, vector<128x128xbf16>
    %c0_221 = arith.constant 0 : index
    %c0_222 = arith.constant 0 : index
    %c0_223 = arith.constant 0 : index
    %711 = vector.load %arg7[%c0_221, %c0_222, %c0_223] : memref<1x128x128xbf16, #tpu.memory_space<vmem>>, vector<1x128x128xbf16>
    %712 = vector.shape_cast %711 : vector<1x128x128xbf16> to vector<128x128xbf16>
    %cst_224 = arith.constant dense<0.000000e+00> : vector<128x128xf32>
    %713 = tpu.matmul %710, %712, %cst_224 {dimension_numbers = #tpu.dot_dimension_numbers<[1], [0], [0], [1], [0, 0, 1, 1], [], []>} : vector<128x128xbf16>, vector<128x128xbf16>, vector<128x128xf32> -> vector<128x128xf32>
    %714 = vector.extract_strided_slice %5 {offsets = [3, 0], sizes = [1, 128], strides = [1, 1]} : vector<16x128xf32> to vector<1x128xf32>
    %715 = vector.broadcast %714 : vector<1x128xf32> to vector<128x128xf32>
    %716 = arith.addf %713, %715 : vector<128x128xf32>
    %717 = arith.addf %716, %3 : vector<128x128xf32>
    %718 = vector.extract_strided_slice %5 {offsets = [5, 0], sizes = [1, 128], strides = [1, 1]} : vector<16x128xf32> to vector<1x128xf32>
    %719 = vector.extract_strided_slice %5 {offsets = [6, 0], sizes = [1, 128], strides = [1, 1]} : vector<16x128xf32> to vector<1x128xf32>
    %cst_225 = arith.constant dense<0.000000e+00> : vector<128xf32>
    %720 = vector.multi_reduction <add>, %717, %cst_225 [1] : vector<128x128xf32> to vector<128xf32>
    %721 = vector.shape_cast %720 : vector<128xf32> to vector<128x1xf32>
    %cst_226 = arith.constant 1.280000e+02 : f32
    %722 = vector.broadcast %cst_226 : f32 to vector<128x1xf32>
    %723 = arith.divf %721, %722 : vector<128x1xf32>
    %724 = vector.broadcast %723 : vector<128x1xf32> to vector<128x128xf32>
    %725 = arith.subf %717, %724 : vector<128x128xf32>
    %726 = arith.mulf %725, %725 : vector<128x128xf32>
    %cst_227 = arith.constant dense<0.000000e+00> : vector<128xf32>
    %727 = vector.multi_reduction <add>, %726, %cst_227 [1] : vector<128x128xf32> to vector<128xf32>
    %728 = vector.shape_cast %727 : vector<128xf32> to vector<128x1xf32>
    %cst_228 = arith.constant 1.280000e+02 : f32
    %729 = vector.broadcast %cst_228 : f32 to vector<128x1xf32>
    %730 = arith.divf %728, %729 : vector<128x1xf32>
    %cst_229 = arith.constant 9.99999974E-6 : f32
    %731 = vector.broadcast %cst_229 : f32 to vector<128x1xf32>
    %732 = arith.addf %730, %731 : vector<128x1xf32>
    %733 = math.rsqrt %732 : vector<128x1xf32>
    %734 = vector.broadcast %733 : vector<128x1xf32> to vector<128x128xf32>
    %735 = arith.mulf %725, %734 : vector<128x128xf32>
    %736 = vector.broadcast %718 : vector<1x128xf32> to vector<128x128xf32>
    %737 = arith.mulf %735, %736 : vector<128x128xf32>
    %738 = vector.broadcast %719 : vector<1x128xf32> to vector<128x128xf32>
    %739 = arith.addf %737, %738 : vector<128x128xf32>
    %740 = arith.truncf %739 : vector<128x128xf32> to vector<128x128xbf16>
    %c0_230 = arith.constant 0 : index
    %c0_231 = arith.constant 0 : index
    %c0_232 = arith.constant 0 : index
    %741 = vector.load %arg8[%c0_230, %c0_231, %c0_232] : memref<1x128x256xbf16, #tpu.memory_space<vmem>>, vector<1x128x256xbf16>
    %742 = vector.shape_cast %741 : vector<1x128x256xbf16> to vector<128x256xbf16>
    %cst_233 = arith.constant dense<0.000000e+00> : vector<128x256xf32>
    %743 = tpu.matmul %740, %742, %cst_233 {dimension_numbers = #tpu.dot_dimension_numbers<[1], [0], [0], [1], [0, 0, 1, 1], [], []>} : vector<128x128xbf16>, vector<128x256xbf16>, vector<128x256xf32> -> vector<128x256xf32>
    %c0_234 = arith.constant 0 : index
    %c0_235 = arith.constant 0 : index
    %c0_236 = arith.constant 0 : index
    %744 = vector.load %arg11[%c0_234, %c0_235, %c0_236] : memref<1x1x256xf32, #tpu.memory_space<vmem>>, vector<1x1x256xf32>
    %745 = vector.shape_cast %744 : vector<1x1x256xf32> to vector<1x256xf32>
    %746 = vector.broadcast %745 : vector<1x256xf32> to vector<128x256xf32>
    %747 = arith.addf %743, %746 : vector<128x256xf32>
    %cst_237 = arith.constant 5.000000e-01 : f32
    %748 = vector.broadcast %cst_237 : f32 to vector<128x256xf32>
    %749 = arith.mulf %748, %747 : vector<128x256xf32>
    %cst_238 = arith.constant 0.707106769 : f32
    %750 = vector.broadcast %cst_238 : f32 to vector<128x256xf32>
    %751 = arith.mulf %747, %750 : vector<128x256xf32>
    %752 = math.erf %751 : vector<128x256xf32>
    %cst_239 = arith.constant 1.000000e+00 : f32
    %753 = vector.broadcast %cst_239 : f32 to vector<128x256xf32>
    %754 = arith.addf %753, %752 : vector<128x256xf32>
    %755 = arith.mulf %749, %754 : vector<128x256xf32>
    %756 = arith.truncf %755 : vector<128x256xf32> to vector<128x256xbf16>
    %c0_240 = arith.constant 0 : index
    %c0_241 = arith.constant 0 : index
    %c0_242 = arith.constant 0 : index
    %757 = vector.load %arg9[%c0_240, %c0_241, %c0_242] : memref<1x256x128xbf16, #tpu.memory_space<vmem>>, vector<1x256x128xbf16>
    %758 = vector.shape_cast %757 : vector<1x256x128xbf16> to vector<256x128xbf16>
    %cst_243 = arith.constant dense<0.000000e+00> : vector<128x128xf32>
    %759 = tpu.matmul %756, %758, %cst_243 {dimension_numbers = #tpu.dot_dimension_numbers<[1], [0], [0], [1], [0, 0, 1, 1], [], []>} : vector<128x256xbf16>, vector<256x128xbf16>, vector<128x128xf32> -> vector<128x128xf32>
    %760 = vector.extract_strided_slice %5 {offsets = [4, 0], sizes = [1, 128], strides = [1, 1]} : vector<16x128xf32> to vector<1x128xf32>
    %761 = vector.broadcast %760 : vector<1x128xf32> to vector<128x128xf32>
    %762 = arith.addf %759, %761 : vector<128x128xf32>
    %763 = arith.addf %762, %739 : vector<128x128xf32>
    %764 = vector.extract_strided_slice %5 {offsets = [7, 0], sizes = [1, 128], strides = [1, 1]} : vector<16x128xf32> to vector<1x128xf32>
    %765 = vector.extract_strided_slice %5 {offsets = [8, 0], sizes = [1, 128], strides = [1, 1]} : vector<16x128xf32> to vector<1x128xf32>
    %cst_244 = arith.constant dense<0.000000e+00> : vector<128xf32>
    %766 = vector.multi_reduction <add>, %763, %cst_244 [1] : vector<128x128xf32> to vector<128xf32>
    %767 = vector.shape_cast %766 : vector<128xf32> to vector<128x1xf32>
    %cst_245 = arith.constant 1.280000e+02 : f32
    %768 = vector.broadcast %cst_245 : f32 to vector<128x1xf32>
    %769 = arith.divf %767, %768 : vector<128x1xf32>
    %770 = vector.broadcast %769 : vector<128x1xf32> to vector<128x128xf32>
    %771 = arith.subf %763, %770 : vector<128x128xf32>
    %772 = arith.mulf %771, %771 : vector<128x128xf32>
    %cst_246 = arith.constant dense<0.000000e+00> : vector<128xf32>
    %773 = vector.multi_reduction <add>, %772, %cst_246 [1] : vector<128x128xf32> to vector<128xf32>
    %774 = vector.shape_cast %773 : vector<128xf32> to vector<128x1xf32>
    %cst_247 = arith.constant 1.280000e+02 : f32
    %775 = vector.broadcast %cst_247 : f32 to vector<128x1xf32>
    %776 = arith.divf %774, %775 : vector<128x1xf32>
    %cst_248 = arith.constant 9.99999974E-6 : f32
    %777 = vector.broadcast %cst_248 : f32 to vector<128x1xf32>
    %778 = arith.addf %776, %777 : vector<128x1xf32>
    %779 = math.rsqrt %778 : vector<128x1xf32>
    %780 = vector.broadcast %779 : vector<128x1xf32> to vector<128x128xf32>
    %781 = arith.mulf %771, %780 : vector<128x128xf32>
    %782 = vector.broadcast %764 : vector<1x128xf32> to vector<128x128xf32>
    %783 = arith.mulf %781, %782 : vector<128x128xf32>
    %784 = vector.broadcast %765 : vector<1x128xf32> to vector<128x128xf32>
    %785 = arith.addf %783, %784 : vector<128x128xf32>
    %c0_249 = arith.constant 0 : index
    %c0_250 = arith.constant 0 : index
    %786 = vector.load %arg13[%c0_249, %c0_250] : memref<128x128xf32, #tpu.memory_space<vmem>>, vector<128x128xf32>
    tpu.vector_store %arg13[%c0_249, %c0_250], %785 {strides = array<i32>} : memref<128x128xf32, #tpu.memory_space<vmem>>, vector<128x128xf32>,
    %c1_i32 = arith.constant 1 : i32
    %787 = arith.cmpi eq, %arg1, %c1_i32 : i32
    %788 = arith.extui %787 : i1 to i32
    %c0_i32_251 = arith.constant 0 : i32
    %789 = arith.cmpi ne, %788, %c0_i32_251 : i32
    scf.if %789 {
      %c0_252 = arith.constant 0 : index
      %c0_253 = arith.constant 0 : index
      %790 = vector.load %arg12[%c0_252, %c0_253] : memref<128x128xf32, #tpu.memory_space<vmem>>, vector<128x128xf32>
      tpu.vector_store %arg12[%c0_252, %c0_253], %785 {strides = array<i32>} : memref<128x128xf32, #tpu.memory_space<vmem>>, vector<128x128xf32>,
    } else {
    }
    return
  }
  func.func @transform_0(%arg0: i32, %arg1: i32) -> (i32, i32) {
    %c0_i32 = arith.constant 0 : i32
    %c0_i32_0 = arith.constant 0 : i32
    return %arg0, %c0_i32 : i32, i32
  }
  func.func @transform_1(%arg0: i32, %arg1: i32) -> (i32, i32, i32) {
    %c0_i32 = arith.constant 0 : i32
    %c0_i32_0 = arith.constant 0 : i32
    %c0_i32_1 = arith.constant 0 : i32
    return %arg0, %c0_i32, %c0_i32_0 : i32, i32, i32
  }
  func.func @transform_2(%arg0: i32, %arg1: i32) -> (i32, i32, i32) {
    %c0_i32 = arith.constant 0 : i32
    %c0_i32_0 = arith.constant 0 : i32
    %c0_i32_1 = arith.constant 0 : i32
    return %arg1, %c0_i32, %c0_i32_0 : i32, i32, i32
  }
  func.func @transform_3(%arg0: i32, %arg1: i32) -> (i32, i32, i32) {
    %c0_i32 = arith.constant 0 : i32
    %c0_i32_0 = arith.constant 0 : i32
    %c0_i32_1 = arith.constant 0 : i32
    return %arg1, %c0_i32, %c0_i32_0 : i32, i32, i32
  }
  func.func @transform_4(%arg0: i32, %arg1: i32) -> (i32, i32, i32) {
    %c0_i32 = arith.constant 0 : i32
    %c0_i32_0 = arith.constant 0 : i32
    %c0_i32_1 = arith.constant 0 : i32
    return %arg1, %c0_i32, %c0_i32_0 : i32, i32, i32
  }
  func.func @transform_5(%arg0: i32, %arg1: i32) -> (i32, i32, i32) {
    %c0_i32 = arith.constant 0 : i32
    %c0_i32_0 = arith.constant 0 : i32
    %c0_i32_1 = arith.constant 0 : i32
    return %arg1, %c0_i32, %c0_i32_0 : i32, i32, i32
  }
  func.func @transform_6(%arg0: i32, %arg1: i32) -> (i32, i32, i32) {
    %c0_i32 = arith.constant 0 : i32
    %c0_i32_0 = arith.constant 0 : i32
    %c0_i32_1 = arith.constant 0 : i32
    return %arg1, %c0_i32, %c0_i32_0 : i32, i32, i32
  }
  func.func @transform_7(%arg0: i32, %arg1: i32) -> (i32, i32, i32) {
    %c0_i32 = arith.constant 0 : i32
    %c0_i32_0 = arith.constant 0 : i32
    %c0_i32_1 = arith.constant 0 : i32
    return %arg1, %c0_i32, %c0_i32_0 : i32, i32, i32
  }
  func.func @transform_8(%arg0: i32, %arg1: i32) -> (i32, i32, i32) {
    %c0_i32 = arith.constant 0 : i32
    %c0_i32_0 = arith.constant 0 : i32
    %c0_i32_1 = arith.constant 0 : i32
    return %arg1, %c0_i32, %c0_i32_0 : i32, i32, i32
  }
  func.func @transform_9(%arg0: i32, %arg1: i32) -> (i32, i32, i32) {
    %c0_i32 = arith.constant 0 : i32
    %c0_i32_0 = arith.constant 0 : i32
    %c0_i32_1 = arith.constant 0 : i32
    return %arg1, %c0_i32, %c0_i32_0 : i32, i32, i32
  }
  func.func @transform_10(%arg0: i32, %arg1: i32) -> (i32, i32) {
    %c0_i32 = arith.constant 0 : i32
    %c0_i32_0 = arith.constant 0 : i32
    return %arg0, %c0_i32 : i32, i32
  }
}

</mosaic_0001>

<llo_original>
// kernel: tpu_custom_call.1
$region0: #{tpu_custom_call.1}
  #allocation0 [shape = 'u32[]', space=smem, size = 0x4, offset = 0x4, fixed_abs, tag = 'smem constant byte address 0x4 - core index']
  #allocation1 [shape = 'u32[144,128]{1,0:T(1,128)}', space=vmem, size = 0x12000, scoped, tag = 'internal scratch']
  #allocation2 [shape = 'f32[128,128]{1,0:T(8,128)}', space=vmem, size = 0x10000, scoped, tag = 'scratch operand']
  #allocation3 [shape = 'bf16[128,128]{1,0:T(8,128)(2,1)}', space=vmem, size = 0x8000, scoped, tag = 'scratch operand']
  %s0 = inlined_call_operand.hbm [shape: f32[256,128], index: 0, kind: input, shape index: {}]
  %s1 = inlined_call_operand.hbm [shape: f32[16,1,16], index: 1, kind: input, shape index: {}]
  %s2 = inlined_call_operand.hbm [shape: bf16[2,128,128], index: 2, kind: input, shape index: {}]
  %s3 = inlined_call_operand.hbm [shape: bf16[2,128,128], index: 3, kind: input, shape index: {}]
  %s4 = inlined_call_operand.hbm [shape: bf16[2,128,128], index: 4, kind: input, shape index: {}]
  %s5 = inlined_call_operand.hbm [shape: bf16[2,128,128], index: 5, kind: input, shape index: {}]
  %s6 = inlined_call_operand.hbm [shape: bf16[2,128,256], index: 6, kind: input, shape index: {}]
  %s7 = inlined_call_operand.hbm [shape: bf16[2,256,128], index: 7, kind: input, shape index: {}]
  %s8 = inlined_call_operand.hbm [shape: f32[2,16,128], index: 8, kind: input, shape index: {}]
  %s9 = inlined_call_operand.vmem [shape: f32[2,1,256], index: 9, kind: input, shape index: {}]
  %s10 = inlined_call_operand.hbm [shape: f32[256,128], index: 10, kind: output, shape index: {}]
  %s11 = sld [smem:[#allocation0]]
  $region117: #{tpu_custom_call.1} parent=0
    _
  %s13 = ssub.s32 1, %s11
  %s14 = scalar_select 0, %s13, %s11
  $region1: #{tpu_custom_call.1} parent=0
    #allocation4 [shape = 'u8[131072]{0}', space=vmem, size = 0x20000, scoped, tag = 'input window, operand 0']
    #allocation5 [shape = 's32[2]{0}', space=sflag, size = 0x8, scoped, tag = 'scoped memory for tpu_custom_call.1']
    #allocation6 [shape = 's32[2]{0}', space=sflag, size = 0x8, scoped, tag = 'scoped memory for tpu_custom_call.1']
    #allocation7 [shape = 'u8[8192]{0}', space=vmem, size = 0x2000, scoped, tag = 'input window, operand 1']
    #allocation8 [shape = 's32[2]{0}', space=sflag, size = 0x8, scoped, tag = 'scoped memory for tpu_custom_call.1']
    #allocation9 [shape = 'u8[65536]{0}', space=vmem, size = 0x10000, scoped, tag = 'input window, operand 2']
    #allocation10 [shape = 'u8[65536]{0}', space=vmem, size = 0x10000, scoped, tag = 'input window, operand 3']
    #allocation11 [shape = 's32[2]{0}', space=sflag, size = 0x8, scoped, tag = 'scoped memory for tpu_custom_call.1']
    #allocation12 [shape = 'u8[65536]{0}', space=vmem, size = 0x10000, scoped, tag = 'input window, operand 4']
    #allocation13 [shape = 'u8[65536]{0}', space=vmem, size = 0x10000, scoped, tag = 'input window, operand 5']
    #allocation14 [shape = 's32[2]{0}', space=sflag, size = 0x8, scoped, tag = 'scoped memory for tpu_custom_call.1']
    #allocation15 [shape = 'u8[131072]{0}', space=vmem, size = 0x20000, scoped, tag = 'input window, operand 6']
    #allocation16 [shape = 'u8[131072]{0}', space=vmem, size = 0x20000, scoped, tag = 'input window, operand 7']
    #allocation17 [shape = 's32[2]{0}', space=sflag, size = 0x8, scoped, tag = 'scoped memory for tpu_custom_call.1']
    #allocation18 [shape = 'u8[16384]{0}', space=vmem, size = 0x4000, scoped, tag = 'input window, operand 8']
    #allocation19 [shape = 'u8[131072]{0}', space=vmem, size = 0x20000, scoped, tag = 'output window, operand 0']
    %15 = vsyncpa [#allocation5], 0
    %s16 = scalar_lea.sflag [#allocation5], 1
    %17 = vsyncpa %s16, 0
    %18 = vsyncpa [#allocation8], 0
    %s19 = scalar_lea.sflag [#allocation8], 1
    %20 = vsyncpa %s19, 0
    %21 = vsyncpa [#allocation11], 0
    %s22 = scalar_lea.sflag [#allocation11], 1
    %23 = vsyncpa %s22, 0
    %24 = vsyncpa [#allocation14], 0
    %s25 = scalar_lea.sflag [#allocation14], 1
    %26 = vsyncpa %s25, 0
    %27 = vsyncpa [#allocation17], 0
    %s28 = scalar_lea.sflag [#allocation17], 1
    %29 = vsyncpa %s28, 0
    %30 = vsyncpa [#allocation6], 0
    %s31 = scalar_lea.sflag [#allocation6], 1
    %32 = vsyncpa %s31, 0
    loop: start=0, step=1, limit=6
    $region2: #{tpu_custom_call.1} parent=1 // loop_pre_header
      _
    $region3: #{tpu_custom_call.1} parent=1 // loop_header
      %s34 = sphi 0, %s38
      %p35 = scmp.ge.s32.totalorder %s34, 6
      %s41 = sphi 0, %s53
      %s42 = sphi 0, %s49
      %s43 = sphi 0, %s41
      %s44 = sphi 0, %s42
      %s45 = sphi 0, %s43
      %s46 = sphi 0, %s44
      %s56 = sphi 0, %s58
      %s59 = sphi 0, %s56
      %s60 = sphi 0, %s59
      %s76 = sphi 0, %s60
      %s82 = sphi 0, %s84
      %s85 = sphi 0, %s82
      %s86 = sphi 0, %s85
      %s102 = sphi 0, %s86
      %s108 = sphi 0, %s110
      %s111 = sphi 0, %s108
      %s112 = sphi 0, %s111
      %s128 = sphi 0, %s112
      %s134 = sphi 0, %s136
      %s137 = sphi 0, %s134
      %s138 = sphi 0, %s137
      %s154 = sphi 0, %s138
      %s160 = sphi 0, %s162
      %s163 = sphi 0, %s160
      %s164 = sphi 0, %s163
      %s180 = sphi 0, %s164
      %s186 = sphi 0, %s188
      %s189 = sphi 0, %s186
      %s190 = sphi 0, %s189
      %s206 = sphi 0, %s190
      %s212 = sphi 0, %s214
      %s215 = sphi 0, %s212
      %s216 = sphi 0, %s215
      %s232 = sphi 0, %s216
      %s238 = sphi 0, %s240
      %s241 = sphi 0, %s238
      %s242 = sphi 0, %s241
      %s258 = sphi 0, %s242
      %s264 = sphi 0, %s266
      %s267 = sphi 0, %s264
      %s268 = sphi 0, %s267
      %s284 = sphi 0, %s268
      %s290 = sphi 0, %s292
      %s293 = sphi 0, %s290
      %s294 = sphi 0, %s293
      %s310 = sphi 0, %s294
      %s316 = sphi 0, %s318
      %s319 = sphi 0, %s316
      %s320 = sphi 0, %s319
      %s336 = sphi 0, %s320
    $region4: #{tpu_custom_call.1} parent=1 // loop_header_branch
      %37 = sbr.rel (%p35) target = $region8
    $region5: #{tpu_custom_call.1} parent=1 // loop_body
      %s39 = ssub.s32 %s34, 1
      %s40 = ssub.s32 %s34, 2
      %s47 = sadd.s32 1, %s42
      %p48 = scmp.ge.s32.totalorder %s47, 2
      %s49 = scalar_select %p48, 0, %s47
      %s50 = sadd.s32 1, %s41
      %s51 = scalar_select %p48, %s50, %s41
      %p52 = scmp.ge.s32.totalorder %s51, 2
      %s53 = scalar_select %p52, 0, %s51
      %s54 = ssub.s32 %s41, %s53
      %p55 = scmp.eq.s32.totalorder %s54, 0
      %s57 = sadd.s32 %s56, 1
      %s58 = scalar_select %p55, %s56, %s57
      %p61 = pneg %p55
      %p62 = scmp.eq.s32.totalorder %s34, 3
      %p63 = por %p61, %p62
      %p64 = scmp.ne.s32.totalorder %s56, %s59
      %p65 = scmp.eq.s32.totalorder %s34, 0
      %p66 = por %p64, %p65
      %p67 = scmp.ne.s32.totalorder %s56, %s59
      %p68 = scmp.eq.s32.totalorder %s39, 3
      %p69 = por %p67, %p68
      %p70 = scmp.ne.s32.totalorder %s59, %s60
      %p71 = scmp.eq.s32.totalorder %s39, 0
      %p72 = por %p70, %p71
      %p73 = scmp.ne.s32.totalorder %s59, %s60
      %p74 = scmp.eq.s32.totalorder %s40, 3
      %p75 = por %p73, %p74
      %p77 = scmp.ne.s32.totalorder %s60, %s76
      %p78 = scmp.eq.s32.totalorder %s40, 0
      %p79 = por %p77, %p78
      %s80 = ssub.s32 %s41, %s53
      %p81 = scmp.eq.s32.totalorder %s80, 0
      %s83 = sadd.s32 %s82, 1
      %s84 = scalar_select %p81, %s82, %s83
      %p87 = pneg %p81
      %p88 = scmp.eq.s32.totalorder %s34, 3
      %p89 = por %p87, %p88
      %p90 = scmp.ne.s32.totalorder %s82, %s85
      %p91 = scmp.eq.s32.totalorder %s34, 0
      %p92 = por %p90, %p91
      %p93 = scmp.ne.s32.totalorder %s82, %s85
      %p94 = scmp.eq.s32.totalorder %s39, 3
      %p95 = por %p93, %p94
      %p96 = scmp.ne.s32.totalorder %s85, %s86
      %p97 = scmp.eq.s32.totalorder %s39, 0
      %p98 = por %p96, %p97
      %p99 = scmp.ne.s32.totalorder %s85, %s86
      %p100 = scmp.eq.s32.totalorder %s40, 3
      %p101 = por %p99, %p100
      %p103 = scmp.ne.s32.totalorder %s86, %s102
      %p104 = scmp.eq.s32.totalorder %s40, 0
      %p105 = por %p103, %p104
      %s106 = ssub.s32 %s42, %s49
      %p107 = scmp.eq.s32.totalorder %s106, 0
      %s109 = sadd.s32 %s108, 1
      %s110 = scalar_select %p107, %s108, %s109
      %p113 = pneg %p107
      %p114 = scmp.eq.s32.totalorder %s34, 3
      %p115 = por %p113, %p114
      %p116 = scmp.ne.s32.totalorder %s108, %s111
      %p117 = scmp.eq.s32.totalorder %s34, 0
      %p118 = por %p116, %p117
      %p119 = scmp.ne.s32.totalorder %s108, %s111
      %p120 = scmp.eq.s32.totalorder %s39, 3
      %p121 = por %p119, %p120
      %p122 = scmp.ne.s32.totalorder %s111, %s112
      %p123 = scmp.eq.s32.totalorder %s39, 0
      %p124 = por %p122, %p123
      %p125 = scmp.ne.s32.totalorder %s111, %s112
      %p126 = scmp.eq.s32.totalorder %s40, 3
      %p127 = por %p125, %p126
      %p129 = scmp.ne.s32.totalorder %s112, %s128
      %p130 = scmp.eq.s32.totalorder %s40, 0
      %p131 = por %p129, %p130
      %s132 = ssub.s32 %s42, %s49
      %p133 = scmp.eq.s32.totalorder %s132, 0
      %s135 = sadd.s32 %s134, 1
      %s136 = scalar_select %p133, %s134, %s135
      %p139 = pneg %p133
      %p140 = scmp.eq.s32.totalorder %s34, 3
      %p141 = por %p139, %p140
      %p142 = scmp.ne.s32.totalorder %s134, %s137
      %p143 = scmp.eq.s32.totalorder %s34, 0
      %p144 = por %p142, %p143
      %p145 = scmp.ne.s32.totalorder %s134, %s137
      %p146 = scmp.eq.s32.totalorder %s39, 3
      %p147 = por %p145, %p146
      %p148 = scmp.ne.s32.totalorder %s137, %s138
      %p149 = scmp.eq.s32.totalorder %s39, 0
      %p150 = por %p148, %p149
      %p151 = scmp.ne.s32.totalorder %s137, %s138
      %p152 = scmp.eq.s32.totalorder %s40, 3
      %p153 = por %p151, %p152
      %p155 = scmp.ne.s32.totalorder %s138, %s154
      %p156 = scmp.eq.s32.totalorder %s40, 0
      %p157 = por %p155, %p156
      %s158 = ssub.s32 %s42, %s49
      %p159 = scmp.eq.s32.totalorder %s158, 0
      %s161 = sadd.s32 %s160, 1
      %s162 = scalar_select %p159, %s160, %s161
      %p165 = pneg %p159
      %p166 = scmp.eq.s32.totalorder %s34, 3
      %p167 = por %p165, %p166
      %p168 = scmp.ne.s32.totalorder %s160, %s163
      %p169 = scmp.eq.s32.totalorder %s34, 0
      %p170 = por %p168, %p169
      %p171 = scmp.ne.s32.totalorder %s160, %s163
      %p172 = scmp.eq.s32.totalorder %s39, 3
      %p173 = por %p171, %p172
      %p174 = scmp.ne.s32.totalorder %s163, %s164
      %p175 = scmp.eq.s32.totalorder %s39, 0
      %p176 = por %p174, %p175
      %p177 = scmp.ne.s32.totalorder %s163, %s164
      %p178 = scmp.eq.s32.totalorder %s40, 3
      %p179 = por %p177, %p178
      %p181 = scmp.ne.s32.totalorder %s164, %s180
      %p182 = scmp.eq.s32.totalorder %s40, 0
      %p183 = por %p181, %p182
      %s184 = ssub.s32 %s42, %s49
      %p185 = scmp.eq.s32.totalorder %s184, 0
      %s187 = sadd.s32 %s186, 1
      %s188 = scalar_select %p185, %s186, %s187
      %p191 = pneg %p185
      %p192 = scmp.eq.s32.totalorder %s34, 3
      %p193 = por %p191, %p192
      %p194 = scmp.ne.s32.totalorder %s186, %s189
      %p195 = scmp.eq.s32.totalorder %s34, 0
      %p196 = por %p194, %p195
      %p197 = scmp.ne.s32.totalorder %s186, %s189
      %p198 = scmp.eq.s32.totalorder %s39, 3
      %p199 = por %p197, %p198
      %p200 = scmp.ne.s32.totalorder %s189, %s190
      %p201 = scmp.eq.s32.totalorder %s39, 0
      %p202 = por %p200, %p201
      %p203 = scmp.ne.s32.totalorder %s189, %s190
      %p204 = scmp.eq.s32.totalorder %s40, 3
      %p205 = por %p203, %p204
      %p207 = scmp.ne.s32.totalorder %s190, %s206
      %p208 = scmp.eq.s32.totalorder %s40, 0
      %p209 = por %p207, %p208
      %s210 = ssub.s32 %s42, %s49
      %p211 = scmp.eq.s32.totalorder %s210, 0
      %s213 = sadd.s32 %s212, 1
      %s214 = scalar_select %p211, %s212, %s213
      %p217 = pneg %p211
      %p218 = scmp.eq.s32.totalorder %s34, 3
      %p219 = por %p217, %p218
      %p220 = scmp.ne.s32.totalorder %s212, %s215
      %p221 = scmp.eq.s32.totalorder %s34, 0
      %p222 = por %p220, %p221
      %p223 = scmp.ne.s32.totalorder %s212, %s215
      %p224 = scmp.eq.s32.totalorder %s39, 3
      %p225 = por %p223, %p224
      %p226 = scmp.ne.s32.totalorder %s215, %s216
      %p227 = scmp.eq.s32.totalorder %s39, 0
      %p228 = por %p226, %p227
      %p229 = scmp.ne.s32.totalorder %s215, %s216
      %p230 = scmp.eq.s32.totalorder %s40, 3
      %p231 = por %p229, %p230
      %p233 = scmp.ne.s32.totalorder %s216, %s232
      %p234 = scmp.eq.s32.totalorder %s40, 0
      %p235 = por %p233, %p234
      %s236 = ssub.s32 %s42, %s49
      %p237 = scmp.eq.s32.totalorder %s236, 0
      %s239 = sadd.s32 %s238, 1
      %s240 = scalar_select %p237, %s238, %s239
      %p243 = pneg %p237
      %p244 = scmp.eq.s32.totalorder %s34, 3
      %p245 = por %p243, %p244
      %p246 = scmp.ne.s32.totalorder %s238, %s241
      %p247 = scmp.eq.s32.totalorder %s34, 0
      %p248 = por %p246, %p247
      %p249 = scmp.ne.s32.totalorder %s238, %s241
      %p250 = scmp.eq.s32.totalorder %s39, 3
      %p251 = por %p249, %p250
      %p252 = scmp.ne.s32.totalorder %s241, %s242
      %p253 = scmp.eq.s32.totalorder %s39, 0
      %p254 = por %p252, %p253
      %p255 = scmp.ne.s32.totalorder %s241, %s242
      %p256 = scmp.eq.s32.totalorder %s40, 3
      %p257 = por %p255, %p256
      %p259 = scmp.ne.s32.totalorder %s242, %s258
      %p260 = scmp.eq.s32.totalorder %s40, 0
      %p261 = por %p259, %p260
      %s262 = ssub.s32 %s42, %s49
      %p263 = scmp.eq.s32.totalorder %s262, 0
      %s265 = sadd.s32 %s264, 1
      %s266 = scalar_select %p263, %s264, %s265
      %p269 = pneg %p263
      %p270 = scmp.eq.s32.totalorder %s34, 3
      %p271 = por %p269, %p270
      %p272 = scmp.ne.s32.totalorder %s264, %s267
      %p273 = scmp.eq.s32.totalorder %s34, 0
      %p274 = por %p272, %p273
      %p275 = scmp.ne.s32.totalorder %s264, %s267
      %p276 = scmp.eq.s32.totalorder %s39, 3
      %p277 = por %p275, %p276
      %p278 = scmp.ne.s32.totalorder %s267, %s268
      %p279 = scmp.eq.s32.totalorder %s39, 0
      %p280 = por %p278, %p279
      %p281 = scmp.ne.s32.totalorder %s267, %s268
      %p282 = scmp.eq.s32.totalorder %s40, 3
      %p283 = por %p281, %p282
      %p285 = scmp.ne.s32.totalorder %s268, %s284
      %p286 = scmp.eq.s32.totalorder %s40, 0
      %p287 = por %p285, %p286
      %s288 = ssub.s32 %s42, %s49
      %p289 = scmp.eq.s32.totalorder %s288, 0
      %s291 = sadd.s32 %s290, 1
      %s292 = scalar_select %p289, %s290, %s291
      %p295 = pneg %p289
      %p296 = scmp.eq.s32.totalorder %s34, 3
      %p297 = por %p295, %p296
      %p298 = scmp.ne.s32.totalorder %s290, %s293
      %p299 = scmp.eq.s32.totalorder %s34, 0
      %p300 = por %p298, %p299
      %p301 = scmp.ne.s32.totalorder %s290, %s293
      %p302 = scmp.eq.s32.totalorder %s39, 3
      %p303 = por %p301, %p302
      %p304 = scmp.ne.s32.totalorder %s293, %s294
      %p305 = scmp.eq.s32.totalorder %s39, 0
      %p306 = por %p304, %p305
      %p307 = scmp.ne.s32.totalorder %s293, %s294
      %p308 = scmp.eq.s32.totalorder %s40, 3
      %p309 = por %p307, %p308
      %p311 = scmp.ne.s32.totalorder %s294, %s310
      %p312 = scmp.eq.s32.totalorder %s40, 0
      %p313 = por %p311, %p312
      %s314 = ssub.s32 %s41, %s53
      %p315 = scmp.eq.s32.totalorder %s314, 0
      %s317 = sadd.s32 %s316, 1
      %s318 = scalar_select %p315, %s316, %s317
      %p321 = pneg %p315
      %p322 = scmp.eq.s32.totalorder %s34, 3
      %p323 = por %p321, %p322
      %p324 = scmp.ne.s32.totalorder %s316, %s319
      %p325 = scmp.eq.s32.totalorder %s34, 0
      %p326 = por %p324, %p325
      %p327 = scmp.ne.s32.totalorder %s316, %s319
      %p328 = scmp.eq.s32.totalorder %s39, 3
      %p329 = por %p327, %p328
      %p330 = scmp.ne.s32.totalorder %s319, %s320
      %p331 = scmp.eq.s32.totalorder %s39, 0
      %p332 = por %p330, %p331
      %p333 = scmp.ne.s32.totalorder %s319, %s320
      %p334 = scmp.eq.s32.totalorder %s40, 3
      %p335 = por %p333, %p334
      %p337 = scmp.ne.s32.totalorder %s320, %s336
      %p338 = scmp.eq.s32.totalorder %s40, 0
      %p339 = por %p337, %p338
      %p340 = scmp.le.s32.totalorder 1, %s34
      %p341 = scmp.lt.s32.totalorder %s34, 5
      %p342 = pnand %p340, %p341
      %p343 = pneg %p342
      // Predicated region
      $region9: #{tpu_custom_call.1} parent=5 // pred_check
        _
      $region10: #{tpu_custom_call.1} parent=5 // pred_check_branch
        %345 = sbr.rel (%p342) target = $region12
      $region11: #{tpu_custom_call.1} parent=5 // pred_region
        %s346 = ssub.s32 %s34, 1
      $region12: #{tpu_custom_call.1} parent=5 // pred_fallthru
        _
      %p347 = scmp.lt.s32.totalorder %s34, 4
      // Predicated region
      $region13: #{tpu_custom_call.1} parent=5 // pred_check
        %p348 = pneg %p347
      $region14: #{tpu_custom_call.1} parent=5 // pred_check_branch
        %350 = sbr.rel (%p348) target = $region16
      $region15: #{tpu_custom_call.1} parent=5 // pred_region
        // Predicated region
        $region17: #{tpu_custom_call.1} parent=15 // pred_check
          %p351 = pneg %p66
        $region18: #{tpu_custom_call.1} parent=15 // pred_check_branch
          %353 = sbr.rel (%p351) target = $region20
        $region19: #{tpu_custom_call.1} parent=15 // pred_region
          %s354 = sand.u32 %s56, 1
          %s355 = scalar_lea.sflag [#allocation5], %s354
          %s356 = sand.u32 %s56, 1
          %s357 = smul.addr %s356, 128
          %s358 = scalar_lea.vmem [#allocation4], %s357
          %s359 = smul.u32 16, %s41
          %s361 = ssub.s32 2048, 2048
          %362 = vsyncadd %s355, %s361
          %s363 = smul.addr %s359, 128
          %s364 = scalar_lea.hbm %s0, %s363
          %s365 = sshll.u32 %s358, 4
          %s366 = int_to_ptr.vmem [resolvable:$true] %s365
          %371 = dma.hbm_to_vmem [thread:$0]  %s364, 2048, %s366, %s355, 128, 128, 8
        $region20: #{tpu_custom_call.1} parent=15 // pred_fallthru
          _
        // Predicated region
        $region21: #{tpu_custom_call.1} parent=15 // pred_check
          %p372 = pneg %p92
        $region22: #{tpu_custom_call.1} parent=15 // pred_check_branch
          %374 = sbr.rel (%p372) target = $region24
        $region23: #{tpu_custom_call.1} parent=15 // pred_region
          %s375 = sand.u32 %s34, 1
          %s376 = scalar_lea.sflag [#allocation8], %s375
          %s377 = sand.u32 %s82, 1
          %s378 = smul.addr %s377, 8
          %s379 = scalar_lea.vmem [#allocation7], %s378
          %s380 = smul.u32 8, %s41
          %s382 = ssub.s32 128, 128
          %383 = vsyncadd %s376, %s382
          %s384 = smul.addr %s380, 16
          %s385 = scalar_lea.hbm %s1, %s384
          %s386 = sshll.u32 %s379, 4
          %s387 = int_to_ptr.vmem [resolvable:$true] %s386
          %392 = dma.hbm_to_vmem [thread:$0]  %s385, 128, %s387, %s376, 16, 16, 1
        $region24: #{tpu_custom_call.1} parent=15 // pred_fallthru
          _
        // Predicated region
        $region25: #{tpu_custom_call.1} parent=15 // pred_check
          %p393 = pneg %p118
        $region26: #{tpu_custom_call.1} parent=15 // pred_check_branch
          %395 = sbr.rel (%p393) target = $region28
        $region27: #{tpu_custom_call.1} parent=15 // pred_region
          %s396 = sand.u32 %s34, 1
          %s397 = scalar_lea.sflag [#allocation8], %s396
          %s398 = sand.u32 %s108, 1
          %s399 = smul.addr %s398, 64
          %s400 = scalar_lea.vmem [#allocation9], %s399
          %s402 = ssub.s32 1024, 1024
          %403 = vsyncadd %s397, %s402
          %s404 = smul.addr %s42, 16
          %s405 = smul.addr %s404, 64
          %s406 = scalar_lea.hbm %s2, %s405
          %s407 = sshll.u32 %s400, 4
          %s408 = int_to_ptr.vmem [resolvable:$true] %s407
          %413 = dma.hbm_to_vmem [thread:$0]  %s406, 1024, %s408, %s397, 64, 64, 4
        $region28: #{tpu_custom_call.1} parent=15 // pred_fallthru
          _
        // Predicated region
        $region29: #{tpu_custom_call.1} parent=15 // pred_check
          %p414 = pneg %p144
        $region30: #{tpu_custom_call.1} parent=15 // pred_check_branch
          %416 = sbr.rel (%p414) target = $region32
        $region31: #{tpu_custom_call.1} parent=15 // pred_region
          %s417 = sand.u32 %s34, 1
          %s418 = scalar_lea.sflag [#allocation11], %s417
          %s419 = sand.u32 %s134, 1
          %s420 = smul.addr %s419, 64
          %s421 = scalar_lea.vmem [#allocation10], %s420
          %s423 = ssub.s32 1024, 1024
          %424 = vsyncadd %s418, %s423
          %s425 = smul.addr %s42, 16
          %s426 = smul.addr %s425, 64
          %s427 = scalar_lea.hbm %s3, %s426
          %s428 = sshll.u32 %s421, 4
          %s429 = int_to_ptr.vmem [resolvable:$true] %s428
          %434 = dma.hbm_to_vmem [thread:$0]  %s427, 1024, %s429, %s418, 64, 64, 4
        $region32: #{tpu_custom_call.1} parent=15 // pred_fallthru
          _
        // Predicated region
        $region33: #{tpu_custom_call.1} parent=15 // pred_check
          %p435 = pneg %p170
        $region34: #{tpu_custom_call.1} parent=15 // pred_check_branch
          %437 = sbr.rel (%p435) target = $region36
        $region35: #{tpu_custom_call.1} parent=15 // pred_region
          %s438 = sand.u32 %s34, 1
          %s439 = scalar_lea.sflag [#allocation11], %s438
          %s440 = sand.u32 %s160, 1
          %s441 = smul.addr %s440, 64
          %s442 = scalar_lea.vmem [#allocation12], %s441
          %s444 = ssub.s32 1024, 1024
          %445 = vsyncadd %s439, %s444
          %s446 = smul.addr %s42, 16
          %s447 = smul.addr %s446, 64
          %s448 = scalar_lea.hbm %s4, %s447
          %s449 = sshll.u32 %s442, 4
          %s450 = int_to_ptr.vmem [resolvable:$true] %s449
          %455 = dma.hbm_to_vmem [thread:$0]  %s448, 1024, %s450, %s439, 64, 64, 4
        $region36: #{tpu_custom_call.1} parent=15 // pred_fallthru
          _
        // Predicated region
        $region37: #{tpu_custom_call.1} parent=15 // pred_check
          %p456 = pneg %p196
        $region38: #{tpu_custom_call.1} parent=15 // pred_check_branch
          %458 = sbr.rel (%p456) target = $region40
        $region39: #{tpu_custom_call.1} parent=15 // pred_region
          %s459 = sand.u32 %s34, 1
          %s460 = scalar_lea.sflag [#allocation14], %s459
          %s461 = sand.u32 %s186, 1
          %s462 = smul.addr %s461, 64
          %s463 = scalar_lea.vmem [#allocation13], %s462
          %s465 = ssub.s32 1024, 1024
          %466 = vsyncadd %s460, %s465
          %s467 = smul.addr %s42, 16
          %s468 = smul.addr %s467, 64
          %s469 = scalar_lea.hbm %s5, %s468
          %s470 = sshll.u32 %s463, 4
          %s471 = int_to_ptr.vmem [resolvable:$true] %s470
          %476 = dma.hbm_to_vmem [thread:$0]  %s469, 1024, %s471, %s460, 64, 64, 4
        $region40: #{tpu_custom_call.1} parent=15 // pred_fallthru
          _
        // Predicated region
        $region41: #{tpu_custom_call.1} parent=15 // pred_check
          %p477 = pneg %p222
        $region42: #{tpu_custom_call.1} parent=15 // pred_check_branch
          %479 = sbr.rel (%p477) target = $region44
        $region43: #{tpu_custom_call.1} parent=15 // pred_region
          %s480 = sand.u32 %s34, 1
          %s481 = scalar_lea.sflag [#allocation14], %s480
          %s482 = sand.u32 %s212, 1
          %s483 = smul.addr %s482, 128
          %s484 = scalar_lea.vmem [#allocation15], %s483
          %s486 = ssub.s32 2048, 2048
          %487 = vsyncadd %s481, %s486
          %s488 = smul.addr %s42, 32
          %s489 = smul.addr %s488, 64
          %s490 = scalar_lea.hbm %s6, %s489
          %s491 = sshll.u32 %s484, 4
          %s492 = int_to_ptr.vmem [resolvable:$true] %s491
          %497 = dma.hbm_to_vmem [thread:$0]  %s490, 2048, %s492, %s481, 128, 128, 8
        $region44: #{tpu_custom_call.1} parent=15 // pred_fallthru
          _
        // Predicated region
        $region45: #{tpu_custom_call.1} parent=15 // pred_check
          %p498 = pneg %p248
        $region46: #{tpu_custom_call.1} parent=15 // pred_check_branch
          %500 = sbr.rel (%p498) target = $region48
        $region47: #{tpu_custom_call.1} parent=15 // pred_region
          %s501 = sand.u32 %s34, 1
          %s502 = scalar_lea.sflag [#allocation17], %s501
          %s503 = sand.u32 %s238, 1
          %s504 = smul.addr %s503, 128
          %s505 = scalar_lea.vmem [#allocation16], %s504
          %s507 = ssub.s32 2048, 2048
          %508 = vsyncadd %s502, %s507
          %s509 = smul.addr %s42, 32
          %s510 = smul.addr %s509, 64
          %s511 = scalar_lea.hbm %s7, %s510
          %s512 = sshll.u32 %s505, 4
          %s513 = int_to_ptr.vmem [resolvable:$true] %s512
          %518 = dma.hbm_to_vmem [thread:$0]  %s511, 2048, %s513, %s502, 64, 64, 4
        $region48: #{tpu_custom_call.1} parent=15 // pred_fallthru
          _
        // Predicated region
        $region49: #{tpu_custom_call.1} parent=15 // pred_check
          %p519 = pneg %p274
        $region50: #{tpu_custom_call.1} parent=15 // pred_check_branch
          %521 = sbr.rel (%p519) target = $region52
        $region51: #{tpu_custom_call.1} parent=15 // pred_region
          %s522 = sand.u32 %s34, 1
          %s523 = scalar_lea.sflag [#allocation17], %s522
          %s524 = sand.u32 %s264, 1
          %s525 = smul.addr %s524, 16
          %s526 = scalar_lea.vmem [#allocation18], %s525
          %s528 = ssub.s32 256, 256
          %529 = vsyncadd %s523, %s528
          %s530 = smul.addr %s42, 2
          %s531 = smul.addr %s530, 128
          %s532 = scalar_lea.hbm %s8, %s531
          %s533 = sshll.u32 %s526, 4
          %s534 = int_to_ptr.vmem [resolvable:$true] %s533
          %539 = dma.hbm_to_vmem [thread:$0]  %s532, 256, %s534, %s523, 128, 128, 8
        $region52: #{tpu_custom_call.1} parent=15 // pred_fallthru
          _
        // Predicated region
        $region53: #{tpu_custom_call.1} parent=15 // pred_check
          %p540 = pneg %p300
        $region54: #{tpu_custom_call.1} parent=15 // pred_check_branch
          %542 = sbr.rel (%p540) target = $region56
        $region55: #{tpu_custom_call.1} parent=15 // pred_region
          %p543 = scmp.lt.s32.totalorder %s42, 1
          %s544 = scalar_select %p543, %s42, 1
          %s545 = smul.addr %s544, 2
          %s546 = scalar_lea.vmem %s9, %s545
        $region56: #{tpu_custom_call.1} parent=15 // pred_fallthru
          _
      $region16: #{tpu_custom_call.1} parent=5 // pred_fallthru
        _
      %p547 = scmp.le.s32.totalorder 1, %s34
      %p548 = scmp.lt.s32.totalorder %s34, 5
      %p549 = pnand %p547, %p548
      %p550 = pneg %p549
      // Predicated region
      $region57: #{tpu_custom_call.1} parent=5 // pred_check
        _
      $region58: #{tpu_custom_call.1} parent=5 // pred_check_branch
        %552 = sbr.rel (%p549) target = $region60
      $region59: #{tpu_custom_call.1} parent=5 // pred_region
        %s553 = ssub.s32 %s34, 1
        %s554 = sand.u32 %s59, 1
        %s555 = scalar_lea.sflag [#allocation5], %s554
        %s556 = sand.u32 %s59, 1
        %s557 = smul.addr %s556, 128
        %s558 = scalar_lea.vmem [#allocation4], %s557
        // Predicated region
        $region61: #{tpu_custom_call.1} parent=59 // pred_check
          %p559 = pneg %p72
        $region62: #{tpu_custom_call.1} parent=59 // pred_check_branch
          %561 = sbr.rel (%p559) target = $region64
        $region63: #{tpu_custom_call.1} parent=59 // pred_region
          %562 = dma.done %s555, 2048
        $region64: #{tpu_custom_call.1} parent=59 // pred_fallthru
          _
        %s563 = sand.u32 %s39, 1
        %s564 = scalar_lea.sflag [#allocation8], %s563
        %s565 = sand.u32 %s85, 1
        %s566 = smul.addr %s565, 8
        %s567 = scalar_lea.vmem [#allocation7], %s566
        // Predicated region
        $region65: #{tpu_custom_call.1} parent=59 // pred_check
          %p568 = pneg %p98
        $region66: #{tpu_custom_call.1} parent=59 // pred_check_branch
          %570 = sbr.rel (%p568) target = $region68
        $region67: #{tpu_custom_call.1} parent=59 // pred_region
          %571 = dma.done %s564, 128
        $region68: #{tpu_custom_call.1} parent=59 // pred_fallthru
          _
        %s572 = sand.u32 %s39, 1
        %s573 = scalar_lea.sflag [#allocation8], %s572
        %s574 = sand.u32 %s111, 1
        %s575 = smul.addr %s574, 64
        %s576 = scalar_lea.vmem [#allocation9], %s575
        // Predicated region
        $region69: #{tpu_custom_call.1} parent=59 // pred_check
          %p577 = pneg %p124
        $region70: #{tpu_custom_call.1} parent=59 // pred_check_branch
          %579 = sbr.rel (%p577) target = $region72
        $region71: #{tpu_custom_call.1} parent=59 // pred_region
          %580 = dma.done %s573, 1024
        $region72: #{tpu_custom_call.1} parent=59 // pred_fallthru
          _
        %s581 = sand.u32 %s39, 1
        %s582 = scalar_lea.sflag [#allocation11], %s581
        %s583 = sand.u32 %s137, 1
        %s584 = smul.addr %s583, 64
        %s585 = scalar_lea.vmem [#allocation10], %s584
        // Predicated region
        $region73: #{tpu_custom_call.1} parent=59 // pred_check
          %p586 = pneg %p150
        $region74: #{tpu_custom_call.1} parent=59 // pred_check_branch
          %588 = sbr.rel (%p586) target = $region76
        $region75: #{tpu_custom_call.1} parent=59 // pred_region
          %589 = dma.done %s582, 1024
        $region76: #{tpu_custom_call.1} parent=59 // pred_fallthru
          _
        %s590 = sand.u32 %s39, 1
        %s591 = scalar_lea.sflag [#allocation11], %s590
        %s592 = sand.u32 %s163, 1
        %s593 = smul.addr %s592, 64
        %s594 = scalar_lea.vmem [#allocation12], %s593
        // Predicated region
        $region77: #{tpu_custom_call.1} parent=59 // pred_check
          %p595 = pneg %p176
        $region78: #{tpu_custom_call.1} parent=59 // pred_check_branch
          %597 = sbr.rel (%p595) target = $region80
        $region79: #{tpu_custom_call.1} parent=59 // pred_region
          %598 = dma.done %s591, 1024
        $region80: #{tpu_custom_call.1} parent=59 // pred_fallthru
          _
        %s599 = sand.u32 %s39, 1
        %s600 = scalar_lea.sflag [#allocation14], %s599
        %s601 = sand.u32 %s189, 1
        %s602 = smul.addr %s601, 64
        %s603 = scalar_lea.vmem [#allocation13], %s602
        // Predicated region
        $region81: #{tpu_custom_call.1} parent=59 // pred_check
          %p604 = pneg %p202
        $region82: #{tpu_custom_call.1} parent=59 // pred_check_branch
          %606 = sbr.rel (%p604) target = $region84
        $region83: #{tpu_custom_call.1} parent=59 // pred_region
          %607 = dma.done %s600, 1024
        $region84: #{tpu_custom_call.1} parent=59 // pred_fallthru
          _
        %s608 = sand.u32 %s39, 1
        %s609 = scalar_lea.sflag [#allocation14], %s608
        %s610 = sand.u32 %s215, 1
        %s611 = smul.addr %s610, 128
        %s612 = scalar_lea.vmem [#allocation15], %s611
        // Predicated region
        $region85: #{tpu_custom_call.1} parent=59 // pred_check
          %p613 = pneg %p228
        $region86: #{tpu_custom_call.1} parent=59 // pred_check_branch
          %615 = sbr.rel (%p613) target = $region88
        $region87: #{tpu_custom_call.1} parent=59 // pred_region
          %616 = dma.done %s609, 2048
        $region88: #{tpu_custom_call.1} parent=59 // pred_fallthru
          _
        %s617 = sand.u32 %s39, 1
        %s618 = scalar_lea.sflag [#allocation17], %s617
        %s619 = sand.u32 %s241, 1
        %s620 = smul.addr %s619, 128
        %s621 = scalar_lea.vmem [#allocation16], %s620
        // Predicated region
        $region89: #{tpu_custom_call.1} parent=59 // pred_check
          %p622 = pneg %p254
        $region90: #{tpu_custom_call.1} parent=59 // pred_check_branch
          %624 = sbr.rel (%p622) target = $region92
        $region91: #{tpu_custom_call.1} parent=59 // pred_region
          %625 = dma.done %s618, 2048
        $region92: #{tpu_custom_call.1} parent=59 // pred_fallthru
          _
        %s626 = sand.u32 %s39, 1
        %s627 = scalar_lea.sflag [#allocation17], %s626
        %s628 = sand.u32 %s267, 1
        %s629 = smul.addr %s628, 16
        %s630 = scalar_lea.vmem [#allocation18], %s629
        // Predicated region
        $region93: #{tpu_custom_call.1} parent=59 // pred_check
          %p631 = pneg %p280
        $region94: #{tpu_custom_call.1} parent=59 // pred_check_branch
          %633 = sbr.rel (%p631) target = $region96
        $region95: #{tpu_custom_call.1} parent=59 // pred_region
          %634 = dma.done %s627, 256
        $region96: #{tpu_custom_call.1} parent=59 // pred_fallthru
          _
        %s635 = sand.u32 %s59, 1
        %s636 = scalar_lea.sflag [#allocation5], %s635
        %s637 = sand.u32 %s59, 1
        %s638 = smul.addr %s637, 128
        %s639 = scalar_lea.vmem [#allocation4], %s638
        %p640 = pneg %p72
        %p641 = pneg %p69
        %s642 = sand.u32 %s39, 1
        %s643 = scalar_lea.sflag [#allocation8], %s642
        %s644 = sand.u32 %s85, 1
        %s645 = smul.addr %s644, 8
        %s646 = scalar_lea.vmem [#allocation7], %s645
        %p647 = pneg %p98
        %p648 = pneg %p95
        %s649 = sand.u32 %s39, 1
        %s650 = scalar_lea.sflag [#allocation8], %s649
        %s651 = sand.u32 %s111, 1
        %s652 = smul.addr %s651, 64
        %s653 = scalar_lea.vmem [#allocation9], %s652
        %p654 = pneg %p124
        %p655 = pneg %p121
        %s656 = sand.u32 %s39, 1
        %s657 = scalar_lea.sflag [#allocation11], %s656
        %s658 = sand.u32 %s137, 1
        %s659 = smul.addr %s658, 64
        %s660 = scalar_lea.vmem [#allocation10], %s659
        %p661 = pneg %p150
        %p662 = pneg %p147
        %s663 = sand.u32 %s39, 1
        %s664 = scalar_lea.sflag [#allocation11], %s663
        %s665 = sand.u32 %s163, 1
        %s666 = smul.addr %s665, 64
        %s667 = scalar_lea.vmem [#allocation12], %s666
        %p668 = pneg %p176
        %p669 = pneg %p173
        %s670 = sand.u32 %s39, 1
        %s671 = scalar_lea.sflag [#allocation14], %s670
        %s672 = sand.u32 %s189, 1
        %s673 = smul.addr %s672, 64
        %s674 = scalar_lea.vmem [#allocation13], %s673
        %p675 = pneg %p202
        %p676 = pneg %p199
        %s677 = sand.u32 %s39, 1
        %s678 = scalar_lea.sflag [#allocation14], %s677
        %s679 = sand.u32 %s215, 1
        %s680 = smul.addr %s679, 128
        %s681 = scalar_lea.vmem [#allocation15], %s680
        %p682 = pneg %p228
        %p683 = pneg %p225
        %s684 = sand.u32 %s39, 1
        %s685 = scalar_lea.sflag [#allocation17], %s684
        %s686 = sand.u32 %s241, 1
        %s687 = smul.addr %s686, 128
        %s688 = scalar_lea.vmem [#allocation16], %s687
        %p689 = pneg %p254
        %p690 = pneg %p251
        %s691 = sand.u32 %s39, 1
        %s692 = scalar_lea.sflag [#allocation17], %s691
        %s693 = sand.u32 %s267, 1
        %s694 = smul.addr %s693, 16
        %s695 = scalar_lea.vmem [#allocation18], %s694
        %p696 = pneg %p280
        %p697 = pneg %p277
        %p698 = scmp.lt.s32.totalorder %s44, 1
        %s699 = scalar_select %p698, %s44, 1
        %s700 = smul.addr %s699, 2
        %s701 = scalar_lea.vmem %s9, %s700
        %p702 = pneg %p306
        %p703 = pneg %p303
        %p704 = pneg %p332
        %p705 = pneg %p329
        %s706 = sand.u32 %s319, 1
        %s707 = scalar_lea.sflag [#allocation6], %s706
        %s708 = sand.u32 %s319, 1
        %s709 = smul.addr %s708, 128
        %s710 = scalar_lea.vmem [#allocation19], %s709
        %s711 = smul.u32 16, %s43
        %s712 = smul.u32 8, %s43
        %p713 = scmp.lt.s32.totalorder %s44, 1
        %s714 = scalar_select %p713, %s44, 1
        %s715 = smul.addr %s714, 2
        %s716 = scalar_lea.vmem %s9, %s715
        %s717 = smul.u32 16, %s43
        %p719 = scmp.eq.s32.totalorder %s44, 0
        // Predicated region
        $region97: #{tpu_custom_call.1} parent=59 // pred_check
          %p720 = pneg %p719
        $region98: #{tpu_custom_call.1} parent=59 // pred_check_branch
          %722 = sbr.rel (%p720) target = $region100
        $region99: #{tpu_custom_call.1} parent=59 // pred_region
          %v723 = vld [vmem:[%s558] sm:$0xff]
          %v724 = vld [vmem:[%s558 + $0x8] sm:$0xff]
          %v725 = vld [vmem:[%s558 + $0x10] sm:$0xff]
          %v726 = vld [vmem:[%s558 + $0x18] sm:$0xff]
          %v727 = vld [vmem:[%s558 + $0x20] sm:$0xff]
          %v728 = vld [vmem:[%s558 + $0x28] sm:$0xff]
          %v729 = vld [vmem:[%s558 + $0x30] sm:$0xff]
          %v730 = vld [vmem:[%s558 + $0x38] sm:$0xff]
          %v731 = vld [vmem:[%s558 + $0x40] sm:$0xff]
          %v732 = vld [vmem:[%s558 + $0x48] sm:$0xff]
          %v733 = vld [vmem:[%s558 + $0x50] sm:$0xff]
          %v734 = vld [vmem:[%s558 + $0x58] sm:$0xff]
          %v735 = vld [vmem:[%s558 + $0x60] sm:$0xff]
          %v736 = vld [vmem:[%s558 + $0x68] sm:$0xff]
          %v737 = vld [vmem:[%s558 + $0x70] sm:$0xff]
          %v738 = vld [vmem:[%s558 + $0x78] sm:$0xff]
          %739 = vst [vmem:[#allocation2] sm:$0xff] %v723
          %740 = vst [vmem:[#allocation2 + $0x8] sm:$0xff] %v724
          %741 = vst [vmem:[#allocation2 + $0x10] sm:$0xff] %v725
          %742 = vst [vmem:[#allocation2 + $0x18] sm:$0xff] %v726
          %743 = vst [vmem:[#allocation2 + $0x20] sm:$0xff] %v727
          %744 = vst [vmem:[#allocation2 + $0x28] sm:$0xff] %v728
          %745 = vst [vmem:[#allocation2 + $0x30] sm:$0xff] %v729
          %746 = vst [vmem:[#allocation2 + $0x38] sm:$0xff] %v730
          %747 = vst [vmem:[#allocation2 + $0x40] sm:$0xff] %v731
          %748 = vst [vmem:[#allocation2 + $0x48] sm:$0xff] %v732
          %749 = vst [vmem:[#allocation2 + $0x50] sm:$0xff] %v733
          %750 = vst [vmem:[#allocation2 + $0x58] sm:$0xff] %v734
          %751 = vst [vmem:[#allocation2 + $0x60] sm:$0xff] %v735
          %752 = vst [vmem:[#allocation2 + $0x68] sm:$0xff] %v736
          %753 = vst [vmem:[#allocation2 + $0x70] sm:$0xff] %v737
          %754 = vst [vmem:[#allocation2 + $0x78] sm:$0xff] %v738
        $region100: #{tpu_custom_call.1} parent=59 // pred_fallthru
          _
        %v755 = vld [vmem:[#allocation2] sm:$0xff]
        %v756 = vld [vmem:[#allocation2 + $0x8] sm:$0xff]
        %v757 = vld [vmem:[#allocation2 + $0x10] sm:$0xff]
        %v758 = vld [vmem:[#allocation2 + $0x18] sm:$0xff]
        %v759 = vld [vmem:[#allocation2 + $0x20] sm:$0xff]
        %v760 = vld [vmem:[#allocation2 + $0x28] sm:$0xff]
        %v761 = vld [vmem:[#allocation2 + $0x30] sm:$0xff]
        %v762 = vld [vmem:[#allocation2 + $0x38] sm:$0xff]
        %v763 = vld [vmem:[#allocation2 + $0x40] sm:$0xff]
        %v764 = vld [vmem:[#allocation2 + $0x48] sm:$0xff]
        %v765 = vld [vmem:[#allocation2 + $0x50] sm:$0xff]
        %v766 = vld [vmem:[#allocation2 + $0x58] sm:$0xff]
        %v767 = vld [vmem:[#allocation2 + $0x60] sm:$0xff]
        %v768 = vld [vmem:[#allocation2 + $0x68] sm:$0xff]
        %v769 = vld [vmem:[#allocation2 + $0x70] sm:$0xff]
        %v770 = vld [vmem:[#allocation2 + $0x78] sm:$0xff]
        %v771 = vld [vmem:[%s630] sm:$0xff]
        %v772 = vld [vmem:[%s630 + $0x8] sm:$0xff]
        %v773 = vpack.c.bf16 %v756, %v755
        %v774 = vpack.c.bf16 %v758, %v757
        %v775 = vpack.c.bf16 %v760, %v759
        %v776 = vpack.c.bf16 %v762, %v761
        %v777 = vpack.c.bf16 %v764, %v763
        %v778 = vpack.c.bf16 %v766, %v765
        %v779 = vpack.c.bf16 %v768, %v767
        %v780 = vpack.c.bf16 %v770, %v769
        %v781 = vld [vmem:[%s576] sm:$0xf]
        %v782 = vld [vmem:[%s576 + $0x4] sm:$0xf]
        %v783 = vld [vmem:[%s576 + $0x8] sm:$0xf]
        %v784 = vld [vmem:[%s576 + $0xc] sm:$0xf]
        %v785 = vld [vmem:[%s576 + $0x10] sm:$0xf]
        %v786 = vld [vmem:[%s576 + $0x14] sm:$0xf]
        %v787 = vld [vmem:[%s576 + $0x18] sm:$0xf]
        %v788 = vld [vmem:[%s576 + $0x1c] sm:$0xf]
        %v789 = vld [vmem:[%s576 + $0x20] sm:$0xf]
        %v790 = vld [vmem:[%s576 + $0x24] sm:$0xf]
        %v791 = vld [vmem:[%s576 + $0x28] sm:$0xf]
        %v792 = vld [vmem:[%s576 + $0x2c] sm:$0xf]
        %v793 = vld [vmem:[%s576 + $0x30] sm:$0xf]
        %v794 = vld [vmem:[%s576 + $0x34] sm:$0xf]
        %v795 = vld [vmem:[%s576 + $0x38] sm:$0xf]
        %v796 = vld [vmem:[%s576 + $0x3c] sm:$0xf]
        %v797 = vlaneseq
        %v798 = vshrl.u32 %v797, 7
        %v799 = vsub.s32 0, %v798
        %v800 = vrot.slane %v771, %v799
        %v817 = vunpack.c.l.b16 %v781
        %v818 = vunpack.c.l.b16 %v782
        %v819 = vunpack.c.l.b16 %v783
        %v820 = vunpack.c.l.b16 %v784
        %v821 = vunpack.c.l.b16 %v785
        %v822 = vunpack.c.l.b16 %v786
        %v823 = vunpack.c.l.b16 %v787
        %v824 = vunpack.c.l.b16 %v788
        %v825 = vunpack.c.l.b16 %v789
        %v826 = vunpack.c.l.b16 %v790
        %v827 = vunpack.c.l.b16 %v791
        %v828 = vunpack.c.l.b16 %v792
        %v829 = vunpack.c.l.b16 %v793
        %v830 = vunpack.c.l.b16 %v794
        %v831 = vunpack.c.l.b16 %v795
        %v832 = vunpack.c.l.b16 %v796
        %v833 = vpack.c.b16 %v818, %v817
        %v834 = vpack.c.b16 %v820, %v819
        %v835 = vpack.c.b16 %v822, %v821
        %v836 = vpack.c.b16 %v824, %v823
        %v837 = vpack.c.b16 %v826, %v825
        %v838 = vpack.c.b16 %v828, %v827
        %v839 = vpack.c.b16 %v830, %v829
        %v840 = vpack.c.b16 %v832, %v831
        %849 = vmatprep.subr.bf16.mxu0 0
        %850 = vmatpush1.bf16.msra.mxu0 %v840
        %851 = vmatprep.subr.bf16.mxu0 0
        %852 = vmatpush1.bf16.msra.mxu0 %v839
        %853 = vmatprep.subr.bf16.mxu0 0
        %854 = vmatpush1.bf16.msra.mxu0 %v838
        %855 = vmatprep.subr.bf16.mxu0 0
        %856 = vmatpush1.bf16.msra.mxu0 %v837
        %857 = vmatprep.subr.bf16.mxu0 0
        %858 = vmatpush1.bf16.msra.mxu0 %v836
        %859 = vmatprep.subr.bf16.mxu0 0
        %860 = vmatpush1.bf16.msra.mxu0 %v835
        %861 = vmatprep.subr.bf16.mxu0 0
        %862 = vmatpush1.bf16.msra.mxu0 %v834
        %863 = vmatprep.subr.bf16.mxu0 0
        %864 = vmatpush1.bf16.msra.mxu0 %v833
        %865 = vmatprep.subr.bf16.mxu0 0
        %866 = vmatpush2.bf16.msra.mxu0 0
        %867 = vmatprep.subr.bf16.mxu0 0
        %868 = vmatpush2.bf16.msra.mxu0 0
        %869 = vmatprep.subr.bf16.mxu0 0
        %870 = vmatpush2.bf16.msra.mxu0 0
        %871 = vmatprep.subr.bf16.mxu0 0
        %872 = vmatpush2.bf16.msra.mxu0 0
        %873 = vmatprep.subr.bf16.mxu0 0
        %874 = vmatpush2.bf16.msra.mxu0 0
        %875 = vmatprep.subr.bf16.mxu0 0
        %876 = vmatpush2.bf16.msra.mxu0 0
        %877 = vmatprep.subr.bf16.mxu0 0
        %878 = vmatpush2.bf16.msra.mxu0 0
        %879 = vmatprep.subr.bf16.mxu0 0
        %880 = vmatpush2.bf16.msra.mxu0 0
        %881 = vmatprep.mubr.bf16.mxu0 0
        %882 = vmatmul.mubr.bf16.gmra.mxu0 %v773
        %v883 = vpop.f32.mrf.mxu0
        %v884 = vadd.f32 %v800, %v883
        %v885 = vpop.f32.mrf.mxu0
        %v886 = vpop.f32.mrf.mxu0
        %v887 = vadd.f32 %v800, %v886
        %v888 = vpop.f32.mrf.mxu0
        %889 = vmatprep.mubr.bf16.mxu0 0
        %890 = vmatmul.mubr.bf16.gmra.mxu0 %v774
        %v891 = vpop.f32.mrf.mxu0
        %v892 = vadd.f32 %v800, %v891
        %v893 = vpop.f32.mrf.mxu0
        %v894 = vpop.f32.mrf.mxu0
        %v895 = vadd.f32 %v800, %v894
        %v896 = vpop.f32.mrf.mxu0
        %897 = vmatprep.mubr.bf16.mxu0 0
        %898 = vmatmul.mubr.bf16.gmra.mxu0 %v775
        %v899 = vpop.f32.mrf.mxu0
        %v900 = vadd.f32 %v800, %v899
        %v901 = vpop.f32.mrf.mxu0
        %v902 = vpop.f32.mrf.mxu0
        %v903 = vadd.f32 %v800, %v902
        %v904 = vpop.f32.mrf.mxu0
        %905 = vmatprep.mubr.bf16.mxu0 0
        %906 = vmatmul.mubr.bf16.gmra.mxu0 %v776
        %v907 = vpop.f32.mrf.mxu0
        %v908 = vadd.f32 %v800, %v907
        %v909 = vpop.f32.mrf.mxu0
        %v910 = vpop.f32.mrf.mxu0
        %v911 = vadd.f32 %v800, %v910
        %v912 = vpop.f32.mrf.mxu0
        %913 = vmatprep.mubr.bf16.mxu0 0
        %914 = vmatmul.mubr.bf16.gmra.mxu0 %v777
        %v915 = vpop.f32.mrf.mxu0
        %v916 = vadd.f32 %v800, %v915
        %v917 = vpop.f32.mrf.mxu0
        %v918 = vpop.f32.mrf.mxu0
        %v919 = vadd.f32 %v800, %v918
        %v920 = vpop.f32.mrf.mxu0
        %921 = vmatprep.mubr.bf16.mxu0 0
        %922 = vmatmul.mubr.bf16.gmra.mxu0 %v778
        %v923 = vpop.f32.mrf.mxu0
        %v924 = vadd.f32 %v800, %v923
        %v925 = vpop.f32.mrf.mxu0
        %v926 = vpop.f32.mrf.mxu0
        %v927 = vadd.f32 %v800, %v926
        %v928 = vpop.f32.mrf.mxu0
        %929 = vmatprep.mubr.bf16.mxu0 0
        %930 = vmatmul.mubr.bf16.gmra.mxu0 %v779
        %v931 = vpop.f32.mrf.mxu0
        %v932 = vadd.f32 %v800, %v931
        %v933 = vpop.f32.mrf.mxu0
        %v934 = vpop.f32.mrf.mxu0
        %v935 = vadd.f32 %v800, %v934
        %v936 = vpop.f32.mrf.mxu0
        %937 = vmatprep.mubr.bf16.mxu0 0
        %938 = vmatmul.mubr.bf16.gmra.mxu0 %v780
        %v939 = vpop.f32.mrf.mxu0
        %v940 = vadd.f32 %v800, %v939
        %v941 = vpop.f32.mrf.mxu0
        %v942 = vpop.f32.mrf.mxu0
        %v943 = vadd.f32 %v800, %v942
        %v944 = vpop.f32.mrf.mxu0
        %945 = vdwg.mxu0
        %v946 = vld [vmem:[%s585] sm:$0xf]
        %v947 = vld [vmem:[%s585 + $0x4] sm:$0xf]
        %v948 = vld [vmem:[%s585 + $0x8] sm:$0xf]
        %v949 = vld [vmem:[%s585 + $0xc] sm:$0xf]
        %v950 = vld [vmem:[%s585 + $0x10] sm:$0xf]
        %v951 = vld [vmem:[%s585 + $0x14] sm:$0xf]
        %v952 = vld [vmem:[%s585 + $0x18] sm:$0xf]
        %v953 = vld [vmem:[%s585 + $0x1c] sm:$0xf]
        %v954 = vld [vmem:[%s585 + $0x20] sm:$0xf]
        %v955 = vld [vmem:[%s585 + $0x24] sm:$0xf]
        %v956 = vld [vmem:[%s585 + $0x28] sm:$0xf]
        %v957 = vld [vmem:[%s585 + $0x2c] sm:$0xf]
        %v958 = vld [vmem:[%s585 + $0x30] sm:$0xf]
        %v959 = vld [vmem:[%s585 + $0x34] sm:$0xf]
        %v960 = vld [vmem:[%s585 + $0x38] sm:$0xf]
        %v961 = vld [vmem:[%s585 + $0x3c] sm:$0xf]
        %v962 = vlaneseq
        %v963 = vshrl.u32 %v962, 7
        %v964 = vsub.s32 1, %v963
        %v965 = vrot.slane %v771, %v964
        %v982 = vunpack.c.l.b16 %v946
        %v983 = vunpack.c.l.b16 %v947
        %v984 = vunpack.c.l.b16 %v948
        %v985 = vunpack.c.l.b16 %v949
        %v986 = vunpack.c.l.b16 %v950
        %v987 = vunpack.c.l.b16 %v951
        %v988 = vunpack.c.l.b16 %v952
        %v989 = vunpack.c.l.b16 %v953
        %v990 = vunpack.c.l.b16 %v954
        %v991 = vunpack.c.l.b16 %v955
        %v992 = vunpack.c.l.b16 %v956
        %v993 = vunpack.c.l.b16 %v957
        %v994 = vunpack.c.l.b16 %v958
        %v995 = vunpack.c.l.b16 %v959
        %v996 = vunpack.c.l.b16 %v960
        %v997 = vunpack.c.l.b16 %v961
        %v998 = vpack.c.b16 %v983, %v982
        %v999 = vpack.c.b16 %v985, %v984
        %v1000 = vpack.c.b16 %v987, %v986
        %v1001 = vpack.c.b16 %v989, %v988
        %v1002 = vpack.c.b16 %v991, %v990
        %v1003 = vpack.c.b16 %v993, %v992
        %v1004 = vpack.c.b16 %v995, %v994
        %v1005 = vpack.c.b16 %v997, %v996
        %1014 = vmatprep.subr.bf16.mxu0 0
        %1015 = vmatpush1.bf16.msra.mxu0 %v1005
        %1016 = vmatprep.subr.bf16.mxu0 0
        %1017 = vmatpush1.bf16.msra.mxu0 %v1004
        %1018 = vmatprep.subr.bf16.mxu0 0
        %1019 = vmatpush1.bf16.msra.mxu0 %v1003
        %1020 = vmatprep.subr.bf16.mxu0 0
        %1021 = vmatpush1.bf16.msra.mxu0 %v1002
        %1022 = vmatprep.subr.bf16.mxu0 0
        %1023 = vmatpush1.bf16.msra.mxu0 %v1001
        %1024 = vmatprep.subr.bf16.mxu0 0
        %1025 = vmatpush1.bf16.msra.mxu0 %v1000
        %1026 = vmatprep.subr.bf16.mxu0 0
        %1027 = vmatpush1.bf16.msra.mxu0 %v999
        %1028 = vmatprep.subr.bf16.mxu0 0
        %1029 = vmatpush1.bf16.msra.mxu0 %v998
        %1030 = vmatprep.subr.bf16.mxu0 0
        %1031 = vmatpush2.bf16.msra.mxu0 0
        %1032 = vmatprep.subr.bf16.mxu0 0
        %1033 = vmatpush2.bf16.msra.mxu0 0
        %1034 = vmatprep.subr.bf16.mxu0 0
        %1035 = vmatpush2.bf16.msra.mxu0 0
        %1036 = vmatprep.subr.bf16.mxu0 0
        %1037 = vmatpush2.bf16.msra.mxu0 0
        %1038 = vmatprep.subr.bf16.mxu0 0
        %1039 = vmatpush2.bf16.msra.mxu0 0
        %1040 = vmatprep.subr.bf16.mxu0 0
        %1041 = vmatpush2.bf16.msra.mxu0 0
        %1042 = vmatprep.subr.bf16.mxu0 0
        %1043 = vmatpush2.bf16.msra.mxu0 0
        %1044 = vmatprep.subr.bf16.mxu0 0
        %1045 = vmatpush2.bf16.msra.mxu0 0
        %1046 = vmatprep.mubr.bf16.mxu0 0
        %1047 = vmatmul.mubr.bf16.gmra.mxu0 %v773
        %v1048 = vpop.f32.mrf.mxu0
        %v1049 = vadd.f32 %v965, %v1048
        %v1050 = vpop.f32.mrf.mxu0
        %v1051 = vpop.f32.mrf.mxu0
        %v1052 = vadd.f32 %v965, %v1051
        %v1053 = vpop.f32.mrf.mxu0
        %1054 = vmatprep.mubr.bf16.mxu0 0
        %1055 = vmatmul.mubr.bf16.gmra.mxu0 %v774
        %v1056 = vpop.f32.mrf.mxu0
        %v1057 = vadd.f32 %v965, %v1056
        %v1058 = vpop.f32.mrf.mxu0
        %v1059 = vpop.f32.mrf.mxu0
        %v1060 = vadd.f32 %v965, %v1059
        %v1061 = vpop.f32.mrf.mxu0
        %1062 = vmatprep.mubr.bf16.mxu0 0
        %1063 = vmatmul.mubr.bf16.gmra.mxu0 %v775
        %v1064 = vpop.f32.mrf.mxu0
        %v1065 = vadd.f32 %v965, %v1064
        %v1066 = vpop.f32.mrf.mxu0
        %v1067 = vpop.f32.mrf.mxu0
        %v1068 = vadd.f32 %v965, %v1067
        %v1069 = vpop.f32.mrf.mxu0
        %1070 = vmatprep.mubr.bf16.mxu0 0
        %1071 = vmatmul.mubr.bf16.gmra.mxu0 %v776
        %v1072 = vpop.f32.mrf.mxu0
        %v1073 = vadd.f32 %v965, %v1072
        %v1074 = vpop.f32.mrf.mxu0
        %v1075 = vpop.f32.mrf.mxu0
        %v1076 = vadd.f32 %v965, %v1075
        %v1077 = vpop.f32.mrf.mxu0
        %1078 = vmatprep.mubr.bf16.mxu0 0
        %1079 = vmatmul.mubr.bf16.gmra.mxu0 %v777
        %v1080 = vpop.f32.mrf.mxu0
        %v1081 = vadd.f32 %v965, %v1080
        %v1082 = vpop.f32.mrf.mxu0
        %v1083 = vpop.f32.mrf.mxu0
        %v1084 = vadd.f32 %v965, %v1083
        %v1085 = vpop.f32.mrf.mxu0
        %1086 = vmatprep.mubr.bf16.mxu0 0
        %1087 = vmatmul.mubr.bf16.gmra.mxu0 %v778
        %v1088 = vpop.f32.mrf.mxu0
        %v1089 = vadd.f32 %v965, %v1088
        %v1090 = vpop.f32.mrf.mxu0
        %v1091 = vpop.f32.mrf.mxu0
        %v1092 = vadd.f32 %v965, %v1091
        %v1093 = vpop.f32.mrf.mxu0
        %1094 = vmatprep.mubr.bf16.mxu0 0
        %1095 = vmatmul.mubr.bf16.gmra.mxu0 %v779
        %v1096 = vpop.f32.mrf.mxu0
        %v1097 = vadd.f32 %v965, %v1096
        %v1098 = vpop.f32.mrf.mxu0
        %v1099 = vpop.f32.mrf.mxu0
        %v1100 = vadd.f32 %v965, %v1099
        %v1101 = vpop.f32.mrf.mxu0
        %1102 = vmatprep.mubr.bf16.mxu0 0
        %1103 = vmatmul.mubr.bf16.gmra.mxu0 %v780
        %v1104 = vpop.f32.mrf.mxu0
        %v1105 = vadd.f32 %v965, %v1104
        %v1106 = vpop.f32.mrf.mxu0
        %v1107 = vpop.f32.mrf.mxu0
        %v1108 = vadd.f32 %v965, %v1107
        %v1109 = vpop.f32.mrf.mxu0
        %1110 = vdwg.mxu0
        %v1111 = vld [vmem:[%s594] sm:$0xf]
        %v1112 = vld [vmem:[%s594 + $0x4] sm:$0xf]
        %v1113 = vld [vmem:[%s594 + $0x8] sm:$0xf]
        %v1114 = vld [vmem:[%s594 + $0xc] sm:$0xf]
        %v1115 = vld [vmem:[%s594 + $0x10] sm:$0xf]
        %v1116 = vld [vmem:[%s594 + $0x14] sm:$0xf]
        %v1117 = vld [vmem:[%s594 + $0x18] sm:$0xf]
        %v1118 = vld [vmem:[%s594 + $0x1c] sm:$0xf]
        %v1119 = vld [vmem:[%s594 + $0x20] sm:$0xf]
        %v1120 = vld [vmem:[%s594 + $0x24] sm:$0xf]
        %v1121 = vld [vmem:[%s594 + $0x28] sm:$0xf]
        %v1122 = vld [vmem:[%s594 + $0x2c] sm:$0xf]
        %v1123 = vld [vmem:[%s594 + $0x30] sm:$0xf]
        %v1124 = vld [vmem:[%s594 + $0x34] sm:$0xf]
        %v1125 = vld [vmem:[%s594 + $0x38] sm:$0xf]
        %v1126 = vld [vmem:[%s594 + $0x3c] sm:$0xf]
        %v1127 = vlaneseq
        %v1128 = vshrl.u32 %v1127, 7
        %v1129 = vsub.s32 2, %v1128
        %v1130 = vrot.slane %v771, %v1129
        %v1147 = vunpack.c.l.b16 %v1111
        %v1148 = vunpack.c.l.b16 %v1112
        %v1149 = vunpack.c.l.b16 %v1113
        %v1150 = vunpack.c.l.b16 %v1114
        %v1151 = vunpack.c.l.b16 %v1115
        %v1152 = vunpack.c.l.b16 %v1116
        %v1153 = vunpack.c.l.b16 %v1117
        %v1154 = vunpack.c.l.b16 %v1118
        %v1155 = vunpack.c.l.b16 %v1119
        %v1156 = vunpack.c.l.b16 %v1120
        %v1157 = vunpack.c.l.b16 %v1121
        %v1158 = vunpack.c.l.b16 %v1122
        %v1159 = vunpack.c.l.b16 %v1123
        %v1160 = vunpack.c.l.b16 %v1124
        %v1161 = vunpack.c.l.b16 %v1125
        %v1162 = vunpack.c.l.b16 %v1126
        %v1163 = vpack.c.b16 %v1148, %v1147
        %v1164 = vpack.c.b16 %v1150, %v1149
        %v1165 = vpack.c.b16 %v1152, %v1151
        %v1166 = vpack.c.b16 %v1154, %v1153
        %v1167 = vpack.c.b16 %v1156, %v1155
        %v1168 = vpack.c.b16 %v1158, %v1157
        %v1169 = vpack.c.b16 %v1160, %v1159
        %v1170 = vpack.c.b16 %v1162, %v1161
        %1179 = vmatprep.subr.bf16.mxu0 0
        %1180 = vmatpush1.bf16.msra.mxu0 %v1170
        %1181 = vmatprep.subr.bf16.mxu0 0
        %1182 = vmatpush1.bf16.msra.mxu0 %v1169
        %1183 = vmatprep.subr.bf16.mxu0 0
        %1184 = vmatpush1.bf16.msra.mxu0 %v1168
        %1185 = vmatprep.subr.bf16.mxu0 0
        %1186 = vmatpush1.bf16.msra.mxu0 %v1167
        %1187 = vmatprep.subr.bf16.mxu0 0
        %1188 = vmatpush1.bf16.msra.mxu0 %v1166
        %1189 = vmatprep.subr.bf16.mxu0 0
        %1190 = vmatpush1.bf16.msra.mxu0 %v1165
        %1191 = vmatprep.subr.bf16.mxu0 0
        %1192 = vmatpush1.bf16.msra.mxu0 %v1164
        %1193 = vmatprep.subr.bf16.mxu0 0
        %1194 = vmatpush1.bf16.msra.mxu0 %v1163
        %1195 = vmatprep.subr.bf16.mxu0 0
        %1196 = vmatpush2.bf16.msra.mxu0 0
        %1197 = vmatprep.subr.bf16.mxu0 0
        %1198 = vmatpush2.bf16.msra.mxu0 0
        %1199 = vmatprep.subr.bf16.mxu0 0
        %1200 = vmatpush2.bf16.msra.mxu0 0
        %1201 = vmatprep.subr.bf16.mxu0 0
        %1202 = vmatpush2.bf16.msra.mxu0 0
        %1203 = vmatprep.subr.bf16.mxu0 0
        %1204 = vmatpush2.bf16.msra.mxu0 0
        %1205 = vmatprep.subr.bf16.mxu0 0
        %1206 = vmatpush2.bf16.msra.mxu0 0
        %1207 = vmatprep.subr.bf16.mxu0 0
        %1208 = vmatpush2.bf16.msra.mxu0 0
        %1209 = vmatprep.subr.bf16.mxu0 0
        %1210 = vmatpush2.bf16.msra.mxu0 0
        %1211 = vmatprep.mubr.bf16.mxu0 0
        %1212 = vmatmul.mubr.bf16.gmra.mxu0 %v773
        %v1213 = vpop.f32.mrf.mxu0
        %v1214 = vadd.f32 %v1130, %v1213
        %v1215 = vpop.f32.mrf.mxu0
        %v1216 = vpop.f32.mrf.mxu0
        %v1217 = vadd.f32 %v1130, %v1216
        %v1218 = vpop.f32.mrf.mxu0
        %1219 = vmatprep.mubr.bf16.mxu0 0
        %1220 = vmatmul.mubr.bf16.gmra.mxu0 %v774
        %v1221 = vpop.f32.mrf.mxu0
        %v1222 = vadd.f32 %v1130, %v1221
        %v1223 = vpop.f32.mrf.mxu0
        %v1224 = vpop.f32.mrf.mxu0
        %v1225 = vadd.f32 %v1130, %v1224
        %v1226 = vpop.f32.mrf.mxu0
        %1227 = vmatprep.mubr.bf16.mxu0 0
        %1228 = vmatmul.mubr.bf16.gmra.mxu0 %v775
        %v1229 = vpop.f32.mrf.mxu0
        %v1230 = vadd.f32 %v1130, %v1229
        %v1231 = vpop.f32.mrf.mxu0
        %v1232 = vpop.f32.mrf.mxu0
        %v1233 = vadd.f32 %v1130, %v1232
        %v1234 = vpop.f32.mrf.mxu0
        %1235 = vmatprep.mubr.bf16.mxu0 0
        %1236 = vmatmul.mubr.bf16.gmra.mxu0 %v776
        %v1237 = vpop.f32.mrf.mxu0
        %v1238 = vadd.f32 %v1130, %v1237
        %v1239 = vpop.f32.mrf.mxu0
        %v1240 = vpop.f32.mrf.mxu0
        %v1241 = vadd.f32 %v1130, %v1240
        %v1242 = vpop.f32.mrf.mxu0
        %1243 = vmatprep.mubr.bf16.mxu0 0
        %1244 = vmatmul.mubr.bf16.gmra.mxu0 %v777
        %v1245 = vpop.f32.mrf.mxu0
        %v1246 = vadd.f32 %v1130, %v1245
        %v1247 = vpop.f32.mrf.mxu0
        %v1248 = vpop.f32.mrf.mxu0
        %v1249 = vadd.f32 %v1130, %v1248
        %v1250 = vpop.f32.mrf.mxu0
        %1251 = vmatprep.mubr.bf16.mxu0 0
        %1252 = vmatmul.mubr.bf16.gmra.mxu0 %v778
        %v1253 = vpop.f32.mrf.mxu0
        %v1254 = vadd.f32 %v1130, %v1253
        %v1255 = vpop.f32.mrf.mxu0
        %v1256 = vpop.f32.mrf.mxu0
        %v1257 = vadd.f32 %v1130, %v1256
        %v1258 = vpop.f32.mrf.mxu0
        %1259 = vmatprep.mubr.bf16.mxu0 0
        %1260 = vmatmul.mubr.bf16.gmra.mxu0 %v779
        %v1261 = vpop.f32.mrf.mxu0
        %v1262 = vadd.f32 %v1130, %v1261
        %v1263 = vpop.f32.mrf.mxu0
        %v1264 = vpop.f32.mrf.mxu0
        %v1265 = vadd.f32 %v1130, %v1264
        %v1266 = vpop.f32.mrf.mxu0
        %1267 = vmatprep.mubr.bf16.mxu0 0
        %1268 = vmatmul.mubr.bf16.gmra.mxu0 %v780
        %v1269 = vpop.f32.mrf.mxu0
        %v1270 = vadd.f32 %v1130, %v1269
        %v1271 = vpop.f32.mrf.mxu0
        %v1272 = vpop.f32.mrf.mxu0
        %v1273 = vadd.f32 %v1130, %v1272
        %v1274 = vpop.f32.mrf.mxu0
        %1275 = vdwg.mxu0
        %v1276 = vmul.f32 %v884, 0.17677669
        %v1277 = vmul.f32 %v887, 0.17677669
        %v1278 = vmul.f32 %v892, 0.17677669
        %v1279 = vmul.f32 %v895, 0.17677669
        %v1280 = vmul.f32 %v900, 0.17677669
        %v1281 = vmul.f32 %v903, 0.17677669
        %v1282 = vmul.f32 %v908, 0.17677669
        %v1283 = vmul.f32 %v911, 0.17677669
        %v1284 = vmul.f32 %v916, 0.17677669
        %v1285 = vmul.f32 %v919, 0.17677669
        %v1286 = vmul.f32 %v924, 0.17677669
        %v1287 = vmul.f32 %v927, 0.17677669
        %v1288 = vmul.f32 %v932, 0.17677669
        %v1289 = vmul.f32 %v935, 0.17677669
        %v1290 = vmul.f32 %v940, 0.17677669
        %v1291 = vmul.f32 %v943, 0.17677669
        %v1292 = vpack.c.bf16 %v1277, %v1276
        %v1293 = vpack.c.bf16 %v1279, %v1278
        %v1294 = vpack.c.bf16 %v1281, %v1280
        %v1295 = vpack.c.bf16 %v1283, %v1282
        %v1296 = vpack.c.bf16 %v1285, %v1284
        %v1297 = vpack.c.bf16 %v1287, %v1286
        %v1298 = vpack.c.bf16 %v1289, %v1288
        %v1299 = vpack.c.bf16 %v1291, %v1290
        %v1300 = vpack.c.bf16 %v1052, %v1049
        %v1301 = vpack.c.bf16 %v1060, %v1057
        %v1302 = vpack.c.bf16 %v1068, %v1065
        %v1303 = vpack.c.bf16 %v1076, %v1073
        %v1304 = vpack.c.bf16 %v1084, %v1081
        %v1305 = vpack.c.bf16 %v1092, %v1089
        %v1306 = vpack.c.bf16 %v1100, %v1097
        %v1307 = vpack.c.bf16 %v1108, %v1105
        %v1308 = vpack.c.bf16 %v1217, %v1214
        %v1309 = vpack.c.bf16 %v1225, %v1222
        %v1310 = vpack.c.bf16 %v1233, %v1230
        %v1311 = vpack.c.bf16 %v1241, %v1238
        %v1312 = vpack.c.bf16 %v1249, %v1246
        %v1313 = vpack.c.bf16 %v1257, %v1254
        %v1314 = vpack.c.bf16 %v1265, %v1262
        %v1315 = vpack.c.bf16 %v1273, %v1270
        %v1316 = vld [vmem:[%s567] sm:$0x1]
        %v1318 = vlaneseq
        %v1319 = vshrl.u32 %v1318, 7
        %v1320 = vsub.s32 0, %v1319
        %v1321 = vrot.slane %v1316, %v1320
        %vm1323 = vcmask 261120
        %v1325 = vsel %vm1323, %v1292, 0
        %v1328 = vsel %vm1323, %v1300, 0
        %1330 = vmatprep.subr.bf16.mxu0 0
        %1331 = vmatpush1.bf16.xpose.msra.mxu0 0
        %1332 = vmatprep.subr.bf16.mxu0 0
        %1333 = vmatpush1.bf16.xpose.msra.mxu0 0
        %1334 = vmatprep.subr.bf16.mxu0 0
        %1335 = vmatpush1.bf16.xpose.msra.mxu0 0
        %1336 = vmatprep.subr.bf16.mxu0 0
        %1337 = vmatpush1.bf16.xpose.msra.mxu0 0
        %1338 = vmatprep.subr.bf16.mxu0 0
        %1339 = vmatpush1.bf16.xpose.msra.mxu0 0
        %1340 = vmatprep.subr.bf16.mxu0 0
        %1341 = vmatpush1.bf16.xpose.msra.mxu0 0
        %1342 = vmatprep.subr.bf16.mxu0 0
        %1343 = vmatpush1.bf16.xpose.msra.mxu0 0
        %1344 = vmatprep.subr.bf16.mxu0 0
        %1345 = vmatpush1.bf16.xpose.msra.mxu0 %v1328
        %1346 = vmatprep.subr.bf16.mxu0 0
        %1347 = vmatpush2.bf16.xpose.msra.mxu0 0
        %1348 = vmatprep.subr.bf16.mxu0 0
        %1349 = vmatpush2.bf16.xpose.msra.mxu0 0
        %1350 = vmatprep.subr.bf16.mxu0 0
        %1351 = vmatpush2.bf16.xpose.msra.mxu0 0
        %1352 = vmatprep.subr.bf16.mxu0 0
        %1353 = vmatpush2.bf16.xpose.msra.mxu0 0
        %1354 = vmatprep.subr.bf16.mxu0 0
        %1355 = vmatpush2.bf16.xpose.msra.mxu0 0
        %1356 = vmatprep.subr.bf16.mxu0 0
        %1357 = vmatpush2.bf16.xpose.msra.mxu0 0
        %1358 = vmatprep.subr.bf16.mxu0 0
        %1359 = vmatpush2.bf16.xpose.msra.mxu0 0
        %1360 = vmatprep.subr.bf16.mxu0 0
        %1361 = vmatpush2.bf16.xpose.msra.mxu0 0
        %1362 = vmatprep.mubr.bf16.mxu0 0
        %1363 = vmatmul.mubr.bf16.gmra.mxu0 %v1325
        %v1364 = vpop.f32.mrf.mxu0
        %v1365 = vadd.f32 %v1321, %v1364
        %v1366 = vpop.f32.mrf.mxu0
        %v1367 = vpop.f32.mrf.mxu0
        %v1368 = vadd.f32 %v1321, %v1367
        %v1369 = vpop.f32.mrf.mxu0
        %1370 = vdwg.mxu0
        %vm1371 = vcmask 130048
        %v1372 = vsel %vm1371, %v1365, -inf
        %1373 = vmax.xlane.f32.xlu0 %v1372
        %v1374 = vpop.xlane.xlu0 %1373
        %v1375 = vsel %vm1371, %v1368, -inf
        %1376 = vmax.xlane.f32.xlu0 %v1375
        %v1377 = vpop.xlane.xlu0 %1376
        %v1378 = vsub.f32 %v1365, %v1374
        %v1379 = vsub.f32 %v1368, %v1377
        %v1380 = vmul.f32 %v1378, 1.442695
        %v1381 = vpow.pop %v1380
        %v1382 = vmul.f32 %v1379, 1.442695
        %v1383 = vpow.pop %v1382
        %v1384 = vsel %vm1371, %v1381, 0.0
        %1385 = vadd.xlane.f32.xlu0 %v1384
        %v1386 = vpop.xlane.xlu0 %1385
        %v1387 = vsel %vm1371, %v1383, 0.0
        %1388 = vadd.xlane.f32.xlu0 %v1387
        %v1389 = vpop.xlane.xlu0 %1388
        %v1390 = vrcp.pop %v1386
        %v1391 = vrcp.pop %v1389
        %v1392 = vpack.c.bf16 %v1383, %v1381
        %v1394 = vsel %vm1371, %v1392, 0
        %1396 = vmatprep.subr.bf16.mxu0 0
        %1397 = vmatpush1.bf16.msra.mxu0 0
        %1398 = vmatprep.subr.bf16.mxu0 0
        %1399 = vmatpush1.bf16.msra.mxu0 0
        %1400 = vmatprep.subr.bf16.mxu0 0
        %1401 = vmatpush1.bf16.msra.mxu0 0
        %1402 = vmatprep.subr.bf16.mxu0 0
        %1403 = vmatpush1.bf16.msra.mxu0 0
        %1404 = vmatprep.subr.bf16.mxu0 0
        %1405 = vmatpush1.bf16.msra.mxu0 0
        %1406 = vmatprep.subr.bf16.mxu0 0
        %1407 = vmatpush1.bf16.msra.mxu0 0
        %1408 = vmatprep.subr.bf16.mxu0 0
        %1409 = vmatpush1.bf16.msra.mxu0 0
        %1410 = vmatprep.subr.bf16.mxu0 0
        %1411 = vmatpush1.bf16.msra.mxu0 %v1308
        %1412 = vmatprep.subr.bf16.mxu0 0
        %1413 = vmatpush2.bf16.msra.mxu0 0
        %1414 = vmatprep.subr.bf16.mxu0 0
        %1415 = vmatpush2.bf16.msra.mxu0 0
        %1416 = vmatprep.subr.bf16.mxu0 0
        %1417 = vmatpush2.bf16.msra.mxu0 0
        %1418 = vmatprep.subr.bf16.mxu0 0
        %1419 = vmatpush2.bf16.msra.mxu0 0
        %1420 = vmatprep.subr.bf16.mxu0 0
        %1421 = vmatpush2.bf16.msra.mxu0 0
        %1422 = vmatprep.subr.bf16.mxu0 0
        %1423 = vmatpush2.bf16.msra.mxu0 0
        %1424 = vmatprep.subr.bf16.mxu0 0
        %1425 = vmatpush2.bf16.msra.mxu0 0
        %1426 = vmatprep.subr.bf16.mxu0 0
        %1427 = vmatpush2.bf16.msra.mxu0 0
        %1428 = vmatprep.mubr.bf16.mxu0 0
        %1429 = vmatmul.mubr.bf16.gmra.mxu0 %v1394
        %v1430 = vpop.f32.mrf.mxu0
        %v1431 = vadd.f32 0.0, %v1430
        %v1432 = vpop.f32.mrf.mxu0
        %v1433 = vpop.f32.mrf.mxu0
        %v1434 = vadd.f32 0.0, %v1433
        %v1435 = vpop.f32.mrf.mxu0
        %1436 = vdwg.mxu0
        %v1437 = vmul.f32 %v1431, %v1390
        %v1438 = vmul.f32 %v1434, %v1391
        %v1439 = vpack.c.bf16 %v1438, %v1437
        %v1441 = vunpack.c.l.b16 %v1439
        %v1442 = vunpack.c.h.b16 %v1439
        %v1443 = vpack.c.b16 %v1441, %v1441
        %v1444 = vpack.c.b16 %v1442, %v1442
        %vm1447 = vcmask 257024
        %1448 = vst.msk [vmem:[#allocation3] sm:$0xf] %vm1447, %v1443
        %1449 = vst.msk [vmem:[#allocation3 + $0x4] sm:$0xf] %vm1447, %v1444
        %1451 = vrot.lane.b32.xlu0 %v1292, 96
        %v1452 = vpop.permute.xlu0 %1451
        %1454 = vrot.lane.b32.xlu0 %v1300, 96
        %v1455 = vpop.permute.xlu0 %1454
        %v1457 = vsel %vm1323, %v1452, 0
        %v1460 = vsel %vm1323, %v1455, 0
        %1462 = vmatprep.subr.bf16.mxu0 0
        %1463 = vmatpush1.bf16.xpose.msra.mxu0 0
        %1464 = vmatprep.subr.bf16.mxu0 0
        %1465 = vmatpush1.bf16.xpose.msra.mxu0 0
        %1466 = vmatprep.subr.bf16.mxu0 0
        %1467 = vmatpush1.bf16.xpose.msra.mxu0 0
        %1468 = vmatprep.subr.bf16.mxu0 0
        %1469 = vmatpush1.bf16.xpose.msra.mxu0 0
        %1470 = vmatprep.subr.bf16.mxu0 0
        %1471 = vmatpush1.bf16.xpose.msra.mxu0 0
        %1472 = vmatprep.subr.bf16.mxu0 0
        %1473 = vmatpush1.bf16.xpose.msra.mxu0 0
        %1474 = vmatprep.subr.bf16.mxu0 0
        %1475 = vmatpush1.bf16.xpose.msra.mxu0 0
        %1476 = vmatprep.subr.bf16.mxu0 0
        %1477 = vmatpush1.bf16.xpose.msra.mxu0 %v1460
        %1478 = vmatprep.subr.bf16.mxu0 0
        %1479 = vmatpush2.bf16.xpose.msra.mxu0 0
        %1480 = vmatprep.subr.bf16.mxu0 0
        %1481 = vmatpush2.bf16.xpose.msra.mxu0 0
        %1482 = vmatprep.subr.bf16.mxu0 0
        %1483 = vmatpush2.bf16.xpose.msra.mxu0 0
        %1484 = vmatprep.subr.bf16.mxu0 0
        %1485 = vmatpush2.bf16.xpose.msra.mxu0 0
        %1486 = vmatprep.subr.bf16.mxu0 0
        %1487 = vmatpush2.bf16.xpose.msra.mxu0 0
        %1488 = vmatprep.subr.bf16.mxu0 0
        %1489 = vmatpush2.bf16.xpose.msra.mxu0 0
        %1490 = vmatprep.subr.bf16.mxu0 0
        %1491 = vmatpush2.bf16.xpose.msra.mxu0 0
        %1492 = vmatprep.subr.bf16.mxu0 0
        %1493 = vmatpush2.bf16.xpose.msra.mxu0 0
        %1494 = vmatprep.mubr.bf16.mxu0 0
        %1495 = vmatmul.mubr.bf16.gmra.mxu0 %v1457
        %v1496 = vpop.f32.mrf.mxu0
        %v1497 = vadd.f32 %v1321, %v1496
        %v1498 = vpop.f32.mrf.mxu0
        %v1499 = vpop.f32.mrf.mxu0
        %v1500 = vadd.f32 %v1321, %v1499
        %v1501 = vpop.f32.mrf.mxu0
        %1502 = vdwg.mxu0
        %v1503 = vsel %vm1371, %v1497, -inf
        %1504 = vmax.xlane.f32.xlu0 %v1503
        %v1505 = vpop.xlane.xlu0 %1504
        %v1506 = vsel %vm1371, %v1500, -inf
        %1507 = vmax.xlane.f32.xlu0 %v1506
        %v1508 = vpop.xlane.xlu0 %1507
        %v1509 = vsub.f32 %v1497, %v1505
        %v1510 = vsub.f32 %v1500, %v1508
        %v1511 = vmul.f32 %v1509, 1.442695
        %v1512 = vpow.pop %v1511
        %v1513 = vmul.f32 %v1510, 1.442695
        %v1514 = vpow.pop %v1513
        %v1515 = vsel %vm1371, %v1512, 0.0
        %1516 = vadd.xlane.f32.xlu0 %v1515
        %v1517 = vpop.xlane.xlu0 %1516
        %v1518 = vsel %vm1371, %v1514, 0.0
        %1519 = vadd.xlane.f32.xlu0 %v1518
        %v1520 = vpop.xlane.xlu0 %1519
        %v1521 = vrcp.pop %v1517
        %v1522 = vrcp.pop %v1520
        %v1523 = vpack.c.bf16 %v1514, %v1512
        %1525 = vrot.lane.b32.xlu0 %v1308, 96
        %v1526 = vpop.permute.xlu0 %1525
        %v1529 = vsel %vm1371, %v1523, 0
        %1531 = vmatprep.subr.bf16.mxu0 0
        %1532 = vmatpush1.bf16.msra.mxu0 0
        %1533 = vmatprep.subr.bf16.mxu0 0
        %1534 = vmatpush1.bf16.msra.mxu0 0
        %1535 = vmatprep.subr.bf16.mxu0 0
        %1536 = vmatpush1.bf16.msra.mxu0 0
        %1537 = vmatprep.subr.bf16.mxu0 0
        %1538 = vmatpush1.bf16.msra.mxu0 0
        %1539 = vmatprep.subr.bf16.mxu0 0
        %1540 = vmatpush1.bf16.msra.mxu0 0
        %1541 = vmatprep.subr.bf16.mxu0 0
        %1542 = vmatpush1.bf16.msra.mxu0 0
        %1543 = vmatprep.subr.bf16.mxu0 0
        %1544 = vmatpush1.bf16.msra.mxu0 0
        %1545 = vmatprep.subr.bf16.mxu0 0
        %1546 = vmatpush1.bf16.msra.mxu0 %v1526
        %1547 = vmatprep.subr.bf16.mxu0 0
        %1548 = vmatpush2.bf16.msra.mxu0 0
        %1549 = vmatprep.subr.bf16.mxu0 0
        %1550 = vmatpush2.bf16.msra.mxu0 0
        %1551 = vmatprep.subr.bf16.mxu0 0
        %1552 = vmatpush2.bf16.msra.mxu0 0
        %1553 = vmatprep.subr.bf16.mxu0 0
        %1554 = vmatpush2.bf16.msra.mxu0 0
        %1555 = vmatprep.subr.bf16.mxu0 0
        %1556 = vmatpush2.bf16.msra.mxu0 0
        %1557 = vmatprep.subr.bf16.mxu0 0
        %1558 = vmatpush2.bf16.msra.mxu0 0
        %1559 = vmatprep.subr.bf16.mxu0 0
        %1560 = vmatpush2.bf16.msra.mxu0 0
        %1561 = vmatprep.subr.bf16.mxu0 0
        %1562 = vmatpush2.bf16.msra.mxu0 0
        %1563 = vmatprep.mubr.bf16.mxu0 0
        %1564 = vmatmul.mubr.bf16.gmra.mxu0 %v1529
        %v1565 = vpop.f32.mrf.mxu0
        %v1566 = vadd.f32 0.0, %v1565
        %v1567 = vpop.f32.mrf.mxu0
        %v1568 = vpop.f32.mrf.mxu0
        %v1569 = vadd.f32 0.0, %v1568
        %v1570 = vpop.f32.mrf.mxu0
        %1571 = vdwg.mxu0
        %v1572 = vmul.f32 %v1566, %v1521
        %v1573 = vmul.f32 %v1569, %v1522
        %v1574 = vpack.c.bf16 %v1573, %v1572
        %v1576 = vunpack.c.l.b16 %v1574
        %v1577 = vunpack.c.h.b16 %v1574
        %v1578 = vpack.c.b16 %v1576, %v1576
        %v1579 = vpack.c.b16 %v1577, %v1577
        %1580 = vrot.lane.b32.xlu0 %v1578, 32
        %v1581 = vpop.permute.xlu0 %1580
        %1582 = vrot.lane.b32.xlu0 %v1579, 32
        %v1583 = vpop.permute.xlu0 %1582
        %vm1586 = vcmask 519424
        %1587 = vst.msk [vmem:[#allocation3] sm:$0xf] %vm1586, %v1581
        %1588 = vst.msk [vmem:[#allocation3 + $0x4] sm:$0xf] %vm1586, %v1583
        %1589 = vrot.lane.b32.xlu0 %v1292, 64
        %v1590 = vpop.permute.xlu0 %1589
        %1591 = vrot.lane.b32.xlu0 %v1300, 64
        %v1592 = vpop.permute.xlu0 %1591
        %v1594 = vsel %vm1323, %v1590, 0
        %v1597 = vsel %vm1323, %v1592, 0
        %1599 = vmatprep.subr.bf16.mxu0 0
        %1600 = vmatpush1.bf16.xpose.msra.mxu0 0
        %1601 = vmatprep.subr.bf16.mxu0 0
        %1602 = vmatpush1.bf16.xpose.msra.mxu0 0
        %1603 = vmatprep.subr.bf16.mxu0 0
        %1604 = vmatpush1.bf16.xpose.msra.mxu0 0
        %1605 = vmatprep.subr.bf16.mxu0 0
        %1606 = vmatpush1.bf16.xpose.msra.mxu0 0
        %1607 = vmatprep.subr.bf16.mxu0 0
        %1608 = vmatpush1.bf16.xpose.msra.mxu0 0
        %1609 = vmatprep.subr.bf16.mxu0 0
        %1610 = vmatpush1.bf16.xpose.msra.mxu0 0
        %1611 = vmatprep.subr.bf16.mxu0 0
        %1612 = vmatpush1.bf16.xpose.msra.mxu0 0
        %1613 = vmatprep.subr.bf16.mxu0 0
        %1614 = vmatpush1.bf16.xpose.msra.mxu0 %v1597
        %1615 = vmatprep.subr.bf16.mxu0 0
        %1616 = vmatpush2.bf16.xpose.msra.mxu0 0
        %1617 = vmatprep.subr.bf16.mxu0 0
        %1618 = vmatpush2.bf16.xpose.msra.mxu0 0
        %1619 = vmatprep.subr.bf16.mxu0 0
        %1620 = vmatpush2.bf16.xpose.msra.mxu0 0
        %1621 = vmatprep.subr.bf16.mxu0 0
        %1622 = vmatpush2.bf16.xpose.msra.mxu0 0
        %1623 = vmatprep.subr.bf16.mxu0 0
        %1624 = vmatpush2.bf16.xpose.msra.mxu0 0
        %1625 = vmatprep.subr.bf16.mxu0 0
        %1626 = vmatpush2.bf16.xpose.msra.mxu0 0
        %1627 = vmatprep.subr.bf16.mxu0 0
        %1628 = vmatpush2.bf16.xpose.msra.mxu0 0
        %1629 = vmatprep.subr.bf16.mxu0 0
        %1630 = vmatpush2.bf16.xpose.msra.mxu0 0
        %1631 = vmatprep.mubr.bf16.mxu0 0
        %1632 = vmatmul.mubr.bf16.gmra.mxu0 %v1594
        %v1633 = vpop.f32.mrf.mxu0
        %v1634 = vadd.f32 %v1321, %v1633
        %v1635 = vpop.f32.mrf.mxu0
        %v1636 = vpop.f32.mrf.mxu0
        %v1637 = vadd.f32 %v1321, %v1636
        %v1638 = vpop.f32.mrf.mxu0
        %1639 = vdwg.mxu0
        %v1640 = vsel %vm1371, %v1634, -inf
        %1641 = vmax.xlane.f32.xlu0 %v1640
        %v1642 = vpop.xlane.xlu0 %1641
        %v1643 = vsel %vm1371, %v1637, -inf
        %1644 = vmax.xlane.f32.xlu0 %v1643
        %v1645 = vpop.xlane.xlu0 %1644
        %v1646 = vsub.f32 %v1634, %v1642
        %v1647 = vsub.f32 %v1637, %v1645
        %v1648 = vmul.f32 %v1646, 1.442695
        %v1649 = vpow.pop %v1648
        %v1650 = vmul.f32 %v1647, 1.442695
        %v1651 = vpow.pop %v1650
        %v1652 = vsel %vm1371, %v1649, 0.0
        %1653 = vadd.xlane.f32.xlu0 %v1652
        %v1654 = vpop.xlane.xlu0 %1653
        %v1655 = vsel %vm1371, %v1651, 0.0
        %1656 = vadd.xlane.f32.xlu0 %v1655
        %v1657 = vpop.xlane.xlu0 %1656
        %v1658 = vrcp.pop %v1654
        %v1659 = vrcp.pop %v1657
        %v1660 = vpack.c.bf16 %v1651, %v1649
        %1661 = vrot.lane.b32.xlu0 %v1308, 64
        %v1662 = vpop.permute.xlu0 %1661
        %v1665 = vsel %vm1371, %v1660, 0
        %1667 = vmatprep.subr.bf16.mxu0 0
        %1668 = vmatpush1.bf16.msra.mxu0 0
        %1669 = vmatprep.subr.bf16.mxu0 0
        %1670 = vmatpush1.bf16.msra.mxu0 0
        %1671 = vmatprep.subr.bf16.mxu0 0
        %1672 = vmatpush1.bf16.msra.mxu0 0
        %1673 = vmatprep.subr.bf16.mxu0 0
        %1674 = vmatpush1.bf16.msra.mxu0 0
        %1675 = vmatprep.subr.bf16.mxu0 0
        %1676 = vmatpush1.bf16.msra.mxu0 0
        %1677 = vmatprep.subr.bf16.mxu0 0
        %1678 = vmatpush1.bf16.msra.mxu0 0
        %1679 = vmatprep.subr.bf16.mxu0 0
        %1680 = vmatpush1.bf16.msra.mxu0 0
        %1681 = vmatprep.subr.bf16.mxu0 0
        %1682 = vmatpush1.bf16.msra.mxu0 %v1662
        %1683 = vmatprep.subr.bf16.mxu0 0
        %1684 = vmatpush2.bf16.msra.mxu0 0
        %1685 = vmatprep.subr.bf16.mxu0 0
        %1686 = vmatpush2.bf16.msra.mxu0 0
        %1687 = vmatprep.subr.bf16.mxu0 0
        %1688 = vmatpush2.bf16.msra.mxu0 0
        %1689 = vmatprep.subr.bf16.mxu0 0
        %1690 = vmatpush2.bf16.msra.mxu0 0
        %1691 = vmatprep.subr.bf16.mxu0 0
        %1692 = vmatpush2.bf16.msra.mxu0 0
        %1693 = vmatprep.subr.bf16.mxu0 0
        %1694 = vmatpush2.bf16.msra.mxu0 0
        %1695 = vmatprep.subr.bf16.mxu0 0
        %1696 = vmatpush2.bf16.msra.mxu0 0
        %1697 = vmatprep.subr.bf16.mxu0 0
        %1698 = vmatpush2.bf16.msra.mxu0 0
        %1699 = vmatprep.mubr.bf16.mxu0 0
        %1700 = vmatmul.mubr.bf16.gmra.mxu0 %v1665
        %v1701 = vpop.f32.mrf.mxu0
        %v1702 = vadd.f32 0.0, %v1701
        %v1703 = vpop.f32.mrf.mxu0
        %v1704 = vpop.f32.mrf.mxu0
        %v1705 = vadd.f32 0.0, %v1704
        %v1706 = vpop.f32.mrf.mxu0
        %1707 = vdwg.mxu0
        %v1708 = vmul.f32 %v1702, %v1658
        %v1709 = vmul.f32 %v1705, %v1659
        %v1710 = vpack.c.bf16 %v1709, %v1708
        %v1712 = vunpack.c.l.b16 %v1710
        %v1713 = vunpack.c.h.b16 %v1710
        %v1714 = vpack.c.b16 %v1712, %v1712
        %v1715 = vpack.c.b16 %v1713, %v1713
        %1716 = vrot.lane.b32.xlu0 %v1714, 64
        %v1717 = vpop.permute.xlu0 %1716
        %1718 = vrot.lane.b32.xlu0 %v1715, 64
        %v1719 = vpop.permute.xlu0 %1718
        %vm1722 = vcmask 781824
        %1723 = vst.msk [vmem:[#allocation3] sm:$0xf] %vm1722, %v1717
        %1724 = vst.msk [vmem:[#allocation3 + $0x4] sm:$0xf] %vm1722, %v1719
        %1725 = vrot.lane.b32.xlu0 %v1292, 32
        %v1726 = vpop.permute.xlu0 %1725
        %1727 = vrot.lane.b32.xlu0 %v1300, 32
        %v1728 = vpop.permute.xlu0 %1727
        %v1730 = vsel %vm1323, %v1726, 0
        %v1733 = vsel %vm1323, %v1728, 0
        %1735 = vmatprep.subr.bf16.mxu0 0
        %1736 = vmatpush1.bf16.xpose.msra.mxu0 0
        %1737 = vmatprep.subr.bf16.mxu0 0
        %1738 = vmatpush1.bf16.xpose.msra.mxu0 0
        %1739 = vmatprep.subr.bf16.mxu0 0
        %1740 = vmatpush1.bf16.xpose.msra.mxu0 0
        %1741 = vmatprep.subr.bf16.mxu0 0
        %1742 = vmatpush1.bf16.xpose.msra.mxu0 0
        %1743 = vmatprep.subr.bf16.mxu0 0
        %1744 = vmatpush1.bf16.xpose.msra.mxu0 0
        %1745 = vmatprep.subr.bf16.mxu0 0
        %1746 = vmatpush1.bf16.xpose.msra.mxu0 0
        %1747 = vmatprep.subr.bf16.mxu0 0
        %1748 = vmatpush1.bf16.xpose.msra.mxu0 0
        %1749 = vmatprep.subr.bf16.mxu0 0
        %1750 = vmatpush1.bf16.xpose.msra.mxu0 %v1733
        %1751 = vmatprep.subr.bf16.mxu0 0
        %1752 = vmatpush2.bf16.xpose.msra.mxu0 0
        %1753 = vmatprep.subr.bf16.mxu0 0
        %1754 = vmatpush2.bf16.xpose.msra.mxu0 0
        %1755 = vmatprep.subr.bf16.mxu0 0
        %1756 = vmatpush2.bf16.xpose.msra.mxu0 0
        %1757 = vmatprep.subr.bf16.mxu0 0
        %1758 = vmatpush2.bf16.xpose.msra.mxu0 0
        %1759 = vmatprep.subr.bf16.mxu0 0
        %1760 = vmatpush2.bf16.xpose.msra.mxu0 0
        %1761 = vmatprep.subr.bf16.mxu0 0
        %1762 = vmatpush2.bf16.xpose.msra.mxu0 0
        %1763 = vmatprep.subr.bf16.mxu0 0
        %1764 = vmatpush2.bf16.xpose.msra.mxu0 0
        %1765 = vmatprep.subr.bf16.mxu0 0
        %1766 = vmatpush2.bf16.xpose.msra.mxu0 0
        %1767 = vmatprep.mubr.bf16.mxu0 0
        %1768 = vmatmul.mubr.bf16.gmra.mxu0 %v1730
        %v1769 = vpop.f32.mrf.mxu0
        %v1770 = vadd.f32 %v1321, %v1769
        %v1771 = vpop.f32.mrf.mxu0
        %v1772 = vpop.f32.mrf.mxu0
        %v1773 = vadd.f32 %v1321, %v1772
        %v1774 = vpop.f32.mrf.mxu0
        %1775 = vdwg.mxu0
        %v1776 = vsel %vm1371, %v1770, -inf
        %1777 = vmax.xlane.f32.xlu0 %v1776
        %v1778 = vpop.xlane.xlu0 %1777
        %v1779 = vsel %vm1371, %v1773, -inf
        %1780 = vmax.xlane.f32.xlu0 %v1779
        %v1781 = vpop.xlane.xlu0 %1780
        %v1782 = vsub.f32 %v1770, %v1778
        %v1783 = vsub.f32 %v1773, %v1781
        %v1784 = vmul.f32 %v1782, 1.442695
        %v1785 = vpow.pop %v1784
        %v1786 = vmul.f32 %v1783, 1.442695
        %v1787 = vpow.pop %v1786
        %v1788 = vsel %vm1371, %v1785, 0.0
        %1789 = vadd.xlane.f32.xlu0 %v1788
        %v1790 = vpop.xlane.xlu0 %1789
        %v1791 = vsel %vm1371, %v1787, 0.0
        %1792 = vadd.xlane.f32.xlu0 %v1791
        %v1793 = vpop.xlane.xlu0 %1792
        %v1794 = vrcp.pop %v1790
        %v1795 = vrcp.pop %v1793
        %v1796 = vpack.c.bf16 %v1787, %v1785
        %1797 = vrot.lane.b32.xlu0 %v1308, 32
        %v1798 = vpop.permute.xlu0 %1797
        %v1801 = vsel %vm1371, %v1796, 0
        %1803 = vmatprep.subr.bf16.mxu0 0
        %1804 = vmatpush1.bf16.msra.mxu0 0
        %1805 = vmatprep.subr.bf16.mxu0 0
        %1806 = vmatpush1.bf16.msra.mxu0 0
        %1807 = vmatprep.subr.bf16.mxu0 0
        %1808 = vmatpush1.bf16.msra.mxu0 0
        %1809 = vmatprep.subr.bf16.mxu0 0
        %1810 = vmatpush1.bf16.msra.mxu0 0
        %1811 = vmatprep.subr.bf16.mxu0 0
        %1812 = vmatpush1.bf16.msra.mxu0 0
        %1813 = vmatprep.subr.bf16.mxu0 0
        %1814 = vmatpush1.bf16.msra.mxu0 0
        %1815 = vmatprep.subr.bf16.mxu0 0
        %1816 = vmatpush1.bf16.msra.mxu0 0
        %1817 = vmatprep.subr.bf16.mxu0 0
        %1818 = vmatpush1.bf16.msra.mxu0 %v1798
        %1819 = vmatprep.subr.bf16.mxu0 0
        %1820 = vmatpush2.bf16.msra.mxu0 0
        %1821 = vmatprep.subr.bf16.mxu0 0
        %1822 = vmatpush2.bf16.msra.mxu0 0
        %1823 = vmatprep.subr.bf16.mxu0 0
        %1824 = vmatpush2.bf16.msra.mxu0 0
        %1825 = vmatprep.subr.bf16.mxu0 0
        %1826 = vmatpush2.bf16.msra.mxu0 0
        %1827 = vmatprep.subr.bf16.mxu0 0
        %1828 = vmatpush2.bf16.msra.mxu0 0
        %1829 = vmatprep.subr.bf16.mxu0 0
        %1830 = vmatpush2.bf16.msra.mxu0 0
        %1831 = vmatprep.subr.bf16.mxu0 0
        %1832 = vmatpush2.bf16.msra.mxu0 0
        %1833 = vmatprep.subr.bf16.mxu0 0
        %1834 = vmatpush2.bf16.msra.mxu0 0
        %1835 = vmatprep.mubr.bf16.mxu0 0
        %1836 = vmatmul.mubr.bf16.gmra.mxu0 %v1801
        %v1837 = vpop.f32.mrf.mxu0
        %v1838 = vadd.f32 0.0, %v1837
        %v1839 = vpop.f32.mrf.mxu0
        %v1840 = vpop.f32.mrf.mxu0
        %v1841 = vadd.f32 0.0, %v1840
        %v1842 = vpop.f32.mrf.mxu0
        %1843 = vdwg.mxu0
        %v1844 = vmul.f32 %v1838, %v1794
        %v1845 = vmul.f32 %v1841, %v1795
        %v1846 = vpack.c.bf16 %v1845, %v1844
        %v1848 = vunpack.c.l.b16 %v1846
        %v1849 = vunpack.c.h.b16 %v1846
        %v1850 = vpack.c.b16 %v1848, %v1848
        %v1851 = vpack.c.b16 %v1849, %v1849
        %1852 = vrot.lane.b32.xlu0 %v1850, 96
        %v1853 = vpop.permute.xlu0 %1852
        %1854 = vrot.lane.b32.xlu0 %v1851, 96
        %v1855 = vpop.permute.xlu0 %1854
        %vm1858 = vcmask 1044224
        %1859 = vst.msk [vmem:[#allocation3] sm:$0xf] %vm1858, %v1853
        %1860 = vst.msk [vmem:[#allocation3 + $0x4] sm:$0xf] %vm1858, %v1855
        %s1861 = scalar_lea.vmem %s567, 1 [#allocation7]
        %v1862 = vld [vmem:[%s1861] sm:$0x1]
        %v1864 = vlaneseq
        %v1865 = vshrl.u32 %v1864, 7
        %v1866 = vsub.s32 0, %v1865
        %v1867 = vrot.slane %v1862, %v1866
        %v1870 = vsel %vm1323, %v1293, 0
        %v1873 = vsel %vm1323, %v1301, 0
        %1875 = vmatprep.subr.bf16.mxu0 0
        %1876 = vmatpush1.bf16.xpose.msra.mxu0 0
        %1877 = vmatprep.subr.bf16.mxu0 0
        %1878 = vmatpush1.bf16.xpose.msra.mxu0 0
        %1879 = vmatprep.subr.bf16.mxu0 0
        %1880 = vmatpush1.bf16.xpose.msra.mxu0 0
        %1881 = vmatprep.subr.bf16.mxu0 0
        %1882 = vmatpush1.bf16.xpose.msra.mxu0 0
        %1883 = vmatprep.subr.bf16.mxu0 0
        %1884 = vmatpush1.bf16.xpose.msra.mxu0 0
        %1885 = vmatprep.subr.bf16.mxu0 0
        %1886 = vmatpush1.bf16.xpose.msra.mxu0 0
        %1887 = vmatprep.subr.bf16.mxu0 0
        %1888 = vmatpush1.bf16.xpose.msra.mxu0 0
        %1889 = vmatprep.subr.bf16.mxu0 0
        %1890 = vmatpush1.bf16.xpose.msra.mxu0 %v1873
        %1891 = vmatprep.subr.bf16.mxu0 0
        %1892 = vmatpush2.bf16.xpose.msra.mxu0 0
        %1893 = vmatprep.subr.bf16.mxu0 0
        %1894 = vmatpush2.bf16.xpose.msra.mxu0 0
        %1895 = vmatprep.subr.bf16.mxu0 0
        %1896 = vmatpush2.bf16.xpose.msra.mxu0 0
        %1897 = vmatprep.subr.bf16.mxu0 0
        %1898 = vmatpush2.bf16.xpose.msra.mxu0 0
        %1899 = vmatprep.subr.bf16.mxu0 0
        %1900 = vmatpush2.bf16.xpose.msra.mxu0 0
        %1901 = vmatprep.subr.bf16.mxu0 0
        %1902 = vmatpush2.bf16.xpose.msra.mxu0 0
        %1903 = vmatprep.subr.bf16.mxu0 0
        %1904 = vmatpush2.bf16.xpose.msra.mxu0 0
        %1905 = vmatprep.subr.bf16.mxu0 0
        %1906 = vmatpush2.bf16.xpose.msra.mxu0 0
        %1907 = vmatprep.mubr.bf16.mxu0 0
        %1908 = vmatmul.mubr.bf16.gmra.mxu0 %v1870
        %v1909 = vpop.f32.mrf.mxu0
        %v1910 = vadd.f32 %v1867, %v1909
        %v1911 = vpop.f32.mrf.mxu0
        %v1912 = vpop.f32.mrf.mxu0
        %v1913 = vadd.f32 %v1867, %v1912
        %v1914 = vpop.f32.mrf.mxu0
        %1915 = vdwg.mxu0
        %v1916 = vsel %vm1371, %v1910, -inf
        %1917 = vmax.xlane.f32.xlu0 %v1916
        %v1918 = vpop.xlane.xlu0 %1917
        %v1919 = vsel %vm1371, %v1913, -inf
        %1920 = vmax.xlane.f32.xlu0 %v1919
        %v1921 = vpop.xlane.xlu0 %1920
        %v1922 = vsub.f32 %v1910, %v1918
        %v1923 = vsub.f32 %v1913, %v1921
        %v1924 = vmul.f32 %v1922, 1.442695
        %v1925 = vpow.pop %v1924
        %v1926 = vmul.f32 %v1923, 1.442695
        %v1927 = vpow.pop %v1926
        %v1928 = vsel %vm1371, %v1925, 0.0
        %1929 = vadd.xlane.f32.xlu0 %v1928
        %v1930 = vpop.xlane.xlu0 %1929
        %v1931 = vsel %vm1371, %v1927, 0.0
        %1932 = vadd.xlane.f32.xlu0 %v1931
        %v1933 = vpop.xlane.xlu0 %1932
        %v1934 = vrcp.pop %v1930
        %v1935 = vrcp.pop %v1933
        %v1936 = vpack.c.bf16 %v1927, %v1925
        %v1938 = vsel %vm1371, %v1936, 0
        %1940 = vmatprep.subr.bf16.mxu0 0
        %1941 = vmatpush1.bf16.msra.mxu0 0
        %1942 = vmatprep.subr.bf16.mxu0 0
        %1943 = vmatpush1.bf16.msra.mxu0 0
        %1944 = vmatprep.subr.bf16.mxu0 0
        %1945 = vmatpush1.bf16.msra.mxu0 0
        %1946 = vmatprep.subr.bf16.mxu0 0
        %1947 = vmatpush1.bf16.msra.mxu0 0
        %1948 = vmatprep.subr.bf16.mxu0 0
        %1949 = vmatpush1.bf16.msra.mxu0 0
        %1950 = vmatprep.subr.bf16.mxu0 0
        %1951 = vmatpush1.bf16.msra.mxu0 0
        %1952 = vmatprep.subr.bf16.mxu0 0
        %1953 = vmatpush1.bf16.msra.mxu0 0
        %1954 = vmatprep.subr.bf16.mxu0 0
        %1955 = vmatpush1.bf16.msra.mxu0 %v1309
        %1956 = vmatprep.subr.bf16.mxu0 0
        %1957 = vmatpush2.bf16.msra.mxu0 0
        %1958 = vmatprep.subr.bf16.mxu0 0
        %1959 = vmatpush2.bf16.msra.mxu0 0
        %1960 = vmatprep.subr.bf16.mxu0 0
        %1961 = vmatpush2.bf16.msra.mxu0 0
        %1962 = vmatprep.subr.bf16.mxu0 0
        %1963 = vmatpush2.bf16.msra.mxu0 0
        %1964 = vmatprep.subr.bf16.mxu0 0
        %1965 = vmatpush2.bf16.msra.mxu0 0
        %1966 = vmatprep.subr.bf16.mxu0 0
        %1967 = vmatpush2.bf16.msra.mxu0 0
        %1968 = vmatprep.subr.bf16.mxu0 0
        %1969 = vmatpush2.bf16.msra.mxu0 0
        %1970 = vmatprep.subr.bf16.mxu0 0
        %1971 = vmatpush2.bf16.msra.mxu0 0
        %1972 = vmatprep.mubr.bf16.mxu0 0
        %1973 = vmatmul.mubr.bf16.gmra.mxu0 %v1938
        %v1974 = vpop.f32.mrf.mxu0
        %v1975 = vadd.f32 0.0, %v1974
        %v1976 = vpop.f32.mrf.mxu0
        %v1977 = vpop.f32.mrf.mxu0
        %v1978 = vadd.f32 0.0, %v1977
        %v1979 = vpop.f32.mrf.mxu0
        %1980 = vdwg.mxu0
        %v1981 = vmul.f32 %v1975, %v1934
        %v1982 = vmul.f32 %v1978, %v1935
        %v1983 = vpack.c.bf16 %v1982, %v1981
        %v1985 = vunpack.c.l.b16 %v1983
        %v1986 = vunpack.c.h.b16 %v1983
        %v1987 = vpack.c.b16 %v1985, %v1985
        %v1988 = vpack.c.b16 %v1986, %v1986
        %1991 = vst.msk [vmem:[#allocation3 + $0x8] sm:$0xf] %vm1447, %v1987
        %1992 = vst.msk [vmem:[#allocation3 + $0xc] sm:$0xf] %vm1447, %v1988
        %1994 = vrot.lane.b32.xlu0 %v1293, 96
        %v1995 = vpop.permute.xlu0 %1994
        %1997 = vrot.lane.b32.xlu0 %v1301, 96
        %v1998 = vpop.permute.xlu0 %1997
        %v2000 = vsel %vm1323, %v1995, 0
        %v2003 = vsel %vm1323, %v1998, 0
        %2005 = vmatprep.subr.bf16.mxu0 0
        %2006 = vmatpush1.bf16.xpose.msra.mxu0 0
        %2007 = vmatprep.subr.bf16.mxu0 0
        %2008 = vmatpush1.bf16.xpose.msra.mxu0 0
        %2009 = vmatprep.subr.bf16.mxu0 0
        %2010 = vmatpush1.bf16.xpose.msra.mxu0 0
        %2011 = vmatprep.subr.bf16.mxu0 0
        %2012 = vmatpush1.bf16.xpose.msra.mxu0 0
        %2013 = vmatprep.subr.bf16.mxu0 0
        %2014 = vmatpush1.bf16.xpose.msra.mxu0 0
        %2015 = vmatprep.subr.bf16.mxu0 0
        %2016 = vmatpush1.bf16.xpose.msra.mxu0 0
        %2017 = vmatprep.subr.bf16.mxu0 0
        %2018 = vmatpush1.bf16.xpose.msra.mxu0 0
        %2019 = vmatprep.subr.bf16.mxu0 0
        %2020 = vmatpush1.bf16.xpose.msra.mxu0 %v2003
        %2021 = vmatprep.subr.bf16.mxu0 0
        %2022 = vmatpush2.bf16.xpose.msra.mxu0 0
        %2023 = vmatprep.subr.bf16.mxu0 0
        %2024 = vmatpush2.bf16.xpose.msra.mxu0 0
        %2025 = vmatprep.subr.bf16.mxu0 0
        %2026 = vmatpush2.bf16.xpose.msra.mxu0 0
        %2027 = vmatprep.subr.bf16.mxu0 0
        %2028 = vmatpush2.bf16.xpose.msra.mxu0 0
        %2029 = vmatprep.subr.bf16.mxu0 0
        %2030 = vmatpush2.bf16.xpose.msra.mxu0 0
        %2031 = vmatprep.subr.bf16.mxu0 0
        %2032 = vmatpush2.bf16.xpose.msra.mxu0 0
        %2033 = vmatprep.subr.bf16.mxu0 0
        %2034 = vmatpush2.bf16.xpose.msra.mxu0 0
        %2035 = vmatprep.subr.bf16.mxu0 0
        %2036 = vmatpush2.bf16.xpose.msra.mxu0 0
        %2037 = vmatprep.mubr.bf16.mxu0 0
        %2038 = vmatmul.mubr.bf16.gmra.mxu0 %v2000
        %v2039 = vpop.f32.mrf.mxu0
        %v2040 = vadd.f32 %v1867, %v2039
        %v2041 = vpop.f32.mrf.mxu0
        %v2042 = vpop.f32.mrf.mxu0
        %v2043 = vadd.f32 %v1867, %v2042
        %v2044 = vpop.f32.mrf.mxu0
        %2045 = vdwg.mxu0
        %v2046 = vsel %vm1371, %v2040, -inf
        %2047 = vmax.xlane.f32.xlu0 %v2046
        %v2048 = vpop.xlane.xlu0 %2047
        %v2049 = vsel %vm1371, %v2043, -inf
        %2050 = vmax.xlane.f32.xlu0 %v2049
        %v2051 = vpop.xlane.xlu0 %2050
        %v2052 = vsub.f32 %v2040, %v2048
        %v2053 = vsub.f32 %v2043, %v2051
        %v2054 = vmul.f32 %v2052, 1.442695
        %v2055 = vpow.pop %v2054
        %v2056 = vmul.f32 %v2053, 1.442695
        %v2057 = vpow.pop %v2056
        %v2058 = vsel %vm1371, %v2055, 0.0
        %2059 = vadd.xlane.f32.xlu0 %v2058
        %v2060 = vpop.xlane.xlu0 %2059
        %v2061 = vsel %vm1371, %v2057, 0.0
        %2062 = vadd.xlane.f32.xlu0 %v2061
        %v2063 = vpop.xlane.xlu0 %2062
        %v2064 = vrcp.pop %v2060
        %v2065 = vrcp.pop %v2063
        %v2066 = vpack.c.bf16 %v2057, %v2055
        %2068 = vrot.lane.b32.xlu0 %v1309, 96
        %v2069 = vpop.permute.xlu0 %2068
        %v2072 = vsel %vm1371, %v2066, 0
        %2074 = vmatprep.subr.bf16.mxu0 0
        %2075 = vmatpush1.bf16.msra.mxu0 0
        %2076 = vmatprep.subr.bf16.mxu0 0
        %2077 = vmatpush1.bf16.msra.mxu0 0
        %2078 = vmatprep.subr.bf16.mxu0 0
        %2079 = vmatpush1.bf16.msra.mxu0 0
        %2080 = vmatprep.subr.bf16.mxu0 0
        %2081 = vmatpush1.bf16.msra.mxu0 0
        %2082 = vmatprep.subr.bf16.mxu0 0
        %2083 = vmatpush1.bf16.msra.mxu0 0
        %2084 = vmatprep.subr.bf16.mxu0 0
        %2085 = vmatpush1.bf16.msra.mxu0 0
        %2086 = vmatprep.subr.bf16.mxu0 0
        %2087 = vmatpush1.bf16.msra.mxu0 0
        %2088 = vmatprep.subr.bf16.mxu0 0
        %2089 = vmatpush1.bf16.msra.mxu0 %v2069
        %2090 = vmatprep.subr.bf16.mxu0 0
        %2091 = vmatpush2.bf16.msra.mxu0 0
        %2092 = vmatprep.subr.bf16.mxu0 0
        %2093 = vmatpush2.bf16.msra.mxu0 0
        %2094 = vmatprep.subr.bf16.mxu0 0
        %2095 = vmatpush2.bf16.msra.mxu0 0
        %2096 = vmatprep.subr.bf16.mxu0 0
        %2097 = vmatpush2.bf16.msra.mxu0 0
        %2098 = vmatprep.subr.bf16.mxu0 0
        %2099 = vmatpush2.bf16.msra.mxu0 0
        %2100 = vmatprep.subr.bf16.mxu0 0
        %2101 = vmatpush2.bf16.msra.mxu0 0
        %2102 = vmatprep.subr.bf16.mxu0 0
        %2103 = vmatpush2.bf16.msra.mxu0 0
        %2104 = vmatprep.subr.bf16.mxu0 0
        %2105 = vmatpush2.bf16.msra.mxu0 0
        %2106 = vmatprep.mubr.bf16.mxu0 0
        %2107 = vmatmul.mubr.bf16.gmra.mxu0 %v2072
        %v2108 = vpop.f32.mrf.mxu0
        %v2109 = vadd.f32 0.0, %v2108
        %v2110 = vpop.f32.mrf.mxu0
        %v2111 = vpop.f32.mrf.mxu0
        %v2112 = vadd.f32 0.0, %v2111
        %v2113 = vpop.f32.mrf.mxu0
        %2114 = vdwg.mxu0
        %v2115 = vmul.f32 %v2109, %v2064
        %v2116 = vmul.f32 %v2112, %v2065
        %v2117 = vpack.c.bf16 %v2116, %v2115
        %v2119 = vunpack.c.l.b16 %v2117
        %v2120 = vunpack.c.h.b16 %v2117
        %v2121 = vpack.c.b16 %v2119, %v2119
        %v2122 = vpack.c.b16 %v2120, %v2120
        %2123 = vrot.lane.b32.xlu0 %v2121, 32
        %v2124 = vpop.permute.xlu0 %2123
        %2125 = vrot.lane.b32.xlu0 %v2122, 32
        %v2126 = vpop.permute.xlu0 %2125
        %2129 = vst.msk [vmem:[#allocation3 + $0x8] sm:$0xf] %vm1586, %v2124
        %2130 = vst.msk [vmem:[#allocation3 + $0xc] sm:$0xf] %vm1586, %v2126
        %2131 = vrot.lane.b32.xlu0 %v1293, 64
        %v2132 = vpop.permute.xlu0 %2131
        %2133 = vrot.lane.b32.xlu0 %v1301, 64
        %v2134 = vpop.permute.xlu0 %2133
        %v2136 = vsel %vm1323, %v2132, 0
        %v2139 = vsel %vm1323, %v2134, 0
        %2141 = vmatprep.subr.bf16.mxu0 0
        %2142 = vmatpush1.bf16.xpose.msra.mxu0 0
        %2143 = vmatprep.subr.bf16.mxu0 0
        %2144 = vmatpush1.bf16.xpose.msra.mxu0 0
        %2145 = vmatprep.subr.bf16.mxu0 0
        %2146 = vmatpush1.bf16.xpose.msra.mxu0 0
        %2147 = vmatprep.subr.bf16.mxu0 0
        %2148 = vmatpush1.bf16.xpose.msra.mxu0 0
        %2149 = vmatprep.subr.bf16.mxu0 0
        %2150 = vmatpush1.bf16.xpose.msra.mxu0 0
        %2151 = vmatprep.subr.bf16.mxu0 0
        %2152 = vmatpush1.bf16.xpose.msra.mxu0 0
        %2153 = vmatprep.subr.bf16.mxu0 0
        %2154 = vmatpush1.bf16.xpose.msra.mxu0 0
        %2155 = vmatprep.subr.bf16.mxu0 0
        %2156 = vmatpush1.bf16.xpose.msra.mxu0 %v2139
        %2157 = vmatprep.subr.bf16.mxu0 0
        %2158 = vmatpush2.bf16.xpose.msra.mxu0 0
        %2159 = vmatprep.subr.bf16.mxu0 0
        %2160 = vmatpush2.bf16.xpose.msra.mxu0 0
        %2161 = vmatprep.subr.bf16.mxu0 0
        %2162 = vmatpush2.bf16.xpose.msra.mxu0 0
        %2163 = vmatprep.subr.bf16.mxu0 0
        %2164 = vmatpush2.bf16.xpose.msra.mxu0 0
        %2165 = vmatprep.subr.bf16.mxu0 0
        %2166 = vmatpush2.bf16.xpose.msra.mxu0 0
        %2167 = vmatprep.subr.bf16.mxu0 0
        %2168 = vmatpush2.bf16.xpose.msra.mxu0 0
        %2169 = vmatprep.subr.bf16.mxu0 0
        %2170 = vmatpush2.bf16.xpose.msra.mxu0 0
        %2171 = vmatprep.subr.bf16.mxu0 0
        %2172 = vmatpush2.bf16.xpose.msra.mxu0 0
        %2173 = vmatprep.mubr.bf16.mxu0 0
        %2174 = vmatmul.mubr.bf16.gmra.mxu0 %v2136
        %v2175 = vpop.f32.mrf.mxu0
        %v2176 = vadd.f32 %v1867, %v2175
        %v2177 = vpop.f32.mrf.mxu0
        %v2178 = vpop.f32.mrf.mxu0
        %v2179 = vadd.f32 %v1867, %v2178
        %v2180 = vpop.f32.mrf.mxu0
        %2181 = vdwg.mxu0
        %v2182 = vsel %vm1371, %v2176, -inf
        %2183 = vmax.xlane.f32.xlu0 %v2182
        %v2184 = vpop.xlane.xlu0 %2183
        %v2185 = vsel %vm1371, %v2179, -inf
        %2186 = vmax.xlane.f32.xlu0 %v2185
        %v2187 = vpop.xlane.xlu0 %2186
        %v2188 = vsub.f32 %v2176, %v2184
        %v2189 = vsub.f32 %v2179, %v2187
        %v2190 = vmul.f32 %v2188, 1.442695
        %v2191 = vpow.pop %v2190
        %v2192 = vmul.f32 %v2189, 1.442695
        %v2193 = vpow.pop %v2192
        %v2194 = vsel %vm1371, %v2191, 0.0
        %2195 = vadd.xlane.f32.xlu0 %v2194
        %v2196 = vpop.xlane.xlu0 %2195
        %v2197 = vsel %vm1371, %v2193, 0.0
        %2198 = vadd.xlane.f32.xlu0 %v2197
        %v2199 = vpop.xlane.xlu0 %2198
        %v2200 = vrcp.pop %v2196
        %v2201 = vrcp.pop %v2199
        %v2202 = vpack.c.bf16 %v2193, %v2191
        %2203 = vrot.lane.b32.xlu0 %v1309, 64
        %v2204 = vpop.permute.xlu0 %2203
        %v2207 = vsel %vm1371, %v2202, 0
        %2209 = vmatprep.subr.bf16.mxu0 0
        %2210 = vmatpush1.bf16.msra.mxu0 0
        %2211 = vmatprep.subr.bf16.mxu0 0
        %2212 = vmatpush1.bf16.msra.mxu0 0
        %2213 = vmatprep.subr.bf16.mxu0 0
        %2214 = vmatpush1.bf16.msra.mxu0 0
        %2215 = vmatprep.subr.bf16.mxu0 0
        %2216 = vmatpush1.bf16.msra.mxu0 0
        %2217 = vmatprep.subr.bf16.mxu0 0
        %2218 = vmatpush1.bf16.msra.mxu0 0
        %2219 = vmatprep.subr.bf16.mxu0 0
        %2220 = vmatpush1.bf16.msra.mxu0 0
        %2221 = vmatprep.subr.bf16.mxu0 0
        %2222 = vmatpush1.bf16.msra.mxu0 0
        %2223 = vmatprep.subr.bf16.mxu0 0
        %2224 = vmatpush1.bf16.msra.mxu0 %v2204
        %2225 = vmatprep.subr.bf16.mxu0 0
        %2226 = vmatpush2.bf16.msra.mxu0 0
        %2227 = vmatprep.subr.bf16.mxu0 0
        %2228 = vmatpush2.bf16.msra.mxu0 0
        %2229 = vmatprep.subr.bf16.mxu0 0
        %2230 = vmatpush2.bf16.msra.mxu0 0
        %2231 = vmatprep.subr.bf16.mxu0 0
        %2232 = vmatpush2.bf16.msra.mxu0 0
        %2233 = vmatprep.subr.bf16.mxu0 0
        %2234 = vmatpush2.bf16.msra.mxu0 0
        %2235 = vmatprep.subr.bf16.mxu0 0
        %2236 = vmatpush2.bf16.msra.mxu0 0
        %2237 = vmatprep.subr.bf16.mxu0 0
        %2238 = vmatpush2.bf16.msra.mxu0 0
        %2239 = vmatprep.subr.bf16.mxu0 0
        %2240 = vmatpush2.bf16.msra.mxu0 0
        %2241 = vmatprep.mubr.bf16.mxu0 0
        %2242 = vmatmul.mubr.bf16.gmra.mxu0 %v2207
        %v2243 = vpop.f32.mrf.mxu0
        %v2244 = vadd.f32 0.0, %v2243
        %v2245 = vpop.f32.mrf.mxu0
        %v2246 = vpop.f32.mrf.mxu0
        %v2247 = vadd.f32 0.0, %v2246
        %v2248 = vpop.f32.mrf.mxu0
        %2249 = vdwg.mxu0
        %v2250 = vmul.f32 %v2244, %v2200
        %v2251 = vmul.f32 %v2247, %v2201
        %v2252 = vpack.c.bf16 %v2251, %v2250
        %v2254 = vunpack.c.l.b16 %v2252
        %v2255 = vunpack.c.h.b16 %v2252
        %v2256 = vpack.c.b16 %v2254, %v2254
        %v2257 = vpack.c.b16 %v2255, %v2255
        %2258 = vrot.lane.b32.xlu0 %v2256, 64
        %v2259 = vpop.permute.xlu0 %2258
        %2260 = vrot.lane.b32.xlu0 %v2257, 64
        %v2261 = vpop.permute.xlu0 %2260
        %2264 = vst.msk [vmem:[#allocation3 + $0x8] sm:$0xf] %vm1722, %v2259
        %2265 = vst.msk [vmem:[#allocation3 + $0xc] sm:$0xf] %vm1722, %v2261
        %2266 = vrot.lane.b32.xlu0 %v1293, 32
        %v2267 = vpop.permute.xlu0 %2266
        %2268 = vrot.lane.b32.xlu0 %v1301, 32
        %v2269 = vpop.permute.xlu0 %2268
        %v2271 = vsel %vm1323, %v2267, 0
        %v2274 = vsel %vm1323, %v2269, 0
        %2276 = vmatprep.subr.bf16.mxu0 0
        %2277 = vmatpush1.bf16.xpose.msra.mxu0 0
        %2278 = vmatprep.subr.bf16.mxu0 0
        %2279 = vmatpush1.bf16.xpose.msra.mxu0 0
        %2280 = vmatprep.subr.bf16.mxu0 0
        %2281 = vmatpush1.bf16.xpose.msra.mxu0 0
        %2282 = vmatprep.subr.bf16.mxu0 0
        %2283 = vmatpush1.bf16.xpose.msra.mxu0 0
        %2284 = vmatprep.subr.bf16.mxu0 0
        %2285 = vmatpush1.bf16.xpose.msra.mxu0 0
        %2286 = vmatprep.subr.bf16.mxu0 0
        %2287 = vmatpush1.bf16.xpose.msra.mxu0 0
        %2288 = vmatprep.subr.bf16.mxu0 0
        %2289 = vmatpush1.bf16.xpose.msra.mxu0 0
        %2290 = vmatprep.subr.bf16.mxu0 0
        %2291 = vmatpush1.bf16.xpose.msra.mxu0 %v2274
        %2292 = vmatprep.subr.bf16.mxu0 0
        %2293 = vmatpush2.bf16.xpose.msra.mxu0 0
        %2294 = vmatprep.subr.bf16.mxu0 0
        %2295 = vmatpush2.bf16.xpose.msra.mxu0 0
        %2296 = vmatprep.subr.bf16.mxu0 0
        %2297 = vmatpush2.bf16.xpose.msra.mxu0 0
        %2298 = vmatprep.subr.bf16.mxu0 0
        %2299 = vmatpush2.bf16.xpose.msra.mxu0 0
        %2300 = vmatprep.subr.bf16.mxu0 0
        %2301 = vmatpush2.bf16.xpose.msra.mxu0 0
        %2302 = vmatprep.subr.bf16.mxu0 0
        %2303 = vmatpush2.bf16.xpose.msra.mxu0 0
        %2304 = vmatprep.subr.bf16.mxu0 0
        %2305 = vmatpush2.bf16.xpose.msra.mxu0 0
        %2306 = vmatprep.subr.bf16.mxu0 0
        %2307 = vmatpush2.bf16.xpose.msra.mxu0 0
        %2308 = vmatprep.mubr.bf16.mxu0 0
        %2309 = vmatmul.mubr.bf16.gmra.mxu0 %v2271
        %v2310 = vpop.f32.mrf.mxu0
        %v2311 = vadd.f32 %v1867, %v2310
        %v2312 = vpop.f32.mrf.mxu0
        %v2313 = vpop.f32.mrf.mxu0
        %v2314 = vadd.f32 %v1867, %v2313
        %v2315 = vpop.f32.mrf.mxu0
        %2316 = vdwg.mxu0
        %v2317 = vsel %vm1371, %v2311, -inf
        %2318 = vmax.xlane.f32.xlu0 %v2317
        %v2319 = vpop.xlane.xlu0 %2318
        %v2320 = vsel %vm1371, %v2314, -inf
        %2321 = vmax.xlane.f32.xlu0 %v2320
        %v2322 = vpop.xlane.xlu0 %2321
        %v2323 = vsub.f32 %v2311, %v2319
        %v2324 = vsub.f32 %v2314, %v2322
        %v2325 = vmul.f32 %v2323, 1.442695
        %v2326 = vpow.pop %v2325
        %v2327 = vmul.f32 %v2324, 1.442695
        %v2328 = vpow.pop %v2327
        %v2329 = vsel %vm1371, %v2326, 0.0
        %2330 = vadd.xlane.f32.xlu0 %v2329
        %v2331 = vpop.xlane.xlu0 %2330
        %v2332 = vsel %vm1371, %v2328, 0.0
        %2333 = vadd.xlane.f32.xlu0 %v2332
        %v2334 = vpop.xlane.xlu0 %2333
        %v2335 = vrcp.pop %v2331
        %v2336 = vrcp.pop %v2334
        %v2337 = vpack.c.bf16 %v2328, %v2326
        %2338 = vrot.lane.b32.xlu0 %v1309, 32
        %v2339 = vpop.permute.xlu0 %2338
        %v2342 = vsel %vm1371, %v2337, 0
        %2344 = vmatprep.subr.bf16.mxu0 0
        %2345 = vmatpush1.bf16.msra.mxu0 0
        %2346 = vmatprep.subr.bf16.mxu0 0
        %2347 = vmatpush1.bf16.msra.mxu0 0
        %2348 = vmatprep.subr.bf16.mxu0 0
        %2349 = vmatpush1.bf16.msra.mxu0 0
        %2350 = vmatprep.subr.bf16.mxu0 0
        %2351 = vmatpush1.bf16.msra.mxu0 0
        %2352 = vmatprep.subr.bf16.mxu0 0
        %2353 = vmatpush1.bf16.msra.mxu0 0
        %2354 = vmatprep.subr.bf16.mxu0 0
        %2355 = vmatpush1.bf16.msra.mxu0 0
        %2356 = vmatprep.subr.bf16.mxu0 0
        %2357 = vmatpush1.bf16.msra.mxu0 0
        %2358 = vmatprep.subr.bf16.mxu0 0
        %2359 = vmatpush1.bf16.msra.mxu0 %v2339
        %2360 = vmatprep.subr.bf16.mxu0 0
        %2361 = vmatpush2.bf16.msra.mxu0 0
        %2362 = vmatprep.subr.bf16.mxu0 0
        %2363 = vmatpush2.bf16.msra.mxu0 0
        %2364 = vmatprep.subr.bf16.mxu0 0
        %2365 = vmatpush2.bf16.msra.mxu0 0
        %2366 = vmatprep.subr.bf16.mxu0 0
        %2367 = vmatpush2.bf16.msra.mxu0 0
        %2368 = vmatprep.subr.bf16.mxu0 0
        %2369 = vmatpush2.bf16.msra.mxu0 0
        %2370 = vmatprep.subr.bf16.mxu0 0
        %2371 = vmatpush2.bf16.msra.mxu0 0
        %2372 = vmatprep.subr.bf16.mxu0 0
        %2373 = vmatpush2.bf16.msra.mxu0 0
        %2374 = vmatprep.subr.bf16.mxu0 0
        %2375 = vmatpush2.bf16.msra.mxu0 0
        %2376 = vmatprep.mubr.bf16.mxu0 0
        %2377 = vmatmul.mubr.bf16.gmra.mxu0 %v2342
        %v2378 = vpop.f32.mrf.mxu0
        %v2379 = vadd.f32 0.0, %v2378
        %v2380 = vpop.f32.mrf.mxu0
        %v2381 = vpop.f32.mrf.mxu0
        %v2382 = vadd.f32 0.0, %v2381
        %v2383 = vpop.f32.mrf.mxu0
        %2384 = vdwg.mxu0
        %v2385 = vmul.f32 %v2379, %v2335
        %v2386 = vmul.f32 %v2382, %v2336
        %v2387 = vpack.c.bf16 %v2386, %v2385
        %v2389 = vunpack.c.l.b16 %v2387
        %v2390 = vunpack.c.h.b16 %v2387
        %v2391 = vpack.c.b16 %v2389, %v2389
        %v2392 = vpack.c.b16 %v2390, %v2390
        %2393 = vrot.lane.b32.xlu0 %v2391, 96
        %v2394 = vpop.permute.xlu0 %2393
        %2395 = vrot.lane.b32.xlu0 %v2392, 96
        %v2396 = vpop.permute.xlu0 %2395
        %2399 = vst.msk [vmem:[#allocation3 + $0x8] sm:$0xf] %vm1858, %v2394
        %2400 = vst.msk [vmem:[#allocation3 + $0xc] sm:$0xf] %vm1858, %v2396
        %s2401 = scalar_lea.vmem %s567, 2 [#allocation7]
        %v2402 = vld [vmem:[%s2401] sm:$0x1]
        %v2404 = vlaneseq
        %v2405 = vshrl.u32 %v2404, 7
        %v2406 = vsub.s32 0, %v2405
        %v2407 = vrot.slane %v2402, %v2406
        %v2410 = vsel %vm1323, %v1294, 0
        %v2413 = vsel %vm1323, %v1302, 0
        %2415 = vmatprep.subr.bf16.mxu0 0
        %2416 = vmatpush1.bf16.xpose.msra.mxu0 0
        %2417 = vmatprep.subr.bf16.mxu0 0
        %2418 = vmatpush1.bf16.xpose.msra.mxu0 0
        %2419 = vmatprep.subr.bf16.mxu0 0
        %2420 = vmatpush1.bf16.xpose.msra.mxu0 0
        %2421 = vmatprep.subr.bf16.mxu0 0
        %2422 = vmatpush1.bf16.xpose.msra.mxu0 0
        %2423 = vmatprep.subr.bf16.mxu0 0
        %2424 = vmatpush1.bf16.xpose.msra.mxu0 0
        %2425 = vmatprep.subr.bf16.mxu0 0
        %2426 = vmatpush1.bf16.xpose.msra.mxu0 0
        %2427 = vmatprep.subr.bf16.mxu0 0
        %2428 = vmatpush1.bf16.xpose.msra.mxu0 0
        %2429 = vmatprep.subr.bf16.mxu0 0
        %2430 = vmatpush1.bf16.xpose.msra.mxu0 %v2413
        %2431 = vmatprep.subr.bf16.mxu0 0
        %2432 = vmatpush2.bf16.xpose.msra.mxu0 0
        %2433 = vmatprep.subr.bf16.mxu0 0
        %2434 = vmatpush2.bf16.xpose.msra.mxu0 0
        %2435 = vmatprep.subr.bf16.mxu0 0
        %2436 = vmatpush2.bf16.xpose.msra.mxu0 0
        %2437 = vmatprep.subr.bf16.mxu0 0
        %2438 = vmatpush2.bf16.xpose.msra.mxu0 0
        %2439 = vmatprep.subr.bf16.mxu0 0
        %2440 = vmatpush2.bf16.xpose.msra.mxu0 0
        %2441 = vmatprep.subr.bf16.mxu0 0
        %2442 = vmatpush2.bf16.xpose.msra.mxu0 0
        %2443 = vmatprep.subr.bf16.mxu0 0
        %2444 = vmatpush2.bf16.xpose.msra.mxu0 0
        %2445 = vmatprep.subr.bf16.mxu0 0
        %2446 = vmatpush2.bf16.xpose.msra.mxu0 0
        %2447 = vmatprep.mubr.bf16.mxu0 0
        %2448 = vmatmul.mubr.bf16.gmra.mxu0 %v2410
        %v2449 = vpop.f32.mrf.mxu0
        %v2450 = vadd.f32 %v2407, %v2449
        %v2451 = vpop.f32.mrf.mxu0
        %v2452 = vpop.f32.mrf.mxu0
        %v2453 = vadd.f32 %v2407, %v2452
        %v2454 = vpop.f32.mrf.mxu0
        %2455 = vdwg.mxu0
        %v2456 = vsel %vm1371, %v2450, -inf
        %2457 = vmax.xlane.f32.xlu0 %v2456
        %v2458 = vpop.xlane.xlu0 %2457
        %v2459 = vsel %vm1371, %v2453, -inf
        %2460 = vmax.xlane.f32.xlu0 %v2459
        %v2461 = vpop.xlane.xlu0 %2460
        %v2462 = vsub.f32 %v2450, %v2458
        %v2463 = vsub.f32 %v2453, %v2461
        %v2464 = vmul.f32 %v2462, 1.442695
        %v2465 = vpow.pop %v2464
        %v2466 = vmul.f32 %v2463, 1.442695
        %v2467 = vpow.pop %v2466
        %v2468 = vsel %vm1371, %v2465, 0.0
        %2469 = vadd.xlane.f32.xlu0 %v2468
        %v2470 = vpop.xlane.xlu0 %2469
        %v2471 = vsel %vm1371, %v2467, 0.0
        %2472 = vadd.xlane.f32.xlu0 %v2471
        %v2473 = vpop.xlane.xlu0 %2472
        %v2474 = vrcp.pop %v2470
        %v2475 = vrcp.pop %v2473
        %v2476 = vpack.c.bf16 %v2467, %v2465
        %v2478 = vsel %vm1371, %v2476, 0
        %2480 = vmatprep.subr.bf16.mxu0 0
        %2481 = vmatpush1.bf16.msra.mxu0 0
        %2482 = vmatprep.subr.bf16.mxu0 0
        %2483 = vmatpush1.bf16.msra.mxu0 0
        %2484 = vmatprep.subr.bf16.mxu0 0
        %2485 = vmatpush1.bf16.msra.mxu0 0
        %2486 = vmatprep.subr.bf16.mxu0 0
        %2487 = vmatpush1.bf16.msra.mxu0 0
        %2488 = vmatprep.subr.bf16.mxu0 0
        %2489 = vmatpush1.bf16.msra.mxu0 0
        %2490 = vmatprep.subr.bf16.mxu0 0
        %2491 = vmatpush1.bf16.msra.mxu0 0
        %2492 = vmatprep.subr.bf16.mxu0 0
        %2493 = vmatpush1.bf16.msra.mxu0 0
        %2494 = vmatprep.subr.bf16.mxu0 0
        %2495 = vmatpush1.bf16.msra.mxu0 %v1310
        %2496 = vmatprep.subr.bf16.mxu0 0
        %2497 = vmatpush2.bf16.msra.mxu0 0
        %2498 = vmatprep.subr.bf16.mxu0 0
        %2499 = vmatpush2.bf16.msra.mxu0 0
        %2500 = vmatprep.subr.bf16.mxu0 0
        %2501 = vmatpush2.bf16.msra.mxu0 0
        %2502 = vmatprep.subr.bf16.mxu0 0
        %2503 = vmatpush2.bf16.msra.mxu0 0
        %2504 = vmatprep.subr.bf16.mxu0 0
        %2505 = vmatpush2.bf16.msra.mxu0 0
        %2506 = vmatprep.subr.bf16.mxu0 0
        %2507 = vmatpush2.bf16.msra.mxu0 0
        %2508 = vmatprep.subr.bf16.mxu0 0
        %2509 = vmatpush2.bf16.msra.mxu0 0
        %2510 = vmatprep.subr.bf16.mxu0 0
        %2511 = vmatpush2.bf16.msra.mxu0 0
        %2512 = vmatprep.mubr.bf16.mxu0 0
        %2513 = vmatmul.mubr.bf16.gmra.mxu0 %v2478
        %v2514 = vpop.f32.mrf.mxu0
        %v2515 = vadd.f32 0.0, %v2514
        %v2516 = vpop.f32.mrf.mxu0
        %v2517 = vpop.f32.mrf.mxu0
        %v2518 = vadd.f32 0.0, %v2517
        %v2519 = vpop.f32.mrf.mxu0
        %2520 = vdwg.mxu0
        %v2521 = vmul.f32 %v2515, %v2474
        %v2522 = vmul.f32 %v2518, %v2475
        %v2523 = vpack.c.bf16 %v2522, %v2521
        %v2525 = vunpack.c.l.b16 %v2523
        %v2526 = vunpack.c.h.b16 %v2523
        %v2527 = vpack.c.b16 %v2525, %v2525
        %v2528 = vpack.c.b16 %v2526, %v2526
        %2531 = vst.msk [vmem:[#allocation3 + $0x10] sm:$0xf] %vm1447, %v2527
        %2532 = vst.msk [vmem:[#allocation3 + $0x14] sm:$0xf] %vm1447, %v2528
        %2534 = vrot.lane.b32.xlu0 %v1294, 96
        %v2535 = vpop.permute.xlu0 %2534
        %2537 = vrot.lane.b32.xlu0 %v1302, 96
        %v2538 = vpop.permute.xlu0 %2537
        %v2540 = vsel %vm1323, %v2535, 0
        %v2543 = vsel %vm1323, %v2538, 0
        %2545 = vmatprep.subr.bf16.mxu0 0
        %2546 = vmatpush1.bf16.xpose.msra.mxu0 0
        %2547 = vmatprep.subr.bf16.mxu0 0
        %2548 = vmatpush1.bf16.xpose.msra.mxu0 0
        %2549 = vmatprep.subr.bf16.mxu0 0
        %2550 = vmatpush1.bf16.xpose.msra.mxu0 0
        %2551 = vmatprep.subr.bf16.mxu0 0
        %2552 = vmatpush1.bf16.xpose.msra.mxu0 0
        %2553 = vmatprep.subr.bf16.mxu0 0
        %2554 = vmatpush1.bf16.xpose.msra.mxu0 0
        %2555 = vmatprep.subr.bf16.mxu0 0
        %2556 = vmatpush1.bf16.xpose.msra.mxu0 0
        %2557 = vmatprep.subr.bf16.mxu0 0
        %2558 = vmatpush1.bf16.xpose.msra.mxu0 0
        %2559 = vmatprep.subr.bf16.mxu0 0
        %2560 = vmatpush1.bf16.xpose.msra.mxu0 %v2543
        %2561 = vmatprep.subr.bf16.mxu0 0
        %2562 = vmatpush2.bf16.xpose.msra.mxu0 0
        %2563 = vmatprep.subr.bf16.mxu0 0
        %2564 = vmatpush2.bf16.xpose.msra.mxu0 0
        %2565 = vmatprep.subr.bf16.mxu0 0
        %2566 = vmatpush2.bf16.xpose.msra.mxu0 0
        %2567 = vmatprep.subr.bf16.mxu0 0
        %2568 = vmatpush2.bf16.xpose.msra.mxu0 0
        %2569 = vmatprep.subr.bf16.mxu0 0
        %2570 = vmatpush2.bf16.xpose.msra.mxu0 0
        %2571 = vmatprep.subr.bf16.mxu0 0
        %2572 = vmatpush2.bf16.xpose.msra.mxu0 0
        %2573 = vmatprep.subr.bf16.mxu0 0
        %2574 = vmatpush2.bf16.xpose.msra.mxu0 0
        %2575 = vmatprep.subr.bf16.mxu0 0
        %2576 = vmatpush2.bf16.xpose.msra.mxu0 0
        %2577 = vmatprep.mubr.bf16.mxu0 0
        %2578 = vmatmul.mubr.bf16.gmra.mxu0 %v2540
        %v2579 = vpop.f32.mrf.mxu0
        %v2580 = vadd.f32 %v2407, %v2579
        %v2581 = vpop.f32.mrf.mxu0
        %v2582 = vpop.f32.mrf.mxu0
        %v2583 = vadd.f32 %v2407, %v2582
        %v2584 = vpop.f32.mrf.mxu0
        %2585 = vdwg.mxu0
        %v2586 = vsel %vm1371, %v2580, -inf
        %2587 = vmax.xlane.f32.xlu0 %v2586
        %v2588 = vpop.xlane.xlu0 %2587
        %v2589 = vsel %vm1371, %v2583, -inf
        %2590 = vmax.xlane.f32.xlu0 %v2589
        %v2591 = vpop.xlane.xlu0 %2590
        %v2592 = vsub.f32 %v2580, %v2588
        %v2593 = vsub.f32 %v2583, %v2591
        %v2594 = vmul.f32 %v2592, 1.442695
        %v2595 = vpow.pop %v2594
        %v2596 = vmul.f32 %v2593, 1.442695
        %v2597 = vpow.pop %v2596
        %v2598 = vsel %vm1371, %v2595, 0.0
        %2599 = vadd.xlane.f32.xlu0 %v2598
        %v2600 = vpop.xlane.xlu0 %2599
        %v2601 = vsel %vm1371, %v2597, 0.0
        %2602 = vadd.xlane.f32.xlu0 %v2601
        %v2603 = vpop.xlane.xlu0 %2602
        %v2604 = vrcp.pop %v2600
        %v2605 = vrcp.pop %v2603
        %v2606 = vpack.c.bf16 %v2597, %v2595
        %2608 = vrot.lane.b32.xlu0 %v1310, 96
        %v2609 = vpop.permute.xlu0 %2608
        %v2612 = vsel %vm1371, %v2606, 0
        %2614 = vmatprep.subr.bf16.mxu0 0
        %2615 = vmatpush1.bf16.msra.mxu0 0
        %2616 = vmatprep.subr.bf16.mxu0 0
        %2617 = vmatpush1.bf16.msra.mxu0 0
        %2618 = vmatprep.subr.bf16.mxu0 0
        %2619 = vmatpush1.bf16.msra.mxu0 0
        %2620 = vmatprep.subr.bf16.mxu0 0
        %2621 = vmatpush1.bf16.msra.mxu0 0
        %2622 = vmatprep.subr.bf16.mxu0 0
        %2623 = vmatpush1.bf16.msra.mxu0 0
        %2624 = vmatprep.subr.bf16.mxu0 0
        %2625 = vmatpush1.bf16.msra.mxu0 0
        %2626 = vmatprep.subr.bf16.mxu0 0
        %2627 = vmatpush1.bf16.msra.mxu0 0
        %2628 = vmatprep.subr.bf16.mxu0 0
        %2629 = vmatpush1.bf16.msra.mxu0 %v2609
        %2630 = vmatprep.subr.bf16.mxu0 0
        %2631 = vmatpush2.bf16.msra.mxu0 0
        %2632 = vmatprep.subr.bf16.mxu0 0
        %2633 = vmatpush2.bf16.msra.mxu0 0
        %2634 = vmatprep.subr.bf16.mxu0 0
        %2635 = vmatpush2.bf16.msra.mxu0 0
        %2636 = vmatprep.subr.bf16.mxu0 0
        %2637 = vmatpush2.bf16.msra.mxu0 0
        %2638 = vmatprep.subr.bf16.mxu0 0
        %2639 = vmatpush2.bf16.msra.mxu0 0
        %2640 = vmatprep.subr.bf16.mxu0 0
        %2641 = vmatpush2.bf16.msra.mxu0 0
        %2642 = vmatprep.subr.bf16.mxu0 0
        %2643 = vmatpush2.bf16.msra.mxu0 0
        %2644 = vmatprep.subr.bf16.mxu0 0
        %2645 = vmatpush2.bf16.msra.mxu0 0
        %2646 = vmatprep.mubr.bf16.mxu0 0
        %2647 = vmatmul.mubr.bf16.gmra.mxu0 %v2612
        %v2648 = vpop.f32.mrf.mxu0
        %v2649 = vadd.f32 0.0, %v2648
        %v2650 = vpop.f32.mrf.mxu0
        %v2651 = vpop.f32.mrf.mxu0
        %v2652 = vadd.f32 0.0, %v2651
        %v2653 = vpop.f32.mrf.mxu0
        %2654 = vdwg.mxu0
        %v2655 = vmul.f32 %v2649, %v2604
        %v2656 = vmul.f32 %v2652, %v2605
        %v2657 = vpack.c.bf16 %v2656, %v2655
        %v2659 = vunpack.c.l.b16 %v2657
        %v2660 = vunpack.c.h.b16 %v2657
        %v2661 = vpack.c.b16 %v2659, %v2659
        %v2662 = vpack.c.b16 %v2660, %v2660
        %2663 = vrot.lane.b32.xlu0 %v2661, 32
        %v2664 = vpop.permute.xlu0 %2663
        %2665 = vrot.lane.b32.xlu0 %v2662, 32
        %v2666 = vpop.permute.xlu0 %2665
        %2669 = vst.msk [vmem:[#allocation3 + $0x10] sm:$0xf] %vm1586, %v2664
        %2670 = vst.msk [vmem:[#allocation3 + $0x14] sm:$0xf] %vm1586, %v2666
        %2671 = vrot.lane.b32.xlu0 %v1294, 64
        %v2672 = vpop.permute.xlu0 %2671
        %2673 = vrot.lane.b32.xlu0 %v1302, 64
        %v2674 = vpop.permute.xlu0 %2673
        %v2676 = vsel %vm1323, %v2672, 0
        %v2679 = vsel %vm1323, %v2674, 0
        %2681 = vmatprep.subr.bf16.mxu0 0
        %2682 = vmatpush1.bf16.xpose.msra.mxu0 0
        %2683 = vmatprep.subr.bf16.mxu0 0
        %2684 = vmatpush1.bf16.xpose.msra.mxu0 0
        %2685 = vmatprep.subr.bf16.mxu0 0
        %2686 = vmatpush1.bf16.xpose.msra.mxu0 0
        %2687 = vmatprep.subr.bf16.mxu0 0
        %2688 = vmatpush1.bf16.xpose.msra.mxu0 0
        %2689 = vmatprep.subr.bf16.mxu0 0
        %2690 = vmatpush1.bf16.xpose.msra.mxu0 0
        %2691 = vmatprep.subr.bf16.mxu0 0
        %2692 = vmatpush1.bf16.xpose.msra.mxu0 0
        %2693 = vmatprep.subr.bf16.mxu0 0
        %2694 = vmatpush1.bf16.xpose.msra.mxu0 0
        %2695 = vmatprep.subr.bf16.mxu0 0
        %2696 = vmatpush1.bf16.xpose.msra.mxu0 %v2679
        %2697 = vmatprep.subr.bf16.mxu0 0
        %2698 = vmatpush2.bf16.xpose.msra.mxu0 0
        %2699 = vmatprep.subr.bf16.mxu0 0
        %2700 = vmatpush2.bf16.xpose.msra.mxu0 0
        %2701 = vmatprep.subr.bf16.mxu0 0
        %2702 = vmatpush2.bf16.xpose.msra.mxu0 0
        %2703 = vmatprep.subr.bf16.mxu0 0
        %2704 = vmatpush2.bf16.xpose.msra.mxu0 0
        %2705 = vmatprep.subr.bf16.mxu0 0
        %2706 = vmatpush2.bf16.xpose.msra.mxu0 0
        %2707 = vmatprep.subr.bf16.mxu0 0
        %2708 = vmatpush2.bf16.xpose.msra.mxu0 0
        %2709 = vmatprep.subr.bf16.mxu0 0
        %2710 = vmatpush2.bf16.xpose.msra.mxu0 0
        %2711 = vmatprep.subr.bf16.mxu0 0
        %2712 = vmatpush2.bf16.xpose.msra.mxu0 0
        %2713 = vmatprep.mubr.bf16.mxu0 0
        %2714 = vmatmul.mubr.bf16.gmra.mxu0 %v2676
        %v2715 = vpop.f32.mrf.mxu0
        %v2716 = vadd.f32 %v2407, %v2715
        %v2717 = vpop.f32.mrf.mxu0
        %v2718 = vpop.f32.mrf.mxu0
        %v2719 = vadd.f32 %v2407, %v2718
        %v2720 = vpop.f32.mrf.mxu0
        %2721 = vdwg.mxu0
        %v2722 = vsel %vm1371, %v2716, -inf
        %2723 = vmax.xlane.f32.xlu0 %v2722
        %v2724 = vpop.xlane.xlu0 %2723
        %v2725 = vsel %vm1371, %v2719, -inf
        %2726 = vmax.xlane.f32.xlu0 %v2725
        %v2727 = vpop.xlane.xlu0 %2726
        %v2728 = vsub.f32 %v2716, %v2724
        %v2729 = vsub.f32 %v2719, %v2727
        %v2730 = vmul.f32 %v2728, 1.442695
        %v2731 = vpow.pop %v2730
        %v2732 = vmul.f32 %v2729, 1.442695
        %v2733 = vpow.pop %v2732
        %v2734 = vsel %vm1371, %v2731, 0.0
        %2735 = vadd.xlane.f32.xlu0 %v2734
        %v2736 = vpop.xlane.xlu0 %2735
        %v2737 = vsel %vm1371, %v2733, 0.0
        %2738 = vadd.xlane.f32.xlu0 %v2737
        %v2739 = vpop.xlane.xlu0 %2738
        %v2740 = vrcp.pop %v2736
        %v2741 = vrcp.pop %v2739
        %v2742 = vpack.c.bf16 %v2733, %v2731
        %2743 = vrot.lane.b32.xlu0 %v1310, 64
        %v2744 = vpop.permute.xlu0 %2743
        %v2747 = vsel %vm1371, %v2742, 0
        %2749 = vmatprep.subr.bf16.mxu0 0
        %2750 = vmatpush1.bf16.msra.mxu0 0
        %2751 = vmatprep.subr.bf16.mxu0 0
        %2752 = vmatpush1.bf16.msra.mxu0 0
        %2753 = vmatprep.subr.bf16.mxu0 0
        %2754 = vmatpush1.bf16.msra.mxu0 0
        %2755 = vmatprep.subr.bf16.mxu0 0
        %2756 = vmatpush1.bf16.msra.mxu0 0
        %2757 = vmatprep.subr.bf16.mxu0 0
        %2758 = vmatpush1.bf16.msra.mxu0 0
        %2759 = vmatprep.subr.bf16.mxu0 0
        %2760 = vmatpush1.bf16.msra.mxu0 0
        %2761 = vmatprep.subr.bf16.mxu0 0
        %2762 = vmatpush1.bf16.msra.mxu0 0
        %2763 = vmatprep.subr.bf16.mxu0 0
        %2764 = vmatpush1.bf16.msra.mxu0 %v2744
        %2765 = vmatprep.subr.bf16.mxu0 0
        %2766 = vmatpush2.bf16.msra.mxu0 0
        %2767 = vmatprep.subr.bf16.mxu0 0
        %2768 = vmatpush2.bf16.msra.mxu0 0
        %2769 = vmatprep.subr.bf16.mxu0 0
        %2770 = vmatpush2.bf16.msra.mxu0 0
        %2771 = vmatprep.subr.bf16.mxu0 0
        %2772 = vmatpush2.bf16.msra.mxu0 0
        %2773 = vmatprep.subr.bf16.mxu0 0
        %2774 = vmatpush2.bf16.msra.mxu0 0
        %2775 = vmatprep.subr.bf16.mxu0 0
        %2776 = vmatpush2.bf16.msra.mxu0 0
        %2777 = vmatprep.subr.bf16.mxu0 0
        %2778 = vmatpush2.bf16.msra.mxu0 0
        %2779 = vmatprep.subr.bf16.mxu0 0
        %2780 = vmatpush2.bf16.msra.mxu0 0
        %2781 = vmatprep.mubr.bf16.mxu0 0
        %2782 = vmatmul.mubr.bf16.gmra.mxu0 %v2747
        %v2783 = vpop.f32.mrf.mxu0
        %v2784 = vadd.f32 0.0, %v2783
        %v2785 = vpop.f32.mrf.mxu0
        %v2786 = vpop.f32.mrf.mxu0
        %v2787 = vadd.f32 0.0, %v2786
        %v2788 = vpop.f32.mrf.mxu0
        %2789 = vdwg.mxu0
        %v2790 = vmul.f32 %v2784, %v2740
        %v2791 = vmul.f32 %v2787, %v2741
        %v2792 = vpack.c.bf16 %v2791, %v2790
        %v2794 = vunpack.c.l.b16 %v2792
        %v2795 = vunpack.c.h.b16 %v2792
        %v2796 = vpack.c.b16 %v2794, %v2794
        %v2797 = vpack.c.b16 %v2795, %v2795
        %2798 = vrot.lane.b32.xlu0 %v2796, 64
        %v2799 = vpop.permute.xlu0 %2798
        %2800 = vrot.lane.b32.xlu0 %v2797, 64
        %v2801 = vpop.permute.xlu0 %2800
        %2804 = vst.msk [vmem:[#allocation3 + $0x10] sm:$0xf] %vm1722, %v2799
        %2805 = vst.msk [vmem:[#allocation3 + $0x14] sm:$0xf] %vm1722, %v2801
        %2806 = vrot.lane.b32.xlu0 %v1294, 32
        %v2807 = vpop.permute.xlu0 %2806
        %2808 = vrot.lane.b32.xlu0 %v1302, 32
        %v2809 = vpop.permute.xlu0 %2808
        %v2811 = vsel %vm1323, %v2807, 0
        %v2814 = vsel %vm1323, %v2809, 0
        %2816 = vmatprep.subr.bf16.mxu0 0
        %2817 = vmatpush1.bf16.xpose.msra.mxu0 0
        %2818 = vmatprep.subr.bf16.mxu0 0
        %2819 = vmatpush1.bf16.xpose.msra.mxu0 0
        %2820 = vmatprep.subr.bf16.mxu0 0
        %2821 = vmatpush1.bf16.xpose.msra.mxu0 0
        %2822 = vmatprep.subr.bf16.mxu0 0
        %2823 = vmatpush1.bf16.xpose.msra.mxu0 0
        %2824 = vmatprep.subr.bf16.mxu0 0
        %2825 = vmatpush1.bf16.xpose.msra.mxu0 0
        %2826 = vmatprep.subr.bf16.mxu0 0
        %2827 = vmatpush1.bf16.xpose.msra.mxu0 0
        %2828 = vmatprep.subr.bf16.mxu0 0
        %2829 = vmatpush1.bf16.xpose.msra.mxu0 0
        %2830 = vmatprep.subr.bf16.mxu0 0
        %2831 = vmatpush1.bf16.xpose.msra.mxu0 %v2814
        %2832 = vmatprep.subr.bf16.mxu0 0
        %2833 = vmatpush2.bf16.xpose.msra.mxu0 0
        %2834 = vmatprep.subr.bf16.mxu0 0
        %2835 = vmatpush2.bf16.xpose.msra.mxu0 0
        %2836 = vmatprep.subr.bf16.mxu0 0
        %2837 = vmatpush2.bf16.xpose.msra.mxu0 0
        %2838 = vmatprep.subr.bf16.mxu0 0
        %2839 = vmatpush2.bf16.xpose.msra.mxu0 0
        %2840 = vmatprep.subr.bf16.mxu0 0
        %2841 = vmatpush2.bf16.xpose.msra.mxu0 0
        %2842 = vmatprep.subr.bf16.mxu0 0
        %2843 = vmatpush2.bf16.xpose.msra.mxu0 0
        %2844 = vmatprep.subr.bf16.mxu0 0
        %2845 = vmatpush2.bf16.xpose.msra.mxu0 0
        %2846 = vmatprep.subr.bf16.mxu0 0
        %2847 = vmatpush2.bf16.xpose.msra.mxu0 0
        %2848 = vmatprep.mubr.bf16.mxu0 0
        %2849 = vmatmul.mubr.bf16.gmra.mxu0 %v2811
        %v2850 = vpop.f32.mrf.mxu0
        %v2851 = vadd.f32 %v2407, %v2850
        %v2852 = vpop.f32.mrf.mxu0
        %v2853 = vpop.f32.mrf.mxu0
        %v2854 = vadd.f32 %v2407, %v2853
        %v2855 = vpop.f32.mrf.mxu0
        %2856 = vdwg.mxu0
        %v2857 = vsel %vm1371, %v2851, -inf
        %2858 = vmax.xlane.f32.xlu0 %v2857
        %v2859 = vpop.xlane.xlu0 %2858
        %v2860 = vsel %vm1371, %v2854, -inf
        %2861 = vmax.xlane.f32.xlu0 %v2860
        %v2862 = vpop.xlane.xlu0 %2861
        %v2863 = vsub.f32 %v2851, %v2859
        %v2864 = vsub.f32 %v2854, %v2862
        %v2865 = vmul.f32 %v2863, 1.442695
        %v2866 = vpow.pop %v2865
        %v2867 = vmul.f32 %v2864, 1.442695
        %v2868 = vpow.pop %v2867
        %v2869 = vsel %vm1371, %v2866, 0.0
        %2870 = vadd.xlane.f32.xlu0 %v2869
        %v2871 = vpop.xlane.xlu0 %2870
        %v2872 = vsel %vm1371, %v2868, 0.0
        %2873 = vadd.xlane.f32.xlu0 %v2872
        %v2874 = vpop.xlane.xlu0 %2873
        %v2875 = vrcp.pop %v2871
        %v2876 = vrcp.pop %v2874
        %v2877 = vpack.c.bf16 %v2868, %v2866
        %2878 = vrot.lane.b32.xlu0 %v1310, 32
        %v2879 = vpop.permute.xlu0 %2878
        %v2882 = vsel %vm1371, %v2877, 0
        %2884 = vmatprep.subr.bf16.mxu0 0
        %2885 = vmatpush1.bf16.msra.mxu0 0
        %2886 = vmatprep.subr.bf16.mxu0 0
        %2887 = vmatpush1.bf16.msra.mxu0 0
        %2888 = vmatprep.subr.bf16.mxu0 0
        %2889 = vmatpush1.bf16.msra.mxu0 0
        %2890 = vmatprep.subr.bf16.mxu0 0
        %2891 = vmatpush1.bf16.msra.mxu0 0
        %2892 = vmatprep.subr.bf16.mxu0 0
        %2893 = vmatpush1.bf16.msra.mxu0 0
        %2894 = vmatprep.subr.bf16.mxu0 0
        %2895 = vmatpush1.bf16.msra.mxu0 0
        %2896 = vmatprep.subr.bf16.mxu0 0
        %2897 = vmatpush1.bf16.msra.mxu0 0
        %2898 = vmatprep.subr.bf16.mxu0 0
        %2899 = vmatpush1.bf16.msra.mxu0 %v2879
        %2900 = vmatprep.subr.bf16.mxu0 0
        %2901 = vmatpush2.bf16.msra.mxu0 0
        %2902 = vmatprep.subr.bf16.mxu0 0
        %2903 = vmatpush2.bf16.msra.mxu0 0
        %2904 = vmatprep.subr.bf16.mxu0 0
        %2905 = vmatpush2.bf16.msra.mxu0 0
        %2906 = vmatprep.subr.bf16.mxu0 0
        %2907 = vmatpush2.bf16.msra.mxu0 0
        %2908 = vmatprep.subr.bf16.mxu0 0
        %2909 = vmatpush2.bf16.msra.mxu0 0
        %2910 = vmatprep.subr.bf16.mxu0 0
        %2911 = vmatpush2.bf16.msra.mxu0 0
        %2912 = vmatprep.subr.bf16.mxu0 0
        %2913 = vmatpush2.bf16.msra.mxu0 0
        %2914 = vmatprep.subr.bf16.mxu0 0
        %2915 = vmatpush2.bf16.msra.mxu0 0
        %2916 = vmatprep.mubr.bf16.mxu0 0
        %2917 = vmatmul.mubr.bf16.gmra.mxu0 %v2882
        %v2918 = vpop.f32.mrf.mxu0
        %v2919 = vadd.f32 0.0, %v2918
        %v2920 = vpop.f32.mrf.mxu0
        %v2921 = vpop.f32.mrf.mxu0
        %v2922 = vadd.f32 0.0, %v2921
        %v2923 = vpop.f32.mrf.mxu0
        %2924 = vdwg.mxu0
        %v2925 = vmul.f32 %v2919, %v2875
        %v2926 = vmul.f32 %v2922, %v2876
        %v2927 = vpack.c.bf16 %v2926, %v2925
        %v2929 = vunpack.c.l.b16 %v2927
        %v2930 = vunpack.c.h.b16 %v2927
        %v2931 = vpack.c.b16 %v2929, %v2929
        %v2932 = vpack.c.b16 %v2930, %v2930
        %2933 = vrot.lane.b32.xlu0 %v2931, 96
        %v2934 = vpop.permute.xlu0 %2933
        %2935 = vrot.lane.b32.xlu0 %v2932, 96
        %v2936 = vpop.permute.xlu0 %2935
        %2939 = vst.msk [vmem:[#allocation3 + $0x10] sm:$0xf] %vm1858, %v2934
        %2940 = vst.msk [vmem:[#allocation3 + $0x14] sm:$0xf] %vm1858, %v2936
        %s2941 = scalar_lea.vmem %s567, 3 [#allocation7]
        %v2942 = vld [vmem:[%s2941] sm:$0x1]
        %v2944 = vlaneseq
        %v2945 = vshrl.u32 %v2944, 7
        %v2946 = vsub.s32 0, %v2945
        %v2947 = vrot.slane %v2942, %v2946
        %v2950 = vsel %vm1323, %v1295, 0
        %v2953 = vsel %vm1323, %v1303, 0
        %2955 = vmatprep.subr.bf16.mxu0 0
        %2956 = vmatpush1.bf16.xpose.msra.mxu0 0
        %2957 = vmatprep.subr.bf16.mxu0 0
        %2958 = vmatpush1.bf16.xpose.msra.mxu0 0
        %2959 = vmatprep.subr.bf16.mxu0 0
        %2960 = vmatpush1.bf16.xpose.msra.mxu0 0
        %2961 = vmatprep.subr.bf16.mxu0 0
        %2962 = vmatpush1.bf16.xpose.msra.mxu0 0
        %2963 = vmatprep.subr.bf16.mxu0 0
        %2964 = vmatpush1.bf16.xpose.msra.mxu0 0
        %2965 = vmatprep.subr.bf16.mxu0 0
        %2966 = vmatpush1.bf16.xpose.msra.mxu0 0
        %2967 = vmatprep.subr.bf16.mxu0 0
        %2968 = vmatpush1.bf16.xpose.msra.mxu0 0
        %2969 = vmatprep.subr.bf16.mxu0 0
        %2970 = vmatpush1.bf16.xpose.msra.mxu0 %v2953
        %2971 = vmatprep.subr.bf16.mxu0 0
        %2972 = vmatpush2.bf16.xpose.msra.mxu0 0
        %2973 = vmatprep.subr.bf16.mxu0 0
        %2974 = vmatpush2.bf16.xpose.msra.mxu0 0
        %2975 = vmatprep.subr.bf16.mxu0 0
        %2976 = vmatpush2.bf16.xpose.msra.mxu0 0
        %2977 = vmatprep.subr.bf16.mxu0 0
        %2978 = vmatpush2.bf16.xpose.msra.mxu0 0
        %2979 = vmatprep.subr.bf16.mxu0 0
        %2980 = vmatpush2.bf16.xpose.msra.mxu0 0
        %2981 = vmatprep.subr.bf16.mxu0 0
        %2982 = vmatpush2.bf16.xpose.msra.mxu0 0
        %2983 = vmatprep.subr.bf16.mxu0 0
        %2984 = vmatpush2.bf16.xpose.msra.mxu0 0
        %2985 = vmatprep.subr.bf16.mxu0 0
        %2986 = vmatpush2.bf16.xpose.msra.mxu0 0
        %2987 = vmatprep.mubr.bf16.mxu0 0
        %2988 = vmatmul.mubr.bf16.gmra.mxu0 %v2950
        %v2989 = vpop.f32.mrf.mxu0
        %v2990 = vadd.f32 %v2947, %v2989
        %v2991 = vpop.f32.mrf.mxu0
        %v2992 = vpop.f32.mrf.mxu0
        %v2993 = vadd.f32 %v2947, %v2992
        %v2994 = vpop.f32.mrf.mxu0
        %2995 = vdwg.mxu0
        %v2996 = vsel %vm1371, %v2990, -inf
        %2997 = vmax.xlane.f32.xlu0 %v2996
        %v2998 = vpop.xlane.xlu0 %2997
        %v2999 = vsel %vm1371, %v2993, -inf
        %3000 = vmax.xlane.f32.xlu0 %v2999
        %v3001 = vpop.xlane.xlu0 %3000
        %v3002 = vsub.f32 %v2990, %v2998
        %v3003 = vsub.f32 %v2993, %v3001
        %v3004 = vmul.f32 %v3002, 1.442695
        %v3005 = vpow.pop %v3004
        %v3006 = vmul.f32 %v3003, 1.442695
        %v3007 = vpow.pop %v3006
        %v3008 = vsel %vm1371, %v3005, 0.0
        %3009 = vadd.xlane.f32.xlu0 %v3008
        %v3010 = vpop.xlane.xlu0 %3009
        %v3011 = vsel %vm1371, %v3007, 0.0
        %3012 = vadd.xlane.f32.xlu0 %v3011
        %v3013 = vpop.xlane.xlu0 %3012
        %v3014 = vrcp.pop %v3010
        %v3015 = vrcp.pop %v3013
        %v3016 = vpack.c.bf16 %v3007, %v3005
        %v3018 = vsel %vm1371, %v3016, 0
        %3020 = vmatprep.subr.bf16.mxu0 0
        %3021 = vmatpush1.bf16.msra.mxu0 0
        %3022 = vmatprep.subr.bf16.mxu0 0
        %3023 = vmatpush1.bf16.msra.mxu0 0
        %3024 = vmatprep.subr.bf16.mxu0 0
        %3025 = vmatpush1.bf16.msra.mxu0 0
        %3026 = vmatprep.subr.bf16.mxu0 0
        %3027 = vmatpush1.bf16.msra.mxu0 0
        %3028 = vmatprep.subr.bf16.mxu0 0
        %3029 = vmatpush1.bf16.msra.mxu0 0
        %3030 = vmatprep.subr.bf16.mxu0 0
        %3031 = vmatpush1.bf16.msra.mxu0 0
        %3032 = vmatprep.subr.bf16.mxu0 0
        %3033 = vmatpush1.bf16.msra.mxu0 0
        %3034 = vmatprep.subr.bf16.mxu0 0
        %3035 = vmatpush1.bf16.msra.mxu0 %v1311
        %3036 = vmatprep.subr.bf16.mxu0 0
        %3037 = vmatpush2.bf16.msra.mxu0 0
        %3038 = vmatprep.subr.bf16.mxu0 0
        %3039 = vmatpush2.bf16.msra.mxu0 0
        %3040 = vmatprep.subr.bf16.mxu0 0
        %3041 = vmatpush2.bf16.msra.mxu0 0
        %3042 = vmatprep.subr.bf16.mxu0 0
        %3043 = vmatpush2.bf16.msra.mxu0 0
        %3044 = vmatprep.subr.bf16.mxu0 0
        %3045 = vmatpush2.bf16.msra.mxu0 0
        %3046 = vmatprep.subr.bf16.mxu0 0
        %3047 = vmatpush2.bf16.msra.mxu0 0
        %3048 = vmatprep.subr.bf16.mxu0 0
        %3049 = vmatpush2.bf16.msra.mxu0 0
        %3050 = vmatprep.subr.bf16.mxu0 0
        %3051 = vmatpush2.bf16.msra.mxu0 0
        %3052 = vmatprep.mubr.bf16.mxu0 0
        %3053 = vmatmul.mubr.bf16.gmra.mxu0 %v3018
        %v3054 = vpop.f32.mrf.mxu0
        %v3055 = vadd.f32 0.0, %v3054
        %v3056 = vpop.f32.mrf.mxu0
        %v3057 = vpop.f32.mrf.mxu0
        %v3058 = vadd.f32 0.0, %v3057
        %v3059 = vpop.f32.mrf.mxu0
        %3060 = vdwg.mxu0
        %v3061 = vmul.f32 %v3055, %v3014
        %v3062 = vmul.f32 %v3058, %v3015
        %v3063 = vpack.c.bf16 %v3062, %v3061
        %v3065 = vunpack.c.l.b16 %v3063
        %v3066 = vunpack.c.h.b16 %v3063
        %v3067 = vpack.c.b16 %v3065, %v3065
        %v3068 = vpack.c.b16 %v3066, %v3066
        %3071 = vst.msk [vmem:[#allocation3 + $0x18] sm:$0xf] %vm1447, %v3067
        %3072 = vst.msk [vmem:[#allocation3 + $0x1c] sm:$0xf] %vm1447, %v3068
        %3074 = vrot.lane.b32.xlu0 %v1295, 96
        %v3075 = vpop.permute.xlu0 %3074
        %3077 = vrot.lane.b32.xlu0 %v1303, 96
        %v3078 = vpop.permute.xlu0 %3077
        %v3080 = vsel %vm1323, %v3075, 0
        %v3083 = vsel %vm1323, %v3078, 0
        %3085 = vmatprep.subr.bf16.mxu0 0
        %3086 = vmatpush1.bf16.xpose.msra.mxu0 0
        %3087 = vmatprep.subr.bf16.mxu0 0
        %3088 = vmatpush1.bf16.xpose.msra.mxu0 0
        %3089 = vmatprep.subr.bf16.mxu0 0
        %3090 = vmatpush1.bf16.xpose.msra.mxu0 0
        %3091 = vmatprep.subr.bf16.mxu0 0
        %3092 = vmatpush1.bf16.xpose.msra.mxu0 0
        %3093 = vmatprep.subr.bf16.mxu0 0
        %3094 = vmatpush1.bf16.xpose.msra.mxu0 0
        %3095 = vmatprep.subr.bf16.mxu0 0
        %3096 = vmatpush1.bf16.xpose.msra.mxu0 0
        %3097 = vmatprep.subr.bf16.mxu0 0
        %3098 = vmatpush1.bf16.xpose.msra.mxu0 0
        %3099 = vmatprep.subr.bf16.mxu0 0
        %3100 = vmatpush1.bf16.xpose.msra.mxu0 %v3083
        %3101 = vmatprep.subr.bf16.mxu0 0
        %3102 = vmatpush2.bf16.xpose.msra.mxu0 0
        %3103 = vmatprep.subr.bf16.mxu0 0
        %3104 = vmatpush2.bf16.xpose.msra.mxu0 0
        %3105 = vmatprep.subr.bf16.mxu0 0
        %3106 = vmatpush2.bf16.xpose.msra.mxu0 0
        %3107 = vmatprep.subr.bf16.mxu0 0
        %3108 = vmatpush2.bf16.xpose.msra.mxu0 0
        %3109 = vmatprep.subr.bf16.mxu0 0
        %3110 = vmatpush2.bf16.xpose.msra.mxu0 0
        %3111 = vmatprep.subr.bf16.mxu0 0
        %3112 = vmatpush2.bf16.xpose.msra.mxu0 0
        %3113 = vmatprep.subr.bf16.mxu0 0
        %3114 = vmatpush2.bf16.xpose.msra.mxu0 0
        %3115 = vmatprep.subr.bf16.mxu0 0
        %3116 = vmatpush2.bf16.xpose.msra.mxu0 0
        %3117 = vmatprep.mubr.bf16.mxu0 0
        %3118 = vmatmul.mubr.bf16.gmra.mxu0 %v3080
        %v3119 = vpop.f32.mrf.mxu0
        %v3120 = vadd.f32 %v2947, %v3119
        %v3121 = vpop.f32.mrf.mxu0
        %v3122 = vpop.f32.mrf.mxu0
        %v3123 = vadd.f32 %v2947, %v3122
        %v3124 = vpop.f32.mrf.mxu0
        %3125 = vdwg.mxu0
        %v3126 = vsel %vm1371, %v3120, -inf
        %3127 = vmax.xlane.f32.xlu0 %v3126
        %v3128 = vpop.xlane.xlu0 %3127
        %v3129 = vsel %vm1371, %v3123, -inf
        %3130 = vmax.xlane.f32.xlu0 %v3129
        %v3131 = vpop.xlane.xlu0 %3130
        %v3132 = vsub.f32 %v3120, %v3128
        %v3133 = vsub.f32 %v3123, %v3131
        %v3134 = vmul.f32 %v3132, 1.442695
        %v3135 = vpow.pop %v3134
        %v3136 = vmul.f32 %v3133, 1.442695
        %v3137 = vpow.pop %v3136
        %v3138 = vsel %vm1371, %v3135, 0.0
        %3139 = vadd.xlane.f32.xlu0 %v3138
        %v3140 = vpop.xlane.xlu0 %3139
        %v3141 = vsel %vm1371, %v3137, 0.0
        %3142 = vadd.xlane.f32.xlu0 %v3141
        %v3143 = vpop.xlane.xlu0 %3142
        %v3144 = vrcp.pop %v3140
        %v3145 = vrcp.pop %v3143
        %v3146 = vpack.c.bf16 %v3137, %v3135
        %3148 = vrot.lane.b32.xlu0 %v1311, 96
        %v3149 = vpop.permute.xlu0 %3148
        %v3152 = vsel %vm1371, %v3146, 0
        %3154 = vmatprep.subr.bf16.mxu0 0
        %3155 = vmatpush1.bf16.msra.mxu0 0
        %3156 = vmatprep.subr.bf16.mxu0 0
        %3157 = vmatpush1.bf16.msra.mxu0 0
        %3158 = vmatprep.subr.bf16.mxu0 0
        %3159 = vmatpush1.bf16.msra.mxu0 0
        %3160 = vmatprep.subr.bf16.mxu0 0
        %3161 = vmatpush1.bf16.msra.mxu0 0
        %3162 = vmatprep.subr.bf16.mxu0 0
        %3163 = vmatpush1.bf16.msra.mxu0 0
        %3164 = vmatprep.subr.bf16.mxu0 0
        %3165 = vmatpush1.bf16.msra.mxu0 0
        %3166 = vmatprep.subr.bf16.mxu0 0
        %3167 = vmatpush1.bf16.msra.mxu0 0
        %3168 = vmatprep.subr.bf16.mxu0 0
        %3169 = vmatpush1.bf16.msra.mxu0 %v3149
        %3170 = vmatprep.subr.bf16.mxu0 0
        %3171 = vmatpush2.bf16.msra.mxu0 0
        %3172 = vmatprep.subr.bf16.mxu0 0
        %3173 = vmatpush2.bf16.msra.mxu0 0
        %3174 = vmatprep.subr.bf16.mxu0 0
        %3175 = vmatpush2.bf16.msra.mxu0 0
        %3176 = vmatprep.subr.bf16.mxu0 0
        %3177 = vmatpush2.bf16.msra.mxu0 0
        %3178 = vmatprep.subr.bf16.mxu0 0
        %3179 = vmatpush2.bf16.msra.mxu0 0
        %3180 = vmatprep.subr.bf16.mxu0 0
        %3181 = vmatpush2.bf16.msra.mxu0 0
        %3182 = vmatprep.subr.bf16.mxu0 0
        %3183 = vmatpush2.bf16.msra.mxu0 0
        %3184 = vmatprep.subr.bf16.mxu0 0
        %3185 = vmatpush2.bf16.msra.mxu0 0
        %3186 = vmatprep.mubr.bf16.mxu0 0
        %3187 = vmatmul.mubr.bf16.gmra.mxu0 %v3152
        %v3188 = vpop.f32.mrf.mxu0
        %v3189 = vadd.f32 0.0, %v3188
        %v3190 = vpop.f32.mrf.mxu0
        %v3191 = vpop.f32.mrf.mxu0
        %v3192 = vadd.f32 0.0, %v3191
        %v3193 = vpop.f32.mrf.mxu0
        %3194 = vdwg.mxu0
        %v3195 = vmul.f32 %v3189, %v3144
        %v3196 = vmul.f32 %v3192, %v3145
        %v3197 = vpack.c.bf16 %v3196, %v3195
        %v3199 = vunpack.c.l.b16 %v3197
        %v3200 = vunpack.c.h.b16 %v3197
        %v3201 = vpack.c.b16 %v3199, %v3199
        %v3202 = vpack.c.b16 %v3200, %v3200
        %3203 = vrot.lane.b32.xlu0 %v3201, 32
        %v3204 = vpop.permute.xlu0 %3203
        %3205 = vrot.lane.b32.xlu0 %v3202, 32
        %v3206 = vpop.permute.xlu0 %3205
        %3209 = vst.msk [vmem:[#allocation3 + $0x18] sm:$0xf] %vm1586, %v3204
        %3210 = vst.msk [vmem:[#allocation3 + $0x1c] sm:$0xf] %vm1586, %v3206
        %3211 = vrot.lane.b32.xlu0 %v1295, 64
        %v3212 = vpop.permute.xlu0 %3211
        %3213 = vrot.lane.b32.xlu0 %v1303, 64
        %v3214 = vpop.permute.xlu0 %3213
        %v3216 = vsel %vm1323, %v3212, 0
        %v3219 = vsel %vm1323, %v3214, 0
        %3221 = vmatprep.subr.bf16.mxu0 0
        %3222 = vmatpush1.bf16.xpose.msra.mxu0 0
        %3223 = vmatprep.subr.bf16.mxu0 0
        %3224 = vmatpush1.bf16.xpose.msra.mxu0 0
        %3225 = vmatprep.subr.bf16.mxu0 0
        %3226 = vmatpush1.bf16.xpose.msra.mxu0 0
        %3227 = vmatprep.subr.bf16.mxu0 0
        %3228 = vmatpush1.bf16.xpose.msra.mxu0 0
        %3229 = vmatprep.subr.bf16.mxu0 0
        %3230 = vmatpush1.bf16.xpose.msra.mxu0 0
        %3231 = vmatprep.subr.bf16.mxu0 0
        %3232 = vmatpush1.bf16.xpose.msra.mxu0 0
        %3233 = vmatprep.subr.bf16.mxu0 0
        %3234 = vmatpush1.bf16.xpose.msra.mxu0 0
        %3235 = vmatprep.subr.bf16.mxu0 0
        %3236 = vmatpush1.bf16.xpose.msra.mxu0 %v3219
        %3237 = vmatprep.subr.bf16.mxu0 0
        %3238 = vmatpush2.bf16.xpose.msra.mxu0 0
        %3239 = vmatprep.subr.bf16.mxu0 0
        %3240 = vmatpush2.bf16.xpose.msra.mxu0 0
        %3241 = vmatprep.subr.bf16.mxu0 0
        %3242 = vmatpush2.bf16.xpose.msra.mxu0 0
        %3243 = vmatprep.subr.bf16.mxu0 0
        %3244 = vmatpush2.bf16.xpose.msra.mxu0 0
        %3245 = vmatprep.subr.bf16.mxu0 0
        %3246 = vmatpush2.bf16.xpose.msra.mxu0 0
        %3247 = vmatprep.subr.bf16.mxu0 0
        %3248 = vmatpush2.bf16.xpose.msra.mxu0 0
        %3249 = vmatprep.subr.bf16.mxu0 0
        %3250 = vmatpush2.bf16.xpose.msra.mxu0 0
        %3251 = vmatprep.subr.bf16.mxu0 0
        %3252 = vmatpush2.bf16.xpose.msra.mxu0 0
        %3253 = vmatprep.mubr.bf16.mxu0 0
        %3254 = vmatmul.mubr.bf16.gmra.mxu0 %v3216
        %v3255 = vpop.f32.mrf.mxu0
        %v3256 = vadd.f32 %v2947, %v3255
        %v3257 = vpop.f32.mrf.mxu0
        %v3258 = vpop.f32.mrf.mxu0
        %v3259 = vadd.f32 %v2947, %v3258
        %v3260 = vpop.f32.mrf.mxu0
        %3261 = vdwg.mxu0
        %v3262 = vsel %vm1371, %v3256, -inf
        %3263 = vmax.xlane.f32.xlu0 %v3262
        %v3264 = vpop.xlane.xlu0 %3263
        %v3265 = vsel %vm1371, %v3259, -inf
        %3266 = vmax.xlane.f32.xlu0 %v3265
        %v3267 = vpop.xlane.xlu0 %3266
        %v3268 = vsub.f32 %v3256, %v3264
        %v3269 = vsub.f32 %v3259, %v3267
        %v3270 = vmul.f32 %v3268, 1.442695
        %v3271 = vpow.pop %v3270
        %v3272 = vmul.f32 %v3269, 1.442695
        %v3273 = vpow.pop %v3272
        %v3274 = vsel %vm1371, %v3271, 0.0
        %3275 = vadd.xlane.f32.xlu0 %v3274
        %v3276 = vpop.xlane.xlu0 %3275
        %v3277 = vsel %vm1371, %v3273, 0.0
        %3278 = vadd.xlane.f32.xlu0 %v3277
        %v3279 = vpop.xlane.xlu0 %3278
        %v3280 = vrcp.pop %v3276
        %v3281 = vrcp.pop %v3279
        %v3282 = vpack.c.bf16 %v3273, %v3271
        %3283 = vrot.lane.b32.xlu0 %v1311, 64
        %v3284 = vpop.permute.xlu0 %3283
        %v3287 = vsel %vm1371, %v3282, 0
        %3289 = vmatprep.subr.bf16.mxu0 0
        %3290 = vmatpush1.bf16.msra.mxu0 0
        %3291 = vmatprep.subr.bf16.mxu0 0
        %3292 = vmatpush1.bf16.msra.mxu0 0
        %3293 = vmatprep.subr.bf16.mxu0 0
        %3294 = vmatpush1.bf16.msra.mxu0 0
        %3295 = vmatprep.subr.bf16.mxu0 0
        %3296 = vmatpush1.bf16.msra.mxu0 0
        %3297 = vmatprep.subr.bf16.mxu0 0
        %3298 = vmatpush1.bf16.msra.mxu0 0
        %3299 = vmatprep.subr.bf16.mxu0 0
        %3300 = vmatpush1.bf16.msra.mxu0 0
        %3301 = vmatprep.subr.bf16.mxu0 0
        %3302 = vmatpush1.bf16.msra.mxu0 0
        %3303 = vmatprep.subr.bf16.mxu0 0
        %3304 = vmatpush1.bf16.msra.mxu0 %v3284
        %3305 = vmatprep.subr.bf16.mxu0 0
        %3306 = vmatpush2.bf16.msra.mxu0 0
        %3307 = vmatprep.subr.bf16.mxu0 0
        %3308 = vmatpush2.bf16.msra.mxu0 0
        %3309 = vmatprep.subr.bf16.mxu0 0
        %3310 = vmatpush2.bf16.msra.mxu0 0
        %3311 = vmatprep.subr.bf16.mxu0 0
        %3312 = vmatpush2.bf16.msra.mxu0 0
        %3313 = vmatprep.subr.bf16.mxu0 0
        %3314 = vmatpush2.bf16.msra.mxu0 0
        %3315 = vmatprep.subr.bf16.mxu0 0
        %3316 = vmatpush2.bf16.msra.mxu0 0
        %3317 = vmatprep.subr.bf16.mxu0 0
        %3318 = vmatpush2.bf16.msra.mxu0 0
        %3319 = vmatprep.subr.bf16.mxu0 0
        %3320 = vmatpush2.bf16.msra.mxu0 0
        %3321 = vmatprep.mubr.bf16.mxu0 0
        %3322 = vmatmul.mubr.bf16.gmra.mxu0 %v3287
        %v3323 = vpop.f32.mrf.mxu0
        %v3324 = vadd.f32 0.0, %v3323
        %v3325 = vpop.f32.mrf.mxu0
        %v3326 = vpop.f32.mrf.mxu0
        %v3327 = vadd.f32 0.0, %v3326
        %v3328 = vpop.f32.mrf.mxu0
        %3329 = vdwg.mxu0
        %v3330 = vmul.f32 %v3324, %v3280
        %v3331 = vmul.f32 %v3327, %v3281
        %v3332 = vpack.c.bf16 %v3331, %v3330
        %v3334 = vunpack.c.l.b16 %v3332
        %v3335 = vunpack.c.h.b16 %v3332
        %v3336 = vpack.c.b16 %v3334, %v3334
        %v3337 = vpack.c.b16 %v3335, %v3335
        %3338 = vrot.lane.b32.xlu0 %v3336, 64
        %v3339 = vpop.permute.xlu0 %3338
        %3340 = vrot.lane.b32.xlu0 %v3337, 64
        %v3341 = vpop.permute.xlu0 %3340
        %3344 = vst.msk [vmem:[#allocation3 + $0x18] sm:$0xf] %vm1722, %v3339
        %3345 = vst.msk [vmem:[#allocation3 + $0x1c] sm:$0xf] %vm1722, %v3341
        %3346 = vrot.lane.b32.xlu0 %v1295, 32
        %v3347 = vpop.permute.xlu0 %3346
        %3348 = vrot.lane.b32.xlu0 %v1303, 32
        %v3349 = vpop.permute.xlu0 %3348
        %v3351 = vsel %vm1323, %v3347, 0
        %v3354 = vsel %vm1323, %v3349, 0
        %3356 = vmatprep.subr.bf16.mxu0 0
        %3357 = vmatpush1.bf16.xpose.msra.mxu0 0
        %3358 = vmatprep.subr.bf16.mxu0 0
        %3359 = vmatpush1.bf16.xpose.msra.mxu0 0
        %3360 = vmatprep.subr.bf16.mxu0 0
        %3361 = vmatpush1.bf16.xpose.msra.mxu0 0
        %3362 = vmatprep.subr.bf16.mxu0 0
        %3363 = vmatpush1.bf16.xpose.msra.mxu0 0
        %3364 = vmatprep.subr.bf16.mxu0 0
        %3365 = vmatpush1.bf16.xpose.msra.mxu0 0
        %3366 = vmatprep.subr.bf16.mxu0 0
        %3367 = vmatpush1.bf16.xpose.msra.mxu0 0
        %3368 = vmatprep.subr.bf16.mxu0 0
        %3369 = vmatpush1.bf16.xpose.msra.mxu0 0
        %3370 = vmatprep.subr.bf16.mxu0 0
        %3371 = vmatpush1.bf16.xpose.msra.mxu0 %v3354
        %3372 = vmatprep.subr.bf16.mxu0 0
        %3373 = vmatpush2.bf16.xpose.msra.mxu0 0
        %3374 = vmatprep.subr.bf16.mxu0 0
        %3375 = vmatpush2.bf16.xpose.msra.mxu0 0
        %3376 = vmatprep.subr.bf16.mxu0 0
        %3377 = vmatpush2.bf16.xpose.msra.mxu0 0
        %3378 = vmatprep.subr.bf16.mxu0 0
        %3379 = vmatpush2.bf16.xpose.msra.mxu0 0
        %3380 = vmatprep.subr.bf16.mxu0 0
        %3381 = vmatpush2.bf16.xpose.msra.mxu0 0
        %3382 = vmatprep.subr.bf16.mxu0 0
        %3383 = vmatpush2.bf16.xpose.msra.mxu0 0
        %3384 = vmatprep.subr.bf16.mxu0 0
        %3385 = vmatpush2.bf16.xpose.msra.mxu0 0
        %3386 = vmatprep.subr.bf16.mxu0 0
        %3387 = vmatpush2.bf16.xpose.msra.mxu0 0
        %3388 = vmatprep.mubr.bf16.mxu0 0
        %3389 = vmatmul.mubr.bf16.gmra.mxu0 %v3351
        %v3390 = vpop.f32.mrf.mxu0
        %v3391 = vadd.f32 %v2947, %v3390
        %v3392 = vpop.f32.mrf.mxu0
        %v3393 = vpop.f32.mrf.mxu0
        %v3394 = vadd.f32 %v2947, %v3393
        %v3395 = vpop.f32.mrf.mxu0
        %3396 = vdwg.mxu0
        %v3397 = vsel %vm1371, %v3391, -inf
        %3398 = vmax.xlane.f32.xlu0 %v3397
        %v3399 = vpop.xlane.xlu0 %3398
        %v3400 = vsel %vm1371, %v3394, -inf
        %3401 = vmax.xlane.f32.xlu0 %v3400
        %v3402 = vpop.xlane.xlu0 %3401
        %v3403 = vsub.f32 %v3391, %v3399
        %v3404 = vsub.f32 %v3394, %v3402
        %v3405 = vmul.f32 %v3403, 1.442695
        %v3406 = vpow.pop %v3405
        %v3407 = vmul.f32 %v3404, 1.442695
        %v3408 = vpow.pop %v3407
        %v3409 = vsel %vm1371, %v3406, 0.0
        %3410 = vadd.xlane.f32.xlu0 %v3409
        %v3411 = vpop.xlane.xlu0 %3410
        %v3412 = vsel %vm1371, %v3408, 0.0
        %3413 = vadd.xlane.f32.xlu0 %v3412
        %v3414 = vpop.xlane.xlu0 %3413
        %v3415 = vrcp.pop %v3411
        %v3416 = vrcp.pop %v3414
        %v3417 = vpack.c.bf16 %v3408, %v3406
        %3418 = vrot.lane.b32.xlu0 %v1311, 32
        %v3419 = vpop.permute.xlu0 %3418
        %v3422 = vsel %vm1371, %v3417, 0
        %3424 = vmatprep.subr.bf16.mxu0 0
        %3425 = vmatpush1.bf16.msra.mxu0 0
        %3426 = vmatprep.subr.bf16.mxu0 0
        %3427 = vmatpush1.bf16.msra.mxu0 0
        %3428 = vmatprep.subr.bf16.mxu0 0
        %3429 = vmatpush1.bf16.msra.mxu0 0
        %3430 = vmatprep.subr.bf16.mxu0 0
        %3431 = vmatpush1.bf16.msra.mxu0 0
        %3432 = vmatprep.subr.bf16.mxu0 0
        %3433 = vmatpush1.bf16.msra.mxu0 0
        %3434 = vmatprep.subr.bf16.mxu0 0
        %3435 = vmatpush1.bf16.msra.mxu0 0
        %3436 = vmatprep.subr.bf16.mxu0 0
        %3437 = vmatpush1.bf16.msra.mxu0 0
        %3438 = vmatprep.subr.bf16.mxu0 0
        %3439 = vmatpush1.bf16.msra.mxu0 %v3419
        %3440 = vmatprep.subr.bf16.mxu0 0
        %3441 = vmatpush2.bf16.msra.mxu0 0
        %3442 = vmatprep.subr.bf16.mxu0 0
        %3443 = vmatpush2.bf16.msra.mxu0 0
        %3444 = vmatprep.subr.bf16.mxu0 0
        %3445 = vmatpush2.bf16.msra.mxu0 0
        %3446 = vmatprep.subr.bf16.mxu0 0
        %3447 = vmatpush2.bf16.msra.mxu0 0
        %3448 = vmatprep.subr.bf16.mxu0 0
        %3449 = vmatpush2.bf16.msra.mxu0 0
        %3450 = vmatprep.subr.bf16.mxu0 0
        %3451 = vmatpush2.bf16.msra.mxu0 0
        %3452 = vmatprep.subr.bf16.mxu0 0
        %3453 = vmatpush2.bf16.msra.mxu0 0
        %3454 = vmatprep.subr.bf16.mxu0 0
        %3455 = vmatpush2.bf16.msra.mxu0 0
        %3456 = vmatprep.mubr.bf16.mxu0 0
        %3457 = vmatmul.mubr.bf16.gmra.mxu0 %v3422
        %v3458 = vpop.f32.mrf.mxu0
        %v3459 = vadd.f32 0.0, %v3458
        %v3460 = vpop.f32.mrf.mxu0
        %v3461 = vpop.f32.mrf.mxu0
        %v3462 = vadd.f32 0.0, %v3461
        %v3463 = vpop.f32.mrf.mxu0
        %3464 = vdwg.mxu0
        %v3465 = vmul.f32 %v3459, %v3415
        %v3466 = vmul.f32 %v3462, %v3416
        %v3467 = vpack.c.bf16 %v3466, %v3465
        %v3469 = vunpack.c.l.b16 %v3467
        %v3470 = vunpack.c.h.b16 %v3467
        %v3471 = vpack.c.b16 %v3469, %v3469
        %v3472 = vpack.c.b16 %v3470, %v3470
        %3473 = vrot.lane.b32.xlu0 %v3471, 96
        %v3474 = vpop.permute.xlu0 %3473
        %3475 = vrot.lane.b32.xlu0 %v3472, 96
        %v3476 = vpop.permute.xlu0 %3475
        %3479 = vst.msk [vmem:[#allocation3 + $0x18] sm:$0xf] %vm1858, %v3474
        %3480 = vst.msk [vmem:[#allocation3 + $0x1c] sm:$0xf] %vm1858, %v3476
        %s3481 = scalar_lea.vmem %s567, 4 [#allocation7]
        %v3482 = vld [vmem:[%s3481] sm:$0x1]
        %v3484 = vlaneseq
        %v3485 = vshrl.u32 %v3484, 7
        %v3486 = vsub.s32 0, %v3485
        %v3487 = vrot.slane %v3482, %v3486
        %v3490 = vsel %vm1323, %v1296, 0
        %v3493 = vsel %vm1323, %v1304, 0
        %3495 = vmatprep.subr.bf16.mxu0 0
        %3496 = vmatpush1.bf16.xpose.msra.mxu0 0
        %3497 = vmatprep.subr.bf16.mxu0 0
        %3498 = vmatpush1.bf16.xpose.msra.mxu0 0
        %3499 = vmatprep.subr.bf16.mxu0 0
        %3500 = vmatpush1.bf16.xpose.msra.mxu0 0
        %3501 = vmatprep.subr.bf16.mxu0 0
        %3502 = vmatpush1.bf16.xpose.msra.mxu0 0
        %3503 = vmatprep.subr.bf16.mxu0 0
        %3504 = vmatpush1.bf16.xpose.msra.mxu0 0
        %3505 = vmatprep.subr.bf16.mxu0 0
        %3506 = vmatpush1.bf16.xpose.msra.mxu0 0
        %3507 = vmatprep.subr.bf16.mxu0 0
        %3508 = vmatpush1.bf16.xpose.msra.mxu0 0
        %3509 = vmatprep.subr.bf16.mxu0 0
        %3510 = vmatpush1.bf16.xpose.msra.mxu0 %v3493
        %3511 = vmatprep.subr.bf16.mxu0 0
        %3512 = vmatpush2.bf16.xpose.msra.mxu0 0
        %3513 = vmatprep.subr.bf16.mxu0 0
        %3514 = vmatpush2.bf16.xpose.msra.mxu0 0
        %3515 = vmatprep.subr.bf16.mxu0 0
        %3516 = vmatpush2.bf16.xpose.msra.mxu0 0
        %3517 = vmatprep.subr.bf16.mxu0 0
        %3518 = vmatpush2.bf16.xpose.msra.mxu0 0
        %3519 = vmatprep.subr.bf16.mxu0 0
        %3520 = vmatpush2.bf16.xpose.msra.mxu0 0
        %3521 = vmatprep.subr.bf16.mxu0 0
        %3522 = vmatpush2.bf16.xpose.msra.mxu0 0
        %3523 = vmatprep.subr.bf16.mxu0 0
        %3524 = vmatpush2.bf16.xpose.msra.mxu0 0
        %3525 = vmatprep.subr.bf16.mxu0 0
        %3526 = vmatpush2.bf16.xpose.msra.mxu0 0
        %3527 = vmatprep.mubr.bf16.mxu0 0
        %3528 = vmatmul.mubr.bf16.gmra.mxu0 %v3490
        %v3529 = vpop.f32.mrf.mxu0
        %v3530 = vadd.f32 %v3487, %v3529
        %v3531 = vpop.f32.mrf.mxu0
        %v3532 = vpop.f32.mrf.mxu0
        %v3533 = vadd.f32 %v3487, %v3532
        %v3534 = vpop.f32.mrf.mxu0
        %3535 = vdwg.mxu0
        %v3536 = vsel %vm1371, %v3530, -inf
        %3537 = vmax.xlane.f32.xlu0 %v3536
        %v3538 = vpop.xlane.xlu0 %3537
        %v3539 = vsel %vm1371, %v3533, -inf
        %3540 = vmax.xlane.f32.xlu0 %v3539
        %v3541 = vpop.xlane.xlu0 %3540
        %v3542 = vsub.f32 %v3530, %v3538
        %v3543 = vsub.f32 %v3533, %v3541
        %v3544 = vmul.f32 %v3542, 1.442695
        %v3545 = vpow.pop %v3544
        %v3546 = vmul.f32 %v3543, 1.442695
        %v3547 = vpow.pop %v3546
        %v3548 = vsel %vm1371, %v3545, 0.0
        %3549 = vadd.xlane.f32.xlu0 %v3548
        %v3550 = vpop.xlane.xlu0 %3549
        %v3551 = vsel %vm1371, %v3547, 0.0
        %3552 = vadd.xlane.f32.xlu0 %v3551
        %v3553 = vpop.xlane.xlu0 %3552
        %v3554 = vrcp.pop %v3550
        %v3555 = vrcp.pop %v3553
        %v3556 = vpack.c.bf16 %v3547, %v3545
        %v3558 = vsel %vm1371, %v3556, 0
        %3560 = vmatprep.subr.bf16.mxu0 0
        %3561 = vmatpush1.bf16.msra.mxu0 0
        %3562 = vmatprep.subr.bf16.mxu0 0
        %3563 = vmatpush1.bf16.msra.mxu0 0
        %3564 = vmatprep.subr.bf16.mxu0 0
        %3565 = vmatpush1.bf16.msra.mxu0 0
        %3566 = vmatprep.subr.bf16.mxu0 0
        %3567 = vmatpush1.bf16.msra.mxu0 0
        %3568 = vmatprep.subr.bf16.mxu0 0
        %3569 = vmatpush1.bf16.msra.mxu0 0
        %3570 = vmatprep.subr.bf16.mxu0 0
        %3571 = vmatpush1.bf16.msra.mxu0 0
        %3572 = vmatprep.subr.bf16.mxu0 0
        %3573 = vmatpush1.bf16.msra.mxu0 0
        %3574 = vmatprep.subr.bf16.mxu0 0
        %3575 = vmatpush1.bf16.msra.mxu0 %v1312
        %3576 = vmatprep.subr.bf16.mxu0 0
        %3577 = vmatpush2.bf16.msra.mxu0 0
        %3578 = vmatprep.subr.bf16.mxu0 0
        %3579 = vmatpush2.bf16.msra.mxu0 0
        %3580 = vmatprep.subr.bf16.mxu0 0
        %3581 = vmatpush2.bf16.msra.mxu0 0
        %3582 = vmatprep.subr.bf16.mxu0 0
        %3583 = vmatpush2.bf16.msra.mxu0 0
        %3584 = vmatprep.subr.bf16.mxu0 0
        %3585 = vmatpush2.bf16.msra.mxu0 0
        %3586 = vmatprep.subr.bf16.mxu0 0
        %3587 = vmatpush2.bf16.msra.mxu0 0
        %3588 = vmatprep.subr.bf16.mxu0 0
        %3589 = vmatpush2.bf16.msra.mxu0 0
        %3590 = vmatprep.subr.bf16.mxu0 0
        %3591 = vmatpush2.bf16.msra.mxu0 0
        %3592 = vmatprep.mubr.bf16.mxu0 0
        %3593 = vmatmul.mubr.bf16.gmra.mxu0 %v3558
        %v3594 = vpop.f32.mrf.mxu0
        %v3595 = vadd.f32 0.0, %v3594
        %v3596 = vpop.f32.mrf.mxu0
        %v3597 = vpop.f32.mrf.mxu0
        %v3598 = vadd.f32 0.0, %v3597
        %v3599 = vpop.f32.mrf.mxu0
        %3600 = vdwg.mxu0
        %v3601 = vmul.f32 %v3595, %v3554
        %v3602 = vmul.f32 %v3598, %v3555
        %v3603 = vpack.c.bf16 %v3602, %v3601
        %v3605 = vunpack.c.l.b16 %v3603
        %v3606 = vunpack.c.h.b16 %v3603
        %v3607 = vpack.c.b16 %v3605, %v3605
        %v3608 = vpack.c.b16 %v3606, %v3606
        %3611 = vst.msk [vmem:[#allocation3 + $0x20] sm:$0xf] %vm1447, %v3607
        %3612 = vst.msk [vmem:[#allocation3 + $0x24] sm:$0xf] %vm1447, %v3608
        %3614 = vrot.lane.b32.xlu0 %v1296, 96
        %v3615 = vpop.permute.xlu0 %3614
        %3617 = vrot.lane.b32.xlu0 %v1304, 96
        %v3618 = vpop.permute.xlu0 %3617
        %v3620 = vsel %vm1323, %v3615, 0
        %v3623 = vsel %vm1323, %v3618, 0
        %3625 = vmatprep.subr.bf16.mxu0 0
        %3626 = vmatpush1.bf16.xpose.msra.mxu0 0
        %3627 = vmatprep.subr.bf16.mxu0 0
        %3628 = vmatpush1.bf16.xpose.msra.mxu0 0
        %3629 = vmatprep.subr.bf16.mxu0 0
        %3630 = vmatpush1.bf16.xpose.msra.mxu0 0
        %3631 = vmatprep.subr.bf16.mxu0 0
        %3632 = vmatpush1.bf16.xpose.msra.mxu0 0
        %3633 = vmatprep.subr.bf16.mxu0 0
        %3634 = vmatpush1.bf16.xpose.msra.mxu0 0
        %3635 = vmatprep.subr.bf16.mxu0 0
        %3636 = vmatpush1.bf16.xpose.msra.mxu0 0
        %3637 = vmatprep.subr.bf16.mxu0 0
        %3638 = vmatpush1.bf16.xpose.msra.mxu0 0
        %3639 = vmatprep.subr.bf16.mxu0 0
        %3640 = vmatpush1.bf16.xpose.msra.mxu0 %v3623
        %3641 = vmatprep.subr.bf16.mxu0 0
        %3642 = vmatpush2.bf16.xpose.msra.mxu0 0
        %3643 = vmatprep.subr.bf16.mxu0 0
        %3644 = vmatpush2.bf16.xpose.msra.mxu0 0
        %3645 = vmatprep.subr.bf16.mxu0 0
        %3646 = vmatpush2.bf16.xpose.msra.mxu0 0
        %3647 = vmatprep.subr.bf16.mxu0 0
        %3648 = vmatpush2.bf16.xpose.msra.mxu0 0
        %3649 = vmatprep.subr.bf16.mxu0 0
        %3650 = vmatpush2.bf16.xpose.msra.mxu0 0
        %3651 = vmatprep.subr.bf16.mxu0 0
        %3652 = vmatpush2.bf16.xpose.msra.mxu0 0
        %3653 = vmatprep.subr.bf16.mxu0 0
        %3654 = vmatpush2.bf16.xpose.msra.mxu0 0
        %3655 = vmatprep.subr.bf16.mxu0 0
        %3656 = vmatpush2.bf16.xpose.msra.mxu0 0
        %3657 = vmatprep.mubr.bf16.mxu0 0
        %3658 = vmatmul.mubr.bf16.gmra.mxu0 %v3620
        %v3659 = vpop.f32.mrf.mxu0
        %v3660 = vadd.f32 %v3487, %v3659
        %v3661 = vpop.f32.mrf.mxu0
        %v3662 = vpop.f32.mrf.mxu0
        %v3663 = vadd.f32 %v3487, %v3662
        %v3664 = vpop.f32.mrf.mxu0
        %3665 = vdwg.mxu0
        %v3666 = vsel %vm1371, %v3660, -inf
        %3667 = vmax.xlane.f32.xlu0 %v3666
        %v3668 = vpop.xlane.xlu0 %3667
        %v3669 = vsel %vm1371, %v3663, -inf
        %3670 = vmax.xlane.f32.xlu0 %v3669
        %v3671 = vpop.xlane.xlu0 %3670
        %v3672 = vsub.f32 %v3660, %v3668
        %v3673 = vsub.f32 %v3663, %v3671
        %v3674 = vmul.f32 %v3672, 1.442695
        %v3675 = vpow.pop %v3674
        %v3676 = vmul.f32 %v3673, 1.442695
        %v3677 = vpow.pop %v3676
        %v3678 = vsel %vm1371, %v3675, 0.0
        %3679 = vadd.xlane.f32.xlu0 %v3678
        %v3680 = vpop.xlane.xlu0 %3679
        %v3681 = vsel %vm1371, %v3677, 0.0
        %3682 = vadd.xlane.f32.xlu0 %v3681
        %v3683 = vpop.xlane.xlu0 %3682
        %v3684 = vrcp.pop %v3680
        %v3685 = vrcp.pop %v3683
        %v3686 = vpack.c.bf16 %v3677, %v3675
        %3688 = vrot.lane.b32.xlu0 %v1312, 96
        %v3689 = vpop.permute.xlu0 %3688
        %v3692 = vsel %vm1371, %v3686, 0
        %3694 = vmatprep.subr.bf16.mxu0 0
        %3695 = vmatpush1.bf16.msra.mxu0 0
        %3696 = vmatprep.subr.bf16.mxu0 0
        %3697 = vmatpush1.bf16.msra.mxu0 0
        %3698 = vmatprep.subr.bf16.mxu0 0
        %3699 = vmatpush1.bf16.msra.mxu0 0
        %3700 = vmatprep.subr.bf16.mxu0 0
        %3701 = vmatpush1.bf16.msra.mxu0 0
        %3702 = vmatprep.subr.bf16.mxu0 0
        %3703 = vmatpush1.bf16.msra.mxu0 0
        %3704 = vmatprep.subr.bf16.mxu0 0
        %3705 = vmatpush1.bf16.msra.mxu0 0
        %3706 = vmatprep.subr.bf16.mxu0 0
        %3707 = vmatpush1.bf16.msra.mxu0 0
        %3708 = vmatprep.subr.bf16.mxu0 0
        %3709 = vmatpush1.bf16.msra.mxu0 %v3689
        %3710 = vmatprep.subr.bf16.mxu0 0
        %3711 = vmatpush2.bf16.msra.mxu0 0
        %3712 = vmatprep.subr.bf16.mxu0 0
        %3713 = vmatpush2.bf16.msra.mxu0 0
        %3714 = vmatprep.subr.bf16.mxu0 0
        %3715 = vmatpush2.bf16.msra.mxu0 0
        %3716 = vmatprep.subr.bf16.mxu0 0
        %3717 = vmatpush2.bf16.msra.mxu0 0
        %3718 = vmatprep.subr.bf16.mxu0 0
        %3719 = vmatpush2.bf16.msra.mxu0 0
        %3720 = vmatprep.subr.bf16.mxu0 0
        %3721 = vmatpush2.bf16.msra.mxu0 0
        %3722 = vmatprep.subr.bf16.mxu0 0
        %3723 = vmatpush2.bf16.msra.mxu0 0
        %3724 = vmatprep.subr.bf16.mxu0 0
        %3725 = vmatpush2.bf16.msra.mxu0 0
        %3726 = vmatprep.mubr.bf16.mxu0 0
        %3727 = vmatmul.mubr.bf16.gmra.mxu0 %v3692
        %v3728 = vpop.f32.mrf.mxu0
        %v3729 = vadd.f32 0.0, %v3728
        %v3730 = vpop.f32.mrf.mxu0
        %v3731 = vpop.f32.mrf.mxu0
        %v3732 = vadd.f32 0.0, %v3731
        %v3733 = vpop.f32.mrf.mxu0
        %3734 = vdwg.mxu0
        %v3735 = vmul.f32 %v3729, %v3684
        %v3736 = vmul.f32 %v3732, %v3685
        %v3737 = vpack.c.bf16 %v3736, %v3735
        %v3739 = vunpack.c.l.b16 %v3737
        %v3740 = vunpack.c.h.b16 %v3737
        %v3741 = vpack.c.b16 %v3739, %v3739
        %v3742 = vpack.c.b16 %v3740, %v3740
        %3743 = vrot.lane.b32.xlu0 %v3741, 32
        %v3744 = vpop.permute.xlu0 %3743
        %3745 = vrot.lane.b32.xlu0 %v3742, 32
        %v3746 = vpop.permute.xlu0 %3745
        %3749 = vst.msk [vmem:[#allocation3 + $0x20] sm:$0xf] %vm1586, %v3744
        %3750 = vst.msk [vmem:[#allocation3 + $0x24] sm:$0xf] %vm1586, %v3746
        %3751 = vrot.lane.b32.xlu0 %v1296, 64
        %v3752 = vpop.permute.xlu0 %3751
        %3753 = vrot.lane.b32.xlu0 %v1304, 64
        %v3754 = vpop.permute.xlu0 %3753
        %v3756 = vsel %vm1323, %v3752, 0
        %v3759 = vsel %vm1323, %v3754, 0
        %3761 = vmatprep.subr.bf16.mxu0 0
        %3762 = vmatpush1.bf16.xpose.msra.mxu0 0
        %3763 = vmatprep.subr.bf16.mxu0 0
        %3764 = vmatpush1.bf16.xpose.msra.mxu0 0
        %3765 = vmatprep.subr.bf16.mxu0 0
        %3766 = vmatpush1.bf16.xpose.msra.mxu0 0
        %3767 = vmatprep.subr.bf16.mxu0 0
        %3768 = vmatpush1.bf16.xpose.msra.mxu0 0
        %3769 = vmatprep.subr.bf16.mxu0 0
        %3770 = vmatpush1.bf16.xpose.msra.mxu0 0
        %3771 = vmatprep.subr.bf16.mxu0 0
        %3772 = vmatpush1.bf16.xpose.msra.mxu0 0
        %3773 = vmatprep.subr.bf16.mxu0 0
        %3774 = vmatpush1.bf16.xpose.msra.mxu0 0
        %3775 = vmatprep.subr.bf16.mxu0 0
        %3776 = vmatpush1.bf16.xpose.msra.mxu0 %v3759
        %3777 = vmatprep.subr.bf16.mxu0 0
        %3778 = vmatpush2.bf16.xpose.msra.mxu0 0
        %3779 = vmatprep.subr.bf16.mxu0 0
        %3780 = vmatpush2.bf16.xpose.msra.mxu0 0
        %3781 = vmatprep.subr.bf16.mxu0 0
        %3782 = vmatpush2.bf16.xpose.msra.mxu0 0
        %3783 = vmatprep.subr.bf16.mxu0 0
        %3784 = vmatpush2.bf16.xpose.msra.mxu0 0
        %3785 = vmatprep.subr.bf16.mxu0 0
        %3786 = vmatpush2.bf16.xpose.msra.mxu0 0
        %3787 = vmatprep.subr.bf16.mxu0 0
        %3788 = vmatpush2.bf16.xpose.msra.mxu0 0
        %3789 = vmatprep.subr.bf16.mxu0 0
        %3790 = vmatpush2.bf16.xpose.msra.mxu0 0
        %3791 = vmatprep.subr.bf16.mxu0 0
        %3792 = vmatpush2.bf16.xpose.msra.mxu0 0
        %3793 = vmatprep.mubr.bf16.mxu0 0
        %3794 = vmatmul.mubr.bf16.gmra.mxu0 %v3756
        %v3795 = vpop.f32.mrf.mxu0
        %v3796 = vadd.f32 %v3487, %v3795
        %v3797 = vpop.f32.mrf.mxu0
        %v3798 = vpop.f32.mrf.mxu0
        %v3799 = vadd.f32 %v3487, %v3798
        %v3800 = vpop.f32.mrf.mxu0
        %3801 = vdwg.mxu0
        %v3802 = vsel %vm1371, %v3796, -inf
        %3803 = vmax.xlane.f32.xlu0 %v3802
        %v3804 = vpop.xlane.xlu0 %3803
        %v3805 = vsel %vm1371, %v3799, -inf
        %3806 = vmax.xlane.f32.xlu0 %v3805
        %v3807 = vpop.xlane.xlu0 %3806
        %v3808 = vsub.f32 %v3796, %v3804
        %v3809 = vsub.f32 %v3799, %v3807
        %v3810 = vmul.f32 %v3808, 1.442695
        %v3811 = vpow.pop %v3810
        %v3812 = vmul.f32 %v3809, 1.442695
        %v3813 = vpow.pop %v3812
        %v3814 = vsel %vm1371, %v3811, 0.0
        %3815 = vadd.xlane.f32.xlu0 %v3814
        %v3816 = vpop.xlane.xlu0 %3815
        %v3817 = vsel %vm1371, %v3813, 0.0
        %3818 = vadd.xlane.f32.xlu0 %v3817
        %v3819 = vpop.xlane.xlu0 %3818
        %v3820 = vrcp.pop %v3816
        %v3821 = vrcp.pop %v3819
        %v3822 = vpack.c.bf16 %v3813, %v3811
        %3823 = vrot.lane.b32.xlu0 %v1312, 64
        %v3824 = vpop.permute.xlu0 %3823
        %v3827 = vsel %vm1371, %v3822, 0
        %3829 = vmatprep.subr.bf16.mxu0 0
        %3830 = vmatpush1.bf16.msra.mxu0 0
        %3831 = vmatprep.subr.bf16.mxu0 0
        %3832 = vmatpush1.bf16.msra.mxu0 0
        %3833 = vmatprep.subr.bf16.mxu0 0
        %3834 = vmatpush1.bf16.msra.mxu0 0
        %3835 = vmatprep.subr.bf16.mxu0 0
        %3836 = vmatpush1.bf16.msra.mxu0 0
        %3837 = vmatprep.subr.bf16.mxu0 0
        %3838 = vmatpush1.bf16.msra.mxu0 0
        %3839 = vmatprep.subr.bf16.mxu0 0
        %3840 = vmatpush1.bf16.msra.mxu0 0
        %3841 = vmatprep.subr.bf16.mxu0 0
        %3842 = vmatpush1.bf16.msra.mxu0 0
        %3843 = vmatprep.subr.bf16.mxu0 0
        %3844 = vmatpush1.bf16.msra.mxu0 %v3824
        %3845 = vmatprep.subr.bf16.mxu0 0
        %3846 = vmatpush2.bf16.msra.mxu0 0
        %3847 = vmatprep.subr.bf16.mxu0 0
        %3848 = vmatpush2.bf16.msra.mxu0 0
        %3849 = vmatprep.subr.bf16.mxu0 0
        %3850 = vmatpush2.bf16.msra.mxu0 0
        %3851 = vmatprep.subr.bf16.mxu0 0
        %3852 = vmatpush2.bf16.msra.mxu0 0
        %3853 = vmatprep.subr.bf16.mxu0 0
        %3854 = vmatpush2.bf16.msra.mxu0 0
        %3855 = vmatprep.subr.bf16.mxu0 0
        %3856 = vmatpush2.bf16.msra.mxu0 0
        %3857 = vmatprep.subr.bf16.mxu0 0
        %3858 = vmatpush2.bf16.msra.mxu0 0
        %3859 = vmatprep.subr.bf16.mxu0 0
        %3860 = vmatpush2.bf16.msra.mxu0 0
        %3861 = vmatprep.mubr.bf16.mxu0 0
        %3862 = vmatmul.mubr.bf16.gmra.mxu0 %v3827
        %v3863 = vpop.f32.mrf.mxu0
        %v3864 = vadd.f32 0.0, %v3863
        %v3865 = vpop.f32.mrf.mxu0
        %v3866 = vpop.f32.mrf.mxu0
        %v3867 = vadd.f32 0.0, %v3866
        %v3868 = vpop.f32.mrf.mxu0
        %3869 = vdwg.mxu0
        %v3870 = vmul.f32 %v3864, %v3820
        %v3871 = vmul.f32 %v3867, %v3821
        %v3872 = vpack.c.bf16 %v3871, %v3870
        %v3874 = vunpack.c.l.b16 %v3872
        %v3875 = vunpack.c.h.b16 %v3872
        %v3876 = vpack.c.b16 %v3874, %v3874
        %v3877 = vpack.c.b16 %v3875, %v3875
        %3878 = vrot.lane.b32.xlu0 %v3876, 64
        %v3879 = vpop.permute.xlu0 %3878
        %3880 = vrot.lane.b32.xlu0 %v3877, 64
        %v3881 = vpop.permute.xlu0 %3880
        %3884 = vst.msk [vmem:[#allocation3 + $0x20] sm:$0xf] %vm1722, %v3879
        %3885 = vst.msk [vmem:[#allocation3 + $0x24] sm:$0xf] %vm1722, %v3881
        %3886 = vrot.lane.b32.xlu0 %v1296, 32
        %v3887 = vpop.permute.xlu0 %3886
        %3888 = vrot.lane.b32.xlu0 %v1304, 32
        %v3889 = vpop.permute.xlu0 %3888
        %v3891 = vsel %vm1323, %v3887, 0
        %v3894 = vsel %vm1323, %v3889, 0
        %3896 = vmatprep.subr.bf16.mxu0 0
        %3897 = vmatpush1.bf16.xpose.msra.mxu0 0
        %3898 = vmatprep.subr.bf16.mxu0 0
        %3899 = vmatpush1.bf16.xpose.msra.mxu0 0
        %3900 = vmatprep.subr.bf16.mxu0 0
        %3901 = vmatpush1.bf16.xpose.msra.mxu0 0
        %3902 = vmatprep.subr.bf16.mxu0 0
        %3903 = vmatpush1.bf16.xpose.msra.mxu0 0
        %3904 = vmatprep.subr.bf16.mxu0 0
        %3905 = vmatpush1.bf16.xpose.msra.mxu0 0
        %3906 = vmatprep.subr.bf16.mxu0 0
        %3907 = vmatpush1.bf16.xpose.msra.mxu0 0
        %3908 = vmatprep.subr.bf16.mxu0 0
        %3909 = vmatpush1.bf16.xpose.msra.mxu0 0
        %3910 = vmatprep.subr.bf16.mxu0 0
        %3911 = vmatpush1.bf16.xpose.msra.mxu0 %v3894
        %3912 = vmatprep.subr.bf16.mxu0 0
        %3913 = vmatpush2.bf16.xpose.msra.mxu0 0
        %3914 = vmatprep.subr.bf16.mxu0 0
        %3915 = vmatpush2.bf16.xpose.msra.mxu0 0
        %3916 = vmatprep.subr.bf16.mxu0 0
        %3917 = vmatpush2.bf16.xpose.msra.mxu0 0
        %3918 = vmatprep.subr.bf16.mxu0 0
        %3919 = vmatpush2.bf16.xpose.msra.mxu0 0
        %3920 = vmatprep.subr.bf16.mxu0 0
        %3921 = vmatpush2.bf16.xpose.msra.mxu0 0
        %3922 = vmatprep.subr.bf16.mxu0 0
        %3923 = vmatpush2.bf16.xpose.msra.mxu0 0
        %3924 = vmatprep.subr.bf16.mxu0 0
        %3925 = vmatpush2.bf16.xpose.msra.mxu0 0
        %3926 = vmatprep.subr.bf16.mxu0 0
        %3927 = vmatpush2.bf16.xpose.msra.mxu0 0
        %3928 = vmatprep.mubr.bf16.mxu0 0
        %3929 = vmatmul.mubr.bf16.gmra.mxu0 %v3891
        %v3930 = vpop.f32.mrf.mxu0
        %v3931 = vadd.f32 %v3487, %v3930
        %v3932 = vpop.f32.mrf.mxu0
        %v3933 = vpop.f32.mrf.mxu0
        %v3934 = vadd.f32 %v3487, %v3933
        %v3935 = vpop.f32.mrf.mxu0
        %3936 = vdwg.mxu0
        %v3937 = vsel %vm1371, %v3931, -inf
        %3938 = vmax.xlane.f32.xlu0 %v3937
        %v3939 = vpop.xlane.xlu0 %3938
        %v3940 = vsel %vm1371, %v3934, -inf
        %3941 = vmax.xlane.f32.xlu0 %v3940
        %v3942 = vpop.xlane.xlu0 %3941
        %v3943 = vsub.f32 %v3931, %v3939
        %v3944 = vsub.f32 %v3934, %v3942
        %v3945 = vmul.f32 %v3943, 1.442695
        %v3946 = vpow.pop %v3945
        %v3947 = vmul.f32 %v3944, 1.442695
        %v3948 = vpow.pop %v3947
        %v3949 = vsel %vm1371, %v3946, 0.0
        %3950 = vadd.xlane.f32.xlu0 %v3949
        %v3951 = vpop.xlane.xlu0 %3950
        %v3952 = vsel %vm1371, %v3948, 0.0
        %3953 = vadd.xlane.f32.xlu0 %v3952
        %v3954 = vpop.xlane.xlu0 %3953
        %v3955 = vrcp.pop %v3951
        %v3956 = vrcp.pop %v3954
        %v3957 = vpack.c.bf16 %v3948, %v3946
        %3958 = vrot.lane.b32.xlu0 %v1312, 32
        %v3959 = vpop.permute.xlu0 %3958
        %v3962 = vsel %vm1371, %v3957, 0
        %3964 = vmatprep.subr.bf16.mxu0 0
        %3965 = vmatpush1.bf16.msra.mxu0 0
        %3966 = vmatprep.subr.bf16.mxu0 0
        %3967 = vmatpush1.bf16.msra.mxu0 0
        %3968 = vmatprep.subr.bf16.mxu0 0
        %3969 = vmatpush1.bf16.msra.mxu0 0
        %3970 = vmatprep.subr.bf16.mxu0 0
        %3971 = vmatpush1.bf16.msra.mxu0 0
        %3972 = vmatprep.subr.bf16.mxu0 0
        %3973 = vmatpush1.bf16.msra.mxu0 0
        %3974 = vmatprep.subr.bf16.mxu0 0
        %3975 = vmatpush1.bf16.msra.mxu0 0
        %3976 = vmatprep.subr.bf16.mxu0 0
        %3977 = vmatpush1.bf16.msra.mxu0 0
        %3978 = vmatprep.subr.bf16.mxu0 0
        %3979 = vmatpush1.bf16.msra.mxu0 %v3959
        %3980 = vmatprep.subr.bf16.mxu0 0
        %3981 = vmatpush2.bf16.msra.mxu0 0
        %3982 = vmatprep.subr.bf16.mxu0 0
        %3983 = vmatpush2.bf16.msra.mxu0 0
        %3984 = vmatprep.subr.bf16.mxu0 0
        %3985 = vmatpush2.bf16.msra.mxu0 0
        %3986 = vmatprep.subr.bf16.mxu0 0
        %3987 = vmatpush2.bf16.msra.mxu0 0
        %3988 = vmatprep.subr.bf16.mxu0 0
        %3989 = vmatpush2.bf16.msra.mxu0 0
        %3990 = vmatprep.subr.bf16.mxu0 0
        %3991 = vmatpush2.bf16.msra.mxu0 0
        %3992 = vmatprep.subr.bf16.mxu0 0
        %3993 = vmatpush2.bf16.msra.mxu0 0
        %3994 = vmatprep.subr.bf16.mxu0 0
        %3995 = vmatpush2.bf16.msra.mxu0 0
        %3996 = vmatprep.mubr.bf16.mxu0 0
        %3997 = vmatmul.mubr.bf16.gmra.mxu0 %v3962
        %v3998 = vpop.f32.mrf.mxu0
        %v3999 = vadd.f32 0.0, %v3998
        %v4000 = vpop.f32.mrf.mxu0
        %v4001 = vpop.f32.mrf.mxu0
        %v4002 = vadd.f32 0.0, %v4001
        %v4003 = vpop.f32.mrf.mxu0
        %4004 = vdwg.mxu0
        %v4005 = vmul.f32 %v3999, %v3955
        %v4006 = vmul.f32 %v4002, %v3956
        %v4007 = vpack.c.bf16 %v4006, %v4005
        %v4009 = vunpack.c.l.b16 %v4007
        %v4010 = vunpack.c.h.b16 %v4007
        %v4011 = vpack.c.b16 %v4009, %v4009
        %v4012 = vpack.c.b16 %v4010, %v4010
        %4013 = vrot.lane.b32.xlu0 %v4011, 96
        %v4014 = vpop.permute.xlu0 %4013
        %4015 = vrot.lane.b32.xlu0 %v4012, 96
        %v4016 = vpop.permute.xlu0 %4015
        %4019 = vst.msk [vmem:[#allocation3 + $0x20] sm:$0xf] %vm1858, %v4014
        %4020 = vst.msk [vmem:[#allocation3 + $0x24] sm:$0xf] %vm1858, %v4016
        %s4021 = scalar_lea.vmem %s567, 5 [#allocation7]
        %v4022 = vld [vmem:[%s4021] sm:$0x1]
        %v4024 = vlaneseq
        %v4025 = vshrl.u32 %v4024, 7
        %v4026 = vsub.s32 0, %v4025
        %v4027 = vrot.slane %v4022, %v4026
        %v4030 = vsel %vm1323, %v1297, 0
        %v4033 = vsel %vm1323, %v1305, 0
        %4035 = vmatprep.subr.bf16.mxu0 0
        %4036 = vmatpush1.bf16.xpose.msra.mxu0 0
        %4037 = vmatprep.subr.bf16.mxu0 0
        %4038 = vmatpush1.bf16.xpose.msra.mxu0 0
        %4039 = vmatprep.subr.bf16.mxu0 0
        %4040 = vmatpush1.bf16.xpose.msra.mxu0 0
        %4041 = vmatprep.subr.bf16.mxu0 0
        %4042 = vmatpush1.bf16.xpose.msra.mxu0 0
        %4043 = vmatprep.subr.bf16.mxu0 0
        %4044 = vmatpush1.bf16.xpose.msra.mxu0 0
        %4045 = vmatprep.subr.bf16.mxu0 0
        %4046 = vmatpush1.bf16.xpose.msra.mxu0 0
        %4047 = vmatprep.subr.bf16.mxu0 0
        %4048 = vmatpush1.bf16.xpose.msra.mxu0 0
        %4049 = vmatprep.subr.bf16.mxu0 0
        %4050 = vmatpush1.bf16.xpose.msra.mxu0 %v4033
        %4051 = vmatprep.subr.bf16.mxu0 0
        %4052 = vmatpush2.bf16.xpose.msra.mxu0 0
        %4053 = vmatprep.subr.bf16.mxu0 0
        %4054 = vmatpush2.bf16.xpose.msra.mxu0 0
        %4055 = vmatprep.subr.bf16.mxu0 0
        %4056 = vmatpush2.bf16.xpose.msra.mxu0 0
        %4057 = vmatprep.subr.bf16.mxu0 0
        %4058 = vmatpush2.bf16.xpose.msra.mxu0 0
        %4059 = vmatprep.subr.bf16.mxu0 0
        %4060 = vmatpush2.bf16.xpose.msra.mxu0 0
        %4061 = vmatprep.subr.bf16.mxu0 0
        %4062 = vmatpush2.bf16.xpose.msra.mxu0 0
        %4063 = vmatprep.subr.bf16.mxu0 0
        %4064 = vmatpush2.bf16.xpose.msra.mxu0 0
        %4065 = vmatprep.subr.bf16.mxu0 0
        %4066 = vmatpush2.bf16.xpose.msra.mxu0 0
        %4067 = vmatprep.mubr.bf16.mxu0 0
        %4068 = vmatmul.mubr.bf16.gmra.mxu0 %v4030
        %v4069 = vpop.f32.mrf.mxu0
        %v4070 = vadd.f32 %v4027, %v4069
        %v4071 = vpop.f32.mrf.mxu0
        %v4072 = vpop.f32.mrf.mxu0
        %v4073 = vadd.f32 %v4027, %v4072
        %v4074 = vpop.f32.mrf.mxu0
        %4075 = vdwg.mxu0
        %v4076 = vsel %vm1371, %v4070, -inf
        %4077 = vmax.xlane.f32.xlu0 %v4076
        %v4078 = vpop.xlane.xlu0 %4077
        %v4079 = vsel %vm1371, %v4073, -inf
        %4080 = vmax.xlane.f32.xlu0 %v4079
        %v4081 = vpop.xlane.xlu0 %4080
        %v4082 = vsub.f32 %v4070, %v4078
        %v4083 = vsub.f32 %v4073, %v4081
        %v4084 = vmul.f32 %v4082, 1.442695
        %v4085 = vpow.pop %v4084
        %v4086 = vmul.f32 %v4083, 1.442695
        %v4087 = vpow.pop %v4086
        %v4088 = vsel %vm1371, %v4085, 0.0
        %4089 = vadd.xlane.f32.xlu0 %v4088
        %v4090 = vpop.xlane.xlu0 %4089
        %v4091 = vsel %vm1371, %v4087, 0.0
        %4092 = vadd.xlane.f32.xlu0 %v4091
        %v4093 = vpop.xlane.xlu0 %4092
        %v4094 = vrcp.pop %v4090
        %v4095 = vrcp.pop %v4093
        %v4096 = vpack.c.bf16 %v4087, %v4085
        %v4098 = vsel %vm1371, %v4096, 0
        %4100 = vmatprep.subr.bf16.mxu0 0
        %4101 = vmatpush1.bf16.msra.mxu0 0
        %4102 = vmatprep.subr.bf16.mxu0 0
        %4103 = vmatpush1.bf16.msra.mxu0 0
        %4104 = vmatprep.subr.bf16.mxu0 0
        %4105 = vmatpush1.bf16.msra.mxu0 0
        %4106 = vmatprep.subr.bf16.mxu0 0
        %4107 = vmatpush1.bf16.msra.mxu0 0
        %4108 = vmatprep.subr.bf16.mxu0 0
        %4109 = vmatpush1.bf16.msra.mxu0 0
        %4110 = vmatprep.subr.bf16.mxu0 0
        %4111 = vmatpush1.bf16.msra.mxu0 0
        %4112 = vmatprep.subr.bf16.mxu0 0
        %4113 = vmatpush1.bf16.msra.mxu0 0
        %4114 = vmatprep.subr.bf16.mxu0 0
        %4115 = vmatpush1.bf16.msra.mxu0 %v1313
        %4116 = vmatprep.subr.bf16.mxu0 0
        %4117 = vmatpush2.bf16.msra.mxu0 0
        %4118 = vmatprep.subr.bf16.mxu0 0
        %4119 = vmatpush2.bf16.msra.mxu0 0
        %4120 = vmatprep.subr.bf16.mxu0 0
        %4121 = vmatpush2.bf16.msra.mxu0 0
        %4122 = vmatprep.subr.bf16.mxu0 0
        %4123 = vmatpush2.bf16.msra.mxu0 0
        %4124 = vmatprep.subr.bf16.mxu0 0
        %4125 = vmatpush2.bf16.msra.mxu0 0
        %4126 = vmatprep.subr.bf16.mxu0 0
        %4127 = vmatpush2.bf16.msra.mxu0 0
        %4128 = vmatprep.subr.bf16.mxu0 0
        %4129 = vmatpush2.bf16.msra.mxu0 0
        %4130 = vmatprep.subr.bf16.mxu0 0
        %4131 = vmatpush2.bf16.msra.mxu0 0
        %4132 = vmatprep.mubr.bf16.mxu0 0
        %4133 = vmatmul.mubr.bf16.gmra.mxu0 %v4098
        %v4134 = vpop.f32.mrf.mxu0
        %v4135 = vadd.f32 0.0, %v4134
        %v4136 = vpop.f32.mrf.mxu0
        %v4137 = vpop.f32.mrf.mxu0
        %v4138 = vadd.f32 0.0, %v4137
        %v4139 = vpop.f32.mrf.mxu0
        %4140 = vdwg.mxu0
        %v4141 = vmul.f32 %v4135, %v4094
        %v4142 = vmul.f32 %v4138, %v4095
        %v4143 = vpack.c.bf16 %v4142, %v4141
        %v4145 = vunpack.c.l.b16 %v4143
        %v4146 = vunpack.c.h.b16 %v4143
        %v4147 = vpack.c.b16 %v4145, %v4145
        %v4148 = vpack.c.b16 %v4146, %v4146
        %4151 = vst.msk [vmem:[#allocation3 + $0x28] sm:$0xf] %vm1447, %v4147
        %4152 = vst.msk [vmem:[#allocation3 + $0x2c] sm:$0xf] %vm1447, %v4148
        %4154 = vrot.lane.b32.xlu0 %v1297, 96
        %v4155 = vpop.permute.xlu0 %4154
        %4157 = vrot.lane.b32.xlu0 %v1305, 96
        %v4158 = vpop.permute.xlu0 %4157
        %v4160 = vsel %vm1323, %v4155, 0
        %v4163 = vsel %vm1323, %v4158, 0
        %4165 = vmatprep.subr.bf16.mxu0 0
        %4166 = vmatpush1.bf16.xpose.msra.mxu0 0
        %4167 = vmatprep.subr.bf16.mxu0 0
        %4168 = vmatpush1.bf16.xpose.msra.mxu0 0
        %4169 = vmatprep.subr.bf16.mxu0 0
        %4170 = vmatpush1.bf16.xpose.msra.mxu0 0
        %4171 = vmatprep.subr.bf16.mxu0 0
        %4172 = vmatpush1.bf16.xpose.msra.mxu0 0
        %4173 = vmatprep.subr.bf16.mxu0 0
        %4174 = vmatpush1.bf16.xpose.msra.mxu0 0
        %4175 = vmatprep.subr.bf16.mxu0 0
        %4176 = vmatpush1.bf16.xpose.msra.mxu0 0
        %4177 = vmatprep.subr.bf16.mxu0 0
        %4178 = vmatpush1.bf16.xpose.msra.mxu0 0
        %4179 = vmatprep.subr.bf16.mxu0 0
        %4180 = vmatpush1.bf16.xpose.msra.mxu0 %v4163
        %4181 = vmatprep.subr.bf16.mxu0 0
        %4182 = vmatpush2.bf16.xpose.msra.mxu0 0
        %4183 = vmatprep.subr.bf16.mxu0 0
        %4184 = vmatpush2.bf16.xpose.msra.mxu0 0
        %4185 = vmatprep.subr.bf16.mxu0 0
        %4186 = vmatpush2.bf16.xpose.msra.mxu0 0
        %4187 = vmatprep.subr.bf16.mxu0 0
        %4188 = vmatpush2.bf16.xpose.msra.mxu0 0
        %4189 = vmatprep.subr.bf16.mxu0 0
        %4190 = vmatpush2.bf16.xpose.msra.mxu0 0
        %4191 = vmatprep.subr.bf16.mxu0 0
        %4192 = vmatpush2.bf16.xpose.msra.mxu0 0
        %4193 = vmatprep.subr.bf16.mxu0 0
        %4194 = vmatpush2.bf16.xpose.msra.mxu0 0
        %4195 = vmatprep.subr.bf16.mxu0 0
        %4196 = vmatpush2.bf16.xpose.msra.mxu0 0
        %4197 = vmatprep.mubr.bf16.mxu0 0
        %4198 = vmatmul.mubr.bf16.gmra.mxu0 %v4160
        %v4199 = vpop.f32.mrf.mxu0
        %v4200 = vadd.f32 %v4027, %v4199
        %v4201 = vpop.f32.mrf.mxu0
        %v4202 = vpop.f32.mrf.mxu0
        %v4203 = vadd.f32 %v4027, %v4202
        %v4204 = vpop.f32.mrf.mxu0
        %4205 = vdwg.mxu0
        %v4206 = vsel %vm1371, %v4200, -inf
        %4207 = vmax.xlane.f32.xlu0 %v4206
        %v4208 = vpop.xlane.xlu0 %4207
        %v4209 = vsel %vm1371, %v4203, -inf
        %4210 = vmax.xlane.f32.xlu0 %v4209
        %v4211 = vpop.xlane.xlu0 %4210
        %v4212 = vsub.f32 %v4200, %v4208
        %v4213 = vsub.f32 %v4203, %v4211
        %v4214 = vmul.f32 %v4212, 1.442695
        %v4215 = vpow.pop %v4214
        %v4216 = vmul.f32 %v4213, 1.442695
        %v4217 = vpow.pop %v4216
        %v4218 = vsel %vm1371, %v4215, 0.0
        %4219 = vadd.xlane.f32.xlu0 %v4218
        %v4220 = vpop.xlane.xlu0 %4219
        %v4221 = vsel %vm1371, %v4217, 0.0
        %4222 = vadd.xlane.f32.xlu0 %v4221
        %v4223 = vpop.xlane.xlu0 %4222
        %v4224 = vrcp.pop %v4220
        %v4225 = vrcp.pop %v4223
        %v4226 = vpack.c.bf16 %v4217, %v4215
        %4228 = vrot.lane.b32.xlu0 %v1313, 96
        %v4229 = vpop.permute.xlu0 %4228
        %v4232 = vsel %vm1371, %v4226, 0
        %4234 = vmatprep.subr.bf16.mxu0 0
        %4235 = vmatpush1.bf16.msra.mxu0 0
        %4236 = vmatprep.subr.bf16.mxu0 0
        %4237 = vmatpush1.bf16.msra.mxu0 0
        %4238 = vmatprep.subr.bf16.mxu0 0
        %4239 = vmatpush1.bf16.msra.mxu0 0
        %4240 = vmatprep.subr.bf16.mxu0 0
        %4241 = vmatpush1.bf16.msra.mxu0 0
        %4242 = vmatprep.subr.bf16.mxu0 0
        %4243 = vmatpush1.bf16.msra.mxu0 0
        %4244 = vmatprep.subr.bf16.mxu0 0
        %4245 = vmatpush1.bf16.msra.mxu0 0
        %4246 = vmatprep.subr.bf16.mxu0 0
        %4247 = vmatpush1.bf16.msra.mxu0 0
        %4248 = vmatprep.subr.bf16.mxu0 0
        %4249 = vmatpush1.bf16.msra.mxu0 %v4229
        %4250 = vmatprep.subr.bf16.mxu0 0
        %4251 = vmatpush2.bf16.msra.mxu0 0
        %4252 = vmatprep.subr.bf16.mxu0 0
        %4253 = vmatpush2.bf16.msra.mxu0 0
        %4254 = vmatprep.subr.bf16.mxu0 0
        %4255 = vmatpush2.bf16.msra.mxu0 0
        %4256 = vmatprep.subr.bf16.mxu0 0
        %4257 = vmatpush2.bf16.msra.mxu0 0
        %4258 = vmatprep.subr.bf16.mxu0 0
        %4259 = vmatpush2.bf16.msra.mxu0 0
        %4260 = vmatprep.subr.bf16.mxu0 0
        %4261 = vmatpush2.bf16.msra.mxu0 0
        %4262 = vmatprep.subr.bf16.mxu0 0
        %4263 = vmatpush2.bf16.msra.mxu0 0
        %4264 = vmatprep.subr.bf16.mxu0 0
        %4265 = vmatpush2.bf16.msra.mxu0 0
        %4266 = vmatprep.mubr.bf16.mxu0 0
        %4267 = vmatmul.mubr.bf16.gmra.mxu0 %v4232
        %v4268 = vpop.f32.mrf.mxu0
        %v4269 = vadd.f32 0.0, %v4268
        %v4270 = vpop.f32.mrf.mxu0
        %v4271 = vpop.f32.mrf.mxu0
        %v4272 = vadd.f32 0.0, %v4271
        %v4273 = vpop.f32.mrf.mxu0
        %4274 = vdwg.mxu0
        %v4275 = vmul.f32 %v4269, %v4224
        %v4276 = vmul.f32 %v4272, %v4225
        %v4277 = vpack.c.bf16 %v4276, %v4275
        %v4279 = vunpack.c.l.b16 %v4277
        %v4280 = vunpack.c.h.b16 %v4277
        %v4281 = vpack.c.b16 %v4279, %v4279
        %v4282 = vpack.c.b16 %v4280, %v4280
        %4283 = vrot.lane.b32.xlu0 %v4281, 32
        %v4284 = vpop.permute.xlu0 %4283
        %4285 = vrot.lane.b32.xlu0 %v4282, 32
        %v4286 = vpop.permute.xlu0 %4285
        %4289 = vst.msk [vmem:[#allocation3 + $0x28] sm:$0xf] %vm1586, %v4284
        %4290 = vst.msk [vmem:[#allocation3 + $0x2c] sm:$0xf] %vm1586, %v4286
        %4291 = vrot.lane.b32.xlu0 %v1297, 64
        %v4292 = vpop.permute.xlu0 %4291
        %4293 = vrot.lane.b32.xlu0 %v1305, 64
        %v4294 = vpop.permute.xlu0 %4293
        %v4296 = vsel %vm1323, %v4292, 0
        %v4299 = vsel %vm1323, %v4294, 0
        %4301 = vmatprep.subr.bf16.mxu0 0
        %4302 = vmatpush1.bf16.xpose.msra.mxu0 0
        %4303 = vmatprep.subr.bf16.mxu0 0
        %4304 = vmatpush1.bf16.xpose.msra.mxu0 0
        %4305 = vmatprep.subr.bf16.mxu0 0
        %4306 = vmatpush1.bf16.xpose.msra.mxu0 0
        %4307 = vmatprep.subr.bf16.mxu0 0
        %4308 = vmatpush1.bf16.xpose.msra.mxu0 0
        %4309 = vmatprep.subr.bf16.mxu0 0
        %4310 = vmatpush1.bf16.xpose.msra.mxu0 0
        %4311 = vmatprep.subr.bf16.mxu0 0
        %4312 = vmatpush1.bf16.xpose.msra.mxu0 0
        %4313 = vmatprep.subr.bf16.mxu0 0
        %4314 = vmatpush1.bf16.xpose.msra.mxu0 0
        %4315 = vmatprep.subr.bf16.mxu0 0
        %4316 = vmatpush1.bf16.xpose.msra.mxu0 %v4299
        %4317 = vmatprep.subr.bf16.mxu0 0
        %4318 = vmatpush2.bf16.xpose.msra.mxu0 0
        %4319 = vmatprep.subr.bf16.mxu0 0
        %4320 = vmatpush2.bf16.xpose.msra.mxu0 0
        %4321 = vmatprep.subr.bf16.mxu0 0
        %4322 = vmatpush2.bf16.xpose.msra.mxu0 0
        %4323 = vmatprep.subr.bf16.mxu0 0
        %4324 = vmatpush2.bf16.xpose.msra.mxu0 0
        %4325 = vmatprep.subr.bf16.mxu0 0
        %4326 = vmatpush2.bf16.xpose.msra.mxu0 0
        %4327 = vmatprep.subr.bf16.mxu0 0
        %4328 = vmatpush2.bf16.xpose.msra.mxu0 0
        %4329 = vmatprep.subr.bf16.mxu0 0
        %4330 = vmatpush2.bf16.xpose.msra.mxu0 0
        %4331 = vmatprep.subr.bf16.mxu0 0
        %4332 = vmatpush2.bf16.xpose.msra.mxu0 0
        %4333 = vmatprep.mubr.bf16.mxu0 0
        %4334 = vmatmul.mubr.bf16.gmra.mxu0 %v4296
        %v4335 = vpop.f32.mrf.mxu0
        %v4336 = vadd.f32 %v4027, %v4335
        %v4337 = vpop.f32.mrf.mxu0
        %v4338 = vpop.f32.mrf.mxu0
        %v4339 = vadd.f32 %v4027, %v4338
        %v4340 = vpop.f32.mrf.mxu0
        %4341 = vdwg.mxu0
        %v4342 = vsel %vm1371, %v4336, -inf
        %4343 = vmax.xlane.f32.xlu0 %v4342
        %v4344 = vpop.xlane.xlu0 %4343
        %v4345 = vsel %vm1371, %v4339, -inf
        %4346 = vmax.xlane.f32.xlu0 %v4345
        %v4347 = vpop.xlane.xlu0 %4346
        %v4348 = vsub.f32 %v4336, %v4344
        %v4349 = vsub.f32 %v4339, %v4347
        %v4350 = vmul.f32 %v4348, 1.442695
        %v4351 = vpow.pop %v4350
        %v4352 = vmul.f32 %v4349, 1.442695
        %v4353 = vpow.pop %v4352
        %v4354 = vsel %vm1371, %v4351, 0.0
        %4355 = vadd.xlane.f32.xlu0 %v4354
        %v4356 = vpop.xlane.xlu0 %4355
        %v4357 = vsel %vm1371, %v4353, 0.0
        %4358 = vadd.xlane.f32.xlu0 %v4357
        %v4359 = vpop.xlane.xlu0 %4358
        %v4360 = vrcp.pop %v4356
        %v4361 = vrcp.pop %v4359
        %v4362 = vpack.c.bf16 %v4353, %v4351
        %4363 = vrot.lane.b32.xlu0 %v1313, 64
        %v4364 = vpop.permute.xlu0 %4363
        %v4367 = vsel %vm1371, %v4362, 0
        %4369 = vmatprep.subr.bf16.mxu0 0
        %4370 = vmatpush1.bf16.msra.mxu0 0
        %4371 = vmatprep.subr.bf16.mxu0 0
        %4372 = vmatpush1.bf16.msra.mxu0 0
        %4373 = vmatprep.subr.bf16.mxu0 0
        %4374 = vmatpush1.bf16.msra.mxu0 0
        %4375 = vmatprep.subr.bf16.mxu0 0
        %4376 = vmatpush1.bf16.msra.mxu0 0
        %4377 = vmatprep.subr.bf16.mxu0 0
        %4378 = vmatpush1.bf16.msra.mxu0 0
        %4379 = vmatprep.subr.bf16.mxu0 0
        %4380 = vmatpush1.bf16.msra.mxu0 0
        %4381 = vmatprep.subr.bf16.mxu0 0
        %4382 = vmatpush1.bf16.msra.mxu0 0
        %4383 = vmatprep.subr.bf16.mxu0 0
        %4384 = vmatpush1.bf16.msra.mxu0 %v4364
        %4385 = vmatprep.subr.bf16.mxu0 0
        %4386 = vmatpush2.bf16.msra.mxu0 0
        %4387 = vmatprep.subr.bf16.mxu0 0
        %4388 = vmatpush2.bf16.msra.mxu0 0
        %4389 = vmatprep.subr.bf16.mxu0 0
        %4390 = vmatpush2.bf16.msra.mxu0 0
        %4391 = vmatprep.subr.bf16.mxu0 0
        %4392 = vmatpush2.bf16.msra.mxu0 0
        %4393 = vmatprep.subr.bf16.mxu0 0
        %4394 = vmatpush2.bf16.msra.mxu0 0
        %4395 = vmatprep.subr.bf16.mxu0 0
        %4396 = vmatpush2.bf16.msra.mxu0 0
        %4397 = vmatprep.subr.bf16.mxu0 0
        %4398 = vmatpush2.bf16.msra.mxu0 0
        %4399 = vmatprep.subr.bf16.mxu0 0
        %4400 = vmatpush2.bf16.msra.mxu0 0
        %4401 = vmatprep.mubr.bf16.mxu0 0
        %4402 = vmatmul.mubr.bf16.gmra.mxu0 %v4367
        %v4403 = vpop.f32.mrf.mxu0
        %v4404 = vadd.f32 0.0, %v4403
        %v4405 = vpop.f32.mrf.mxu0
        %v4406 = vpop.f32.mrf.mxu0
        %v4407 = vadd.f32 0.0, %v4406
        %v4408 = vpop.f32.mrf.mxu0
        %4409 = vdwg.mxu0
        %v4410 = vmul.f32 %v4404, %v4360
        %v4411 = vmul.f32 %v4407, %v4361
        %v4412 = vpack.c.bf16 %v4411, %v4410
        %v4414 = vunpack.c.l.b16 %v4412
        %v4415 = vunpack.c.h.b16 %v4412
        %v4416 = vpack.c.b16 %v4414, %v4414
        %v4417 = vpack.c.b16 %v4415, %v4415
        %4418 = vrot.lane.b32.xlu0 %v4416, 64
        %v4419 = vpop.permute.xlu0 %4418
        %4420 = vrot.lane.b32.xlu0 %v4417, 64
        %v4421 = vpop.permute.xlu0 %4420
        %4424 = vst.msk [vmem:[#allocation3 + $0x28] sm:$0xf] %vm1722, %v4419
        %4425 = vst.msk [vmem:[#allocation3 + $0x2c] sm:$0xf] %vm1722, %v4421
        %4426 = vrot.lane.b32.xlu0 %v1297, 32
        %v4427 = vpop.permute.xlu0 %4426
        %4428 = vrot.lane.b32.xlu0 %v1305, 32
        %v4429 = vpop.permute.xlu0 %4428
        %v4431 = vsel %vm1323, %v4427, 0
        %v4434 = vsel %vm1323, %v4429, 0
        %4436 = vmatprep.subr.bf16.mxu0 0
        %4437 = vmatpush1.bf16.xpose.msra.mxu0 0
        %4438 = vmatprep.subr.bf16.mxu0 0
        %4439 = vmatpush1.bf16.xpose.msra.mxu0 0
        %4440 = vmatprep.subr.bf16.mxu0 0
        %4441 = vmatpush1.bf16.xpose.msra.mxu0 0
        %4442 = vmatprep.subr.bf16.mxu0 0
        %4443 = vmatpush1.bf16.xpose.msra.mxu0 0
        %4444 = vmatprep.subr.bf16.mxu0 0
        %4445 = vmatpush1.bf16.xpose.msra.mxu0 0
        %4446 = vmatprep.subr.bf16.mxu0 0
        %4447 = vmatpush1.bf16.xpose.msra.mxu0 0
        %4448 = vmatprep.subr.bf16.mxu0 0
        %4449 = vmatpush1.bf16.xpose.msra.mxu0 0
        %4450 = vmatprep.subr.bf16.mxu0 0
        %4451 = vmatpush1.bf16.xpose.msra.mxu0 %v4434
        %4452 = vmatprep.subr.bf16.mxu0 0
        %4453 = vmatpush2.bf16.xpose.msra.mxu0 0
        %4454 = vmatprep.subr.bf16.mxu0 0
        %4455 = vmatpush2.bf16.xpose.msra.mxu0 0
        %4456 = vmatprep.subr.bf16.mxu0 0
        %4457 = vmatpush2.bf16.xpose.msra.mxu0 0
        %4458 = vmatprep.subr.bf16.mxu0 0
        %4459 = vmatpush2.bf16.xpose.msra.mxu0 0
        %4460 = vmatprep.subr.bf16.mxu0 0
        %4461 = vmatpush2.bf16.xpose.msra.mxu0 0
        %4462 = vmatprep.subr.bf16.mxu0 0
        %4463 = vmatpush2.bf16.xpose.msra.mxu0 0
        %4464 = vmatprep.subr.bf16.mxu0 0
        %4465 = vmatpush2.bf16.xpose.msra.mxu0 0
        %4466 = vmatprep.subr.bf16.mxu0 0
        %4467 = vmatpush2.bf16.xpose.msra.mxu0 0
        %4468 = vmatprep.mubr.bf16.mxu0 0
        %4469 = vmatmul.mubr.bf16.gmra.mxu0 %v4431
        %v4470 = vpop.f32.mrf.mxu0
        %v4471 = vadd.f32 %v4027, %v4470
        %v4472 = vpop.f32.mrf.mxu0
        %v4473 = vpop.f32.mrf.mxu0
        %v4474 = vadd.f32 %v4027, %v4473
        %v4475 = vpop.f32.mrf.mxu0
        %4476 = vdwg.mxu0
        %v4477 = vsel %vm1371, %v4471, -inf
        %4478 = vmax.xlane.f32.xlu0 %v4477
        %v4479 = vpop.xlane.xlu0 %4478
        %v4480 = vsel %vm1371, %v4474, -inf
        %4481 = vmax.xlane.f32.xlu0 %v4480
        %v4482 = vpop.xlane.xlu0 %4481
        %v4483 = vsub.f32 %v4471, %v4479
        %v4484 = vsub.f32 %v4474, %v4482
        %v4485 = vmul.f32 %v4483, 1.442695
        %v4486 = vpow.pop %v4485
        %v4487 = vmul.f32 %v4484, 1.442695
        %v4488 = vpow.pop %v4487
        %v4489 = vsel %vm1371, %v4486, 0.0
        %4490 = vadd.xlane.f32.xlu0 %v4489
        %v4491 = vpop.xlane.xlu0 %4490
        %v4492 = vsel %vm1371, %v4488, 0.0
        %4493 = vadd.xlane.f32.xlu0 %v4492
        %v4494 = vpop.xlane.xlu0 %4493
        %v4495 = vrcp.pop %v4491
        %v4496 = vrcp.pop %v4494
        %v4497 = vpack.c.bf16 %v4488, %v4486
        %4498 = vrot.lane.b32.xlu0 %v1313, 32
        %v4499 = vpop.permute.xlu0 %4498
        %v4502 = vsel %vm1371, %v4497, 0
        %4504 = vmatprep.subr.bf16.mxu0 0
        %4505 = vmatpush1.bf16.msra.mxu0 0
        %4506 = vmatprep.subr.bf16.mxu0 0
        %4507 = vmatpush1.bf16.msra.mxu0 0
        %4508 = vmatprep.subr.bf16.mxu0 0
        %4509 = vmatpush1.bf16.msra.mxu0 0
        %4510 = vmatprep.subr.bf16.mxu0 0
        %4511 = vmatpush1.bf16.msra.mxu0 0
        %4512 = vmatprep.subr.bf16.mxu0 0
        %4513 = vmatpush1.bf16.msra.mxu0 0
        %4514 = vmatprep.subr.bf16.mxu0 0
        %4515 = vmatpush1.bf16.msra.mxu0 0
        %4516 = vmatprep.subr.bf16.mxu0 0
        %4517 = vmatpush1.bf16.msra.mxu0 0
        %4518 = vmatprep.subr.bf16.mxu0 0
        %4519 = vmatpush1.bf16.msra.mxu0 %v4499
        %4520 = vmatprep.subr.bf16.mxu0 0
        %4521 = vmatpush2.bf16.msra.mxu0 0
        %4522 = vmatprep.subr.bf16.mxu0 0
        %4523 = vmatpush2.bf16.msra.mxu0 0
        %4524 = vmatprep.subr.bf16.mxu0 0
        %4525 = vmatpush2.bf16.msra.mxu0 0
        %4526 = vmatprep.subr.bf16.mxu0 0
        %4527 = vmatpush2.bf16.msra.mxu0 0
        %4528 = vmatprep.subr.bf16.mxu0 0
        %4529 = vmatpush2.bf16.msra.mxu0 0
        %4530 = vmatprep.subr.bf16.mxu0 0
        %4531 = vmatpush2.bf16.msra.mxu0 0
        %4532 = vmatprep.subr.bf16.mxu0 0
        %4533 = vmatpush2.bf16.msra.mxu0 0
        %4534 = vmatprep.subr.bf16.mxu0 0
        %4535 = vmatpush2.bf16.msra.mxu0 0
        %4536 = vmatprep.mubr.bf16.mxu0 0
        %4537 = vmatmul.mubr.bf16.gmra.mxu0 %v4502
        %v4538 = vpop.f32.mrf.mxu0
        %v4539 = vadd.f32 0.0, %v4538
        %v4540 = vpop.f32.mrf.mxu0
        %v4541 = vpop.f32.mrf.mxu0
        %v4542 = vadd.f32 0.0, %v4541
        %v4543 = vpop.f32.mrf.mxu0
        %4544 = vdwg.mxu0
        %v4545 = vmul.f32 %v4539, %v4495
        %v4546 = vmul.f32 %v4542, %v4496
        %v4547 = vpack.c.bf16 %v4546, %v4545
        %v4549 = vunpack.c.l.b16 %v4547
        %v4550 = vunpack.c.h.b16 %v4547
        %v4551 = vpack.c.b16 %v4549, %v4549
        %v4552 = vpack.c.b16 %v4550, %v4550
        %4553 = vrot.lane.b32.xlu0 %v4551, 96
        %v4554 = vpop.permute.xlu0 %4553
        %4555 = vrot.lane.b32.xlu0 %v4552, 96
        %v4556 = vpop.permute.xlu0 %4555
        %4559 = vst.msk [vmem:[#allocation3 + $0x28] sm:$0xf] %vm1858, %v4554
        %4560 = vst.msk [vmem:[#allocation3 + $0x2c] sm:$0xf] %vm1858, %v4556
        %s4561 = scalar_lea.vmem %s567, 6 [#allocation7]
        %v4562 = vld [vmem:[%s4561] sm:$0x1]
        %v4564 = vlaneseq
        %v4565 = vshrl.u32 %v4564, 7
        %v4566 = vsub.s32 0, %v4565
        %v4567 = vrot.slane %v4562, %v4566
        %v4570 = vsel %vm1323, %v1298, 0
        %v4573 = vsel %vm1323, %v1306, 0
        %4575 = vmatprep.subr.bf16.mxu0 0
        %4576 = vmatpush1.bf16.xpose.msra.mxu0 0
        %4577 = vmatprep.subr.bf16.mxu0 0
        %4578 = vmatpush1.bf16.xpose.msra.mxu0 0
        %4579 = vmatprep.subr.bf16.mxu0 0
        %4580 = vmatpush1.bf16.xpose.msra.mxu0 0
        %4581 = vmatprep.subr.bf16.mxu0 0
        %4582 = vmatpush1.bf16.xpose.msra.mxu0 0
        %4583 = vmatprep.subr.bf16.mxu0 0
        %4584 = vmatpush1.bf16.xpose.msra.mxu0 0
        %4585 = vmatprep.subr.bf16.mxu0 0
        %4586 = vmatpush1.bf16.xpose.msra.mxu0 0
        %4587 = vmatprep.subr.bf16.mxu0 0
        %4588 = vmatpush1.bf16.xpose.msra.mxu0 0
        %4589 = vmatprep.subr.bf16.mxu0 0
        %4590 = vmatpush1.bf16.xpose.msra.mxu0 %v4573
        %4591 = vmatprep.subr.bf16.mxu0 0
        %4592 = vmatpush2.bf16.xpose.msra.mxu0 0
        %4593 = vmatprep.subr.bf16.mxu0 0
        %4594 = vmatpush2.bf16.xpose.msra.mxu0 0
        %4595 = vmatprep.subr.bf16.mxu0 0
        %4596 = vmatpush2.bf16.xpose.msra.mxu0 0
        %4597 = vmatprep.subr.bf16.mxu0 0
        %4598 = vmatpush2.bf16.xpose.msra.mxu0 0
        %4599 = vmatprep.subr.bf16.mxu0 0
        %4600 = vmatpush2.bf16.xpose.msra.mxu0 0
        %4601 = vmatprep.subr.bf16.mxu0 0
        %4602 = vmatpush2.bf16.xpose.msra.mxu0 0
        %4603 = vmatprep.subr.bf16.mxu0 0
        %4604 = vmatpush2.bf16.xpose.msra.mxu0 0
        %4605 = vmatprep.subr.bf16.mxu0 0
        %4606 = vmatpush2.bf16.xpose.msra.mxu0 0
        %4607 = vmatprep.mubr.bf16.mxu0 0
        %4608 = vmatmul.mubr.bf16.gmra.mxu0 %v4570
        %v4609 = vpop.f32.mrf.mxu0
        %v4610 = vadd.f32 %v4567, %v4609
        %v4611 = vpop.f32.mrf.mxu0
        %v4612 = vpop.f32.mrf.mxu0
        %v4613 = vadd.f32 %v4567, %v4612
        %v4614 = vpop.f32.mrf.mxu0
        %4615 = vdwg.mxu0
        %v4616 = vsel %vm1371, %v4610, -inf
        %4617 = vmax.xlane.f32.xlu0 %v4616
        %v4618 = vpop.xlane.xlu0 %4617
        %v4619 = vsel %vm1371, %v4613, -inf
        %4620 = vmax.xlane.f32.xlu0 %v4619
        %v4621 = vpop.xlane.xlu0 %4620
        %v4622 = vsub.f32 %v4610, %v4618
        %v4623 = vsub.f32 %v4613, %v4621
        %v4624 = vmul.f32 %v4622, 1.442695
        %v4625 = vpow.pop %v4624
        %v4626 = vmul.f32 %v4623, 1.442695
        %v4627 = vpow.pop %v4626
        %v4628 = vsel %vm1371, %v4625, 0.0
        %4629 = vadd.xlane.f32.xlu0 %v4628
        %v4630 = vpop.xlane.xlu0 %4629
        %v4631 = vsel %vm1371, %v4627, 0.0
        %4632 = vadd.xlane.f32.xlu0 %v4631
        %v4633 = vpop.xlane.xlu0 %4632
        %v4634 = vrcp.pop %v4630
        %v4635 = vrcp.pop %v4633
        %v4636 = vpack.c.bf16 %v4627, %v4625
        %v4638 = vsel %vm1371, %v4636, 0
        %4640 = vmatprep.subr.bf16.mxu0 0
        %4641 = vmatpush1.bf16.msra.mxu0 0
        %4642 = vmatprep.subr.bf16.mxu0 0
        %4643 = vmatpush1.bf16.msra.mxu0 0
        %4644 = vmatprep.subr.bf16.mxu0 0
        %4645 = vmatpush1.bf16.msra.mxu0 0
        %4646 = vmatprep.subr.bf16.mxu0 0
        %4647 = vmatpush1.bf16.msra.mxu0 0
        %4648 = vmatprep.subr.bf16.mxu0 0
        %4649 = vmatpush1.bf16.msra.mxu0 0
        %4650 = vmatprep.subr.bf16.mxu0 0
        %4651 = vmatpush1.bf16.msra.mxu0 0
        %4652 = vmatprep.subr.bf16.mxu0 0
        %4653 = vmatpush1.bf16.msra.mxu0 0
        %4654 = vmatprep.subr.bf16.mxu0 0
        %4655 = vmatpush1.bf16.msra.mxu0 %v1314
        %4656 = vmatprep.subr.bf16.mxu0 0
        %4657 = vmatpush2.bf16.msra.mxu0 0
        %4658 = vmatprep.subr.bf16.mxu0 0
        %4659 = vmatpush2.bf16.msra.mxu0 0
        %4660 = vmatprep.subr.bf16.mxu0 0
        %4661 = vmatpush2.bf16.msra.mxu0 0
        %4662 = vmatprep.subr.bf16.mxu0 0
        %4663 = vmatpush2.bf16.msra.mxu0 0
        %4664 = vmatprep.subr.bf16.mxu0 0
        %4665 = vmatpush2.bf16.msra.mxu0 0
        %4666 = vmatprep.subr.bf16.mxu0 0
        %4667 = vmatpush2.bf16.msra.mxu0 0
        %4668 = vmatprep.subr.bf16.mxu0 0
        %4669 = vmatpush2.bf16.msra.mxu0 0
        %4670 = vmatprep.subr.bf16.mxu0 0
        %4671 = vmatpush2.bf16.msra.mxu0 0
        %4672 = vmatprep.mubr.bf16.mxu0 0
        %4673 = vmatmul.mubr.bf16.gmra.mxu0 %v4638
        %v4674 = vpop.f32.mrf.mxu0
        %v4675 = vadd.f32 0.0, %v4674
        %v4676 = vpop.f32.mrf.mxu0
        %v4677 = vpop.f32.mrf.mxu0
        %v4678 = vadd.f32 0.0, %v4677
        %v4679 = vpop.f32.mrf.mxu0
        %4680 = vdwg.mxu0
        %v4681 = vmul.f32 %v4675, %v4634
        %v4682 = vmul.f32 %v4678, %v4635
        %v4683 = vpack.c.bf16 %v4682, %v4681
        %v4685 = vunpack.c.l.b16 %v4683
        %v4686 = vunpack.c.h.b16 %v4683
        %v4687 = vpack.c.b16 %v4685, %v4685
        %v4688 = vpack.c.b16 %v4686, %v4686
        %4691 = vst.msk [vmem:[#allocation3 + $0x30] sm:$0xf] %vm1447, %v4687
        %4692 = vst.msk [vmem:[#allocation3 + $0x34] sm:$0xf] %vm1447, %v4688
        %4694 = vrot.lane.b32.xlu0 %v1298, 96
        %v4695 = vpop.permute.xlu0 %4694
        %4697 = vrot.lane.b32.xlu0 %v1306, 96
        %v4698 = vpop.permute.xlu0 %4697
        %v4700 = vsel %vm1323, %v4695, 0
        %v4703 = vsel %vm1323, %v4698, 0
        %4705 = vmatprep.subr.bf16.mxu0 0
        %4706 = vmatpush1.bf16.xpose.msra.mxu0 0
        %4707 = vmatprep.subr.bf16.mxu0 0
        %4708 = vmatpush1.bf16.xpose.msra.mxu0 0
        %4709 = vmatprep.subr.bf16.mxu0 0
        %4710 = vmatpush1.bf16.xpose.msra.mxu0 0
        %4711 = vmatprep.subr.bf16.mxu0 0
        %4712 = vmatpush1.bf16.xpose.msra.mxu0 0
        %4713 = vmatprep.subr.bf16.mxu0 0
        %4714 = vmatpush1.bf16.xpose.msra.mxu0 0
        %4715 = vmatprep.subr.bf16.mxu0 0
        %4716 = vmatpush1.bf16.xpose.msra.mxu0 0
        %4717 = vmatprep.subr.bf16.mxu0 0
        %4718 = vmatpush1.bf16.xpose.msra.mxu0 0
        %4719 = vmatprep.subr.bf16.mxu0 0
        %4720 = vmatpush1.bf16.xpose.msra.mxu0 %v4703
        %4721 = vmatprep.subr.bf16.mxu0 0
        %4722 = vmatpush2.bf16.xpose.msra.mxu0 0
        %4723 = vmatprep.subr.bf16.mxu0 0
        %4724 = vmatpush2.bf16.xpose.msra.mxu0 0
        %4725 = vmatprep.subr.bf16.mxu0 0
        %4726 = vmatpush2.bf16.xpose.msra.mxu0 0
        %4727 = vmatprep.subr.bf16.mxu0 0
        %4728 = vmatpush2.bf16.xpose.msra.mxu0 0
        %4729 = vmatprep.subr.bf16.mxu0 0
        %4730 = vmatpush2.bf16.xpose.msra.mxu0 0
        %4731 = vmatprep.subr.bf16.mxu0 0
        %4732 = vmatpush2.bf16.xpose.msra.mxu0 0
        %4733 = vmatprep.subr.bf16.mxu0 0
        %4734 = vmatpush2.bf16.xpose.msra.mxu0 0
        %4735 = vmatprep.subr.bf16.mxu0 0
        %4736 = vmatpush2.bf16.xpose.msra.mxu0 0
        %4737 = vmatprep.mubr.bf16.mxu0 0
        %4738 = vmatmul.mubr.bf16.gmra.mxu0 %v4700
        %v4739 = vpop.f32.mrf.mxu0
        %v4740 = vadd.f32 %v4567, %v4739
        %v4741 = vpop.f32.mrf.mxu0
        %v4742 = vpop.f32.mrf.mxu0
        %v4743 = vadd.f32 %v4567, %v4742
        %v4744 = vpop.f32.mrf.mxu0
        %4745 = vdwg.mxu0
        %v4746 = vsel %vm1371, %v4740, -inf
        %4747 = vmax.xlane.f32.xlu0 %v4746
        %v4748 = vpop.xlane.xlu0 %4747
        %v4749 = vsel %vm1371, %v4743, -inf
        %4750 = vmax.xlane.f32.xlu0 %v4749
        %v4751 = vpop.xlane.xlu0 %4750
        %v4752 = vsub.f32 %v4740, %v4748
        %v4753 = vsub.f32 %v4743, %v4751
        %v4754 = vmul.f32 %v4752, 1.442695
        %v4755 = vpow.pop %v4754
        %v4756 = vmul.f32 %v4753, 1.442695
        %v4757 = vpow.pop %v4756
        %v4758 = vsel %vm1371, %v4755, 0.0
        %4759 = vadd.xlane.f32.xlu0 %v4758
        %v4760 = vpop.xlane.xlu0 %4759
        %v4761 = vsel %vm1371, %v4757, 0.0
        %4762 = vadd.xlane.f32.xlu0 %v4761
        %v4763 = vpop.xlane.xlu0 %4762
        %v4764 = vrcp.pop %v4760
        %v4765 = vrcp.pop %v4763
        %v4766 = vpack.c.bf16 %v4757, %v4755
        %4768 = vrot.lane.b32.xlu0 %v1314, 96
        %v4769 = vpop.permute.xlu0 %4768
        %v4772 = vsel %vm1371, %v4766, 0
        %4774 = vmatprep.subr.bf16.mxu0 0
        %4775 = vmatpush1.bf16.msra.mxu0 0
        %4776 = vmatprep.subr.bf16.mxu0 0
        %4777 = vmatpush1.bf16.msra.mxu0 0
        %4778 = vmatprep.subr.bf16.mxu0 0
        %4779 = vmatpush1.bf16.msra.mxu0 0
        %4780 = vmatprep.subr.bf16.mxu0 0
        %4781 = vmatpush1.bf16.msra.mxu0 0
        %4782 = vmatprep.subr.bf16.mxu0 0
        %4783 = vmatpush1.bf16.msra.mxu0 0
        %4784 = vmatprep.subr.bf16.mxu0 0
        %4785 = vmatpush1.bf16.msra.mxu0 0
        %4786 = vmatprep.subr.bf16.mxu0 0
        %4787 = vmatpush1.bf16.msra.mxu0 0
        %4788 = vmatprep.subr.bf16.mxu0 0
        %4789 = vmatpush1.bf16.msra.mxu0 %v4769
        %4790 = vmatprep.subr.bf16.mxu0 0
        %4791 = vmatpush2.bf16.msra.mxu0 0
        %4792 = vmatprep.subr.bf16.mxu0 0
        %4793 = vmatpush2.bf16.msra.mxu0 0
        %4794 = vmatprep.subr.bf16.mxu0 0
        %4795 = vmatpush2.bf16.msra.mxu0 0
        %4796 = vmatprep.subr.bf16.mxu0 0
        %4797 = vmatpush2.bf16.msra.mxu0 0
        %4798 = vmatprep.subr.bf16.mxu0 0
        %4799 = vmatpush2.bf16.msra.mxu0 0
        %4800 = vmatprep.subr.bf16.mxu0 0
        %4801 = vmatpush2.bf16.msra.mxu0 0
        %4802 = vmatprep.subr.bf16.mxu0 0
        %4803 = vmatpush2.bf16.msra.mxu0 0
        %4804 = vmatprep.subr.bf16.mxu0 0
        %4805 = vmatpush2.bf16.msra.mxu0 0
        %4806 = vmatprep.mubr.bf16.mxu0 0
        %4807 = vmatmul.mubr.bf16.gmra.mxu0 %v4772
        %v4808 = vpop.f32.mrf.mxu0
        %v4809 = vadd.f32 0.0, %v4808
        %v4810 = vpop.f32.mrf.mxu0
        %v4811 = vpop.f32.mrf.mxu0
        %v4812 = vadd.f32 0.0, %v4811
        %v4813 = vpop.f32.mrf.mxu0
        %4814 = vdwg.mxu0
        %v4815 = vmul.f32 %v4809, %v4764
        %v4816 = vmul.f32 %v4812, %v4765
        %v4817 = vpack.c.bf16 %v4816, %v4815
        %v4819 = vunpack.c.l.b16 %v4817
        %v4820 = vunpack.c.h.b16 %v4817
        %v4821 = vpack.c.b16 %v4819, %v4819
        %v4822 = vpack.c.b16 %v4820, %v4820
        %4823 = vrot.lane.b32.xlu0 %v4821, 32
        %v4824 = vpop.permute.xlu0 %4823
        %4825 = vrot.lane.b32.xlu0 %v4822, 32
        %v4826 = vpop.permute.xlu0 %4825
        %4829 = vst.msk [vmem:[#allocation3 + $0x30] sm:$0xf] %vm1586, %v4824
        %4830 = vst.msk [vmem:[#allocation3 + $0x34] sm:$0xf] %vm1586, %v4826
        %4831 = vrot.lane.b32.xlu0 %v1298, 64
        %v4832 = vpop.permute.xlu0 %4831
        %4833 = vrot.lane.b32.xlu0 %v1306, 64
        %v4834 = vpop.permute.xlu0 %4833
        %v4836 = vsel %vm1323, %v4832, 0
        %v4839 = vsel %vm1323, %v4834, 0
        %4841 = vmatprep.subr.bf16.mxu0 0
        %4842 = vmatpush1.bf16.xpose.msra.mxu0 0
        %4843 = vmatprep.subr.bf16.mxu0 0
        %4844 = vmatpush1.bf16.xpose.msra.mxu0 0
        %4845 = vmatprep.subr.bf16.mxu0 0
        %4846 = vmatpush1.bf16.xpose.msra.mxu0 0
        %4847 = vmatprep.subr.bf16.mxu0 0
        %4848 = vmatpush1.bf16.xpose.msra.mxu0 0
        %4849 = vmatprep.subr.bf16.mxu0 0
        %4850 = vmatpush1.bf16.xpose.msra.mxu0 0
        %4851 = vmatprep.subr.bf16.mxu0 0
        %4852 = vmatpush1.bf16.xpose.msra.mxu0 0
        %4853 = vmatprep.subr.bf16.mxu0 0
        %4854 = vmatpush1.bf16.xpose.msra.mxu0 0
        %4855 = vmatprep.subr.bf16.mxu0 0
        %4856 = vmatpush1.bf16.xpose.msra.mxu0 %v4839
        %4857 = vmatprep.subr.bf16.mxu0 0
        %4858 = vmatpush2.bf16.xpose.msra.mxu0 0
        %4859 = vmatprep.subr.bf16.mxu0 0
        %4860 = vmatpush2.bf16.xpose.msra.mxu0 0
        %4861 = vmatprep.subr.bf16.mxu0 0
        %4862 = vmatpush2.bf16.xpose.msra.mxu0 0
        %4863 = vmatprep.subr.bf16.mxu0 0
        %4864 = vmatpush2.bf16.xpose.msra.mxu0 0
        %4865 = vmatprep.subr.bf16.mxu0 0
        %4866 = vmatpush2.bf16.xpose.msra.mxu0 0
        %4867 = vmatprep.subr.bf16.mxu0 0
        %4868 = vmatpush2.bf16.xpose.msra.mxu0 0
        %4869 = vmatprep.subr.bf16.mxu0 0
        %4870 = vmatpush2.bf16.xpose.msra.mxu0 0
        %4871 = vmatprep.subr.bf16.mxu0 0
        %4872 = vmatpush2.bf16.xpose.msra.mxu0 0
        %4873 = vmatprep.mubr.bf16.mxu0 0
        %4874 = vmatmul.mubr.bf16.gmra.mxu0 %v4836
        %v4875 = vpop.f32.mrf.mxu0
        %v4876 = vadd.f32 %v4567, %v4875
        %v4877 = vpop.f32.mrf.mxu0
        %v4878 = vpop.f32.mrf.mxu0
        %v4879 = vadd.f32 %v4567, %v4878
        %v4880 = vpop.f32.mrf.mxu0
        %4881 = vdwg.mxu0
        %v4882 = vsel %vm1371, %v4876, -inf
        %4883 = vmax.xlane.f32.xlu0 %v4882
        %v4884 = vpop.xlane.xlu0 %4883
        %v4885 = vsel %vm1371, %v4879, -inf
        %4886 = vmax.xlane.f32.xlu0 %v4885
        %v4887 = vpop.xlane.xlu0 %4886
        %v4888 = vsub.f32 %v4876, %v4884
        %v4889 = vsub.f32 %v4879, %v4887
        %v4890 = vmul.f32 %v4888, 1.442695
        %v4891 = vpow.pop %v4890
        %v4892 = vmul.f32 %v4889, 1.442695
        %v4893 = vpow.pop %v4892
        %v4894 = vsel %vm1371, %v4891, 0.0
        %4895 = vadd.xlane.f32.xlu0 %v4894
        %v4896 = vpop.xlane.xlu0 %4895
        %v4897 = vsel %vm1371, %v4893, 0.0
        %4898 = vadd.xlane.f32.xlu0 %v4897
        %v4899 = vpop.xlane.xlu0 %4898
        %v4900 = vrcp.pop %v4896
        %v4901 = vrcp.pop %v4899
        %v4902 = vpack.c.bf16 %v4893, %v4891
        %4903 = vrot.lane.b32.xlu0 %v1314, 64
        %v4904 = vpop.permute.xlu0 %4903
        %v4907 = vsel %vm1371, %v4902, 0
        %4909 = vmatprep.subr.bf16.mxu0 0
        %4910 = vmatpush1.bf16.msra.mxu0 0
        %4911 = vmatprep.subr.bf16.mxu0 0
        %4912 = vmatpush1.bf16.msra.mxu0 0
        %4913 = vmatprep.subr.bf16.mxu0 0
        %4914 = vmatpush1.bf16.msra.mxu0 0
        %4915 = vmatprep.subr.bf16.mxu0 0
        %4916 = vmatpush1.bf16.msra.mxu0 0
        %4917 = vmatprep.subr.bf16.mxu0 0
        %4918 = vmatpush1.bf16.msra.mxu0 0
        %4919 = vmatprep.subr.bf16.mxu0 0
        %4920 = vmatpush1.bf16.msra.mxu0 0
        %4921 = vmatprep.subr.bf16.mxu0 0
        %4922 = vmatpush1.bf16.msra.mxu0 0
        %4923 = vmatprep.subr.bf16.mxu0 0
        %4924 = vmatpush1.bf16.msra.mxu0 %v4904
        %4925 = vmatprep.subr.bf16.mxu0 0
        %4926 = vmatpush2.bf16.msra.mxu0 0
        %4927 = vmatprep.subr.bf16.mxu0 0
        %4928 = vmatpush2.bf16.msra.mxu0 0
        %4929 = vmatprep.subr.bf16.mxu0 0
        %4930 = vmatpush2.bf16.msra.mxu0 0
        %4931 = vmatprep.subr.bf16.mxu0 0
        %4932 = vmatpush2.bf16.msra.mxu0 0
        %4933 = vmatprep.subr.bf16.mxu0 0
        %4934 = vmatpush2.bf16.msra.mxu0 0
        %4935 = vmatprep.subr.bf16.mxu0 0
        %4936 = vmatpush2.bf16.msra.mxu0 0
        %4937 = vmatprep.subr.bf16.mxu0 0
        %4938 = vmatpush2.bf16.msra.mxu0 0
        %4939 = vmatprep.subr.bf16.mxu0 0
        %4940 = vmatpush2.bf16.msra.mxu0 0
        %4941 = vmatprep.mubr.bf16.mxu0 0
        %4942 = vmatmul.mubr.bf16.gmra.mxu0 %v4907
        %v4943 = vpop.f32.mrf.mxu0
        %v4944 = vadd.f32 0.0, %v4943
        %v4945 = vpop.f32.mrf.mxu0
        %v4946 = vpop.f32.mrf.mxu0
        %v4947 = vadd.f32 0.0, %v4946
        %v4948 = vpop.f32.mrf.mxu0
        %4949 = vdwg.mxu0
        %v4950 = vmul.f32 %v4944, %v4900
        %v4951 = vmul.f32 %v4947, %v4901
        %v4952 = vpack.c.bf16 %v4951, %v4950
        %v4954 = vunpack.c.l.b16 %v4952
        %v4955 = vunpack.c.h.b16 %v4952
        %v4956 = vpack.c.b16 %v4954, %v4954
        %v4957 = vpack.c.b16 %v4955, %v4955
        %4958 = vrot.lane.b32.xlu0 %v4956, 64
        %v4959 = vpop.permute.xlu0 %4958
        %4960 = vrot.lane.b32.xlu0 %v4957, 64
        %v4961 = vpop.permute.xlu0 %4960
        %4964 = vst.msk [vmem:[#allocation3 + $0x30] sm:$0xf] %vm1722, %v4959
        %4965 = vst.msk [vmem:[#allocation3 + $0x34] sm:$0xf] %vm1722, %v4961
        %4966 = vrot.lane.b32.xlu0 %v1298, 32
        %v4967 = vpop.permute.xlu0 %4966
        %4968 = vrot.lane.b32.xlu0 %v1306, 32
        %v4969 = vpop.permute.xlu0 %4968
        %v4971 = vsel %vm1323, %v4967, 0
        %v4974 = vsel %vm1323, %v4969, 0
        %4976 = vmatprep.subr.bf16.mxu0 0
        %4977 = vmatpush1.bf16.xpose.msra.mxu0 0
        %4978 = vmatprep.subr.bf16.mxu0 0
        %4979 = vmatpush1.bf16.xpose.msra.mxu0 0
        %4980 = vmatprep.subr.bf16.mxu0 0
        %4981 = vmatpush1.bf16.xpose.msra.mxu0 0
        %4982 = vmatprep.subr.bf16.mxu0 0
        %4983 = vmatpush1.bf16.xpose.msra.mxu0 0
        %4984 = vmatprep.subr.bf16.mxu0 0
        %4985 = vmatpush1.bf16.xpose.msra.mxu0 0
        %4986 = vmatprep.subr.bf16.mxu0 0
        %4987 = vmatpush1.bf16.xpose.msra.mxu0 0
        %4988 = vmatprep.subr.bf16.mxu0 0
        %4989 = vmatpush1.bf16.xpose.msra.mxu0 0
        %4990 = vmatprep.subr.bf16.mxu0 0
        %4991 = vmatpush1.bf16.xpose.msra.mxu0 %v4974
        %4992 = vmatprep.subr.bf16.mxu0 0
        %4993 = vmatpush2.bf16.xpose.msra.mxu0 0
        %4994 = vmatprep.subr.bf16.mxu0 0
        %4995 = vmatpush2.bf16.xpose.msra.mxu0 0
        %4996 = vmatprep.subr.bf16.mxu0 0
        %4997 = vmatpush2.bf16.xpose.msra.mxu0 0
        %4998 = vmatprep.subr.bf16.mxu0 0
        %4999 = vmatpush2.bf16.xpose.msra.mxu0 0
        %5000 = vmatprep.subr.bf16.mxu0 0
        %5001 = vmatpush2.bf16.xpose.msra.mxu0 0
        %5002 = vmatprep.subr.bf16.mxu0 0
        %5003 = vmatpush2.bf16.xpose.msra.mxu0 0
        %5004 = vmatprep.subr.bf16.mxu0 0
        %5005 = vmatpush2.bf16.xpose.msra.mxu0 0
        %5006 = vmatprep.subr.bf16.mxu0 0
        %5007 = vmatpush2.bf16.xpose.msra.mxu0 0
        %5008 = vmatprep.mubr.bf16.mxu0 0
        %5009 = vmatmul.mubr.bf16.gmra.mxu0 %v4971
        %v5010 = vpop.f32.mrf.mxu0
        %v5011 = vadd.f32 %v4567, %v5010
        %v5012 = vpop.f32.mrf.mxu0
        %v5013 = vpop.f32.mrf.mxu0
        %v5014 = vadd.f32 %v4567, %v5013
        %v5015 = vpop.f32.mrf.mxu0
        %5016 = vdwg.mxu0
        %v5017 = vsel %vm1371, %v5011, -inf
        %5018 = vmax.xlane.f32.xlu0 %v5017
        %v5019 = vpop.xlane.xlu0 %5018
        %v5020 = vsel %vm1371, %v5014, -inf
        %5021 = vmax.xlane.f32.xlu0 %v5020
        %v5022 = vpop.xlane.xlu0 %5021
        %v5023 = vsub.f32 %v5011, %v5019
        %v5024 = vsub.f32 %v5014, %v5022
        %v5025 = vmul.f32 %v5023, 1.442695
        %v5026 = vpow.pop %v5025
        %v5027 = vmul.f32 %v5024, 1.442695
        %v5028 = vpow.pop %v5027
        %v5029 = vsel %vm1371, %v5026, 0.0
        %5030 = vadd.xlane.f32.xlu0 %v5029
        %v5031 = vpop.xlane.xlu0 %5030
        %v5032 = vsel %vm1371, %v5028, 0.0
        %5033 = vadd.xlane.f32.xlu0 %v5032
        %v5034 = vpop.xlane.xlu0 %5033
        %v5035 = vrcp.pop %v5031
        %v5036 = vrcp.pop %v5034
        %v5037 = vpack.c.bf16 %v5028, %v5026
        %5038 = vrot.lane.b32.xlu0 %v1314, 32
        %v5039 = vpop.permute.xlu0 %5038
        %v5042 = vsel %vm1371, %v5037, 0
        %5044 = vmatprep.subr.bf16.mxu0 0
        %5045 = vmatpush1.bf16.msra.mxu0 0
        %5046 = vmatprep.subr.bf16.mxu0 0
        %5047 = vmatpush1.bf16.msra.mxu0 0
        %5048 = vmatprep.subr.bf16.mxu0 0
        %5049 = vmatpush1.bf16.msra.mxu0 0
        %5050 = vmatprep.subr.bf16.mxu0 0
        %5051 = vmatpush1.bf16.msra.mxu0 0
        %5052 = vmatprep.subr.bf16.mxu0 0
        %5053 = vmatpush1.bf16.msra.mxu0 0
        %5054 = vmatprep.subr.bf16.mxu0 0
        %5055 = vmatpush1.bf16.msra.mxu0 0
        %5056 = vmatprep.subr.bf16.mxu0 0
        %5057 = vmatpush1.bf16.msra.mxu0 0
        %5058 = vmatprep.subr.bf16.mxu0 0
        %5059 = vmatpush1.bf16.msra.mxu0 %v5039
        %5060 = vmatprep.subr.bf16.mxu0 0
        %5061 = vmatpush2.bf16.msra.mxu0 0
        %5062 = vmatprep.subr.bf16.mxu0 0
        %5063 = vmatpush2.bf16.msra.mxu0 0
        %5064 = vmatprep.subr.bf16.mxu0 0
        %5065 = vmatpush2.bf16.msra.mxu0 0
        %5066 = vmatprep.subr.bf16.mxu0 0
        %5067 = vmatpush2.bf16.msra.mxu0 0
        %5068 = vmatprep.subr.bf16.mxu0 0
        %5069 = vmatpush2.bf16.msra.mxu0 0
        %5070 = vmatprep.subr.bf16.mxu0 0
        %5071 = vmatpush2.bf16.msra.mxu0 0
        %5072 = vmatprep.subr.bf16.mxu0 0
        %5073 = vmatpush2.bf16.msra.mxu0 0
        %5074 = vmatprep.subr.bf16.mxu0 0
        %5075 = vmatpush2.bf16.msra.mxu0 0
        %5076 = vmatprep.mubr.bf16.mxu0 0
        %5077 = vmatmul.mubr.bf16.gmra.mxu0 %v5042
        %v5078 = vpop.f32.mrf.mxu0
        %v5079 = vadd.f32 0.0, %v5078
        %v5080 = vpop.f32.mrf.mxu0
        %v5081 = vpop.f32.mrf.mxu0
        %v5082 = vadd.f32 0.0, %v5081
        %v5083 = vpop.f32.mrf.mxu0
        %5084 = vdwg.mxu0
        %v5085 = vmul.f32 %v5079, %v5035
        %v5086 = vmul.f32 %v5082, %v5036
        %v5087 = vpack.c.bf16 %v5086, %v5085
        %v5089 = vunpack.c.l.b16 %v5087
        %v5090 = vunpack.c.h.b16 %v5087
        %v5091 = vpack.c.b16 %v5089, %v5089
        %v5092 = vpack.c.b16 %v5090, %v5090
        %5093 = vrot.lane.b32.xlu0 %v5091, 96
        %v5094 = vpop.permute.xlu0 %5093
        %5095 = vrot.lane.b32.xlu0 %v5092, 96
        %v5096 = vpop.permute.xlu0 %5095
        %5099 = vst.msk [vmem:[#allocation3 + $0x30] sm:$0xf] %vm1858, %v5094
        %5100 = vst.msk [vmem:[#allocation3 + $0x34] sm:$0xf] %vm1858, %v5096
        %s5101 = scalar_lea.vmem %s567, 7 [#allocation7]
        %v5102 = vld [vmem:[%s5101] sm:$0x1]
        %v5104 = vlaneseq
        %v5105 = vshrl.u32 %v5104, 7
        %v5106 = vsub.s32 0, %v5105
        %v5107 = vrot.slane %v5102, %v5106
        %v5110 = vsel %vm1323, %v1299, 0
        %v5113 = vsel %vm1323, %v1307, 0
        %5115 = vmatprep.subr.bf16.mxu0 0
        %5116 = vmatpush1.bf16.xpose.msra.mxu0 0
        %5117 = vmatprep.subr.bf16.mxu0 0
        %5118 = vmatpush1.bf16.xpose.msra.mxu0 0
        %5119 = vmatprep.subr.bf16.mxu0 0
        %5120 = vmatpush1.bf16.xpose.msra.mxu0 0
        %5121 = vmatprep.subr.bf16.mxu0 0
        %5122 = vmatpush1.bf16.xpose.msra.mxu0 0
        %5123 = vmatprep.subr.bf16.mxu0 0
        %5124 = vmatpush1.bf16.xpose.msra.mxu0 0
        %5125 = vmatprep.subr.bf16.mxu0 0
        %5126 = vmatpush1.bf16.xpose.msra.mxu0 0
        %5127 = vmatprep.subr.bf16.mxu0 0
        %5128 = vmatpush1.bf16.xpose.msra.mxu0 0
        %5129 = vmatprep.subr.bf16.mxu0 0
        %5130 = vmatpush1.bf16.xpose.msra.mxu0 %v5113
        %5131 = vmatprep.subr.bf16.mxu0 0
        %5132 = vmatpush2.bf16.xpose.msra.mxu0 0
        %5133 = vmatprep.subr.bf16.mxu0 0
        %5134 = vmatpush2.bf16.xpose.msra.mxu0 0
        %5135 = vmatprep.subr.bf16.mxu0 0
        %5136 = vmatpush2.bf16.xpose.msra.mxu0 0
        %5137 = vmatprep.subr.bf16.mxu0 0
        %5138 = vmatpush2.bf16.xpose.msra.mxu0 0
        %5139 = vmatprep.subr.bf16.mxu0 0
        %5140 = vmatpush2.bf16.xpose.msra.mxu0 0
        %5141 = vmatprep.subr.bf16.mxu0 0
        %5142 = vmatpush2.bf16.xpose.msra.mxu0 0
        %5143 = vmatprep.subr.bf16.mxu0 0
        %5144 = vmatpush2.bf16.xpose.msra.mxu0 0
        %5145 = vmatprep.subr.bf16.mxu0 0
        %5146 = vmatpush2.bf16.xpose.msra.mxu0 0
        %5147 = vmatprep.mubr.bf16.mxu0 0
        %5148 = vmatmul.mubr.bf16.gmra.mxu0 %v5110
        %v5149 = vpop.f32.mrf.mxu0
        %v5150 = vadd.f32 %v5107, %v5149
        %v5151 = vpop.f32.mrf.mxu0
        %v5152 = vpop.f32.mrf.mxu0
        %v5153 = vadd.f32 %v5107, %v5152
        %v5154 = vpop.f32.mrf.mxu0
        %5155 = vdwg.mxu0
        %v5156 = vsel %vm1371, %v5150, -inf
        %5157 = vmax.xlane.f32.xlu0 %v5156
        %v5158 = vpop.xlane.xlu0 %5157
        %v5159 = vsel %vm1371, %v5153, -inf
        %5160 = vmax.xlane.f32.xlu0 %v5159
        %v5161 = vpop.xlane.xlu0 %5160
        %v5162 = vsub.f32 %v5150, %v5158
        %v5163 = vsub.f32 %v5153, %v5161
        %v5164 = vmul.f32 %v5162, 1.442695
        %v5165 = vpow.pop %v5164
        %v5166 = vmul.f32 %v5163, 1.442695
        %v5167 = vpow.pop %v5166
        %v5168 = vsel %vm1371, %v5165, 0.0
        %5169 = vadd.xlane.f32.xlu0 %v5168
        %v5170 = vpop.xlane.xlu0 %5169
        %v5171 = vsel %vm1371, %v5167, 0.0
        %5172 = vadd.xlane.f32.xlu0 %v5171
        %v5173 = vpop.xlane.xlu0 %5172
        %v5174 = vrcp.pop %v5170
        %v5175 = vrcp.pop %v5173
        %v5176 = vpack.c.bf16 %v5167, %v5165
        %v5178 = vsel %vm1371, %v5176, 0
        %5180 = vmatprep.subr.bf16.mxu0 0
        %5181 = vmatpush1.bf16.msra.mxu0 0
        %5182 = vmatprep.subr.bf16.mxu0 0
        %5183 = vmatpush1.bf16.msra.mxu0 0
        %5184 = vmatprep.subr.bf16.mxu0 0
        %5185 = vmatpush1.bf16.msra.mxu0 0
        %5186 = vmatprep.subr.bf16.mxu0 0
        %5187 = vmatpush1.bf16.msra.mxu0 0
        %5188 = vmatprep.subr.bf16.mxu0 0
        %5189 = vmatpush1.bf16.msra.mxu0 0
        %5190 = vmatprep.subr.bf16.mxu0 0
        %5191 = vmatpush1.bf16.msra.mxu0 0
        %5192 = vmatprep.subr.bf16.mxu0 0
        %5193 = vmatpush1.bf16.msra.mxu0 0
        %5194 = vmatprep.subr.bf16.mxu0 0
        %5195 = vmatpush1.bf16.msra.mxu0 %v1315
        %5196 = vmatprep.subr.bf16.mxu0 0
        %5197 = vmatpush2.bf16.msra.mxu0 0
        %5198 = vmatprep.subr.bf16.mxu0 0
        %5199 = vmatpush2.bf16.msra.mxu0 0
        %5200 = vmatprep.subr.bf16.mxu0 0
        %5201 = vmatpush2.bf16.msra.mxu0 0
        %5202 = vmatprep.subr.bf16.mxu0 0
        %5203 = vmatpush2.bf16.msra.mxu0 0
        %5204 = vmatprep.subr.bf16.mxu0 0
        %5205 = vmatpush2.bf16.msra.mxu0 0
        %5206 = vmatprep.subr.bf16.mxu0 0
        %5207 = vmatpush2.bf16.msra.mxu0 0
        %5208 = vmatprep.subr.bf16.mxu0 0
        %5209 = vmatpush2.bf16.msra.mxu0 0
        %5210 = vmatprep.subr.bf16.mxu0 0
        %5211 = vmatpush2.bf16.msra.mxu0 0
        %5212 = vmatprep.mubr.bf16.mxu0 0
        %5213 = vmatmul.mubr.bf16.gmra.mxu0 %v5178
        %v5214 = vpop.f32.mrf.mxu0
        %v5215 = vadd.f32 0.0, %v5214
        %v5216 = vpop.f32.mrf.mxu0
        %v5217 = vpop.f32.mrf.mxu0
        %v5218 = vadd.f32 0.0, %v5217
        %v5219 = vpop.f32.mrf.mxu0
        %5220 = vdwg.mxu0
        %v5221 = vmul.f32 %v5215, %v5174
        %v5222 = vmul.f32 %v5218, %v5175
        %v5223 = vpack.c.bf16 %v5222, %v5221
        %v5225 = vunpack.c.l.b16 %v5223
        %v5226 = vunpack.c.h.b16 %v5223
        %v5227 = vpack.c.b16 %v5225, %v5225
        %v5228 = vpack.c.b16 %v5226, %v5226
        %5231 = vst.msk [vmem:[#allocation3 + $0x38] sm:$0xf] %vm1447, %v5227
        %5232 = vst.msk [vmem:[#allocation3 + $0x3c] sm:$0xf] %vm1447, %v5228
        %5234 = vrot.lane.b32.xlu0 %v1299, 96
        %v5235 = vpop.permute.xlu0 %5234
        %5237 = vrot.lane.b32.xlu0 %v1307, 96
        %v5238 = vpop.permute.xlu0 %5237
        %v5240 = vsel %vm1323, %v5235, 0
        %v5243 = vsel %vm1323, %v5238, 0
        %5245 = vmatprep.subr.bf16.mxu0 0
        %5246 = vmatpush1.bf16.xpose.msra.mxu0 0
        %5247 = vmatprep.subr.bf16.mxu0 0
        %5248 = vmatpush1.bf16.xpose.msra.mxu0 0
        %5249 = vmatprep.subr.bf16.mxu0 0
        %5250 = vmatpush1.bf16.xpose.msra.mxu0 0
        %5251 = vmatprep.subr.bf16.mxu0 0
        %5252 = vmatpush1.bf16.xpose.msra.mxu0 0
        %5253 = vmatprep.subr.bf16.mxu0 0
        %5254 = vmatpush1.bf16.xpose.msra.mxu0 0
        %5255 = vmatprep.subr.bf16.mxu0 0
        %5256 = vmatpush1.bf16.xpose.msra.mxu0 0
        %5257 = vmatprep.subr.bf16.mxu0 0
        %5258 = vmatpush1.bf16.xpose.msra.mxu0 0
        %5259 = vmatprep.subr.bf16.mxu0 0
        %5260 = vmatpush1.bf16.xpose.msra.mxu0 %v5243
        %5261 = vmatprep.subr.bf16.mxu0 0
        %5262 = vmatpush2.bf16.xpose.msra.mxu0 0
        %5263 = vmatprep.subr.bf16.mxu0 0
        %5264 = vmatpush2.bf16.xpose.msra.mxu0 0
        %5265 = vmatprep.subr.bf16.mxu0 0
        %5266 = vmatpush2.bf16.xpose.msra.mxu0 0
        %5267 = vmatprep.subr.bf16.mxu0 0
        %5268 = vmatpush2.bf16.xpose.msra.mxu0 0
        %5269 = vmatprep.subr.bf16.mxu0 0
        %5270 = vmatpush2.bf16.xpose.msra.mxu0 0
        %5271 = vmatprep.subr.bf16.mxu0 0
        %5272 = vmatpush2.bf16.xpose.msra.mxu0 0
        %5273 = vmatprep.subr.bf16.mxu0 0
        %5274 = vmatpush2.bf16.xpose.msra.mxu0 0
        %5275 = vmatprep.subr.bf16.mxu0 0
        %5276 = vmatpush2.bf16.xpose.msra.mxu0 0
        %5277 = vmatprep.mubr.bf16.mxu0 0
        %5278 = vmatmul.mubr.bf16.gmra.mxu0 %v5240
        %v5279 = vpop.f32.mrf.mxu0
        %v5280 = vadd.f32 %v5107, %v5279
        %v5281 = vpop.f32.mrf.mxu0
        %v5282 = vpop.f32.mrf.mxu0
        %v5283 = vadd.f32 %v5107, %v5282
        %v5284 = vpop.f32.mrf.mxu0
        %5285 = vdwg.mxu0
        %v5286 = vsel %vm1371, %v5280, -inf
        %5287 = vmax.xlane.f32.xlu0 %v5286
        %v5288 = vpop.xlane.xlu0 %5287
        %v5289 = vsel %vm1371, %v5283, -inf
        %5290 = vmax.xlane.f32.xlu0 %v5289
        %v5291 = vpop.xlane.xlu0 %5290
        %v5292 = vsub.f32 %v5280, %v5288
        %v5293 = vsub.f32 %v5283, %v5291
        %v5294 = vmul.f32 %v5292, 1.442695
        %v5295 = vpow.pop %v5294
        %v5296 = vmul.f32 %v5293, 1.442695
        %v5297 = vpow.pop %v5296
        %v5298 = vsel %vm1371, %v5295, 0.0
        %5299 = vadd.xlane.f32.xlu0 %v5298
        %v5300 = vpop.xlane.xlu0 %5299
        %v5301 = vsel %vm1371, %v5297, 0.0
        %5302 = vadd.xlane.f32.xlu0 %v5301
        %v5303 = vpop.xlane.xlu0 %5302
        %v5304 = vrcp.pop %v5300
        %v5305 = vrcp.pop %v5303
        %v5306 = vpack.c.bf16 %v5297, %v5295
        %5308 = vrot.lane.b32.xlu0 %v1315, 96
        %v5309 = vpop.permute.xlu0 %5308
        %v5312 = vsel %vm1371, %v5306, 0
        %5314 = vmatprep.subr.bf16.mxu0 0
        %5315 = vmatpush1.bf16.msra.mxu0 0
        %5316 = vmatprep.subr.bf16.mxu0 0
        %5317 = vmatpush1.bf16.msra.mxu0 0
        %5318 = vmatprep.subr.bf16.mxu0 0
        %5319 = vmatpush1.bf16.msra.mxu0 0
        %5320 = vmatprep.subr.bf16.mxu0 0
        %5321 = vmatpush1.bf16.msra.mxu0 0
        %5322 = vmatprep.subr.bf16.mxu0 0
        %5323 = vmatpush1.bf16.msra.mxu0 0
        %5324 = vmatprep.subr.bf16.mxu0 0
        %5325 = vmatpush1.bf16.msra.mxu0 0
        %5326 = vmatprep.subr.bf16.mxu0 0
        %5327 = vmatpush1.bf16.msra.mxu0 0
        %5328 = vmatprep.subr.bf16.mxu0 0
        %5329 = vmatpush1.bf16.msra.mxu0 %v5309
        %5330 = vmatprep.subr.bf16.mxu0 0
        %5331 = vmatpush2.bf16.msra.mxu0 0
        %5332 = vmatprep.subr.bf16.mxu0 0
        %5333 = vmatpush2.bf16.msra.mxu0 0
        %5334 = vmatprep.subr.bf16.mxu0 0
        %5335 = vmatpush2.bf16.msra.mxu0 0
        %5336 = vmatprep.subr.bf16.mxu0 0
        %5337 = vmatpush2.bf16.msra.mxu0 0
        %5338 = vmatprep.subr.bf16.mxu0 0
        %5339 = vmatpush2.bf16.msra.mxu0 0
        %5340 = vmatprep.subr.bf16.mxu0 0
        %5341 = vmatpush2.bf16.msra.mxu0 0
        %5342 = vmatprep.subr.bf16.mxu0 0
        %5343 = vmatpush2.bf16.msra.mxu0 0
        %5344 = vmatprep.subr.bf16.mxu0 0
        %5345 = vmatpush2.bf16.msra.mxu0 0
        %5346 = vmatprep.mubr.bf16.mxu0 0
        %5347 = vmatmul.mubr.bf16.gmra.mxu0 %v5312
        %v5348 = vpop.f32.mrf.mxu0
        %v5349 = vadd.f32 0.0, %v5348
        %v5350 = vpop.f32.mrf.mxu0
        %v5351 = vpop.f32.mrf.mxu0
        %v5352 = vadd.f32 0.0, %v5351
        %v5353 = vpop.f32.mrf.mxu0
        %5354 = vdwg.mxu0
        %v5355 = vmul.f32 %v5349, %v5304
        %v5356 = vmul.f32 %v5352, %v5305
        %v5357 = vpack.c.bf16 %v5356, %v5355
        %v5359 = vunpack.c.l.b16 %v5357
        %v5360 = vunpack.c.h.b16 %v5357
        %v5361 = vpack.c.b16 %v5359, %v5359
        %v5362 = vpack.c.b16 %v5360, %v5360
        %5363 = vrot.lane.b32.xlu0 %v5361, 32
        %v5364 = vpop.permute.xlu0 %5363
        %5365 = vrot.lane.b32.xlu0 %v5362, 32
        %v5366 = vpop.permute.xlu0 %5365
        %5369 = vst.msk [vmem:[#allocation3 + $0x38] sm:$0xf] %vm1586, %v5364
        %5370 = vst.msk [vmem:[#allocation3 + $0x3c] sm:$0xf] %vm1586, %v5366
        %5371 = vrot.lane.b32.xlu0 %v1299, 64
        %v5372 = vpop.permute.xlu0 %5371
        %5373 = vrot.lane.b32.xlu0 %v1307, 64
        %v5374 = vpop.permute.xlu0 %5373
        %v5376 = vsel %vm1323, %v5372, 0
        %v5379 = vsel %vm1323, %v5374, 0
        %5381 = vmatprep.subr.bf16.mxu0 0
        %5382 = vmatpush1.bf16.xpose.msra.mxu0 0
        %5383 = vmatprep.subr.bf16.mxu0 0
        %5384 = vmatpush1.bf16.xpose.msra.mxu0 0
        %5385 = vmatprep.subr.bf16.mxu0 0
        %5386 = vmatpush1.bf16.xpose.msra.mxu0 0
        %5387 = vmatprep.subr.bf16.mxu0 0
        %5388 = vmatpush1.bf16.xpose.msra.mxu0 0
        %5389 = vmatprep.subr.bf16.mxu0 0
        %5390 = vmatpush1.bf16.xpose.msra.mxu0 0
        %5391 = vmatprep.subr.bf16.mxu0 0
        %5392 = vmatpush1.bf16.xpose.msra.mxu0 0
        %5393 = vmatprep.subr.bf16.mxu0 0
        %5394 = vmatpush1.bf16.xpose.msra.mxu0 0
        %5395 = vmatprep.subr.bf16.mxu0 0
        %5396 = vmatpush1.bf16.xpose.msra.mxu0 %v5379
        %5397 = vmatprep.subr.bf16.mxu0 0
        %5398 = vmatpush2.bf16.xpose.msra.mxu0 0
        %5399 = vmatprep.subr.bf16.mxu0 0
        %5400 = vmatpush2.bf16.xpose.msra.mxu0 0
        %5401 = vmatprep.subr.bf16.mxu0 0
        %5402 = vmatpush2.bf16.xpose.msra.mxu0 0
        %5403 = vmatprep.subr.bf16.mxu0 0
        %5404 = vmatpush2.bf16.xpose.msra.mxu0 0
        %5405 = vmatprep.subr.bf16.mxu0 0
        %5406 = vmatpush2.bf16.xpose.msra.mxu0 0
        %5407 = vmatprep.subr.bf16.mxu0 0
        %5408 = vmatpush2.bf16.xpose.msra.mxu0 0
        %5409 = vmatprep.subr.bf16.mxu0 0
        %5410 = vmatpush2.bf16.xpose.msra.mxu0 0
        %5411 = vmatprep.subr.bf16.mxu0 0
        %5412 = vmatpush2.bf16.xpose.msra.mxu0 0
        %5413 = vmatprep.mubr.bf16.mxu0 0
        %5414 = vmatmul.mubr.bf16.gmra.mxu0 %v5376
        %v5415 = vpop.f32.mrf.mxu0
        %v5416 = vadd.f32 %v5107, %v5415
        %v5417 = vpop.f32.mrf.mxu0
        %v5418 = vpop.f32.mrf.mxu0
        %v5419 = vadd.f32 %v5107, %v5418
        %v5420 = vpop.f32.mrf.mxu0
        %5421 = vdwg.mxu0
        %v5422 = vsel %vm1371, %v5416, -inf
        %5423 = vmax.xlane.f32.xlu0 %v5422
        %v5424 = vpop.xlane.xlu0 %5423
        %v5425 = vsel %vm1371, %v5419, -inf
        %5426 = vmax.xlane.f32.xlu0 %v5425
        %v5427 = vpop.xlane.xlu0 %5426
        %v5428 = vsub.f32 %v5416, %v5424
        %v5429 = vsub.f32 %v5419, %v5427
        %v5430 = vmul.f32 %v5428, 1.442695
        %v5431 = vpow.pop %v5430
        %v5432 = vmul.f32 %v5429, 1.442695
        %v5433 = vpow.pop %v5432
        %v5434 = vsel %vm1371, %v5431, 0.0
        %5435 = vadd.xlane.f32.xlu0 %v5434
        %v5436 = vpop.xlane.xlu0 %5435
        %v5437 = vsel %vm1371, %v5433, 0.0
        %5438 = vadd.xlane.f32.xlu0 %v5437
        %v5439 = vpop.xlane.xlu0 %5438
        %v5440 = vrcp.pop %v5436
        %v5441 = vrcp.pop %v5439
        %v5442 = vpack.c.bf16 %v5433, %v5431
        %5443 = vrot.lane.b32.xlu0 %v1315, 64
        %v5444 = vpop.permute.xlu0 %5443
        %v5447 = vsel %vm1371, %v5442, 0
        %5449 = vmatprep.subr.bf16.mxu0 0
        %5450 = vmatpush1.bf16.msra.mxu0 0
        %5451 = vmatprep.subr.bf16.mxu0 0
        %5452 = vmatpush1.bf16.msra.mxu0 0
        %5453 = vmatprep.subr.bf16.mxu0 0
        %5454 = vmatpush1.bf16.msra.mxu0 0
        %5455 = vmatprep.subr.bf16.mxu0 0
        %5456 = vmatpush1.bf16.msra.mxu0 0
        %5457 = vmatprep.subr.bf16.mxu0 0
        %5458 = vmatpush1.bf16.msra.mxu0 0
        %5459 = vmatprep.subr.bf16.mxu0 0
        %5460 = vmatpush1.bf16.msra.mxu0 0
        %5461 = vmatprep.subr.bf16.mxu0 0
        %5462 = vmatpush1.bf16.msra.mxu0 0
        %5463 = vmatprep.subr.bf16.mxu0 0
        %5464 = vmatpush1.bf16.msra.mxu0 %v5444
        %5465 = vmatprep.subr.bf16.mxu0 0
        %5466 = vmatpush2.bf16.msra.mxu0 0
        %5467 = vmatprep.subr.bf16.mxu0 0
        %5468 = vmatpush2.bf16.msra.mxu0 0
        %5469 = vmatprep.subr.bf16.mxu0 0
        %5470 = vmatpush2.bf16.msra.mxu0 0
        %5471 = vmatprep.subr.bf16.mxu0 0
        %5472 = vmatpush2.bf16.msra.mxu0 0
        %5473 = vmatprep.subr.bf16.mxu0 0
        %5474 = vmatpush2.bf16.msra.mxu0 0
        %5475 = vmatprep.subr.bf16.mxu0 0
        %5476 = vmatpush2.bf16.msra.mxu0 0
        %5477 = vmatprep.subr.bf16.mxu0 0
        %5478 = vmatpush2.bf16.msra.mxu0 0
        %5479 = vmatprep.subr.bf16.mxu0 0
        %5480 = vmatpush2.bf16.msra.mxu0 0
        %5481 = vmatprep.mubr.bf16.mxu0 0
        %5482 = vmatmul.mubr.bf16.gmra.mxu0 %v5447
        %v5483 = vpop.f32.mrf.mxu0
        %v5484 = vadd.f32 0.0, %v5483
        %v5485 = vpop.f32.mrf.mxu0
        %v5486 = vpop.f32.mrf.mxu0
        %v5487 = vadd.f32 0.0, %v5486
        %v5488 = vpop.f32.mrf.mxu0
        %5489 = vdwg.mxu0
        %v5490 = vmul.f32 %v5484, %v5440
        %v5491 = vmul.f32 %v5487, %v5441
        %v5492 = vpack.c.bf16 %v5491, %v5490
        %v5494 = vunpack.c.l.b16 %v5492
        %v5495 = vunpack.c.h.b16 %v5492
        %v5496 = vpack.c.b16 %v5494, %v5494
        %v5497 = vpack.c.b16 %v5495, %v5495
        %5498 = vrot.lane.b32.xlu0 %v5496, 64
        %v5499 = vpop.permute.xlu0 %5498
        %5500 = vrot.lane.b32.xlu0 %v5497, 64
        %v5501 = vpop.permute.xlu0 %5500
        %5504 = vst.msk [vmem:[#allocation3 + $0x38] sm:$0xf] %vm1722, %v5499
        %5505 = vst.msk [vmem:[#allocation3 + $0x3c] sm:$0xf] %vm1722, %v5501
        %5506 = vrot.lane.b32.xlu0 %v1299, 32
        %v5507 = vpop.permute.xlu0 %5506
        %5508 = vrot.lane.b32.xlu0 %v1307, 32
        %v5509 = vpop.permute.xlu0 %5508
        %v5511 = vsel %vm1323, %v5507, 0
        %v5514 = vsel %vm1323, %v5509, 0
        %5516 = vmatprep.subr.bf16.mxu0 0
        %5517 = vmatpush1.bf16.xpose.msra.mxu0 0
        %5518 = vmatprep.subr.bf16.mxu0 0
        %5519 = vmatpush1.bf16.xpose.msra.mxu0 0
        %5520 = vmatprep.subr.bf16.mxu0 0
        %5521 = vmatpush1.bf16.xpose.msra.mxu0 0
        %5522 = vmatprep.subr.bf16.mxu0 0
        %5523 = vmatpush1.bf16.xpose.msra.mxu0 0
        %5524 = vmatprep.subr.bf16.mxu0 0
        %5525 = vmatpush1.bf16.xpose.msra.mxu0 0
        %5526 = vmatprep.subr.bf16.mxu0 0
        %5527 = vmatpush1.bf16.xpose.msra.mxu0 0
        %5528 = vmatprep.subr.bf16.mxu0 0
        %5529 = vmatpush1.bf16.xpose.msra.mxu0 0
        %5530 = vmatprep.subr.bf16.mxu0 0
        %5531 = vmatpush1.bf16.xpose.msra.mxu0 %v5514
        %5532 = vmatprep.subr.bf16.mxu0 0
        %5533 = vmatpush2.bf16.xpose.msra.mxu0 0
        %5534 = vmatprep.subr.bf16.mxu0 0
        %5535 = vmatpush2.bf16.xpose.msra.mxu0 0
        %5536 = vmatprep.subr.bf16.mxu0 0
        %5537 = vmatpush2.bf16.xpose.msra.mxu0 0
        %5538 = vmatprep.subr.bf16.mxu0 0
        %5539 = vmatpush2.bf16.xpose.msra.mxu0 0
        %5540 = vmatprep.subr.bf16.mxu0 0
        %5541 = vmatpush2.bf16.xpose.msra.mxu0 0
        %5542 = vmatprep.subr.bf16.mxu0 0
        %5543 = vmatpush2.bf16.xpose.msra.mxu0 0
        %5544 = vmatprep.subr.bf16.mxu0 0
        %5545 = vmatpush2.bf16.xpose.msra.mxu0 0
        %5546 = vmatprep.subr.bf16.mxu0 0
        %5547 = vmatpush2.bf16.xpose.msra.mxu0 0
        %5548 = vmatprep.mubr.bf16.mxu0 0
        %5549 = vmatmul.mubr.bf16.gmra.mxu0 %v5511
        %v5550 = vpop.f32.mrf.mxu0
        %v5551 = vadd.f32 %v5107, %v5550
        %v5552 = vpop.f32.mrf.mxu0
        %v5553 = vpop.f32.mrf.mxu0
        %v5554 = vadd.f32 %v5107, %v5553
        %v5555 = vpop.f32.mrf.mxu0
        %5556 = vdwg.mxu0
        %v5557 = vsel %vm1371, %v5551, -inf
        %5558 = vmax.xlane.f32.xlu0 %v5557
        %v5559 = vpop.xlane.xlu0 %5558
        %v5560 = vsel %vm1371, %v5554, -inf
        %5561 = vmax.xlane.f32.xlu0 %v5560
        %v5562 = vpop.xlane.xlu0 %5561
        %v5563 = vsub.f32 %v5551, %v5559
        %v5564 = vsub.f32 %v5554, %v5562
        %v5565 = vmul.f32 %v5563, 1.442695
        %v5566 = vpow.pop %v5565
        %v5567 = vmul.f32 %v5564, 1.442695
        %v5568 = vpow.pop %v5567
        %v5569 = vsel %vm1371, %v5566, 0.0
        %5570 = vadd.xlane.f32.xlu0 %v5569
        %v5571 = vpop.xlane.xlu0 %5570
        %v5572 = vsel %vm1371, %v5568, 0.0
        %5573 = vadd.xlane.f32.xlu0 %v5572
        %v5574 = vpop.xlane.xlu0 %5573
        %v5575 = vrcp.pop %v5571
        %v5576 = vrcp.pop %v5574
        %v5577 = vpack.c.bf16 %v5568, %v5566
        %5578 = vrot.lane.b32.xlu0 %v1315, 32
        %v5579 = vpop.permute.xlu0 %5578
        %v5582 = vsel %vm1371, %v5577, 0
        %5584 = vmatprep.subr.bf16.mxu0 0
        %5585 = vmatpush1.bf16.msra.mxu0 0
        %5586 = vmatprep.subr.bf16.mxu0 0
        %5587 = vmatpush1.bf16.msra.mxu0 0
        %5588 = vmatprep.subr.bf16.mxu0 0
        %5589 = vmatpush1.bf16.msra.mxu0 0
        %5590 = vmatprep.subr.bf16.mxu0 0
        %5591 = vmatpush1.bf16.msra.mxu0 0
        %5592 = vmatprep.subr.bf16.mxu0 0
        %5593 = vmatpush1.bf16.msra.mxu0 0
        %5594 = vmatprep.subr.bf16.mxu0 0
        %5595 = vmatpush1.bf16.msra.mxu0 0
        %5596 = vmatprep.subr.bf16.mxu0 0
        %5597 = vmatpush1.bf16.msra.mxu0 0
        %5598 = vmatprep.subr.bf16.mxu0 0
        %5599 = vmatpush1.bf16.msra.mxu0 %v5579
        %5600 = vmatprep.subr.bf16.mxu0 0
        %5601 = vmatpush2.bf16.msra.mxu0 0
        %5602 = vmatprep.subr.bf16.mxu0 0
        %5603 = vmatpush2.bf16.msra.mxu0 0
        %5604 = vmatprep.subr.bf16.mxu0 0
        %5605 = vmatpush2.bf16.msra.mxu0 0
        %5606 = vmatprep.subr.bf16.mxu0 0
        %5607 = vmatpush2.bf16.msra.mxu0 0
        %5608 = vmatprep.subr.bf16.mxu0 0
        %5609 = vmatpush2.bf16.msra.mxu0 0
        %5610 = vmatprep.subr.bf16.mxu0 0
        %5611 = vmatpush2.bf16.msra.mxu0 0
        %5612 = vmatprep.subr.bf16.mxu0 0
        %5613 = vmatpush2.bf16.msra.mxu0 0
        %5614 = vmatprep.subr.bf16.mxu0 0
        %5615 = vmatpush2.bf16.msra.mxu0 0
        %5616 = vmatprep.mubr.bf16.mxu0 0
        %5617 = vmatmul.mubr.bf16.gmra.mxu0 %v5582
        %v5618 = vpop.f32.mrf.mxu0
        %v5619 = vadd.f32 0.0, %v5618
        %v5620 = vpop.f32.mrf.mxu0
        %v5621 = vpop.f32.mrf.mxu0
        %v5622 = vadd.f32 0.0, %v5621
        %v5623 = vpop.f32.mrf.mxu0
        %5624 = vdwg.mxu0
        %v5625 = vmul.f32 %v5619, %v5575
        %v5626 = vmul.f32 %v5622, %v5576
        %v5627 = vpack.c.bf16 %v5626, %v5625
        %v5629 = vunpack.c.l.b16 %v5627
        %v5630 = vunpack.c.h.b16 %v5627
        %v5631 = vpack.c.b16 %v5629, %v5629
        %v5632 = vpack.c.b16 %v5630, %v5630
        %5633 = vrot.lane.b32.xlu0 %v5631, 96
        %v5634 = vpop.permute.xlu0 %5633
        %5635 = vrot.lane.b32.xlu0 %v5632, 96
        %v5636 = vpop.permute.xlu0 %5635
        %5639 = vst.msk [vmem:[#allocation3 + $0x38] sm:$0xf] %vm1858, %v5634
        %5640 = vst.msk [vmem:[#allocation3 + $0x3c] sm:$0xf] %vm1858, %v5636
        %v5641 = vld [vmem:[#allocation3] sm:$0xf]
        %v5642 = vld [vmem:[#allocation3 + $0x4] sm:$0xf]
        %v5643 = vld [vmem:[#allocation3 + $0x8] sm:$0xf]
        %v5644 = vld [vmem:[#allocation3 + $0xc] sm:$0xf]
        %v5645 = vld [vmem:[#allocation3 + $0x10] sm:$0xf]
        %v5646 = vld [vmem:[#allocation3 + $0x14] sm:$0xf]
        %v5647 = vld [vmem:[#allocation3 + $0x18] sm:$0xf]
        %v5648 = vld [vmem:[#allocation3 + $0x1c] sm:$0xf]
        %v5649 = vld [vmem:[#allocation3 + $0x20] sm:$0xf]
        %v5650 = vld [vmem:[#allocation3 + $0x24] sm:$0xf]
        %v5651 = vld [vmem:[#allocation3 + $0x28] sm:$0xf]
        %v5652 = vld [vmem:[#allocation3 + $0x2c] sm:$0xf]
        %v5653 = vld [vmem:[#allocation3 + $0x30] sm:$0xf]
        %v5654 = vld [vmem:[#allocation3 + $0x34] sm:$0xf]
        %v5655 = vld [vmem:[#allocation3 + $0x38] sm:$0xf]
        %v5656 = vld [vmem:[#allocation3 + $0x3c] sm:$0xf]
        %v5657 = vld [vmem:[%s603] sm:$0xf]
        %v5658 = vld [vmem:[%s603 + $0x4] sm:$0xf]
        %v5659 = vld [vmem:[%s603 + $0x8] sm:$0xf]
        %v5660 = vld [vmem:[%s603 + $0xc] sm:$0xf]
        %v5661 = vld [vmem:[%s603 + $0x10] sm:$0xf]
        %v5662 = vld [vmem:[%s603 + $0x14] sm:$0xf]
        %v5663 = vld [vmem:[%s603 + $0x18] sm:$0xf]
        %v5664 = vld [vmem:[%s603 + $0x1c] sm:$0xf]
        %v5665 = vld [vmem:[%s603 + $0x20] sm:$0xf]
        %v5666 = vld [vmem:[%s603 + $0x24] sm:$0xf]
        %v5667 = vld [vmem:[%s603 + $0x28] sm:$0xf]
        %v5668 = vld [vmem:[%s603 + $0x2c] sm:$0xf]
        %v5669 = vld [vmem:[%s603 + $0x30] sm:$0xf]
        %v5670 = vld [vmem:[%s603 + $0x34] sm:$0xf]
        %v5671 = vld [vmem:[%s603 + $0x38] sm:$0xf]
        %v5672 = vld [vmem:[%s603 + $0x3c] sm:$0xf]
        %v5673 = vlaneseq
        %v5674 = vshrl.u32 %v5673, 7
        %v5675 = vsub.s32 3, %v5674
        %v5676 = vrot.slane %v771, %v5675
        %v5693 = vunpack.c.l.b16 %v5641
        %v5694 = vunpack.c.l.b16 %v5642
        %v5695 = vunpack.c.l.b16 %v5643
        %v5696 = vunpack.c.l.b16 %v5644
        %v5697 = vunpack.c.l.b16 %v5645
        %v5698 = vunpack.c.l.b16 %v5646
        %v5699 = vunpack.c.l.b16 %v5647
        %v5700 = vunpack.c.l.b16 %v5648
        %v5701 = vunpack.c.l.b16 %v5649
        %v5702 = vunpack.c.l.b16 %v5650
        %v5703 = vunpack.c.l.b16 %v5651
        %v5704 = vunpack.c.l.b16 %v5652
        %v5705 = vunpack.c.l.b16 %v5653
        %v5706 = vunpack.c.l.b16 %v5654
        %v5707 = vunpack.c.l.b16 %v5655
        %v5708 = vunpack.c.l.b16 %v5656
        %v5709 = vpack.c.b16 %v5694, %v5693
        %v5710 = vpack.c.b16 %v5696, %v5695
        %v5711 = vpack.c.b16 %v5698, %v5697
        %v5712 = vpack.c.b16 %v5700, %v5699
        %v5713 = vpack.c.b16 %v5702, %v5701
        %v5714 = vpack.c.b16 %v5704, %v5703
        %v5715 = vpack.c.b16 %v5706, %v5705
        %v5716 = vpack.c.b16 %v5708, %v5707
        %v5741 = vunpack.c.l.b16 %v5657
        %v5742 = vunpack.c.l.b16 %v5658
        %v5743 = vunpack.c.l.b16 %v5659
        %v5744 = vunpack.c.l.b16 %v5660
        %v5745 = vunpack.c.l.b16 %v5661
        %v5746 = vunpack.c.l.b16 %v5662
        %v5747 = vunpack.c.l.b16 %v5663
        %v5748 = vunpack.c.l.b16 %v5664
        %v5749 = vunpack.c.l.b16 %v5665
        %v5750 = vunpack.c.l.b16 %v5666
        %v5751 = vunpack.c.l.b16 %v5667
        %v5752 = vunpack.c.l.b16 %v5668
        %v5753 = vunpack.c.l.b16 %v5669
        %v5754 = vunpack.c.l.b16 %v5670
        %v5755 = vunpack.c.l.b16 %v5671
        %v5756 = vunpack.c.l.b16 %v5672
        %v5757 = vpack.c.b16 %v5742, %v5741
        %v5758 = vpack.c.b16 %v5744, %v5743
        %v5759 = vpack.c.b16 %v5746, %v5745
        %v5760 = vpack.c.b16 %v5748, %v5747
        %v5761 = vpack.c.b16 %v5750, %v5749
        %v5762 = vpack.c.b16 %v5752, %v5751
        %v5763 = vpack.c.b16 %v5754, %v5753
        %v5764 = vpack.c.b16 %v5756, %v5755
        %5773 = vmatprep.subr.bf16.mxu0 0
        %5774 = vmatpush1.bf16.msra.mxu0 %v5764
        %5775 = vmatprep.subr.bf16.mxu0 0
        %5776 = vmatpush1.bf16.msra.mxu0 %v5763
        %5777 = vmatprep.subr.bf16.mxu0 0
        %5778 = vmatpush1.bf16.msra.mxu0 %v5762
        %5779 = vmatprep.subr.bf16.mxu0 0
        %5780 = vmatpush1.bf16.msra.mxu0 %v5761
        %5781 = vmatprep.subr.bf16.mxu0 0
        %5782 = vmatpush1.bf16.msra.mxu0 %v5760
        %5783 = vmatprep.subr.bf16.mxu0 0
        %5784 = vmatpush1.bf16.msra.mxu0 %v5759
        %5785 = vmatprep.subr.bf16.mxu0 0
        %5786 = vmatpush1.bf16.msra.mxu0 %v5758
        %5787 = vmatprep.subr.bf16.mxu0 0
        %5788 = vmatpush1.bf16.msra.mxu0 %v5757
        %5789 = vmatprep.subr.bf16.mxu0 0
        %5790 = vmatpush2.bf16.msra.mxu0 0
        %5791 = vmatprep.subr.bf16.mxu0 0
        %5792 = vmatpush2.bf16.msra.mxu0 0
        %5793 = vmatprep.subr.bf16.mxu0 0
        %5794 = vmatpush2.bf16.msra.mxu0 0
        %5795 = vmatprep.subr.bf16.mxu0 0
        %5796 = vmatpush2.bf16.msra.mxu0 0
        %5797 = vmatprep.subr.bf16.mxu0 0
        %5798 = vmatpush2.bf16.msra.mxu0 0
        %5799 = vmatprep.subr.bf16.mxu0 0
        %5800 = vmatpush2.bf16.msra.mxu0 0
        %5801 = vmatprep.subr.bf16.mxu0 0
        %5802 = vmatpush2.bf16.msra.mxu0 0
        %5803 = vmatprep.subr.bf16.mxu0 0
        %5804 = vmatpush2.bf16.msra.mxu0 0
        %5805 = vmatprep.mubr.bf16.mxu0 0
        %5806 = vmatmul.mubr.bf16.gmra.mxu0 %v5709
        %v5807 = vpop.f32.mrf.mxu0
        %v5808 = vadd.f32 %v5676, %v5807
        %v5809 = vpop.f32.mrf.mxu0
        %v5810 = vpop.f32.mrf.mxu0
        %v5811 = vadd.f32 %v5676, %v5810
        %v5812 = vpop.f32.mrf.mxu0
        %5813 = vmatprep.mubr.bf16.mxu0 0
        %5814 = vmatmul.mubr.bf16.gmra.mxu0 %v5710
        %v5815 = vpop.f32.mrf.mxu0
        %v5816 = vadd.f32 %v5676, %v5815
        %v5817 = vpop.f32.mrf.mxu0
        %v5818 = vpop.f32.mrf.mxu0
        %v5819 = vadd.f32 %v5676, %v5818
        %v5820 = vpop.f32.mrf.mxu0
        %5821 = vmatprep.mubr.bf16.mxu0 0
        %5822 = vmatmul.mubr.bf16.gmra.mxu0 %v5711
        %v5823 = vpop.f32.mrf.mxu0
        %v5824 = vadd.f32 %v5676, %v5823
        %v5825 = vpop.f32.mrf.mxu0
        %v5826 = vpop.f32.mrf.mxu0
        %v5827 = vadd.f32 %v5676, %v5826
        %v5828 = vpop.f32.mrf.mxu0
        %5829 = vmatprep.mubr.bf16.mxu0 0
        %5830 = vmatmul.mubr.bf16.gmra.mxu0 %v5712
        %v5831 = vpop.f32.mrf.mxu0
        %v5832 = vadd.f32 %v5676, %v5831
        %v5833 = vpop.f32.mrf.mxu0
        %v5834 = vpop.f32.mrf.mxu0
        %v5835 = vadd.f32 %v5676, %v5834
        %v5836 = vpop.f32.mrf.mxu0
        %5837 = vmatprep.mubr.bf16.mxu0 0
        %5838 = vmatmul.mubr.bf16.gmra.mxu0 %v5713
        %v5839 = vpop.f32.mrf.mxu0
        %v5840 = vadd.f32 %v5676, %v5839
        %v5841 = vpop.f32.mrf.mxu0
        %v5842 = vpop.f32.mrf.mxu0
        %v5843 = vadd.f32 %v5676, %v5842
        %v5844 = vpop.f32.mrf.mxu0
        %5845 = vmatprep.mubr.bf16.mxu0 0
        %5846 = vmatmul.mubr.bf16.gmra.mxu0 %v5714
        %v5847 = vpop.f32.mrf.mxu0
        %v5848 = vadd.f32 %v5676, %v5847
        %v5849 = vpop.f32.mrf.mxu0
        %v5850 = vpop.f32.mrf.mxu0
        %v5851 = vadd.f32 %v5676, %v5850
        %v5852 = vpop.f32.mrf.mxu0
        %5853 = vmatprep.mubr.bf16.mxu0 0
        %5854 = vmatmul.mubr.bf16.gmra.mxu0 %v5715
        %v5855 = vpop.f32.mrf.mxu0
        %v5856 = vadd.f32 %v5676, %v5855
        %v5857 = vpop.f32.mrf.mxu0
        %v5858 = vpop.f32.mrf.mxu0
        %v5859 = vadd.f32 %v5676, %v5858
        %v5860 = vpop.f32.mrf.mxu0
        %5861 = vmatprep.mubr.bf16.mxu0 0
        %5862 = vmatmul.mubr.bf16.gmra.mxu0 %v5716
        %v5863 = vpop.f32.mrf.mxu0
        %v5864 = vadd.f32 %v5676, %v5863
        %v5865 = vpop.f32.mrf.mxu0
        %v5866 = vpop.f32.mrf.mxu0
        %v5867 = vadd.f32 %v5676, %v5866
        %v5868 = vpop.f32.mrf.mxu0
        %5869 = vdwg.mxu0
        %v5870 = vadd.f32 %v5808, %v755
        %v5871 = vadd.f32 %v5811, %v756
        %v5872 = vadd.f32 %v5816, %v757
        %v5873 = vadd.f32 %v5819, %v758
        %v5874 = vadd.f32 %v5824, %v759
        %v5875 = vadd.f32 %v5827, %v760
        %v5876 = vadd.f32 %v5832, %v761
        %v5877 = vadd.f32 %v5835, %v762
        %v5878 = vadd.f32 %v5840, %v763
        %v5879 = vadd.f32 %v5843, %v764
        %v5880 = vadd.f32 %v5848, %v765
        %v5881 = vadd.f32 %v5851, %v766
        %v5882 = vadd.f32 %v5856, %v767
        %v5883 = vadd.f32 %v5859, %v768
        %v5884 = vadd.f32 %v5864, %v769
        %v5885 = vadd.f32 %v5867, %v770
        %5886 = vadd.xlane.f32.xlu0 %v5870
        %v5887 = vpop.xlane.xlu0 %5886
        %5888 = vadd.xlane.f32.xlu0 %v5871
        %v5889 = vpop.xlane.xlu0 %5888
        %5890 = vadd.xlane.f32.xlu0 %v5872
        %v5891 = vpop.xlane.xlu0 %5890
        %5892 = vadd.xlane.f32.xlu0 %v5873
        %v5893 = vpop.xlane.xlu0 %5892
        %5894 = vadd.xlane.f32.xlu0 %v5874
        %v5895 = vpop.xlane.xlu0 %5894
        %5896 = vadd.xlane.f32.xlu0 %v5875
        %v5897 = vpop.xlane.xlu0 %5896
        %5898 = vadd.xlane.f32.xlu0 %v5876
        %v5899 = vpop.xlane.xlu0 %5898
        %5900 = vadd.xlane.f32.xlu0 %v5877
        %v5901 = vpop.xlane.xlu0 %5900
        %5902 = vadd.xlane.f32.xlu0 %v5878
        %v5903 = vpop.xlane.xlu0 %5902
        %5904 = vadd.xlane.f32.xlu0 %v5879
        %v5905 = vpop.xlane.xlu0 %5904
        %5906 = vadd.xlane.f32.xlu0 %v5880
        %v5907 = vpop.xlane.xlu0 %5906
        %5908 = vadd.xlane.f32.xlu0 %v5881
        %v5909 = vpop.xlane.xlu0 %5908
        %5910 = vadd.xlane.f32.xlu0 %v5882
        %v5911 = vpop.xlane.xlu0 %5910
        %5912 = vadd.xlane.f32.xlu0 %v5883
        %v5913 = vpop.xlane.xlu0 %5912
        %5914 = vadd.xlane.f32.xlu0 %v5884
        %v5915 = vpop.xlane.xlu0 %5914
        %5916 = vadd.xlane.f32.xlu0 %v5885
        %v5917 = vpop.xlane.xlu0 %5916
        %v5918 = vrcp.pop 128.0
        %v5919 = vmul.f32 %v5887, %v5918
        %v5920 = vmul.f32 %v5889, %v5918
        %v5921 = vmul.f32 %v5891, %v5918
        %v5922 = vmul.f32 %v5893, %v5918
        %v5923 = vmul.f32 %v5895, %v5918
        %v5924 = vmul.f32 %v5897, %v5918
        %v5925 = vmul.f32 %v5899, %v5918
        %v5926 = vmul.f32 %v5901, %v5918
        %v5927 = vmul.f32 %v5903, %v5918
        %v5928 = vmul.f32 %v5905, %v5918
        %v5929 = vmul.f32 %v5907, %v5918
        %v5930 = vmul.f32 %v5909, %v5918
        %v5931 = vmul.f32 %v5911, %v5918
        %v5932 = vmul.f32 %v5913, %v5918
        %v5933 = vmul.f32 %v5915, %v5918
        %v5934 = vmul.f32 %v5917, %v5918
        %v5935 = vsub.f32 %v5870, %v5919
        %v5936 = vsub.f32 %v5871, %v5920
        %v5937 = vsub.f32 %v5872, %v5921
        %v5938 = vsub.f32 %v5873, %v5922
        %v5939 = vsub.f32 %v5874, %v5923
        %v5940 = vsub.f32 %v5875, %v5924
        %v5941 = vsub.f32 %v5876, %v5925
        %v5942 = vsub.f32 %v5877, %v5926
        %v5943 = vsub.f32 %v5878, %v5927
        %v5944 = vsub.f32 %v5879, %v5928
        %v5945 = vsub.f32 %v5880, %v5929
        %v5946 = vsub.f32 %v5881, %v5930
        %v5947 = vsub.f32 %v5882, %v5931
        %v5948 = vsub.f32 %v5883, %v5932
        %v5949 = vsub.f32 %v5884, %v5933
        %v5950 = vsub.f32 %v5885, %v5934
        %v5951 = vmul.f32 %v5935, %v5935
        %v5952 = vmul.f32 %v5936, %v5936
        %v5953 = vmul.f32 %v5937, %v5937
        %v5954 = vmul.f32 %v5938, %v5938
        %v5955 = vmul.f32 %v5939, %v5939
        %v5956 = vmul.f32 %v5940, %v5940
        %v5957 = vmul.f32 %v5941, %v5941
        %v5958 = vmul.f32 %v5942, %v5942
        %v5959 = vmul.f32 %v5943, %v5943
        %v5960 = vmul.f32 %v5944, %v5944
        %v5961 = vmul.f32 %v5945, %v5945
        %v5962 = vmul.f32 %v5946, %v5946
        %v5963 = vmul.f32 %v5947, %v5947
        %v5964 = vmul.f32 %v5948, %v5948
        %v5965 = vmul.f32 %v5949, %v5949
        %v5966 = vmul.f32 %v5950, %v5950
        %5967 = vadd.xlane.f32.xlu0 %v5951
        %v5968 = vpop.xlane.xlu0 %5967
        %5969 = vadd.xlane.f32.xlu0 %v5952
        %v5970 = vpop.xlane.xlu0 %5969
        %5971 = vadd.xlane.f32.xlu0 %v5953
        %v5972 = vpop.xlane.xlu0 %5971
        %5973 = vadd.xlane.f32.xlu0 %v5954
        %v5974 = vpop.xlane.xlu0 %5973
        %5975 = vadd.xlane.f32.xlu0 %v5955
        %v5976 = vpop.xlane.xlu0 %5975
        %5977 = vadd.xlane.f32.xlu0 %v5956
        %v5978 = vpop.xlane.xlu0 %5977
        %5979 = vadd.xlane.f32.xlu0 %v5957
        %v5980 = vpop.xlane.xlu0 %5979
        %5981 = vadd.xlane.f32.xlu0 %v5958
        %v5982 = vpop.xlane.xlu0 %5981
        %5983 = vadd.xlane.f32.xlu0 %v5959
        %v5984 = vpop.xlane.xlu0 %5983
        %5985 = vadd.xlane.f32.xlu0 %v5960
        %v5986 = vpop.xlane.xlu0 %5985
        %5987 = vadd.xlane.f32.xlu0 %v5961
        %v5988 = vpop.xlane.xlu0 %5987
        %5989 = vadd.xlane.f32.xlu0 %v5962
        %v5990 = vpop.xlane.xlu0 %5989
        %5991 = vadd.xlane.f32.xlu0 %v5963
        %v5992 = vpop.xlane.xlu0 %5991
        %5993 = vadd.xlane.f32.xlu0 %v5964
        %v5994 = vpop.xlane.xlu0 %5993
        %5995 = vadd.xlane.f32.xlu0 %v5965
        %v5996 = vpop.xlane.xlu0 %5995
        %5997 = vadd.xlane.f32.xlu0 %v5966
        %v5998 = vpop.xlane.xlu0 %5997
        %v5999 = vmul.f32 %v5968, %v5918
        %v6000 = vmul.f32 %v5970, %v5918
        %v6001 = vmul.f32 %v5972, %v5918
        %v6002 = vmul.f32 %v5974, %v5918
        %v6003 = vmul.f32 %v5976, %v5918
        %v6004 = vmul.f32 %v5978, %v5918
        %v6005 = vmul.f32 %v5980, %v5918
        %v6006 = vmul.f32 %v5982, %v5918
        %v6007 = vmul.f32 %v5984, %v5918
        %v6008 = vmul.f32 %v5986, %v5918
        %v6009 = vmul.f32 %v5988, %v5918
        %v6010 = vmul.f32 %v5990, %v5918
        %v6011 = vmul.f32 %v5992, %v5918
        %v6012 = vmul.f32 %v5994, %v5918
        %v6013 = vmul.f32 %v5996, %v5918
        %v6014 = vmul.f32 %v5998, %v5918
        %v6015 = vadd.f32 %v5999, 1e-05
        %v6016 = vadd.f32 %v6000, 1e-05
        %v6017 = vadd.f32 %v6001, 1e-05
        %v6018 = vadd.f32 %v6002, 1e-05
        %v6019 = vadd.f32 %v6003, 1e-05
        %v6020 = vadd.f32 %v6004, 1e-05
        %v6021 = vadd.f32 %v6005, 1e-05
        %v6022 = vadd.f32 %v6006, 1e-05
        %v6023 = vadd.f32 %v6007, 1e-05
        %v6024 = vadd.f32 %v6008, 1e-05
        %v6025 = vadd.f32 %v6009, 1e-05
        %v6026 = vadd.f32 %v6010, 1e-05
        %v6027 = vadd.f32 %v6011, 1e-05
        %v6028 = vadd.f32 %v6012, 1e-05
        %v6029 = vadd.f32 %v6013, 1e-05
        %v6030 = vadd.f32 %v6014, 1e-05
        %v6031 = vrsqrt.pop %v6015
        %v6032 = vrsqrt.pop %v6016
        %v6033 = vrsqrt.pop %v6017
        %v6034 = vrsqrt.pop %v6018
        %v6035 = vrsqrt.pop %v6019
        %v6036 = vrsqrt.pop %v6020
        %v6037 = vrsqrt.pop %v6021
        %v6038 = vrsqrt.pop %v6022
        %v6039 = vrsqrt.pop %v6023
        %v6040 = vrsqrt.pop %v6024
        %v6041 = vrsqrt.pop %v6025
        %v6042 = vrsqrt.pop %v6026
        %v6043 = vrsqrt.pop %v6027
        %v6044 = vrsqrt.pop %v6028
        %v6045 = vrsqrt.pop %v6029
        %v6046 = vrsqrt.pop %v6030
        %v6047 = vmul.f32 %v5935, %v6031
        %v6048 = vmul.f32 %v5936, %v6032
        %v6049 = vmul.f32 %v5937, %v6033
        %v6050 = vmul.f32 %v5938, %v6034
        %v6051 = vmul.f32 %v5939, %v6035
        %v6052 = vmul.f32 %v5940, %v6036
        %v6053 = vmul.f32 %v5941, %v6037
        %v6054 = vmul.f32 %v5942, %v6038
        %v6055 = vmul.f32 %v5943, %v6039
        %v6056 = vmul.f32 %v5944, %v6040
        %v6057 = vmul.f32 %v5945, %v6041
        %v6058 = vmul.f32 %v5946, %v6042
        %v6059 = vmul.f32 %v5947, %v6043
        %v6060 = vmul.f32 %v5948, %v6044
        %v6061 = vmul.f32 %v5949, %v6045
        %v6062 = vmul.f32 %v5950, %v6046
        %v6063 = vlaneseq
        %v6064 = vshrl.u32 %v6063, 7
        %v6065 = vsub.s32 5, %v6064
        %v6066 = vrot.slane %v771, %v6065
        %v6067 = vmul.f32 %v6047, %v6066
        %v6068 = vmul.f32 %v6048, %v6066
        %v6069 = vmul.f32 %v6049, %v6066
        %v6070 = vmul.f32 %v6050, %v6066
        %v6071 = vmul.f32 %v6051, %v6066
        %v6072 = vmul.f32 %v6052, %v6066
        %v6073 = vmul.f32 %v6053, %v6066
        %v6074 = vmul.f32 %v6054, %v6066
        %v6075 = vmul.f32 %v6055, %v6066
        %v6076 = vmul.f32 %v6056, %v6066
        %v6077 = vmul.f32 %v6057, %v6066
        %v6078 = vmul.f32 %v6058, %v6066
        %v6079 = vmul.f32 %v6059, %v6066
        %v6080 = vmul.f32 %v6060, %v6066
        %v6081 = vmul.f32 %v6061, %v6066
        %v6082 = vmul.f32 %v6062, %v6066
        %v6083 = vlaneseq
        %v6084 = vshrl.u32 %v6083, 7
        %v6085 = vsub.s32 6, %v6084
        %v6086 = vrot.slane %v771, %v6085
        %v6087 = vadd.f32 %v6067, %v6086
        %v6088 = vadd.f32 %v6068, %v6086
        %v6089 = vadd.f32 %v6069, %v6086
        %v6090 = vadd.f32 %v6070, %v6086
        %v6091 = vadd.f32 %v6071, %v6086
        %v6092 = vadd.f32 %v6072, %v6086
        %v6093 = vadd.f32 %v6073, %v6086
        %v6094 = vadd.f32 %v6074, %v6086
        %v6095 = vadd.f32 %v6075, %v6086
        %v6096 = vadd.f32 %v6076, %v6086
        %v6097 = vadd.f32 %v6077, %v6086
        %v6098 = vadd.f32 %v6078, %v6086
        %v6099 = vadd.f32 %v6079, %v6086
        %v6100 = vadd.f32 %v6080, %v6086
        %v6101 = vadd.f32 %v6081, %v6086
        %v6102 = vadd.f32 %v6082, %v6086
        %v6103 = vpack.c.bf16 %v6088, %v6087
        %v6104 = vpack.c.bf16 %v6090, %v6089
        %v6105 = vpack.c.bf16 %v6092, %v6091
        %v6106 = vpack.c.bf16 %v6094, %v6093
        %v6107 = vpack.c.bf16 %v6096, %v6095
        %v6108 = vpack.c.bf16 %v6098, %v6097
        %v6109 = vpack.c.bf16 %v6100, %v6099
        %v6110 = vpack.c.bf16 %v6102, %v6101
        %v6111 = vld [vmem:[%s612] sm:$0xff]
        %v6112 = vld [vmem:[%s612 + $0x8] sm:$0xff]
        %v6113 = vld [vmem:[%s612 + $0x10] sm:$0xff]
        %v6114 = vld [vmem:[%s612 + $0x18] sm:$0xff]
        %v6115 = vld [vmem:[%s612 + $0x20] sm:$0xff]
        %v6116 = vld [vmem:[%s612 + $0x28] sm:$0xff]
        %v6117 = vld [vmem:[%s612 + $0x30] sm:$0xff]
        %v6118 = vld [vmem:[%s612 + $0x38] sm:$0xff]
        %v6119 = vld [vmem:[%s612 + $0x40] sm:$0xff]
        %v6120 = vld [vmem:[%s612 + $0x48] sm:$0xff]
        %v6121 = vld [vmem:[%s612 + $0x50] sm:$0xff]
        %v6122 = vld [vmem:[%s612 + $0x58] sm:$0xff]
        %v6123 = vld [vmem:[%s612 + $0x60] sm:$0xff]
        %v6124 = vld [vmem:[%s612 + $0x68] sm:$0xff]
        %v6125 = vld [vmem:[%s612 + $0x70] sm:$0xff]
        %v6126 = vld [vmem:[%s612 + $0x78] sm:$0xff]
        %v6127 = vld [vmem:[%s716] sm:$0x3]
        %v6129 = vlaneseq
        %v6130 = vshrl.u32 %v6129, 7
        %v6131 = vsub.s32 0, %v6130
        %v6132 = vrot.slane %v6127, %v6131
        %v6133 = vlaneseq
        %v6134 = vshrl.u32 %v6133, 7
        %v6135 = vsub.s32 1, %v6134
        %v6136 = vrot.slane %v6127, %v6135
        %v6155 = vunpack.c.l.b16 %v6111
        %v6156 = vunpack.c.h.b16 %v6111
        %v6157 = vunpack.c.l.b16 %v6112
        %v6158 = vunpack.c.h.b16 %v6112
        %v6159 = vunpack.c.l.b16 %v6113
        %v6160 = vunpack.c.h.b16 %v6113
        %v6161 = vunpack.c.l.b16 %v6114
        %v6162 = vunpack.c.h.b16 %v6114
        %v6163 = vunpack.c.l.b16 %v6115
        %v6164 = vunpack.c.h.b16 %v6115
        %v6165 = vunpack.c.l.b16 %v6116
        %v6166 = vunpack.c.h.b16 %v6116
        %v6167 = vunpack.c.l.b16 %v6117
        %v6168 = vunpack.c.h.b16 %v6117
        %v6169 = vunpack.c.l.b16 %v6118
        %v6170 = vunpack.c.h.b16 %v6118
        %v6171 = vunpack.c.l.b16 %v6119
        %v6172 = vunpack.c.h.b16 %v6119
        %v6173 = vunpack.c.l.b16 %v6120
        %v6174 = vunpack.c.h.b16 %v6120
        %v6175 = vunpack.c.l.b16 %v6121
        %v6176 = vunpack.c.h.b16 %v6121
        %v6177 = vunpack.c.l.b16 %v6122
        %v6178 = vunpack.c.h.b16 %v6122
        %v6179 = vunpack.c.l.b16 %v6123
        %v6180 = vunpack.c.h.b16 %v6123
        %v6181 = vunpack.c.l.b16 %v6124
        %v6182 = vunpack.c.h.b16 %v6124
        %v6183 = vunpack.c.l.b16 %v6125
        %v6184 = vunpack.c.h.b16 %v6125
        %v6185 = vunpack.c.l.b16 %v6126
        %v6186 = vunpack.c.h.b16 %v6126
        %v6187 = vpack.c.b16 %v6157, %v6155
        %v6188 = vpack.c.b16 %v6158, %v6156
        %v6189 = vpack.c.b16 %v6161, %v6159
        %v6190 = vpack.c.b16 %v6162, %v6160
        %v6191 = vpack.c.b16 %v6165, %v6163
        %v6192 = vpack.c.b16 %v6166, %v6164
        %v6193 = vpack.c.b16 %v6169, %v6167
        %v6194 = vpack.c.b16 %v6170, %v6168
        %v6195 = vpack.c.b16 %v6173, %v6171
        %v6196 = vpack.c.b16 %v6174, %v6172
        %v6197 = vpack.c.b16 %v6177, %v6175
        %v6198 = vpack.c.b16 %v6178, %v6176
        %v6199 = vpack.c.b16 %v6181, %v6179
        %v6200 = vpack.c.b16 %v6182, %v6180
        %v6201 = vpack.c.b16 %v6185, %v6183
        %v6202 = vpack.c.b16 %v6186, %v6184
        %6219 = vmatprep.subr.bf16.mxu0 %v6202
        %6220 = vmatpush1.bf16.msra.mxu0 %v6201
        %6221 = vmatprep.subr.bf16.mxu0 %v6200
        %6222 = vmatpush1.bf16.msra.mxu0 %v6199
        %6223 = vmatprep.subr.bf16.mxu0 %v6198
        %6224 = vmatpush1.bf16.msra.mxu0 %v6197
        %6225 = vmatprep.subr.bf16.mxu0 %v6196
        %6226 = vmatpush1.bf16.msra.mxu0 %v6195
        %6227 = vmatprep.subr.bf16.mxu0 %v6194
        %6228 = vmatpush1.bf16.msra.mxu0 %v6193
        %6229 = vmatprep.subr.bf16.mxu0 %v6192
        %6230 = vmatpush1.bf16.msra.mxu0 %v6191
        %6231 = vmatprep.subr.bf16.mxu0 %v6190
        %6232 = vmatpush1.bf16.msra.mxu0 %v6189
        %6233 = vmatprep.subr.bf16.mxu0 %v6188
        %6234 = vmatpush1.bf16.msra.mxu0 %v6187
        %6235 = vmatprep.subr.bf16.mxu0 0
        %6236 = vmatpush2.bf16.msra.mxu0 0
        %6237 = vmatprep.subr.bf16.mxu0 0
        %6238 = vmatpush2.bf16.msra.mxu0 0
        %6239 = vmatprep.subr.bf16.mxu0 0
        %6240 = vmatpush2.bf16.msra.mxu0 0
        %6241 = vmatprep.subr.bf16.mxu0 0
        %6242 = vmatpush2.bf16.msra.mxu0 0
        %6243 = vmatprep.subr.bf16.mxu0 0
        %6244 = vmatpush2.bf16.msra.mxu0 0
        %6245 = vmatprep.subr.bf16.mxu0 0
        %6246 = vmatpush2.bf16.msra.mxu0 0
        %6247 = vmatprep.subr.bf16.mxu0 0
        %6248 = vmatpush2.bf16.msra.mxu0 0
        %6249 = vmatprep.subr.bf16.mxu0 0
        %6250 = vmatpush2.bf16.msra.mxu0 0
        %6251 = vmatprep.mubr.bf16.mxu0 0
        %6252 = vmatmul.mubr.bf16.gmra.mxu0 %v6103
        %v6253 = vpop.f32.mrf.mxu0
        %v6254 = vadd.f32 %v6132, %v6253
        %v6255 = vpop.f32.mrf.mxu0
        %v6256 = vadd.f32 %v6136, %v6255
        %v6257 = vpop.f32.mrf.mxu0
        %v6258 = vadd.f32 %v6132, %v6257
        %v6259 = vpop.f32.mrf.mxu0
        %v6260 = vadd.f32 %v6136, %v6259
        %6261 = vmatprep.mubr.bf16.mxu0 0
        %6262 = vmatmul.mubr.bf16.gmra.mxu0 %v6104
        %v6263 = vpop.f32.mrf.mxu0
        %v6264 = vadd.f32 %v6132, %v6263
        %v6265 = vpop.f32.mrf.mxu0
        %v6266 = vadd.f32 %v6136, %v6265
        %v6267 = vpop.f32.mrf.mxu0
        %v6268 = vadd.f32 %v6132, %v6267
        %v6269 = vpop.f32.mrf.mxu0
        %v6270 = vadd.f32 %v6136, %v6269
        %6271 = vmatprep.mubr.bf16.mxu0 0
        %6272 = vmatmul.mubr.bf16.gmra.mxu0 %v6105
        %v6273 = vpop.f32.mrf.mxu0
        %v6274 = vadd.f32 %v6132, %v6273
        %v6275 = vpop.f32.mrf.mxu0
        %v6276 = vadd.f32 %v6136, %v6275
        %v6277 = vpop.f32.mrf.mxu0
        %v6278 = vadd.f32 %v6132, %v6277
        %v6279 = vpop.f32.mrf.mxu0
        %v6280 = vadd.f32 %v6136, %v6279
        %6281 = vmatprep.mubr.bf16.mxu0 0
        %6282 = vmatmul.mubr.bf16.gmra.mxu0 %v6106
        %v6283 = vpop.f32.mrf.mxu0
        %v6284 = vadd.f32 %v6132, %v6283
        %v6285 = vpop.f32.mrf.mxu0
        %v6286 = vadd.f32 %v6136, %v6285
        %v6287 = vpop.f32.mrf.mxu0
        %v6288 = vadd.f32 %v6132, %v6287
        %v6289 = vpop.f32.mrf.mxu0
        %v6290 = vadd.f32 %v6136, %v6289
        %6291 = vmatprep.mubr.bf16.mxu0 0
        %6292 = vmatmul.mubr.bf16.gmra.mxu0 %v6107
        %v6293 = vpop.f32.mrf.mxu0
        %v6294 = vadd.f32 %v6132, %v6293
        %v6295 = vpop.f32.mrf.mxu0
        %v6296 = vadd.f32 %v6136, %v6295
        %v6297 = vpop.f32.mrf.mxu0
        %v6298 = vadd.f32 %v6132, %v6297
        %v6299 = vpop.f32.mrf.mxu0
        %v6300 = vadd.f32 %v6136, %v6299
        %6301 = vmatprep.mubr.bf16.mxu0 0
        %6302 = vmatmul.mubr.bf16.gmra.mxu0 %v6108
        %v6303 = vpop.f32.mrf.mxu0
        %v6304 = vadd.f32 %v6132, %v6303
        %v6305 = vpop.f32.mrf.mxu0
        %v6306 = vadd.f32 %v6136, %v6305
        %v6307 = vpop.f32.mrf.mxu0
        %v6308 = vadd.f32 %v6132, %v6307
        %v6309 = vpop.f32.mrf.mxu0
        %v6310 = vadd.f32 %v6136, %v6309
        %6311 = vmatprep.mubr.bf16.mxu0 0
        %6312 = vmatmul.mubr.bf16.gmra.mxu0 %v6109
        %v6313 = vpop.f32.mrf.mxu0
        %v6314 = vadd.f32 %v6132, %v6313
        %v6315 = vpop.f32.mrf.mxu0
        %v6316 = vadd.f32 %v6136, %v6315
        %v6317 = vpop.f32.mrf.mxu0
        %v6318 = vadd.f32 %v6132, %v6317
        %v6319 = vpop.f32.mrf.mxu0
        %v6320 = vadd.f32 %v6136, %v6319
        %6321 = vmatprep.mubr.bf16.mxu0 0
        %6322 = vmatmul.mubr.bf16.gmra.mxu0 %v6110
        %v6323 = vpop.f32.mrf.mxu0
        %v6324 = vadd.f32 %v6132, %v6323
        %v6325 = vpop.f32.mrf.mxu0
        %v6326 = vadd.f32 %v6136, %v6325
        %v6327 = vpop.f32.mrf.mxu0
        %v6328 = vadd.f32 %v6132, %v6327
        %v6329 = vpop.f32.mrf.mxu0
        %v6330 = vadd.f32 %v6136, %v6329
        %6331 = vdwg.mxu0
        %v6332 = vmul.f32 %v6254, 0.5
        %v6333 = vmul.f32 %v6256, 0.5
        %v6334 = vmul.f32 %v6258, 0.5
        %v6335 = vmul.f32 %v6260, 0.5
        %v6336 = vmul.f32 %v6264, 0.5
        %v6337 = vmul.f32 %v6266, 0.5
        %v6338 = vmul.f32 %v6268, 0.5
        %v6339 = vmul.f32 %v6270, 0.5
        %v6340 = vmul.f32 %v6274, 0.5
        %v6341 = vmul.f32 %v6276, 0.5
        %v6342 = vmul.f32 %v6278, 0.5
        %v6343 = vmul.f32 %v6280, 0.5
        %v6344 = vmul.f32 %v6284, 0.5
        %v6345 = vmul.f32 %v6286, 0.5
        %v6346 = vmul.f32 %v6288, 0.5
        %v6347 = vmul.f32 %v6290, 0.5
        %v6348 = vmul.f32 %v6294, 0.5
        %v6349 = vmul.f32 %v6296, 0.5
        %v6350 = vmul.f32 %v6298, 0.5
        %v6351 = vmul.f32 %v6300, 0.5
        %v6352 = vmul.f32 %v6304, 0.5
        %v6353 = vmul.f32 %v6306, 0.5
        %v6354 = vmul.f32 %v6308, 0.5
        %v6355 = vmul.f32 %v6310, 0.5
        %v6356 = vmul.f32 %v6314, 0.5
        %v6357 = vmul.f32 %v6316, 0.5
        %v6358 = vmul.f32 %v6318, 0.5
        %v6359 = vmul.f32 %v6320, 0.5
        %v6360 = vmul.f32 %v6324, 0.5
        %v6361 = vmul.f32 %v6326, 0.5
        %v6362 = vmul.f32 %v6328, 0.5
        %v6363 = vmul.f32 %v6330, 0.5
        %v6364 = vmul.f32 %v6254, 0.70710677
        %v6365 = vmul.f32 %v6256, 0.70710677
        %v6366 = vmul.f32 %v6258, 0.70710677
        %v6367 = vmul.f32 %v6260, 0.70710677
        %v6368 = vmul.f32 %v6264, 0.70710677
        %v6369 = vmul.f32 %v6266, 0.70710677
        %v6370 = vmul.f32 %v6268, 0.70710677
        %v6371 = vmul.f32 %v6270, 0.70710677
        %v6372 = vmul.f32 %v6274, 0.70710677
        %v6373 = vmul.f32 %v6276, 0.70710677
        %v6374 = vmul.f32 %v6278, 0.70710677
        %v6375 = vmul.f32 %v6280, 0.70710677
        %v6376 = vmul.f32 %v6284, 0.70710677
        %v6377 = vmul.f32 %v6286, 0.70710677
        %v6378 = vmul.f32 %v6288, 0.70710677
        %v6379 = vmul.f32 %v6290, 0.70710677
        %v6380 = vmul.f32 %v6294, 0.70710677
        %v6381 = vmul.f32 %v6296, 0.70710677
        %v6382 = vmul.f32 %v6298, 0.70710677
        %v6383 = vmul.f32 %v6300, 0.70710677
        %v6384 = vmul.f32 %v6304, 0.70710677
        %v6385 = vmul.f32 %v6306, 0.70710677
        %v6386 = vmul.f32 %v6308, 0.70710677
        %v6387 = vmul.f32 %v6310, 0.70710677
        %v6388 = vmul.f32 %v6314, 0.70710677
        %v6389 = vmul.f32 %v6316, 0.70710677
        %v6390 = vmul.f32 %v6318, 0.70710677
        %v6391 = vmul.f32 %v6320, 0.70710677
        %v6392 = vmul.f32 %v6324, 0.70710677
        %v6393 = vmul.f32 %v6326, 0.70710677
        %v6394 = vmul.f32 %v6328, 0.70710677
        %v6395 = vmul.f32 %v6330, 0.70710677
        %v6396 = verf.f32.pop %v6364
        %v6397 = verf.f32.pop %v6365
        %v6398 = verf.f32.pop %v6366
        %v6399 = verf.f32.pop %v6367
        %v6400 = verf.f32.pop %v6368
        %v6401 = verf.f32.pop %v6369
        %v6402 = verf.f32.pop %v6370
        %v6403 = verf.f32.pop %v6371
        %v6404 = verf.f32.pop %v6372
        %v6405 = verf.f32.pop %v6373
        %v6406 = verf.f32.pop %v6374
        %v6407 = verf.f32.pop %v6375
        %v6408 = verf.f32.pop %v6376
        %v6409 = verf.f32.pop %v6377
        %v6410 = verf.f32.pop %v6378
        %v6411 = verf.f32.pop %v6379
        %v6412 = verf.f32.pop %v6380
        %v6413 = verf.f32.pop %v6381
        %v6414 = verf.f32.pop %v6382
        %v6415 = verf.f32.pop %v6383
        %v6416 = verf.f32.pop %v6384
        %v6417 = verf.f32.pop %v6385
        %v6418 = verf.f32.pop %v6386
        %v6419 = verf.f32.pop %v6387
        %v6420 = verf.f32.pop %v6388
        %v6421 = verf.f32.pop %v6389
        %v6422 = verf.f32.pop %v6390
        %v6423 = verf.f32.pop %v6391
        %v6424 = verf.f32.pop %v6392
        %v6425 = verf.f32.pop %v6393
        %v6426 = verf.f32.pop %v6394
        %v6427 = verf.f32.pop %v6395
        %v6428 = vadd.f32 %v6396, 1.0
        %v6429 = vadd.f32 %v6397, 1.0
        %v6430 = vadd.f32 %v6398, 1.0
        %v6431 = vadd.f32 %v6399, 1.0
        %v6432 = vadd.f32 %v6400, 1.0
        %v6433 = vadd.f32 %v6401, 1.0
        %v6434 = vadd.f32 %v6402, 1.0
        %v6435 = vadd.f32 %v6403, 1.0
        %v6436 = vadd.f32 %v6404, 1.0
        %v6437 = vadd.f32 %v6405, 1.0
        %v6438 = vadd.f32 %v6406, 1.0
        %v6439 = vadd.f32 %v6407, 1.0
        %v6440 = vadd.f32 %v6408, 1.0
        %v6441 = vadd.f32 %v6409, 1.0
        %v6442 = vadd.f32 %v6410, 1.0
        %v6443 = vadd.f32 %v6411, 1.0
        %v6444 = vadd.f32 %v6412, 1.0
        %v6445 = vadd.f32 %v6413, 1.0
        %v6446 = vadd.f32 %v6414, 1.0
        %v6447 = vadd.f32 %v6415, 1.0
        %v6448 = vadd.f32 %v6416, 1.0
        %v6449 = vadd.f32 %v6417, 1.0
        %v6450 = vadd.f32 %v6418, 1.0
        %v6451 = vadd.f32 %v6419, 1.0
        %v6452 = vadd.f32 %v6420, 1.0
        %v6453 = vadd.f32 %v6421, 1.0
        %v6454 = vadd.f32 %v6422, 1.0
        %v6455 = vadd.f32 %v6423, 1.0
        %v6456 = vadd.f32 %v6424, 1.0
        %v6457 = vadd.f32 %v6425, 1.0
        %v6458 = vadd.f32 %v6426, 1.0
        %v6459 = vadd.f32 %v6427, 1.0
        %v6460 = vmul.f32 %v6332, %v6428
        %v6461 = vmul.f32 %v6333, %v6429
        %v6462 = vmul.f32 %v6334, %v6430
        %v6463 = vmul.f32 %v6335, %v6431
        %v6464 = vmul.f32 %v6336, %v6432
        %v6465 = vmul.f32 %v6337, %v6433
        %v6466 = vmul.f32 %v6338, %v6434
        %v6467 = vmul.f32 %v6339, %v6435
        %v6468 = vmul.f32 %v6340, %v6436
        %v6469 = vmul.f32 %v6341, %v6437
        %v6470 = vmul.f32 %v6342, %v6438
        %v6471 = vmul.f32 %v6343, %v6439
        %v6472 = vmul.f32 %v6344, %v6440
        %v6473 = vmul.f32 %v6345, %v6441
        %v6474 = vmul.f32 %v6346, %v6442
        %v6475 = vmul.f32 %v6347, %v6443
        %v6476 = vmul.f32 %v6348, %v6444
        %v6477 = vmul.f32 %v6349, %v6445
        %v6478 = vmul.f32 %v6350, %v6446
        %v6479 = vmul.f32 %v6351, %v6447
        %v6480 = vmul.f32 %v6352, %v6448
        %v6481 = vmul.f32 %v6353, %v6449
        %v6482 = vmul.f32 %v6354, %v6450
        %v6483 = vmul.f32 %v6355, %v6451
        %v6484 = vmul.f32 %v6356, %v6452
        %v6485 = vmul.f32 %v6357, %v6453
        %v6486 = vmul.f32 %v6358, %v6454
        %v6487 = vmul.f32 %v6359, %v6455
        %v6488 = vmul.f32 %v6360, %v6456
        %v6489 = vmul.f32 %v6361, %v6457
        %v6490 = vmul.f32 %v6362, %v6458
        %v6491 = vmul.f32 %v6363, %v6459
        %v6492 = vpack.c.bf16 %v6462, %v6460
        %v6493 = vpack.c.bf16 %v6463, %v6461
        %v6494 = vpack.c.bf16 %v6466, %v6464
        %v6495 = vpack.c.bf16 %v6467, %v6465
        %v6496 = vpack.c.bf16 %v6470, %v6468
        %v6497 = vpack.c.bf16 %v6471, %v6469
        %v6498 = vpack.c.bf16 %v6474, %v6472
        %v6499 = vpack.c.bf16 %v6475, %v6473
        %v6500 = vpack.c.bf16 %v6478, %v6476
        %v6501 = vpack.c.bf16 %v6479, %v6477
        %v6502 = vpack.c.bf16 %v6482, %v6480
        %v6503 = vpack.c.bf16 %v6483, %v6481
        %v6504 = vpack.c.bf16 %v6486, %v6484
        %v6505 = vpack.c.bf16 %v6487, %v6485
        %v6506 = vpack.c.bf16 %v6490, %v6488
        %v6507 = vpack.c.bf16 %v6491, %v6489
        %v6508 = vld [vmem:[%s621] sm:$0xf]
        %v6509 = vld [vmem:[%s621 + $0x4] sm:$0xf]
        %v6510 = vld [vmem:[%s621 + $0x8] sm:$0xf]
        %v6511 = vld [vmem:[%s621 + $0xc] sm:$0xf]
        %v6512 = vld [vmem:[%s621 + $0x10] sm:$0xf]
        %v6513 = vld [vmem:[%s621 + $0x14] sm:$0xf]
        %v6514 = vld [vmem:[%s621 + $0x18] sm:$0xf]
        %v6515 = vld [vmem:[%s621 + $0x1c] sm:$0xf]
        %v6516 = vld [vmem:[%s621 + $0x20] sm:$0xf]
        %v6517 = vld [vmem:[%s621 + $0x24] sm:$0xf]
        %v6518 = vld [vmem:[%s621 + $0x28] sm:$0xf]
        %v6519 = vld [vmem:[%s621 + $0x2c] sm:$0xf]
        %v6520 = vld [vmem:[%s621 + $0x30] sm:$0xf]
        %v6521 = vld [vmem:[%s621 + $0x34] sm:$0xf]
        %v6522 = vld [vmem:[%s621 + $0x38] sm:$0xf]
        %v6523 = vld [vmem:[%s621 + $0x3c] sm:$0xf]
        %v6524 = vld [vmem:[%s621 + $0x40] sm:$0xf]
        %v6525 = vld [vmem:[%s621 + $0x44] sm:$0xf]
        %v6526 = vld [vmem:[%s621 + $0x48] sm:$0xf]
        %v6527 = vld [vmem:[%s621 + $0x4c] sm:$0xf]
        %v6528 = vld [vmem:[%s621 + $0x50] sm:$0xf]
        %v6529 = vld [vmem:[%s621 + $0x54] sm:$0xf]
        %v6530 = vld [vmem:[%s621 + $0x58] sm:$0xf]
        %v6531 = vld [vmem:[%s621 + $0x5c] sm:$0xf]
        %v6532 = vld [vmem:[%s621 + $0x60] sm:$0xf]
        %v6533 = vld [vmem:[%s621 + $0x64] sm:$0xf]
        %v6534 = vld [vmem:[%s621 + $0x68] sm:$0xf]
        %v6535 = vld [vmem:[%s621 + $0x6c] sm:$0xf]
        %v6536 = vld [vmem:[%s621 + $0x70] sm:$0xf]
        %v6537 = vld [vmem:[%s621 + $0x74] sm:$0xf]
        %v6538 = vld [vmem:[%s621 + $0x78] sm:$0xf]
        %v6539 = vld [vmem:[%s621 + $0x7c] sm:$0xf]
        %v6540 = vlaneseq
        %v6541 = vshrl.u32 %v6540, 7
        %v6542 = vsub.s32 4, %v6541
        %v6543 = vrot.slane %v771, %v6542
        %v6576 = vunpack.c.l.b16 %v6508
        %v6577 = vunpack.c.l.b16 %v6509
        %v6578 = vunpack.c.l.b16 %v6510
        %v6579 = vunpack.c.l.b16 %v6511
        %v6580 = vunpack.c.l.b16 %v6512
        %v6581 = vunpack.c.l.b16 %v6513
        %v6582 = vunpack.c.l.b16 %v6514
        %v6583 = vunpack.c.l.b16 %v6515
        %v6584 = vunpack.c.l.b16 %v6516
        %v6585 = vunpack.c.l.b16 %v6517
        %v6586 = vunpack.c.l.b16 %v6518
        %v6587 = vunpack.c.l.b16 %v6519
        %v6588 = vunpack.c.l.b16 %v6520
        %v6589 = vunpack.c.l.b16 %v6521
        %v6590 = vunpack.c.l.b16 %v6522
        %v6591 = vunpack.c.l.b16 %v6523
        %v6592 = vunpack.c.l.b16 %v6524
        %v6593 = vunpack.c.l.b16 %v6525
        %v6594 = vunpack.c.l.b16 %v6526
        %v6595 = vunpack.c.l.b16 %v6527
        %v6596 = vunpack.c.l.b16 %v6528
        %v6597 = vunpack.c.l.b16 %v6529
        %v6598 = vunpack.c.l.b16 %v6530
        %v6599 = vunpack.c.l.b16 %v6531
        %v6600 = vunpack.c.l.b16 %v6532
        %v6601 = vunpack.c.l.b16 %v6533
        %v6602 = vunpack.c.l.b16 %v6534
        %v6603 = vunpack.c.l.b16 %v6535
        %v6604 = vunpack.c.l.b16 %v6536
        %v6605 = vunpack.c.l.b16 %v6537
        %v6606 = vunpack.c.l.b16 %v6538
        %v6607 = vunpack.c.l.b16 %v6539
        %v6608 = vpack.c.b16 %v6577, %v6576
        %v6609 = vpack.c.b16 %v6579, %v6578
        %v6610 = vpack.c.b16 %v6581, %v6580
        %v6611 = vpack.c.b16 %v6583, %v6582
        %v6612 = vpack.c.b16 %v6585, %v6584
        %v6613 = vpack.c.b16 %v6587, %v6586
        %v6614 = vpack.c.b16 %v6589, %v6588
        %v6615 = vpack.c.b16 %v6591, %v6590
        %v6616 = vpack.c.b16 %v6593, %v6592
        %v6617 = vpack.c.b16 %v6595, %v6594
        %v6618 = vpack.c.b16 %v6597, %v6596
        %v6619 = vpack.c.b16 %v6599, %v6598
        %v6620 = vpack.c.b16 %v6601, %v6600
        %v6621 = vpack.c.b16 %v6603, %v6602
        %v6622 = vpack.c.b16 %v6605, %v6604
        %v6623 = vpack.c.b16 %v6607, %v6606
        %6640 = vmatprep.subr.bf16.mxu0 0
        %6641 = vmatpush1.bf16.msra.mxu0 %v6615
        %6642 = vmatprep.subr.bf16.mxu0 0
        %6643 = vmatpush1.bf16.msra.mxu0 %v6614
        %6644 = vmatprep.subr.bf16.mxu0 0
        %6645 = vmatpush1.bf16.msra.mxu0 %v6613
        %6646 = vmatprep.subr.bf16.mxu0 0
        %6647 = vmatpush1.bf16.msra.mxu0 %v6612
        %6648 = vmatprep.subr.bf16.mxu0 0
        %6649 = vmatpush1.bf16.msra.mxu0 %v6611
        %6650 = vmatprep.subr.bf16.mxu0 0
        %6651 = vmatpush1.bf16.msra.mxu0 %v6610
        %6652 = vmatprep.subr.bf16.mxu0 0
        %6653 = vmatpush1.bf16.msra.mxu0 %v6609
        %6654 = vmatprep.subr.bf16.mxu0 0
        %6655 = vmatpush1.bf16.msra.mxu0 %v6608
        %6656 = vmatprep.subr.bf16.mxu0 0
        %6657 = vmatpush2.bf16.msra.mxu0 %v6623
        %6658 = vmatprep.subr.bf16.mxu0 0
        %6659 = vmatpush2.bf16.msra.mxu0 %v6622
        %6660 = vmatprep.subr.bf16.mxu0 0
        %6661 = vmatpush2.bf16.msra.mxu0 %v6621
        %6662 = vmatprep.subr.bf16.mxu0 0
        %6663 = vmatpush2.bf16.msra.mxu0 %v6620
        %6664 = vmatprep.subr.bf16.mxu0 0
        %6665 = vmatpush2.bf16.msra.mxu0 %v6619
        %6666 = vmatprep.subr.bf16.mxu0 0
        %6667 = vmatpush2.bf16.msra.mxu0 %v6618
        %6668 = vmatprep.subr.bf16.mxu0 0
        %6669 = vmatpush2.bf16.msra.mxu0 %v6617
        %6670 = vmatprep.subr.bf16.mxu0 0
        %6671 = vmatpush2.bf16.msra.mxu0 %v6616
        %6672 = vmatprep.mubr.bf16.mxu0 %v6493
        %6673 = vmatmul.mubr.bf16.gmra.mxu0 %v6492
        %v6674 = vpop.f32.mrf.mxu0
        %v6675 = vadd.f32 %v6543, %v6674
        %v6676 = vpop.f32.mrf.mxu0
        %v6677 = vpop.f32.mrf.mxu0
        %v6678 = vadd.f32 %v6543, %v6677
        %v6679 = vpop.f32.mrf.mxu0
        %6680 = vmatprep.mubr.bf16.mxu0 %v6495
        %6681 = vmatmul.mubr.bf16.gmra.mxu0 %v6494
        %v6682 = vpop.f32.mrf.mxu0
        %v6683 = vadd.f32 %v6543, %v6682
        %v6684 = vpop.f32.mrf.mxu0
        %v6685 = vpop.f32.mrf.mxu0
        %v6686 = vadd.f32 %v6543, %v6685
        %v6687 = vpop.f32.mrf.mxu0
        %6688 = vmatprep.mubr.bf16.mxu0 %v6497
        %6689 = vmatmul.mubr.bf16.gmra.mxu0 %v6496
        %v6690 = vpop.f32.mrf.mxu0
        %v6691 = vadd.f32 %v6543, %v6690
        %v6692 = vpop.f32.mrf.mxu0
        %v6693 = vpop.f32.mrf.mxu0
        %v6694 = vadd.f32 %v6543, %v6693
        %v6695 = vpop.f32.mrf.mxu0
        %6696 = vmatprep.mubr.bf16.mxu0 %v6499
        %6697 = vmatmul.mubr.bf16.gmra.mxu0 %v6498
        %v6698 = vpop.f32.mrf.mxu0
        %v6699 = vadd.f32 %v6543, %v6698
        %v6700 = vpop.f32.mrf.mxu0
        %v6701 = vpop.f32.mrf.mxu0
        %v6702 = vadd.f32 %v6543, %v6701
        %v6703 = vpop.f32.mrf.mxu0
        %6704 = vmatprep.mubr.bf16.mxu0 %v6501
        %6705 = vmatmul.mubr.bf16.gmra.mxu0 %v6500
        %v6706 = vpop.f32.mrf.mxu0
        %v6707 = vadd.f32 %v6543, %v6706
        %v6708 = vpop.f32.mrf.mxu0
        %v6709 = vpop.f32.mrf.mxu0
        %v6710 = vadd.f32 %v6543, %v6709
        %v6711 = vpop.f32.mrf.mxu0
        %6712 = vmatprep.mubr.bf16.mxu0 %v6503
        %6713 = vmatmul.mubr.bf16.gmra.mxu0 %v6502
        %v6714 = vpop.f32.mrf.mxu0
        %v6715 = vadd.f32 %v6543, %v6714
        %v6716 = vpop.f32.mrf.mxu0
        %v6717 = vpop.f32.mrf.mxu0
        %v6718 = vadd.f32 %v6543, %v6717
        %v6719 = vpop.f32.mrf.mxu0
        %6720 = vmatprep.mubr.bf16.mxu0 %v6505
        %6721 = vmatmul.mubr.bf16.gmra.mxu0 %v6504
        %v6722 = vpop.f32.mrf.mxu0
        %v6723 = vadd.f32 %v6543, %v6722
        %v6724 = vpop.f32.mrf.mxu0
        %v6725 = vpop.f32.mrf.mxu0
        %v6726 = vadd.f32 %v6543, %v6725
        %v6727 = vpop.f32.mrf.mxu0
        %6728 = vmatprep.mubr.bf16.mxu0 %v6507
        %6729 = vmatmul.mubr.bf16.gmra.mxu0 %v6506
        %v6730 = vpop.f32.mrf.mxu0
        %v6731 = vadd.f32 %v6543, %v6730
        %v6732 = vpop.f32.mrf.mxu0
        %v6733 = vpop.f32.mrf.mxu0
        %v6734 = vadd.f32 %v6543, %v6733
        %v6735 = vpop.f32.mrf.mxu0
        %6736 = vdwg.mxu0
        %v6737 = vadd.f32 %v6675, %v6087
        %v6738 = vadd.f32 %v6678, %v6088
        %v6739 = vadd.f32 %v6683, %v6089
        %v6740 = vadd.f32 %v6686, %v6090
        %v6741 = vadd.f32 %v6691, %v6091
        %v6742 = vadd.f32 %v6694, %v6092
        %v6743 = vadd.f32 %v6699, %v6093
        %v6744 = vadd.f32 %v6702, %v6094
        %v6745 = vadd.f32 %v6707, %v6095
        %v6746 = vadd.f32 %v6710, %v6096
        %v6747 = vadd.f32 %v6715, %v6097
        %v6748 = vadd.f32 %v6718, %v6098
        %v6749 = vadd.f32 %v6723, %v6099
        %v6750 = vadd.f32 %v6726, %v6100
        %v6751 = vadd.f32 %v6731, %v6101
        %v6752 = vadd.f32 %v6734, %v6102
        %6753 = vadd.xlane.f32.xlu0 %v6737
        %v6754 = vpop.xlane.xlu0 %6753
        %6755 = vadd.xlane.f32.xlu0 %v6738
        %v6756 = vpop.xlane.xlu0 %6755
        %6757 = vadd.xlane.f32.xlu0 %v6739
        %v6758 = vpop.xlane.xlu0 %6757
        %6759 = vadd.xlane.f32.xlu0 %v6740
        %v6760 = vpop.xlane.xlu0 %6759
        %6761 = vadd.xlane.f32.xlu0 %v6741
        %v6762 = vpop.xlane.xlu0 %6761
        %6763 = vadd.xlane.f32.xlu0 %v6742
        %v6764 = vpop.xlane.xlu0 %6763
        %6765 = vadd.xlane.f32.xlu0 %v6743
        %v6766 = vpop.xlane.xlu0 %6765
        %6767 = vadd.xlane.f32.xlu0 %v6744
        %v6768 = vpop.xlane.xlu0 %6767
        %6769 = vadd.xlane.f32.xlu0 %v6745
        %v6770 = vpop.xlane.xlu0 %6769
        %6771 = vadd.xlane.f32.xlu0 %v6746
        %v6772 = vpop.xlane.xlu0 %6771
        %6773 = vadd.xlane.f32.xlu0 %v6747
        %v6774 = vpop.xlane.xlu0 %6773
        %6775 = vadd.xlane.f32.xlu0 %v6748
        %v6776 = vpop.xlane.xlu0 %6775
        %6777 = vadd.xlane.f32.xlu0 %v6749
        %v6778 = vpop.xlane.xlu0 %6777
        %6779 = vadd.xlane.f32.xlu0 %v6750
        %v6780 = vpop.xlane.xlu0 %6779
        %6781 = vadd.xlane.f32.xlu0 %v6751
        %v6782 = vpop.xlane.xlu0 %6781
        %6783 = vadd.xlane.f32.xlu0 %v6752
        %v6784 = vpop.xlane.xlu0 %6783
        %v6785 = vmul.f32 %v6754, %v5918
        %v6786 = vmul.f32 %v6756, %v5918
        %v6787 = vmul.f32 %v6758, %v5918
        %v6788 = vmul.f32 %v6760, %v5918
        %v6789 = vmul.f32 %v6762, %v5918
        %v6790 = vmul.f32 %v6764, %v5918
        %v6791 = vmul.f32 %v6766, %v5918
        %v6792 = vmul.f32 %v6768, %v5918
        %v6793 = vmul.f32 %v6770, %v5918
        %v6794 = vmul.f32 %v6772, %v5918
        %v6795 = vmul.f32 %v6774, %v5918
        %v6796 = vmul.f32 %v6776, %v5918
        %v6797 = vmul.f32 %v6778, %v5918
        %v6798 = vmul.f32 %v6780, %v5918
        %v6799 = vmul.f32 %v6782, %v5918
        %v6800 = vmul.f32 %v6784, %v5918
        %v6801 = vsub.f32 %v6737, %v6785
        %v6802 = vsub.f32 %v6738, %v6786
        %v6803 = vsub.f32 %v6739, %v6787
        %v6804 = vsub.f32 %v6740, %v6788
        %v6805 = vsub.f32 %v6741, %v6789
        %v6806 = vsub.f32 %v6742, %v6790
        %v6807 = vsub.f32 %v6743, %v6791
        %v6808 = vsub.f32 %v6744, %v6792
        %v6809 = vsub.f32 %v6745, %v6793
        %v6810 = vsub.f32 %v6746, %v6794
        %v6811 = vsub.f32 %v6747, %v6795
        %v6812 = vsub.f32 %v6748, %v6796
        %v6813 = vsub.f32 %v6749, %v6797
        %v6814 = vsub.f32 %v6750, %v6798
        %v6815 = vsub.f32 %v6751, %v6799
        %v6816 = vsub.f32 %v6752, %v6800
        %v6817 = vmul.f32 %v6801, %v6801
        %v6818 = vmul.f32 %v6802, %v6802
        %v6819 = vmul.f32 %v6803, %v6803
        %v6820 = vmul.f32 %v6804, %v6804
        %v6821 = vmul.f32 %v6805, %v6805
        %v6822 = vmul.f32 %v6806, %v6806
        %v6823 = vmul.f32 %v6807, %v6807
        %v6824 = vmul.f32 %v6808, %v6808
        %v6825 = vmul.f32 %v6809, %v6809
        %v6826 = vmul.f32 %v6810, %v6810
        %v6827 = vmul.f32 %v6811, %v6811
        %v6828 = vmul.f32 %v6812, %v6812
        %v6829 = vmul.f32 %v6813, %v6813
        %v6830 = vmul.f32 %v6814, %v6814
        %v6831 = vmul.f32 %v6815, %v6815
        %v6832 = vmul.f32 %v6816, %v6816
        %6833 = vadd.xlane.f32.xlu0 %v6817
        %v6834 = vpop.xlane.xlu0 %6833
        %6835 = vadd.xlane.f32.xlu0 %v6818
        %v6836 = vpop.xlane.xlu0 %6835
        %6837 = vadd.xlane.f32.xlu0 %v6819
        %v6838 = vpop.xlane.xlu0 %6837
        %6839 = vadd.xlane.f32.xlu0 %v6820
        %v6840 = vpop.xlane.xlu0 %6839
        %6841 = vadd.xlane.f32.xlu0 %v6821
        %v6842 = vpop.xlane.xlu0 %6841
        %6843 = vadd.xlane.f32.xlu0 %v6822
        %v6844 = vpop.xlane.xlu0 %6843
        %6845 = vadd.xlane.f32.xlu0 %v6823
        %v6846 = vpop.xlane.xlu0 %6845
        %6847 = vadd.xlane.f32.xlu0 %v6824
        %v6848 = vpop.xlane.xlu0 %6847
        %6849 = vadd.xlane.f32.xlu0 %v6825
        %v6850 = vpop.xlane.xlu0 %6849
        %6851 = vadd.xlane.f32.xlu0 %v6826
        %v6852 = vpop.xlane.xlu0 %6851
        %6853 = vadd.xlane.f32.xlu0 %v6827
        %v6854 = vpop.xlane.xlu0 %6853
        %6855 = vadd.xlane.f32.xlu0 %v6828
        %v6856 = vpop.xlane.xlu0 %6855
        %6857 = vadd.xlane.f32.xlu0 %v6829
        %v6858 = vpop.xlane.xlu0 %6857
        %6859 = vadd.xlane.f32.xlu0 %v6830
        %v6860 = vpop.xlane.xlu0 %6859
        %6861 = vadd.xlane.f32.xlu0 %v6831
        %v6862 = vpop.xlane.xlu0 %6861
        %6863 = vadd.xlane.f32.xlu0 %v6832
        %v6864 = vpop.xlane.xlu0 %6863
        %v6865 = vmul.f32 %v6834, %v5918
        %v6866 = vmul.f32 %v6836, %v5918
        %v6867 = vmul.f32 %v6838, %v5918
        %v6868 = vmul.f32 %v6840, %v5918
        %v6869 = vmul.f32 %v6842, %v5918
        %v6870 = vmul.f32 %v6844, %v5918
        %v6871 = vmul.f32 %v6846, %v5918
        %v6872 = vmul.f32 %v6848, %v5918
        %v6873 = vmul.f32 %v6850, %v5918
        %v6874 = vmul.f32 %v6852, %v5918
        %v6875 = vmul.f32 %v6854, %v5918
        %v6876 = vmul.f32 %v6856, %v5918
        %v6877 = vmul.f32 %v6858, %v5918
        %v6878 = vmul.f32 %v6860, %v5918
        %v6879 = vmul.f32 %v6862, %v5918
        %v6880 = vmul.f32 %v6864, %v5918
        %v6881 = vadd.f32 %v6865, 1e-05
        %v6882 = vadd.f32 %v6866, 1e-05
        %v6883 = vadd.f32 %v6867, 1e-05
        %v6884 = vadd.f32 %v6868, 1e-05
        %v6885 = vadd.f32 %v6869, 1e-05
        %v6886 = vadd.f32 %v6870, 1e-05
        %v6887 = vadd.f32 %v6871, 1e-05
        %v6888 = vadd.f32 %v6872, 1e-05
        %v6889 = vadd.f32 %v6873, 1e-05
        %v6890 = vadd.f32 %v6874, 1e-05
        %v6891 = vadd.f32 %v6875, 1e-05
        %v6892 = vadd.f32 %v6876, 1e-05
        %v6893 = vadd.f32 %v6877, 1e-05
        %v6894 = vadd.f32 %v6878, 1e-05
        %v6895 = vadd.f32 %v6879, 1e-05
        %v6896 = vadd.f32 %v6880, 1e-05
        %v6897 = vrsqrt.pop %v6881
        %v6898 = vrsqrt.pop %v6882
        %v6899 = vrsqrt.pop %v6883
        %v6900 = vrsqrt.pop %v6884
        %v6901 = vrsqrt.pop %v6885
        %v6902 = vrsqrt.pop %v6886
        %v6903 = vrsqrt.pop %v6887
        %v6904 = vrsqrt.pop %v6888
        %v6905 = vrsqrt.pop %v6889
        %v6906 = vrsqrt.pop %v6890
        %v6907 = vrsqrt.pop %v6891
        %v6908 = vrsqrt.pop %v6892
        %v6909 = vrsqrt.pop %v6893
        %v6910 = vrsqrt.pop %v6894
        %v6911 = vrsqrt.pop %v6895
        %v6912 = vrsqrt.pop %v6896
        %v6913 = vmul.f32 %v6801, %v6897
        %v6914 = vmul.f32 %v6802, %v6898
        %v6915 = vmul.f32 %v6803, %v6899
        %v6916 = vmul.f32 %v6804, %v6900
        %v6917 = vmul.f32 %v6805, %v6901
        %v6918 = vmul.f32 %v6806, %v6902
        %v6919 = vmul.f32 %v6807, %v6903
        %v6920 = vmul.f32 %v6808, %v6904
        %v6921 = vmul.f32 %v6809, %v6905
        %v6922 = vmul.f32 %v6810, %v6906
        %v6923 = vmul.f32 %v6811, %v6907
        %v6924 = vmul.f32 %v6812, %v6908
        %v6925 = vmul.f32 %v6813, %v6909
        %v6926 = vmul.f32 %v6814, %v6910
        %v6927 = vmul.f32 %v6815, %v6911
        %v6928 = vmul.f32 %v6816, %v6912
        %v6929 = vlaneseq
        %v6930 = vshrl.u32 %v6929, 7
        %v6931 = vsub.s32 7, %v6930
        %v6932 = vrot.slane %v771, %v6931
        %v6933 = vmul.f32 %v6913, %v6932
        %v6934 = vmul.f32 %v6914, %v6932
        %v6935 = vmul.f32 %v6915, %v6932
        %v6936 = vmul.f32 %v6916, %v6932
        %v6937 = vmul.f32 %v6917, %v6932
        %v6938 = vmul.f32 %v6918, %v6932
        %v6939 = vmul.f32 %v6919, %v6932
        %v6940 = vmul.f32 %v6920, %v6932
        %v6941 = vmul.f32 %v6921, %v6932
        %v6942 = vmul.f32 %v6922, %v6932
        %v6943 = vmul.f32 %v6923, %v6932
        %v6944 = vmul.f32 %v6924, %v6932
        %v6945 = vmul.f32 %v6925, %v6932
        %v6946 = vmul.f32 %v6926, %v6932
        %v6947 = vmul.f32 %v6927, %v6932
        %v6948 = vmul.f32 %v6928, %v6932
        %v6949 = vlaneseq
        %v6950 = vshrl.u32 %v6949, 7
        %v6951 = vsub.s32 0, %v6950
        %v6952 = vrot.slane %v772, %v6951
        %v6953 = vadd.f32 %v6933, %v6952
        %v6954 = vadd.f32 %v6934, %v6952
        %v6955 = vadd.f32 %v6935, %v6952
        %v6956 = vadd.f32 %v6936, %v6952
        %v6957 = vadd.f32 %v6937, %v6952
        %v6958 = vadd.f32 %v6938, %v6952
        %v6959 = vadd.f32 %v6939, %v6952
        %v6960 = vadd.f32 %v6940, %v6952
        %v6961 = vadd.f32 %v6941, %v6952
        %v6962 = vadd.f32 %v6942, %v6952
        %v6963 = vadd.f32 %v6943, %v6952
        %v6964 = vadd.f32 %v6944, %v6952
        %v6965 = vadd.f32 %v6945, %v6952
        %v6966 = vadd.f32 %v6946, %v6952
        %v6967 = vadd.f32 %v6947, %v6952
        %v6968 = vadd.f32 %v6948, %v6952
        %6969 = vst [vmem:[#allocation2] sm:$0xff] %v6953
        %6970 = vst [vmem:[#allocation2 + $0x8] sm:$0xff] %v6954
        %6971 = vst [vmem:[#allocation2 + $0x10] sm:$0xff] %v6955
        %6972 = vst [vmem:[#allocation2 + $0x18] sm:$0xff] %v6956
        %6973 = vst [vmem:[#allocation2 + $0x20] sm:$0xff] %v6957
        %6974 = vst [vmem:[#allocation2 + $0x28] sm:$0xff] %v6958
        %6975 = vst [vmem:[#allocation2 + $0x30] sm:$0xff] %v6959
        %6976 = vst [vmem:[#allocation2 + $0x38] sm:$0xff] %v6960
        %6977 = vst [vmem:[#allocation2 + $0x40] sm:$0xff] %v6961
        %6978 = vst [vmem:[#allocation2 + $0x48] sm:$0xff] %v6962
        %6979 = vst [vmem:[#allocation2 + $0x50] sm:$0xff] %v6963
        %6980 = vst [vmem:[#allocation2 + $0x58] sm:$0xff] %v6964
        %6981 = vst [vmem:[#allocation2 + $0x60] sm:$0xff] %v6965
        %6982 = vst [vmem:[#allocation2 + $0x68] sm:$0xff] %v6966
        %6983 = vst [vmem:[#allocation2 + $0x70] sm:$0xff] %v6967
        %6984 = vst [vmem:[#allocation2 + $0x78] sm:$0xff] %v6968
        %p6985 = scmp.eq.s32.totalorder %s44, 1
        // Predicated region
        $region101: #{tpu_custom_call.1} parent=59 // pred_check
          %p6986 = pneg %p6985
        $region102: #{tpu_custom_call.1} parent=59 // pred_check_branch
          %6988 = sbr.rel (%p6986) target = $region104
        $region103: #{tpu_custom_call.1} parent=59 // pred_region
          %6989 = vst [vmem:[%s710] sm:$0xff] %v6953
          %6990 = vst [vmem:[%s710 + $0x8] sm:$0xff] %v6954
          %6991 = vst [vmem:[%s710 + $0x10] sm:$0xff] %v6955
          %6992 = vst [vmem:[%s710 + $0x18] sm:$0xff] %v6956
          %6993 = vst [vmem:[%s710 + $0x20] sm:$0xff] %v6957
          %6994 = vst [vmem:[%s710 + $0x28] sm:$0xff] %v6958
          %6995 = vst [vmem:[%s710 + $0x30] sm:$0xff] %v6959
          %6996 = vst [vmem:[%s710 + $0x38] sm:$0xff] %v6960
          %6997 = vst [vmem:[%s710 + $0x40] sm:$0xff] %v6961
          %6998 = vst [vmem:[%s710 + $0x48] sm:$0xff] %v6962
          %6999 = vst [vmem:[%s710 + $0x50] sm:$0xff] %v6963
          %7000 = vst [vmem:[%s710 + $0x58] sm:$0xff] %v6964
          %7001 = vst [vmem:[%s710 + $0x60] sm:$0xff] %v6965
          %7002 = vst [vmem:[%s710 + $0x68] sm:$0xff] %v6966
          %7003 = vst [vmem:[%s710 + $0x70] sm:$0xff] %v6967
          %7004 = vst [vmem:[%s710 + $0x78] sm:$0xff] %v6968
        $region104: #{tpu_custom_call.1} parent=59 // pred_fallthru
          _
        %s7005 = sand.u32 %s319, 1
        %s7006 = scalar_lea.sflag [#allocation6], %s7005
        %s7007 = sand.u32 %s319, 1
        %s7008 = smul.addr %s7007, 128
        %s7009 = scalar_lea.vmem [#allocation19], %s7008
        // Predicated region
        $region105: #{tpu_custom_call.1} parent=59 // pred_check
          %p7010 = pneg %p329
        $region106: #{tpu_custom_call.1} parent=59 // pred_check_branch
          %7012 = sbr.rel (%p7010) target = $region108
        $region107: #{tpu_custom_call.1} parent=59 // pred_region
          %s7013 = smul.u32 16, %s43
          %s7015 = ssub.s32 2048, 2048
          %7016 = vsyncadd %s7006, %s7015
          %s7017 = smul.addr %s7013, 128
          %s7018 = scalar_lea.hbm %s10, %s7017
          %s7019 = sshll.u32 %s7009, 4
          %s7020 = int_to_ptr.vmem [resolvable:$true] %s7019
          %7025 = dma.vmem_to_hbm [thread:$0]  %s7020, 2048, %s7018, %s7006, 128, 128, 8
        $region108: #{tpu_custom_call.1} parent=59 // pred_fallthru
          _
      $region60: #{tpu_custom_call.1} parent=5 // pred_fallthru
        _
      %p7026 = scmp.le.s32.totalorder 2, %s34
      // Predicated region
      $region109: #{tpu_custom_call.1} parent=5 // pred_check
        %p7027 = pneg %p7026
      $region110: #{tpu_custom_call.1} parent=5 // pred_check_branch
        %7029 = sbr.rel (%p7027) target = $region112
      $region111: #{tpu_custom_call.1} parent=5 // pred_region
        %s7030 = ssub.s32 %s34, 2
        // Predicated region
        $region113: #{tpu_custom_call.1} parent=111 // pred_check
          %p7031 = pneg %p335
        $region114: #{tpu_custom_call.1} parent=111 // pred_check_branch
          %7033 = sbr.rel (%p7031) target = $region116
        $region115: #{tpu_custom_call.1} parent=111 // pred_region
          %s7034 = sand.u32 %s320, 1
          %s7035 = scalar_lea.sflag [#allocation6], %s7034
          %s7036 = sand.u32 %s320, 1
          %s7037 = smul.addr %s7036, 128
          %s7038 = scalar_lea.vmem [#allocation19], %s7037
          %7039 = dma.done %s7035, 2048
        $region116: #{tpu_custom_call.1} parent=111 // pred_fallthru
          _
      $region112: #{tpu_custom_call.1} parent=5 // pred_fallthru
        _
    $region6: #{tpu_custom_call.1} parent=1 // loop_footer
      %s38 = sadd.s32 1, %s34
    $region7: #{tpu_custom_call.1} parent=1 // loop_footer_branch
      %33 = sbr.rel target = $region3
    $region8: #{tpu_custom_call.1} parent=1 // loop_exit
      _
    %7040 = vsyncpa [#allocation5], 1
    %s7041 = scalar_lea.sflag [#allocation5], 1
    %7042 = vsyncpa %s7041, 1
    %7043 = vsyncpa [#allocation8], 1
    %s7044 = scalar_lea.sflag [#allocation8], 1
    %7045 = vsyncpa %s7044, 1
    %7046 = vsyncpa [#allocation11], 1
    %s7047 = scalar_lea.sflag [#allocation11], 1
    %7048 = vsyncpa %s7047, 1
    %7049 = vsyncpa [#allocation14], 1
    %s7050 = scalar_lea.sflag [#allocation14], 1
    %7051 = vsyncpa %s7050, 1
    %7052 = vsyncpa [#allocation17], 1
    %s7053 = scalar_lea.sflag [#allocation17], 1
    %7054 = vsyncpa %s7053, 1
    %7055 = vsyncpa [#allocation6], 1
    %s7056 = scalar_lea.sflag [#allocation6], 1
    %7057 = vsyncpa %s7056, 1

</llo_original>
